<compile_context>
chip_gen: v5e
topology: v5e:2x2
jax: 0.10.0
libtpu: 0.0.40
codegen_flags: <defaults>
</compile_context>

<pallas_src>
import functools

import jax
import jax.numpy as jnp
from jax.experimental import pallas as pl
from jax.experimental.pallas import tpu as pltpu

LRELU_SLOPE = 0.2
GN_EPS = 1e-5          # torch.nn.GroupNorm default eps
GN_GROUPS = 8          # GroupNorm(8, C) in the PyTorch module


def _round_up(x, m):
    return (x + m - 1) // m * m


# --------------------------------------------------------------------------
# Fused conv (+ bias + optional LeakyReLU): tap accumulation over a flattened,
# zero-padded NHWC sample.  One grid step == one batch sample.
# --------------------------------------------------------------------------
def _conv_tap_kernel(x_ref, w_ref, b_ref, o_ref, *, kq, wq, m_wide, leaky):
    acc = None
    for t in range(kq * kq):                              # static unroll over taps
        i, j = divmod(t, kq)
        slab = x_ref[0, pl.ds(i * wq + j, m_wide), :]     # (m_wide, Cin) bf16, contiguous
        part = jnp.dot(slab, w_ref[t], preferred_element_type=jnp.float32)
        acc = part if acc is None else acc + part
    acc = acc + b_ref[...]                                # (1, Cout) broadcast
    if leaky:
        acc = jnp.where(acc > 0, acc, LRELU_SLOPE * acc)
    o_ref[0] = acc.astype(o_ref.dtype)


def conv2d_pallas(x_nhwc, w_oihw, bias, *, stride, pad, leaky, out_dtype):
    """Conv2d(k=4, pad=1, stride 1|2).  w is PyTorch layout (Cout, Cin, KH, KW)."""
    n, h, w, cin = x_nhwc.shape
    cout, cin_w, kh, kw = w_oihw.shape
    assert cin_w == cin and kh == 4 and kw == 4 and pad == 1
    oh = (h + 2 * pad - kh) // stride + 1
    ow = (w + 2 * pad - kw) // stride + 1

    x_bf = x_nhwc.astype(jnp.bfloat16)
    xp = jnp.pad(x_bf, ((0, 0), (pad, pad), (pad, pad), (0, 0)))

    if stride == 2:
        # Space-to-depth: the 4x4/s2 conv becomes an exact 2x2/s1 conv over 4*Cin chans,
        # so every in-kernel tap slice is unit-stride (no strided VMEM gathers).
        hp, wp = h + 2 * pad, w + 2 * pad
        assert hp % 2 == 0 and wp % 2 == 0  # TODO(synk): odd spatial sizes for stride-2
        hq, wq = hp // 2, wp // 2
        xq = xp.reshape(n, hq, 2, wq, 2, cin)
        xq = jnp.transpose(xq, (0, 1, 3, 2, 4, 5)).reshape(n, hq, wq, 4 * cin)
        kq, cin_eq = 2, 4 * cin
        wt = jnp.transpose(w_oihw, (2, 3, 1, 0)).reshape(2, 2, 2, 2, cin, cout)
        wt = jnp.transpose(wt, (0, 2, 1, 3, 4, 5)).reshape(kq * kq, cin_eq, cout)
    else:
        hq, wq = h + 2 * pad, w + 2 * pad
        xq, kq, cin_eq = xp, 4, cin
        wt = jnp.transpose(w_oihw, (2, 3, 1, 0)).reshape(kq * kq, cin_eq, cout)

    assert oh == hq - kq + 1 and ow == wq - kq + 1

    # "Wide" output trick: compute oh * wq rows (columns >= ow are wrapped garbage,
    # sliced off in the wrapper) so each tap reads a contiguous flat row range.
    m_wide = oh * wq
    r = _round_up(hq * wq + kq - 1, 8)            # extra rows so the last tap never OOBs
    x_flat = jnp.pad(xq.reshape(n, hq * wq, cin_eq),
                     ((0, 0), (0, r - hq * wq), (0, 0)))

    # Lane-dense Cout only where needed (first conv / final 1-channel conv).
    cout_p = cout if cout % 128 == 0 else _round_up(cout, 128)
    wt = jnp.pad(wt.astype(jnp.bfloat16), ((0, 0), (0, 0), (0, cout_p - cout)))
    if bias is None:
        b = jnp.zeros((1, cout_p), jnp.float32)
    else:
        b = jnp.pad(bias.astype(jnp.float32), (0, cout_p - cout)).reshape(1, cout_p)

    out_b = 2 if out_dtype == jnp.bfloat16 else 4
    cost = pl.CostEstimate(
        flops=2 * n * m_wide * cin_eq * cout_p * kq * kq,
        transcendentals=0,
        bytes_accessed=n * r * cin_eq * 2 + kq * kq * cin_eq * cout_p * 2
                       + n * m_wide * cout_p * out_b)

    out = pl.pallas_call(
        functools.partial(_conv_tap_kernel, kq=kq, wq=wq, m_wide=m_wide, leaky=leaky),
        out_shape=jax.ShapeDtypeStruct((n, m_wide, cout_p), out_dtype),
        grid=(n,),
        in_specs=[
            pl.BlockSpec((1, r, cin_eq), lambda i: (i, 0, 0)),
            pl.BlockSpec((kq * kq, cin_eq, cout_p), lambda i: (0, 0, 0)),  # resident
            pl.BlockSpec((1, cout_p), lambda i: (0, 0)),                   # resident
        ],
        out_specs=pl.BlockSpec((1, m_wide, cout_p), lambda i: (i, 0, 0)),
        compiler_params=pltpu.CompilerParams(dimension_semantics=("parallel",)),
        cost_estimate=cost,
    )(x_flat, wt, b)

    return out.reshape(n, oh, wq, cout_p)[:, :, :ow, :cout]


# --------------------------------------------------------------------------
# GroupNorm(8, C) + LeakyReLU: HW-tiled two-pass (stats accumulate, normalize)
# --------------------------------------------------------------------------
def _gn_stats_kernel(x_ref, s_ref):
    @pl.when(pl.program_id(1) == 0)
    def _init():
        s_ref[...] = jnp.zeros_like(s_ref)

    xf = x_ref[0].astype(jnp.float32)                       # (THW, C)
    s1 = jnp.sum(xf, axis=0, keepdims=True)                 # (1, C)
    s2 = jnp.sum(xf * xf, axis=0, keepdims=True)            # (1, C)
    s_ref[0] += jnp.concatenate([s1, s2], axis=0)           # (2, C) accumulator in o_ref


def _gn_norm_lrelu_kernel(x_ref, scale_ref, shift_ref, o_ref):
    y = x_ref[0].astype(jnp.float32) * scale_ref[0] + shift_ref[0]
    o_ref[0] = jnp.where(y > 0, y, LRELU_SLOPE * y).astype(o_ref.dtype)


def groupnorm_lrelu_pallas(x_nhwc, gamma, beta, *, groups=GN_GROUPS, eps=GN_EPS,
                           out_dtype=jnp.bfloat16):
    n, h, w, c = x_nhwc.shape
    hw = h * w
    cg = c // groups
    thw = min(2048, _round_up(hw, 8))
    hw_p = _round_up(hw, thw)
    nt = hw_p // thw
    x2 = jnp.pad(x_nhwc.reshape(n, hw, c), ((0, 0), (0, hw_p - hw), (0, 0)))
    in_b = x2.dtype.itemsize

    stats = pl.pallas_call(
        _gn_stats_kernel,
        out_shape=jax.ShapeDtypeStruct((n, 2, c), jnp.float32),
        grid=(n, nt),
        in_specs=[pl.BlockSpec((1, thw, c), lambda i, t: (i, t, 0))],
        out_specs=pl.BlockSpec((1, 2, c), lambda i, t: (i, 0, 0)),
        compiler_params=pltpu.CompilerParams(
            dimension_semantics=("parallel", "arbitrary")),
        cost_estimate=pl.CostEstimate(flops=3 * n * hw_p * c, transcendentals=0,
                                      bytes_accessed=n * hw_p * c * in_b + n * 2 * c * 4),
    )(x2)

    # Tiny (N, C)-sized group pooling + affine folding in plain XLA.
    count = float(hw * cg)
    gsum = stats[:, 0, :].reshape(n, groups, cg).sum(-1)     # (N, G)
    gsq = stats[:, 1, :].reshape(n, groups, cg).sum(-1)
    mean = gsum / count
    var = jnp.maximum(gsq / count - mean * mean, 0.0)        # clamp before rsqrt
    inv = jax.lax.rsqrt(var + eps)
    mean_c = jnp.repeat(mean, cg, axis=1)                    # (N, C)
    inv_c = jnp.repeat(inv, cg, axis=1)
    scale = (inv_c * gamma[None, :]).reshape(n, 1, c).astype(jnp.float32)
    shift = (beta[None, :] - mean_c * inv_c * gamma[None, :]).reshape(n, 1, c).astype(jnp.float32)

    out_b = 2 if out_dtype == jnp.bfloat16 else 4
    y = pl.pallas_call(
        _gn_norm_lrelu_kernel,
        out_shape=jax.ShapeDtypeStruct((n, hw_p, c), out_dtype),
        grid=(n, nt),
        in_specs=[
            pl.BlockSpec((1, thw, c), lambda i, t: (i, t, 0)),
            pl.BlockSpec((1, 1, c), lambda i, t: (i, 0, 0)),
            pl.BlockSpec((1, 1, c), lambda i, t: (i, 0, 0)),
        ],
        out_specs=pl.BlockSpec((1, thw, c), lambda i, t: (i, t, 0)),
        compiler_params=pltpu.CompilerParams(
            dimension_semantics=("parallel", "parallel")),
        cost_estimate=pl.CostEstimate(flops=4 * n * hw_p * c, transcendentals=0,
                                      bytes_accessed=n * hw_p * c * (in_b + out_b)),
    )(x2, scale, shift)

    return y[:, :hw, :].reshape(n, h, w, c)


# --------------------------------------------------------------------------
# Model: parameter construction mirrors Discriminator.__init__
# --------------------------------------------------------------------------
def build_discriminator_params(key, input_nc=3, ndf=16, n_layers=3):
    keys = iter(jax.random.split(key, 4 * (n_layers + 2)))

    def rnd(shape, scale):
        return scale * jax.random.normal(next(keys), shape, jnp.float32)

    layers = []
    # Conv2d(input_nc, ndf, 4, stride=2, padding=1) + LeakyReLU(0.2)
    layers.append(dict(w=rnd((ndf, input_nc, 4, 4), 0.02),
                       b=rnd((ndf,), 0.1), stride=2, gn=None))
    nf_mult = 1
    for n in range(1, n_layers):
        nf_prev, nf_mult = nf_mult, min(2 ** n, 8)
        cout = ndf * nf_mult
        layers.append(dict(w=rnd((cout, ndf * nf_prev, 4, 4), 0.02),
                           b=None, stride=2,
                           gn=(1.0 + rnd((cout,), 0.1), rnd((cout,), 0.1))))
    nf_prev, nf_mult = nf_mult, min(2 ** n_layers, 8)
    cout = ndf * nf_mult
    layers.append(dict(w=rnd((cout, ndf * nf_prev, 4, 4), 0.02),
                       b=None, stride=1,
                       gn=(1.0 + rnd((cout,), 0.1), rnd((cout,), 0.1))))
    # Conv2d(ndf*nf_mult, 1, 4, stride=1, padding=1)  (with bias, no activation)
    layers.append(dict(w=rnd((1, cout, 4, 4), 0.02),
                       b=rnd((1,), 0.1), stride=1, gn=None))
    return layers


def discriminator_forward(x_nchw, layers):
    x = jnp.transpose(x_nchw, (0, 2, 3, 1))               # NCHW -> NHWC (once)
    last = len(layers) - 1
    for idx, lyr in enumerate(layers):
        out_dtype = jnp.float32 if idx == last else jnp.bfloat16
        leaky = (lyr["gn"] is None) and (idx != last)      # first conv fuses LReLU
        x = conv2d_pallas(x, lyr["w"], lyr["b"], stride=lyr["stride"], pad=1,
                          leaky=leaky, out_dtype=out_dtype)
        if lyr["gn"] is not None:
            gamma, beta = lyr["gn"]
            x = groupnorm_lrelu_pallas(x, gamma, beta, out_dtype=jnp.bfloat16)
    return jnp.transpose(x, (0, 3, 1, 2))                  # NHWC -> NCHW


# --------------------------------------------------------------------------
# Pure-JAX reference (bf16 operands / bf16 inter-layer activations mirrored,
# f32 accumulation)
# --------------------------------------------------------------------------
def ref_forward(x_nchw, layers):
    x = x_nchw
    last = len(layers) - 1
    for idx, lyr in enumerate(layers):
        y = jax.lax.conv_general_dilated(
            x.astype(jnp.bfloat16), lyr["w"].astype(jnp.bfloat16),
            (lyr["stride"],) * 2, [(1, 1), (1, 1)],
            dimension_numbers=("NCHW", "OIHW", "NCHW"),
            preferred_element_type=jnp.float32)
        if lyr["b"] is not None:
            y = y + lyr["b"][None, :, None, None]
        if lyr["gn"] is not None:
            y = y.astype(jnp.bfloat16).astype(jnp.float32)   # mirror conv bf16 emit
            gamma, beta = lyr["gn"]
            nb, cb, hb, wb = y.shape
            yg = y.reshape(nb, GN_GROUPS, cb // GN_GROUPS, hb, wb)
            mean = yg.mean(axis=(2, 3, 4), keepdims=True)
            var = ((yg - mean) ** 2).mean(axis=(2, 3, 4), keepdims=True)
            yg = (yg - mean) * jax.lax.rsqrt(var + GN_EPS)
            y = yg.reshape(nb, cb, hb, wb) * gamma[None, :, None, None] + beta[None, :, None, None]
            y = jnp.where(y > 0, y, LRELU_SLOPE * y)
            y = y.astype(jnp.bfloat16)                        # mirror GN bf16 emit
        elif idx != last:
            y = jnp.where(y > 0, y, LRELU_SLOPE * y)
            y = y.astype(jnp.bfloat16)                        # mirror conv bf16 emit
        x = y
    return x.astype(jnp.float32)


if __name__ == "__main__":
    key = jax.random.PRNGKey(0)
    kp, kx = jax.random.split(key)

    # small but structurally faithful config: input_nc=3, ndf=16, n_layers=3
    layers = build_discriminator_params(kp, input_nc=3, ndf=16, n_layers=3)
    x = jax.random.normal(kx, (2, 3, 32, 32), jnp.float32)   # NCHW, like PyTorch

    fwd = jax.jit(lambda inp: discriminator_forward(inp, layers))
    y = jax.block_until_ready(fwd(x))

    assert y.shape == (2, 1, 2, 2), y.shape

    y_ref = ref_forward(x, layers)
    max_diff = float(jnp.max(jnp.abs(y - y_ref)))
    assert max_diff < 5e-3, f"mismatch vs reference: {max_diff}"

    print("KERNEL_OK")
</pallas_src>

<mosaic_0001>
module attributes {stable_mosaic.version = 11 : i64} {
  func.func @_conv_tap_kernel(%arg0: i32, %arg1: memref<1x296x12xbf16, #tpu.memory_space<vmem>>, %arg2: memref<4x12x128xbf16, #tpu.memory_space<vmem>>, %arg3: memref<1x128xf32, #tpu.memory_space<vmem>>, %arg4: memref<1x272x128xbf16, #tpu.memory_space<vmem>>) attributes {dimension_semantics = [#tpu.dimension_semantics<parallel>], iteration_bounds = array<i64: 2>, scalar_prefetch = 0 : i64, scratch_operands = 0 : i64, tpu.core_type = #tpu.core_type<tc>, window_params = [{transform_indices = @transform_0, window_bounds = array<i64: 1, 296, 12>}, {pipeline_mode = #tpu.pipeline_mode<synchronous>, transform_indices = @transform_1, window_bounds = array<i64: 4, 12, 128>}, {pipeline_mode = #tpu.pipeline_mode<synchronous>, transform_indices = @transform_2, window_bounds = array<i64: 1, 128>}, {transform_indices = @transform_3, window_bounds = array<i64: 1, 272, 128>}]} {
    %c0 = arith.constant 0 : index
    %c0_0 = arith.constant 0 : index
    %c0_1 = arith.constant 0 : index
    %0 = vector.load %arg1[%c0, %c0_0, %c0_1] : memref<1x296x12xbf16, #tpu.memory_space<vmem>>, vector<1x272x12xbf16>
    %1 = vector.shape_cast %0 : vector<1x272x12xbf16> to vector<272x12xbf16>
    %c0_2 = arith.constant 0 : index
    %c0_3 = arith.constant 0 : index
    %c0_4 = arith.constant 0 : index
    %2 = vector.load %arg2[%c0_2, %c0_3, %c0_4] : memref<4x12x128xbf16, #tpu.memory_space<vmem>>, vector<1x12x128xbf16>
    %3 = vector.shape_cast %2 : vector<1x12x128xbf16> to vector<12x128xbf16>
    %cst = arith.constant dense<0.000000e+00> : vector<272x128xf32>
    %4 = tpu.matmul %1, %3, %cst {dimension_numbers = #tpu.dot_dimension_numbers<[1], [0], [0], [1], [0, 0, 1, 1], [], []>} : vector<272x12xbf16>, vector<12x128xbf16>, vector<272x128xf32> -> vector<272x128xf32>
    %c0_5 = arith.constant 0 : index
    %c1 = arith.constant 1 : index
    %c0_6 = arith.constant 0 : index
    %5 = vector.load %arg1[%c0_5, %c1, %c0_6] : memref<1x296x12xbf16, #tpu.memory_space<vmem>>, vector<1x272x12xbf16>
    %6 = vector.shape_cast %5 : vector<1x272x12xbf16> to vector<272x12xbf16>
    %c1_7 = arith.constant 1 : index
    %c0_8 = arith.constant 0 : index
    %c0_9 = arith.constant 0 : index
    %7 = vector.load %arg2[%c1_7, %c0_8, %c0_9] : memref<4x12x128xbf16, #tpu.memory_space<vmem>>, vector<1x12x128xbf16>
    %8 = vector.shape_cast %7 : vector<1x12x128xbf16> to vector<12x128xbf16>
    %cst_10 = arith.constant dense<0.000000e+00> : vector<272x128xf32>
    %9 = tpu.matmul %6, %8, %cst_10 {dimension_numbers = #tpu.dot_dimension_numbers<[1], [0], [0], [1], [0, 0, 1, 1], [], []>} : vector<272x12xbf16>, vector<12x128xbf16>, vector<272x128xf32> -> vector<272x128xf32>
    %10 = arith.addf %4, %9 : vector<272x128xf32>
    %c0_11 = arith.constant 0 : index
    %c17 = arith.constant 17 : index
    %c0_12 = arith.constant 0 : index
    %11 = vector.load %arg1[%c0_11, %c17, %c0_12] : memref<1x296x12xbf16, #tpu.memory_space<vmem>>, vector<1x272x12xbf16>
    %12 = vector.shape_cast %11 : vector<1x272x12xbf16> to vector<272x12xbf16>
    %c2 = arith.constant 2 : index
    %c0_13 = arith.constant 0 : index
    %c0_14 = arith.constant 0 : index
    %13 = vector.load %arg2[%c2, %c0_13, %c0_14] : memref<4x12x128xbf16, #tpu.memory_space<vmem>>, vector<1x12x128xbf16>
    %14 = vector.shape_cast %13 : vector<1x12x128xbf16> to vector<12x128xbf16>
    %cst_15 = arith.constant dense<0.000000e+00> : vector<272x128xf32>
    %15 = tpu.matmul %12, %14, %cst_15 {dimension_numbers = #tpu.dot_dimension_numbers<[1], [0], [0], [1], [0, 0, 1, 1], [], []>} : vector<272x12xbf16>, vector<12x128xbf16>, vector<272x128xf32> -> vector<272x128xf32>
    %16 = arith.addf %10, %15 : vector<272x128xf32>
    %c0_16 = arith.constant 0 : index
    %c18 = arith.constant 18 : index
    %c0_17 = arith.constant 0 : index
    %17 = vector.load %arg1[%c0_16, %c18, %c0_17] : memref<1x296x12xbf16, #tpu.memory_space<vmem>>, vector<1x272x12xbf16>
    %18 = vector.shape_cast %17 : vector<1x272x12xbf16> to vector<272x12xbf16>
    %c3 = arith.constant 3 : index
    %c0_18 = arith.constant 0 : index
    %c0_19 = arith.constant 0 : index
    %19 = vector.load %arg2[%c3, %c0_18, %c0_19] : memref<4x12x128xbf16, #tpu.memory_space<vmem>>, vector<1x12x128xbf16>
    %20 = vector.shape_cast %19 : vector<1x12x128xbf16> to vector<12x128xbf16>
    %cst_20 = arith.constant dense<0.000000e+00> : vector<272x128xf32>
    %21 = tpu.matmul %18, %20, %cst_20 {dimension_numbers = #tpu.dot_dimension_numbers<[1], [0], [0], [1], [0, 0, 1, 1], [], []>} : vector<272x12xbf16>, vector<12x128xbf16>, vector<272x128xf32> -> vector<272x128xf32>
    %22 = arith.addf %16, %21 : vector<272x128xf32>
    %c0_21 = arith.constant 0 : index
    %c0_22 = arith.constant 0 : index
    %23 = vector.load %arg3[%c0_21, %c0_22] : memref<1x128xf32, #tpu.memory_space<vmem>>, vector<1x128xf32>
    %24 = vector.broadcast %23 : vector<1x128xf32> to vector<272x128xf32>
    %25 = arith.addf %22, %24 : vector<272x128xf32>
    %cst_23 = arith.constant 0.000000e+00 : f32
    %26 = vector.broadcast %cst_23 : f32 to vector<272x128xf32>
    %27 = arith.cmpf ogt, %25, %26 : vector<272x128xf32>
    %cst_24 = arith.constant 2.000000e-01 : f32
    %28 = vector.broadcast %cst_24 : f32 to vector<272x128xf32>
    %29 = arith.mulf %28, %25 : vector<272x128xf32>
    %30 = arith.select %27, %25, %29 : vector<272x128xi1>, vector<272x128xf32>
    %31 = arith.truncf %30 : vector<272x128xf32> to vector<272x128xbf16>
    %c0_25 = arith.constant 0 : index
    %c0_26 = arith.constant 0 : index
    %c0_27 = arith.constant 0 : index
    %32 = vector.load %arg4[%c0_25, %c0_26, %c0_27] : memref<1x272x128xbf16, #tpu.memory_space<vmem>>, vector<1x272x128xbf16>
    %33 = vector.shape_cast %32 : vector<1x272x128xbf16> to vector<272x128xbf16>
    %34 = vector.shape_cast %31 : vector<272x128xbf16> to vector<1x272x128xbf16>
    tpu.vector_store %arg4[%c0_25, %c0_26, %c0_27], %34 {strides = array<i32>} : memref<1x272x128xbf16, #tpu.memory_space<vmem>>, vector<1x272x128xbf16>,
    return
  }
  func.func @transform_0(%arg0: i32) -> (i32, i32, i32) {
    %c0_i32 = arith.constant 0 : i32
    %c0_i32_0 = arith.constant 0 : i32
    %c0_i32_1 = arith.constant 0 : i32
    return %arg0, %c0_i32, %c0_i32_0 : i32, i32, i32
  }
  func.func @transform_1(%arg0: i32) -> (i32, i32, i32) {
    %c0_i32 = arith.constant 0 : i32
    %c0_i32_0 = arith.constant 0 : i32
    %c0_i32_1 = arith.constant 0 : i32
    %c0_i32_2 = arith.constant 0 : i32
    return %c0_i32, %c0_i32_0, %c0_i32_1 : i32, i32, i32
  }
  func.func @transform_2(%arg0: i32) -> (i32, i32) {
    %c0_i32 = arith.constant 0 : i32
    %c0_i32_0 = arith.constant 0 : i32
    %c0_i32_1 = arith.constant 0 : i32
    return %c0_i32, %c0_i32_0 : i32, i32
  }
  func.func @transform_3(%arg0: i32) -> (i32, i32, i32) {
    %c0_i32 = arith.constant 0 : i32
    %c0_i32_0 = arith.constant 0 : i32
    %c0_i32_1 = arith.constant 0 : i32
    return %arg0, %c0_i32, %c0_i32_0 : i32, i32, i32
  }
}

module attributes {stable_mosaic.version = 11 : i64} {
  func.func @_conv_tap_kernel(%arg0: i32, %arg1: memref<1x88x64xbf16, #tpu.memory_space<vmem>>, %arg2: memref<4x64x128xbf16, #tpu.memory_space<vmem>>, %arg3: memref<1x128xf32, #tpu.memory_space<vmem>>, %arg4: memref<1x72x128xbf16, #tpu.memory_space<vmem>>) attributes {dimension_semantics = [#tpu.dimension_semantics<parallel>], iteration_bounds = array<i64: 2>, scalar_prefetch = 0 : i64, scratch_operands = 0 : i64, tpu.core_type = #tpu.core_type<tc>, window_params = [{transform_indices = @transform_0, window_bounds = array<i64: 1, 88, 64>}, {pipeline_mode = #tpu.pipeline_mode<synchronous>, transform_indices = @transform_1, window_bounds = array<i64: 4, 64, 128>}, {pipeline_mode = #tpu.pipeline_mode<synchronous>, transform_indices = @transform_2, window_bounds = array<i64: 1, 128>}, {transform_indices = @transform_3, window_bounds = array<i64: 1, 72, 128>}]} {
    %c0 = arith.constant 0 : index
    %c0_0 = arith.constant 0 : index
    %c0_1 = arith.constant 0 : index
    %0 = vector.load %arg1[%c0, %c0_0, %c0_1] : memref<1x88x64xbf16, #tpu.memory_space<vmem>>, vector<1x72x64xbf16>
    %1 = vector.shape_cast %0 : vector<1x72x64xbf16> to vector<72x64xbf16>
    %c0_2 = arith.constant 0 : index
    %c0_3 = arith.constant 0 : index
    %c0_4 = arith.constant 0 : index
    %2 = vector.load %arg2[%c0_2, %c0_3, %c0_4] : memref<4x64x128xbf16, #tpu.memory_space<vmem>>, vector<1x64x128xbf16>
    %3 = vector.shape_cast %2 : vector<1x64x128xbf16> to vector<64x128xbf16>
    %cst = arith.constant dense<0.000000e+00> : vector<72x128xf32>
    %4 = tpu.matmul %1, %3, %cst {dimension_numbers = #tpu.dot_dimension_numbers<[1], [0], [0], [1], [0, 0, 1, 1], [], []>} : vector<72x64xbf16>, vector<64x128xbf16>, vector<72x128xf32> -> vector<72x128xf32>
    %c0_5 = arith.constant 0 : index
    %c1 = arith.constant 1 : index
    %c0_6 = arith.constant 0 : index
    %5 = vector.load %arg1[%c0_5, %c1, %c0_6] : memref<1x88x64xbf16, #tpu.memory_space<vmem>>, vector<1x72x64xbf16>
    %6 = vector.shape_cast %5 : vector<1x72x64xbf16> to vector<72x64xbf16>
    %c1_7 = arith.constant 1 : index
    %c0_8 = arith.constant 0 : index
    %c0_9 = arith.constant 0 : index
    %7 = vector.load %arg2[%c1_7, %c0_8, %c0_9] : memref<4x64x128xbf16, #tpu.memory_space<vmem>>, vector<1x64x128xbf16>
    %8 = vector.shape_cast %7 : vector<1x64x128xbf16> to vector<64x128xbf16>
    %cst_10 = arith.constant dense<0.000000e+00> : vector<72x128xf32>
    %9 = tpu.matmul %6, %8, %cst_10 {dimension_numbers = #tpu.dot_dimension_numbers<[1], [0], [0], [1], [0, 0, 1, 1], [], []>} : vector<72x64xbf16>, vector<64x128xbf16>, vector<72x128xf32> -> vector<72x128xf32>
    %10 = arith.addf %4, %9 : vector<72x128xf32>
    %c0_11 = arith.constant 0 : index
    %c9 = arith.constant 9 : index
    %c0_12 = arith.constant 0 : index
    %11 = vector.load %arg1[%c0_11, %c9, %c0_12] : memref<1x88x64xbf16, #tpu.memory_space<vmem>>, vector<1x72x64xbf16>
    %12 = vector.shape_cast %11 : vector<1x72x64xbf16> to vector<72x64xbf16>
    %c2 = arith.constant 2 : index
    %c0_13 = arith.constant 0 : index
    %c0_14 = arith.constant 0 : index
    %13 = vector.load %arg2[%c2, %c0_13, %c0_14] : memref<4x64x128xbf16, #tpu.memory_space<vmem>>, vector<1x64x128xbf16>
    %14 = vector.shape_cast %13 : vector<1x64x128xbf16> to vector<64x128xbf16>
    %cst_15 = arith.constant dense<0.000000e+00> : vector<72x128xf32>
    %15 = tpu.matmul %12, %14, %cst_15 {dimension_numbers = #tpu.dot_dimension_numbers<[1], [0], [0], [1], [0, 0, 1, 1], [], []>} : vector<72x64xbf16>, vector<64x128xbf16>, vector<72x128xf32> -> vector<72x128xf32>
    %16 = arith.addf %10, %15 : vector<72x128xf32>
    %c0_16 = arith.constant 0 : index
    %c10 = arith.constant 10 : index
    %c0_17 = arith.constant 0 : index
    %17 = vector.load %arg1[%c0_16, %c10, %c0_17] : memref<1x88x64xbf16, #tpu.memory_space<vmem>>, vector<1x72x64xbf16>
    %18 = vector.shape_cast %17 : vector<1x72x64xbf16> to vector<72x64xbf16>
    %c3 = arith.constant 3 : index
    %c0_18 = arith.constant 0 : index
    %c0_19 = arith.constant 0 : index
    %19 = vector.load %arg2[%c3, %c0_18, %c0_19] : memref<4x64x128xbf16, #tpu.memory_space<vmem>>, vector<1x64x128xbf16>
    %20 = vector.shape_cast %19 : vector<1x64x128xbf16> to vector<64x128xbf16>
    %cst_20 = arith.constant dense<0.000000e+00> : vector<72x128xf32>
    %21 = tpu.matmul %18, %20, %cst_20 {dimension_numbers = #tpu.dot_dimension_numbers<[1], [0], [0], [1], [0, 0, 1, 1], [], []>} : vector<72x64xbf16>, vector<64x128xbf16>, vector<72x128xf32> -> vector<72x128xf32>
    %22 = arith.addf %16, %21 : vector<72x128xf32>
    %c0_21 = arith.constant 0 : index
    %c0_22 = arith.constant 0 : index
    %23 = vector.load %arg3[%c0_21, %c0_22] : memref<1x128xf32, #tpu.memory_space<vmem>>, vector<1x128xf32>
    %24 = vector.broadcast %23 : vector<1x128xf32> to vector<72x128xf32>
    %25 = arith.addf %22, %24 : vector<72x128xf32>
    %26 = arith.truncf %25 : vector<72x128xf32> to vector<72x128xbf16>
    %c0_23 = arith.constant 0 : index
    %c0_24 = arith.constant 0 : index
    %c0_25 = arith.constant 0 : index
    %27 = vector.load %arg4[%c0_23, %c0_24, %c0_25] : memref<1x72x128xbf16, #tpu.memory_space<vmem>>, vector<1x72x128xbf16>
    %28 = vector.shape_cast %27 : vector<1x72x128xbf16> to vector<72x128xbf16>
    %29 = vector.shape_cast %26 : vector<72x128xbf16> to vector<1x72x128xbf16>
    tpu.vector_store %arg4[%c0_23, %c0_24, %c0_25], %29 {strides = array<i32>} : memref<1x72x128xbf16, #tpu.memory_space<vmem>>, vector<1x72x128xbf16>,
    return
  }
  func.func @transform_0(%arg0: i32) -> (i32, i32, i32) {
    %c0_i32 = arith.constant 0 : i32
    %c0_i32_0 = arith.constant 0 : i32
    %c0_i32_1 = arith.constant 0 : i32
    return %arg0, %c0_i32, %c0_i32_0 : i32, i32, i32
  }
  func.func @transform_1(%arg0: i32) -> (i32, i32, i32) {
    %c0_i32 = arith.constant 0 : i32
    %c0_i32_0 = arith.constant 0 : i32
    %c0_i32_1 = arith.constant 0 : i32
    %c0_i32_2 = arith.constant 0 : i32
    return %c0_i32, %c0_i32_0, %c0_i32_1 : i32, i32, i32
  }
  func.func @transform_2(%arg0: i32) -> (i32, i32) {
    %c0_i32 = arith.constant 0 : i32
    %c0_i32_0 = arith.constant 0 : i32
    %c0_i32_1 = arith.constant 0 : i32
    return %c0_i32, %c0_i32_0 : i32, i32
  }
  func.func @transform_3(%arg0: i32) -> (i32, i32, i32) {
    %c0_i32 = arith.constant 0 : i32
    %c0_i32_0 = arith.constant 0 : i32
    %c0_i32_1 = arith.constant 0 : i32
    return %arg0, %c0_i32, %c0_i32_0 : i32, i32, i32
  }
}

module attributes {stable_mosaic.version = 11 : i64} {
  func.func @_gn_norm_lrelu_kernel(%arg0: i32, %arg1: i32, %arg2: memref<1x64x32xbf16, #tpu.memory_space<vmem>>, %arg3: memref<1x1x32xf32, #tpu.memory_space<vmem>>, %arg4: memref<1x1x32xf32, #tpu.memory_space<vmem>>, %arg5: memref<1x64x32xbf16, #tpu.memory_space<vmem>>) attributes {dimension_semantics = [#tpu.dimension_semantics<parallel>, #tpu.dimension_semantics<parallel>], iteration_bounds = array<i64: 2, 1>, scalar_prefetch = 0 : i64, scratch_operands = 0 : i64, tpu.core_type = #tpu.core_type<tc>, window_params = [{transform_indices = @transform_0, window_bounds = array<i64: 1, 64, 32>}, {transform_indices = @transform_1, window_bounds = array<i64: 1, 1, 32>}, {transform_indices = @transform_2, window_bounds = array<i64: 1, 1, 32>}, {transform_indices = @transform_3, window_bounds = array<i64: 1, 64, 32>}]} {
    %c0 = arith.constant 0 : index
    %c0_0 = arith.constant 0 : index
    %c0_1 = arith.constant 0 : index
    %0 = vector.load %arg2[%c0, %c0_0, %c0_1] : memref<1x64x32xbf16, #tpu.memory_space<vmem>>, vector<1x64x32xbf16>
    %1 = vector.shape_cast %0 : vector<1x64x32xbf16> to vector<64x32xbf16>
    %2 = arith.extf %1 : vector<64x32xbf16> to vector<64x32xf32>
    %c0_2 = arith.constant 0 : index
    %c0_3 = arith.constant 0 : index
    %c0_4 = arith.constant 0 : index
    %3 = vector.load %arg3[%c0_2, %c0_3, %c0_4] : memref<1x1x32xf32, #tpu.memory_space<vmem>>, vector<1x1x32xf32>
    %4 = vector.shape_cast %3 : vector<1x1x32xf32> to vector<1x32xf32>
    %5 = vector.broadcast %4 : vector<1x32xf32> to vector<64x32xf32>
    %6 = arith.mulf %2, %5 : vector<64x32xf32>
    %c0_5 = arith.constant 0 : index
    %c0_6 = arith.constant 0 : index
    %c0_7 = arith.constant 0 : index
    %7 = vector.load %arg4[%c0_5, %c0_6, %c0_7] : memref<1x1x32xf32, #tpu.memory_space<vmem>>, vector<1x1x32xf32>
    %8 = vector.shape_cast %7 : vector<1x1x32xf32> to vector<1x32xf32>
    %9 = vector.broadcast %8 : vector<1x32xf32> to vector<64x32xf32>
    %10 = arith.addf %6, %9 : vector<64x32xf32>
    %cst = arith.constant 0.000000e+00 : f32
    %11 = vector.broadcast %cst : f32 to vector<64x32xf32>
    %12 = arith.cmpf ogt, %10, %11 : vector<64x32xf32>
    %cst_8 = arith.constant 2.000000e-01 : f32
    %13 = vector.broadcast %cst_8 : f32 to vector<64x32xf32>
    %14 = arith.mulf %13, %10 : vector<64x32xf32>
    %15 = arith.select %12, %10, %14 : vector<64x32xi1>, vector<64x32xf32>
    %16 = arith.truncf %15 : vector<64x32xf32> to vector<64x32xbf16>
    %c0_9 = arith.constant 0 : index
    %c0_10 = arith.constant 0 : index
    %c0_11 = arith.constant 0 : index
    %17 = vector.load %arg5[%c0_9, %c0_10, %c0_11] : memref<1x64x32xbf16, #tpu.memory_space<vmem>>, vector<1x64x32xbf16>
    %18 = vector.shape_cast %17 : vector<1x64x32xbf16> to vector<64x32xbf16>
    %19 = vector.shape_cast %16 : vector<64x32xbf16> to vector<1x64x32xbf16>
    tpu.vector_store %arg5[%c0_9, %c0_10, %c0_11], %19 {strides = array<i32>} : memref<1x64x32xbf16, #tpu.memory_space<vmem>>, vector<1x64x32xbf16>,
    return
  }
  func.func @transform_0(%arg0: i32, %arg1: i32) -> (i32, i32, i32) {
    %c0_i32 = arith.constant 0 : i32
    %c0_i32_0 = arith.constant 0 : i32
    return %arg0, %arg1, %c0_i32 : i32, i32, i32
  }
  func.func @transform_1(%arg0: i32, %arg1: i32) -> (i32, i32, i32) {
    %c0_i32 = arith.constant 0 : i32
    %c0_i32_0 = arith.constant 0 : i32
    %c0_i32_1 = arith.constant 0 : i32
    return %arg0, %c0_i32, %c0_i32_0 : i32, i32, i32
  }
  func.func @transform_2(%arg0: i32, %arg1: i32) -> (i32, i32, i32) {
    %c0_i32 = arith.constant 0 : i32
    %c0_i32_0 = arith.constant 0 : i32
    %c0_i32_1 = arith.constant 0 : i32
    return %arg0, %c0_i32, %c0_i32_0 : i32, i32, i32
  }
  func.func @transform_3(%arg0: i32, %arg1: i32) -> (i32, i32, i32) {
    %c0_i32 = arith.constant 0 : i32
    %c0_i32_0 = arith.constant 0 : i32
    return %arg0, %arg1, %c0_i32 : i32, i32, i32
  }
}

module attributes {stable_mosaic.version = 11 : i64} {
  func.func @_gn_stats_kernel(%arg0: i32, %arg1: i32, %arg2: memref<1x64x32xbf16, #tpu.memory_space<vmem>>, %arg3: memref<1x2x32xf32, #tpu.memory_space<vmem>>) attributes {dimension_semantics = [#tpu.dimension_semantics<parallel>, #tpu.dimension_semantics<arbitrary>], iteration_bounds = array<i64: 2, 1>, scalar_prefetch = 0 : i64, scratch_operands = 0 : i64, tpu.core_type = #tpu.core_type<tc>, window_params = [{transform_indices = @transform_0, window_bounds = array<i64: 1, 64, 32>}, {transform_indices = @transform_1, window_bounds = array<i64: 1, 2, 32>}]} {
    %c0_i32 = arith.constant 0 : i32
    %0 = arith.cmpi eq, %arg1, %c0_i32 : i32
    %1 = arith.extui %0 : i1 to i32
    %c0_i32_0 = arith.constant 0 : i32
    %2 = arith.cmpi ne, %1, %c0_i32_0 : i32
    scf.if %2 {
      %cst_10 = arith.constant 0.000000e+00 : f32
      %18 = vector.broadcast %cst_10 : f32 to vector<1x2x32xf32>
      %c0_11 = arith.constant 0 : index
      %c0_12 = arith.constant 0 : index
      %c0_13 = arith.constant 0 : index
      %19 = vector.load %arg3[%c0_11, %c0_12, %c0_13] : memref<1x2x32xf32, #tpu.memory_space<vmem>>, vector<1x2x32xf32>
      tpu.vector_store %arg3[%c0_11, %c0_12, %c0_13], %18 {strides = array<i32>} : memref<1x2x32xf32, #tpu.memory_space<vmem>>, vector<1x2x32xf32>,
    } else {
    }
    %c0 = arith.constant 0 : index
    %c0_1 = arith.constant 0 : index
    %c0_2 = arith.constant 0 : index
    %3 = vector.load %arg2[%c0, %c0_1, %c0_2] : memref<1x64x32xbf16, #tpu.memory_space<vmem>>, vector<1x64x32xbf16>
    %4 = vector.shape_cast %3 : vector<1x64x32xbf16> to vector<64x32xbf16>
    %5 = arith.extf %4 : vector<64x32xbf16> to vector<64x32xf32>
    %cst = arith.constant dense<0.000000e+00> : vector<32xf32>
    %6 = vector.multi_reduction <add>, %5, %cst [0] : vector<64x32xf32> to vector<32xf32>
    %7 = vector.shape_cast %6 : vector<32xf32> to vector<1x32xf32>
    %8 = arith.mulf %5, %5 : vector<64x32xf32>
    %cst_3 = arith.constant dense<0.000000e+00> : vector<32xf32>
    %9 = vector.multi_reduction <add>, %8, %cst_3 [0] : vector<64x32xf32> to vector<32xf32>
    %10 = vector.shape_cast %9 : vector<32xf32> to vector<1x32xf32>
    %c0_4 = arith.constant 0 : index
    %c0_5 = arith.constant 0 : index
    %c0_6 = arith.constant 0 : index
    %11 = vector.load %arg3[%c0_4, %c0_5, %c0_6] : memref<1x2x32xf32, #tpu.memory_space<vmem>>, vector<1x2x32xf32>
    %12 = vector.shape_cast %11 : vector<1x2x32xf32> to vector<2x32xf32>
    %13 = tpu.concatenate %7, %10 in 0 : vector<1x32xf32>, vector<1x32xf32> -> vector<2x32xf32>
    %14 = arith.addf %12, %13 : vector<2x32xf32>
    %c0_7 = arith.constant 0 : index
    %c0_8 = arith.constant 0 : index
    %c0_9 = arith.constant 0 : index
    %15 = vector.load %arg3[%c0_7, %c0_8, %c0_9] : memref<1x2x32xf32, #tpu.memory_space<vmem>>, vector<1x2x32xf32>
    %16 = vector.shape_cast %15 : vector<1x2x32xf32> to vector<2x32xf32>
    %17 = vector.shape_cast %14 : vector<2x32xf32> to vector<1x2x32xf32>
    tpu.vector_store %arg3[%c0_7, %c0_8, %c0_9], %17 {strides = array<i32>} : memref<1x2x32xf32, #tpu.memory_space<vmem>>, vector<1x2x32xf32>,
    return
  }
  func.func @transform_0(%arg0: i32, %arg1: i32) -> (i32, i32, i32) {
    %c0_i32 = arith.constant 0 : i32
    %c0_i32_0 = arith.constant 0 : i32
    return %arg0, %arg1, %c0_i32 : i32, i32, i32
  }
  func.func @transform_1(%arg0: i32, %arg1: i32) -> (i32, i32, i32) {
    %c0_i32 = arith.constant 0 : i32
    %c0_i32_0 = arith.constant 0 : i32
    %c0_i32_1 = arith.constant 0 : i32
    return %arg0, %c0_i32, %c0_i32_0 : i32, i32, i32
  }
}

module attributes {stable_mosaic.version = 11 : i64} {
  func.func @_conv_tap_kernel(%arg0: i32, %arg1: memref<1x32x128xbf16, #tpu.memory_space<vmem>>, %arg2: memref<4x128x128xbf16, #tpu.memory_space<vmem>>, %arg3: memref<1x128xf32, #tpu.memory_space<vmem>>, %arg4: memref<1x20x128xbf16, #tpu.memory_space<vmem>>) attributes {dimension_semantics = [#tpu.dimension_semantics<parallel>], iteration_bounds = array<i64: 2>, scalar_prefetch = 0 : i64, scratch_operands = 0 : i64, tpu.core_type = #tpu.core_type<tc>, window_params = [{transform_indices = @transform_0, window_bounds = array<i64: 1, 32, 128>}, {pipeline_mode = #tpu.pipeline_mode<synchronous>, transform_indices = @transform_1, window_bounds = array<i64: 4, 128, 128>}, {pipeline_mode = #tpu.pipeline_mode<synchronous>, transform_indices = @transform_2, window_bounds = array<i64: 1, 128>}, {transform_indices = @transform_3, window_bounds = array<i64: 1, 20, 128>}]} {
    %c0 = arith.constant 0 : index
    %c0_0 = arith.constant 0 : index
    %c0_1 = arith.constant 0 : index
    %0 = vector.load %arg1[%c0, %c0_0, %c0_1] : memref<1x32x128xbf16, #tpu.memory_space<vmem>>, vector<1x20x128xbf16>
    %1 = vector.shape_cast %0 : vector<1x20x128xbf16> to vector<20x128xbf16>
    %c0_2 = arith.constant 0 : index
    %c0_3 = arith.constant 0 : index
    %c0_4 = arith.constant 0 : index
    %2 = vector.load %arg2[%c0_2, %c0_3, %c0_4] : memref<4x128x128xbf16, #tpu.memory_space<vmem>>, vector<1x128x128xbf16>
    %3 = vector.shape_cast %2 : vector<1x128x128xbf16> to vector<128x128xbf16>
    %cst = arith.constant dense<0.000000e+00> : vector<20x128xf32>
    %4 = tpu.matmul %1, %3, %cst {dimension_numbers = #tpu.dot_dimension_numbers<[1], [0], [0], [1], [0, 0, 1, 1], [], []>} : vector<20x128xbf16>, vector<128x128xbf16>, vector<20x128xf32> -> vector<20x128xf32>
    %c0_5 = arith.constant 0 : index
    %c1 = arith.constant 1 : index
    %c0_6 = arith.constant 0 : index
    %5 = vector.load %arg1[%c0_5, %c1, %c0_6] : memref<1x32x128xbf16, #tpu.memory_space<vmem>>, vector<1x20x128xbf16>
    %6 = vector.shape_cast %5 : vector<1x20x128xbf16> to vector<20x128xbf16>
    %c1_7 = arith.constant 1 : index
    %c0_8 = arith.constant 0 : index
    %c0_9 = arith.constant 0 : index
    %7 = vector.load %arg2[%c1_7, %c0_8, %c0_9] : memref<4x128x128xbf16, #tpu.memory_space<vmem>>, vector<1x128x128xbf16>
    %8 = vector.shape_cast %7 : vector<1x128x128xbf16> to vector<128x128xbf16>
    %cst_10 = arith.constant dense<0.000000e+00> : vector<20x128xf32>
    %9 = tpu.matmul %6, %8, %cst_10 {dimension_numbers = #tpu.dot_dimension_numbers<[1], [0], [0], [1], [0, 0, 1, 1], [], []>} : vector<20x128xbf16>, vector<128x128xbf16>, vector<20x128xf32> -> vector<20x128xf32>
    %10 = arith.addf %4, %9 : vector<20x128xf32>
    %c0_11 = arith.constant 0 : index
    %c5 = arith.constant 5 : index
    %c0_12 = arith.constant 0 : index
    %11 = vector.load %arg1[%c0_11, %c5, %c0_12] : memref<1x32x128xbf16, #tpu.memory_space<vmem>>, vector<1x20x128xbf16>
    %12 = vector.shape_cast %11 : vector<1x20x128xbf16> to vector<20x128xbf16>
    %c2 = arith.constant 2 : index
    %c0_13 = arith.constant 0 : index
    %c0_14 = arith.constant 0 : index
    %13 = vector.load %arg2[%c2, %c0_13, %c0_14] : memref<4x128x128xbf16, #tpu.memory_space<vmem>>, vector<1x128x128xbf16>
    %14 = vector.shape_cast %13 : vector<1x128x128xbf16> to vector<128x128xbf16>
    %cst_15 = arith.constant dense<0.000000e+00> : vector<20x128xf32>
    %15 = tpu.matmul %12, %14, %cst_15 {dimension_numbers = #tpu.dot_dimension_numbers<[1], [0], [0], [1], [0, 0, 1, 1], [], []>} : vector<20x128xbf16>, vector<128x128xbf16>, vector<20x128xf32> -> vector<20x128xf32>
    %16 = arith.addf %10, %15 : vector<20x128xf32>
    %c0_16 = arith.constant 0 : index
    %c6 = arith.constant 6 : index
    %c0_17 = arith.constant 0 : index
    %17 = vector.load %arg1[%c0_16, %c6, %c0_17] : memref<1x32x128xbf16, #tpu.memory_space<vmem>>, vector<1x20x128xbf16>
    %18 = vector.shape_cast %17 : vector<1x20x128xbf16> to vector<20x128xbf16>
    %c3 = arith.constant 3 : index
    %c0_18 = arith.constant 0 : index
    %c0_19 = arith.constant 0 : index
    %19 = vector.load %arg2[%c3, %c0_18, %c0_19] : memref<4x128x128xbf16, #tpu.memory_space<vmem>>, vector<1x128x128xbf16>
    %20 = vector.shape_cast %19 : vector<1x128x128xbf16> to vector<128x128xbf16>
    %cst_20 = arith.constant dense<0.000000e+00> : vector<20x128xf32>
    %21 = tpu.matmul %18, %20, %cst_20 {dimension_numbers = #tpu.dot_dimension_numbers<[1], [0], [0], [1], [0, 0, 1, 1], [], []>} : vector<20x128xbf16>, vector<128x128xbf16>, vector<20x128xf32> -> vector<20x128xf32>
    %22 = arith.addf %16, %21 : vector<20x128xf32>
    %c0_21 = arith.constant 0 : index
    %c0_22 = arith.constant 0 : index
    %23 = vector.load %arg3[%c0_21, %c0_22] : memref<1x128xf32, #tpu.memory_space<vmem>>, vector<1x128xf32>
    %24 = vector.broadcast %23 : vector<1x128xf32> to vector<20x128xf32>
    %25 = arith.addf %22, %24 : vector<20x128xf32>
    %26 = arith.truncf %25 : vector<20x128xf32> to vector<20x128xbf16>
    %c0_23 = arith.constant 0 : index
    %c0_24 = arith.constant 0 : index
    %c0_25 = arith.constant 0 : index
    %27 = vector.load %arg4[%c0_23, %c0_24, %c0_25] : memref<1x20x128xbf16, #tpu.memory_space<vmem>>, vector<1x20x128xbf16>
    %28 = vector.shape_cast %27 : vector<1x20x128xbf16> to vector<20x128xbf16>
    %29 = vector.shape_cast %26 : vector<20x128xbf16> to vector<1x20x128xbf16>
    tpu.vector_store %arg4[%c0_23, %c0_24, %c0_25], %29 {strides = array<i32>} : memref<1x20x128xbf16, #tpu.memory_space<vmem>>, vector<1x20x128xbf16>,
    return
  }
  func.func @transform_0(%arg0: i32) -> (i32, i32, i32) {
    %c0_i32 = arith.constant 0 : i32
    %c0_i32_0 = arith.constant 0 : i32
    %c0_i32_1 = arith.constant 0 : i32
    return %arg0, %c0_i32, %c0_i32_0 : i32, i32, i32
  }
  func.func @transform_1(%arg0: i32) -> (i32, i32, i32) {
    %c0_i32 = arith.constant 0 : i32
    %c0_i32_0 = arith.constant 0 : i32
    %c0_i32_1 = arith.constant 0 : i32
    %c0_i32_2 = arith.constant 0 : i32
    return %c0_i32, %c0_i32_0, %c0_i32_1 : i32, i32, i32
  }
  func.func @transform_2(%arg0: i32) -> (i32, i32) {
    %c0_i32 = arith.constant 0 : i32
    %c0_i32_0 = arith.constant 0 : i32
    %c0_i32_1 = arith.constant 0 : i32
    return %c0_i32, %c0_i32_0 : i32, i32
  }
  func.func @transform_3(%arg0: i32) -> (i32, i32, i32) {
    %c0_i32 = arith.constant 0 : i32
    %c0_i32_0 = arith.constant 0 : i32
    %c0_i32_1 = arith.constant 0 : i32
    return %arg0, %c0_i32, %c0_i32_0 : i32, i32, i32
  }
}

module attributes {stable_mosaic.version = 11 : i64} {
  func.func @_gn_stats_kernel(%arg0: i32, %arg1: i32, %arg2: memref<1x16x64xbf16, #tpu.memory_space<vmem>>, %arg3: memref<1x2x64xf32, #tpu.memory_space<vmem>>) attributes {dimension_semantics = [#tpu.dimension_semantics<parallel>, #tpu.dimension_semantics<arbitrary>], iteration_bounds = array<i64: 2, 1>, scalar_prefetch = 0 : i64, scratch_operands = 0 : i64, tpu.core_type = #tpu.core_type<tc>, window_params = [{transform_indices = @transform_0, window_bounds = array<i64: 1, 16, 64>}, {transform_indices = @transform_1, window_bounds = array<i64: 1, 2, 64>}]} {
    %c0_i32 = arith.constant 0 : i32
    %0 = arith.cmpi eq, %arg1, %c0_i32 : i32
    %1 = arith.extui %0 : i1 to i32
    %c0_i32_0 = arith.constant 0 : i32
    %2 = arith.cmpi ne, %1, %c0_i32_0 : i32
    scf.if %2 {
      %cst_10 = arith.constant 0.000000e+00 : f32
      %18 = vector.broadcast %cst_10 : f32 to vector<1x2x64xf32>
      %c0_11 = arith.constant 0 : index
      %c0_12 = arith.constant 0 : index
      %c0_13 = arith.constant 0 : index
      %19 = vector.load %arg3[%c0_11, %c0_12, %c0_13] : memref<1x2x64xf32, #tpu.memory_space<vmem>>, vector<1x2x64xf32>
      tpu.vector_store %arg3[%c0_11, %c0_12, %c0_13], %18 {strides = array<i32>} : memref<1x2x64xf32, #tpu.memory_space<vmem>>, vector<1x2x64xf32>,
    } else {
    }
    %c0 = arith.constant 0 : index
    %c0_1 = arith.constant 0 : index
    %c0_2 = arith.constant 0 : index
    %3 = vector.load %arg2[%c0, %c0_1, %c0_2] : memref<1x16x64xbf16, #tpu.memory_space<vmem>>, vector<1x16x64xbf16>
    %4 = vector.shape_cast %3 : vector<1x16x64xbf16> to vector<16x64xbf16>
    %5 = arith.extf %4 : vector<16x64xbf16> to vector<16x64xf32>
    %cst = arith.constant dense<0.000000e+00> : vector<64xf32>
    %6 = vector.multi_reduction <add>, %5, %cst [0] : vector<16x64xf32> to vector<64xf32>
    %7 = vector.shape_cast %6 : vector<64xf32> to vector<1x64xf32>
    %8 = arith.mulf %5, %5 : vector<16x64xf32>
    %cst_3 = arith.constant dense<0.000000e+00> : vector<64xf32>
    %9 = vector.multi_reduction <add>, %8, %cst_3 [0] : vector<16x64xf32> to vector<64xf32>
    %10 = vector.shape_cast %9 : vector<64xf32> to vector<1x64xf32>
    %c0_4 = arith.constant 0 : index
    %c0_5 = arith.constant 0 : index
    %c0_6 = arith.constant 0 : index
    %11 = vector.load %arg3[%c0_4, %c0_5, %c0_6] : memref<1x2x64xf32, #tpu.memory_space<vmem>>, vector<1x2x64xf32>
    %12 = vector.shape_cast %11 : vector<1x2x64xf32> to vector<2x64xf32>
    %13 = tpu.concatenate %7, %10 in 0 : vector<1x64xf32>, vector<1x64xf32> -> vector<2x64xf32>
    %14 = arith.addf %12, %13 : vector<2x64xf32>
    %c0_7 = arith.constant 0 : index
    %c0_8 = arith.constant 0 : index
    %c0_9 = arith.constant 0 : index
    %15 = vector.load %arg3[%c0_7, %c0_8, %c0_9] : memref<1x2x64xf32, #tpu.memory_space<vmem>>, vector<1x2x64xf32>
    %16 = vector.shape_cast %15 : vector<1x2x64xf32> to vector<2x64xf32>
    %17 = vector.shape_cast %14 : vector<2x64xf32> to vector<1x2x64xf32>
    tpu.vector_store %arg3[%c0_7, %c0_8, %c0_9], %17 {strides = array<i32>} : memref<1x2x64xf32, #tpu.memory_space<vmem>>, vector<1x2x64xf32>,
    return
  }
  func.func @transform_0(%arg0: i32, %arg1: i32) -> (i32, i32, i32) {
    %c0_i32 = arith.constant 0 : i32
    %c0_i32_0 = arith.constant 0 : i32
    return %arg0, %arg1, %c0_i32 : i32, i32, i32
  }
  func.func @transform_1(%arg0: i32, %arg1: i32) -> (i32, i32, i32) {
    %c0_i32 = arith.constant 0 : i32
    %c0_i32_0 = arith.constant 0 : i32
    %c0_i32_1 = arith.constant 0 : i32
    return %arg0, %c0_i32, %c0_i32_0 : i32, i32, i32
  }
}

module attributes {stable_mosaic.version = 11 : i64} {
  func.func @_gn_norm_lrelu_kernel(%arg0: i32, %arg1: i32, %arg2: memref<1x16x64xbf16, #tpu.memory_space<vmem>>, %arg3: memref<1x1x64xf32, #tpu.memory_space<vmem>>, %arg4: memref<1x1x64xf32, #tpu.memory_space<vmem>>, %arg5: memref<1x16x64xbf16, #tpu.memory_space<vmem>>) attributes {dimension_semantics = [#tpu.dimension_semantics<parallel>, #tpu.dimension_semantics<parallel>], iteration_bounds = array<i64: 2, 1>, scalar_prefetch = 0 : i64, scratch_operands = 0 : i64, tpu.core_type = #tpu.core_type<tc>, window_params = [{transform_indices = @transform_0, window_bounds = array<i64: 1, 16, 64>}, {transform_indices = @transform_1, window_bounds = array<i64: 1, 1, 64>}, {transform_indices = @transform_2, window_bounds = array<i64: 1, 1, 64>}, {transform_indices = @transform_3, window_bounds = array<i64: 1, 16, 64>}]} {
    %c0 = arith.constant 0 : index
    %c0_0 = arith.constant 0 : index
    %c0_1 = arith.constant 0 : index
    %0 = vector.load %arg2[%c0, %c0_0, %c0_1] : memref<1x16x64xbf16, #tpu.memory_space<vmem>>, vector<1x16x64xbf16>
    %1 = vector.shape_cast %0 : vector<1x16x64xbf16> to vector<16x64xbf16>
    %2 = arith.extf %1 : vector<16x64xbf16> to vector<16x64xf32>
    %c0_2 = arith.constant 0 : index
    %c0_3 = arith.constant 0 : index
    %c0_4 = arith.constant 0 : index
    %3 = vector.load %arg3[%c0_2, %c0_3, %c0_4] : memref<1x1x64xf32, #tpu.memory_space<vmem>>, vector<1x1x64xf32>
    %4 = vector.shape_cast %3 : vector<1x1x64xf32> to vector<1x64xf32>
    %5 = vector.broadcast %4 : vector<1x64xf32> to vector<16x64xf32>
    %6 = arith.mulf %2, %5 : vector<16x64xf32>
    %c0_5 = arith.constant 0 : index
    %c0_6 = arith.constant 0 : index
    %c0_7 = arith.constant 0 : index
    %7 = vector.load %arg4[%c0_5, %c0_6, %c0_7] : memref<1x1x64xf32, #tpu.memory_space<vmem>>, vector<1x1x64xf32>
    %8 = vector.shape_cast %7 : vector<1x1x64xf32> to vector<1x64xf32>
    %9 = vector.broadcast %8 : vector<1x64xf32> to vector<16x64xf32>
    %10 = arith.addf %6, %9 : vector<16x64xf32>
    %cst = arith.constant 0.000000e+00 : f32
    %11 = vector.broadcast %cst : f32 to vector<16x64xf32>
    %12 = arith.cmpf ogt, %10, %11 : vector<16x64xf32>
    %cst_8 = arith.constant 2.000000e-01 : f32
    %13 = vector.broadcast %cst_8 : f32 to vector<16x64xf32>
    %14 = arith.mulf %13, %10 : vector<16x64xf32>
    %15 = arith.select %12, %10, %14 : vector<16x64xi1>, vector<16x64xf32>
    %16 = arith.truncf %15 : vector<16x64xf32> to vector<16x64xbf16>
    %c0_9 = arith.constant 0 : index
    %c0_10 = arith.constant 0 : index
    %c0_11 = arith.constant 0 : index
    %17 = vector.load %arg5[%c0_9, %c0_10, %c0_11] : memref<1x16x64xbf16, #tpu.memory_space<vmem>>, vector<1x16x64xbf16>
    %18 = vector.shape_cast %17 : vector<1x16x64xbf16> to vector<16x64xbf16>
    %19 = vector.shape_cast %16 : vector<16x64xbf16> to vector<1x16x64xbf16>
    tpu.vector_store %arg5[%c0_9, %c0_10, %c0_11], %19 {strides = array<i32>} : memref<1x16x64xbf16, #tpu.memory_space<vmem>>, vector<1x16x64xbf16>,
    return
  }
  func.func @transform_0(%arg0: i32, %arg1: i32) -> (i32, i32, i32) {
    %c0_i32 = arith.constant 0 : i32
    %c0_i32_0 = arith.constant 0 : i32
    return %arg0, %arg1, %c0_i32 : i32, i32, i32
  }
  func.func @transform_1(%arg0: i32, %arg1: i32) -> (i32, i32, i32) {
    %c0_i32 = arith.constant 0 : i32
    %c0_i32_0 = arith.constant 0 : i32
    %c0_i32_1 = arith.constant 0 : i32
    return %arg0, %c0_i32, %c0_i32_0 : i32, i32, i32
  }
  func.func @transform_2(%arg0: i32, %arg1: i32) -> (i32, i32, i32) {
    %c0_i32 = arith.constant 0 : i32
    %c0_i32_0 = arith.constant 0 : i32
    %c0_i32_1 = arith.constant 0 : i32
    return %arg0, %c0_i32, %c0_i32_0 : i32, i32, i32
  }
  func.func @transform_3(%arg0: i32, %arg1: i32) -> (i32, i32, i32) {
    %c0_i32 = arith.constant 0 : i32
    %c0_i32_0 = arith.constant 0 : i32
    return %arg0, %arg1, %c0_i32 : i32, i32, i32
  }
}

module attributes {stable_mosaic.version = 11 : i64} {
  func.func @_gn_stats_kernel(%arg0: i32, %arg1: i32, %arg2: memref<1x16x128xbf16, #tpu.memory_space<vmem>>, %arg3: memref<1x2x128xf32, #tpu.memory_space<vmem>>) attributes {dimension_semantics = [#tpu.dimension_semantics<parallel>, #tpu.dimension_semantics<arbitrary>], iteration_bounds = array<i64: 2, 1>, scalar_prefetch = 0 : i64, scratch_operands = 0 : i64, tpu.core_type = #tpu.core_type<tc>, window_params = [{transform_indices = @transform_0, window_bounds = array<i64: 1, 16, 128>}, {transform_indices = @transform_1, window_bounds = array<i64: 1, 2, 128>}]} {
    %c0_i32 = arith.constant 0 : i32
    %0 = arith.cmpi eq, %arg1, %c0_i32 : i32
    %1 = arith.extui %0 : i1 to i32
    %c0_i32_0 = arith.constant 0 : i32
    %2 = arith.cmpi ne, %1, %c0_i32_0 : i32
    scf.if %2 {
      %cst_10 = arith.constant 0.000000e+00 : f32
      %18 = vector.broadcast %cst_10 : f32 to vector<1x2x128xf32>
      %c0_11 = arith.constant 0 : index
      %c0_12 = arith.constant 0 : index
      %c0_13 = arith.constant 0 : index
      %19 = vector.load %arg3[%c0_11, %c0_12, %c0_13] : memref<1x2x128xf32, #tpu.memory_space<vmem>>, vector<1x2x128xf32>
      tpu.vector_store %arg3[%c0_11, %c0_12, %c0_13], %18 {strides = array<i32>} : memref<1x2x128xf32, #tpu.memory_space<vmem>>, vector<1x2x128xf32>,
    } else {
    }
    %c0 = arith.constant 0 : index
    %c0_1 = arith.constant 0 : index
    %c0_2 = arith.constant 0 : index
    %3 = vector.load %arg2[%c0, %c0_1, %c0_2] : memref<1x16x128xbf16, #tpu.memory_space<vmem>>, vector<1x16x128xbf16>
    %4 = vector.shape_cast %3 : vector<1x16x128xbf16> to vector<16x128xbf16>
    %5 = arith.extf %4 : vector<16x128xbf16> to vector<16x128xf32>
    %cst = arith.constant dense<0.000000e+00> : vector<128xf32>
    %6 = vector.multi_reduction <add>, %5, %cst [0] : vector<16x128xf32> to vector<128xf32>
    %7 = vector.shape_cast %6 : vector<128xf32> to vector<1x128xf32>
    %8 = arith.mulf %5, %5 : vector<16x128xf32>
    %cst_3 = arith.constant dense<0.000000e+00> : vector<128xf32>
    %9 = vector.multi_reduction <add>, %8, %cst_3 [0] : vector<16x128xf32> to vector<128xf32>
    %10 = vector.shape_cast %9 : vector<128xf32> to vector<1x128xf32>
    %c0_4 = arith.constant 0 : index
    %c0_5 = arith.constant 0 : index
    %c0_6 = arith.constant 0 : index
    %11 = vector.load %arg3[%c0_4, %c0_5, %c0_6] : memref<1x2x128xf32, #tpu.memory_space<vmem>>, vector<1x2x128xf32>
    %12 = vector.shape_cast %11 : vector<1x2x128xf32> to vector<2x128xf32>
    %13 = tpu.concatenate %7, %10 in 0 : vector<1x128xf32>, vector<1x128xf32> -> vector<2x128xf32>
    %14 = arith.addf %12, %13 : vector<2x128xf32>
    %c0_7 = arith.constant 0 : index
    %c0_8 = arith.constant 0 : index
    %c0_9 = arith.constant 0 : index
    %15 = vector.load %arg3[%c0_7, %c0_8, %c0_9] : memref<1x2x128xf32, #tpu.memory_space<vmem>>, vector<1x2x128xf32>
    %16 = vector.shape_cast %15 : vector<1x2x128xf32> to vector<2x128xf32>
    %17 = vector.shape_cast %14 : vector<2x128xf32> to vector<1x2x128xf32>
    tpu.vector_store %arg3[%c0_7, %c0_8, %c0_9], %17 {strides = array<i32>} : memref<1x2x128xf32, #tpu.memory_space<vmem>>, vector<1x2x128xf32>,
    return
  }
  func.func @transform_0(%arg0: i32, %arg1: i32) -> (i32, i32, i32) {
    %c0_i32 = arith.constant 0 : i32
    %c0_i32_0 = arith.constant 0 : i32
    return %arg0, %arg1, %c0_i32 : i32, i32, i32
  }
  func.func @transform_1(%arg0: i32, %arg1: i32) -> (i32, i32, i32) {
    %c0_i32 = arith.constant 0 : i32
    %c0_i32_0 = arith.constant 0 : i32
    %c0_i32_1 = arith.constant 0 : i32
    return %arg0, %c0_i32, %c0_i32_0 : i32, i32, i32
  }
}

module attributes {stable_mosaic.version = 11 : i64} {
  func.func @_conv_tap_kernel(%arg0: i32, %arg1: memref<1x40x64xbf16, #tpu.memory_space<vmem>>, %arg2: memref<16x64x128xbf16, #tpu.memory_space<vmem>>, %arg3: memref<1x128xf32, #tpu.memory_space<vmem>>, %arg4: memref<1x18x128xbf16, #tpu.memory_space<vmem>>) attributes {dimension_semantics = [#tpu.dimension_semantics<parallel>], iteration_bounds = array<i64: 2>, scalar_prefetch = 0 : i64, scratch_operands = 0 : i64, tpu.core_type = #tpu.core_type<tc>, window_params = [{transform_indices = @transform_0, window_bounds = array<i64: 1, 40, 64>}, {pipeline_mode = #tpu.pipeline_mode<synchronous>, transform_indices = @transform_1, window_bounds = array<i64: 16, 64, 128>}, {pipeline_mode = #tpu.pipeline_mode<synchronous>, transform_indices = @transform_2, window_bounds = array<i64: 1, 128>}, {transform_indices = @transform_3, window_bounds = array<i64: 1, 18, 128>}]} {
    %c0 = arith.constant 0 : index
    %c0_0 = arith.constant 0 : index
    %c0_1 = arith.constant 0 : index
    %0 = vector.load %arg1[%c0, %c0_0, %c0_1] : memref<1x40x64xbf16, #tpu.memory_space<vmem>>, vector<1x18x64xbf16>
    %1 = vector.shape_cast %0 : vector<1x18x64xbf16> to vector<18x64xbf16>
    %c0_2 = arith.constant 0 : index
    %c0_3 = arith.constant 0 : index
    %c0_4 = arith.constant 0 : index
    %2 = vector.load %arg2[%c0_2, %c0_3, %c0_4] : memref<16x64x128xbf16, #tpu.memory_space<vmem>>, vector<1x64x128xbf16>
    %3 = vector.shape_cast %2 : vector<1x64x128xbf16> to vector<64x128xbf16>
    %cst = arith.constant dense<0.000000e+00> : vector<18x128xf32>
    %4 = tpu.matmul %1, %3, %cst {dimension_numbers = #tpu.dot_dimension_numbers<[1], [0], [0], [1], [0, 0, 1, 1], [], []>} : vector<18x64xbf16>, vector<64x128xbf16>, vector<18x128xf32> -> vector<18x128xf32>
    %c0_5 = arith.constant 0 : index
    %c1 = arith.constant 1 : index
    %c0_6 = arith.constant 0 : index
    %5 = vector.load %arg1[%c0_5, %c1, %c0_6] : memref<1x40x64xbf16, #tpu.memory_space<vmem>>, vector<1x18x64xbf16>
    %6 = vector.shape_cast %5 : vector<1x18x64xbf16> to vector<18x64xbf16>
    %c1_7 = arith.constant 1 : index
    %c0_8 = arith.constant 0 : index
    %c0_9 = arith.constant 0 : index
    %7 = vector.load %arg2[%c1_7, %c0_8, %c0_9] : memref<16x64x128xbf16, #tpu.memory_space<vmem>>, vector<1x64x128xbf16>
    %8 = vector.shape_cast %7 : vector<1x64x128xbf16> to vector<64x128xbf16>
    %cst_10 = arith.constant dense<0.000000e+00> : vector<18x128xf32>
    %9 = tpu.matmul %6, %8, %cst_10 {dimension_numbers = #tpu.dot_dimension_numbers<[1], [0], [0], [1], [0, 0, 1, 1], [], []>} : vector<18x64xbf16>, vector<64x128xbf16>, vector<18x128xf32> -> vector<18x128xf32>
    %10 = arith.addf %4, %9 : vector<18x128xf32>
    %c0_11 = arith.constant 0 : index
    %c2 = arith.constant 2 : index
    %c0_12 = arith.constant 0 : index
    %11 = vector.load %arg1[%c0_11, %c2, %c0_12] : memref<1x40x64xbf16, #tpu.memory_space<vmem>>, vector<1x18x64xbf16>
    %12 = vector.shape_cast %11 : vector<1x18x64xbf16> to vector<18x64xbf16>
    %c2_13 = arith.constant 2 : index
    %c0_14 = arith.constant 0 : index
    %c0_15 = arith.constant 0 : index
    %13 = vector.load %arg2[%c2_13, %c0_14, %c0_15] : memref<16x64x128xbf16, #tpu.memory_space<vmem>>, vector<1x64x128xbf16>
    %14 = vector.shape_cast %13 : vector<1x64x128xbf16> to vector<64x128xbf16>
    %cst_16 = arith.constant dense<0.000000e+00> : vector<18x128xf32>
    %15 = tpu.matmul %12, %14, %cst_16 {dimension_numbers = #tpu.dot_dimension_numbers<[1], [0], [0], [1], [0, 0, 1, 1], [], []>} : vector<18x64xbf16>, vector<64x128xbf16>, vector<18x128xf32> -> vector<18x128xf32>
    %16 = arith.addf %10, %15 : vector<18x128xf32>
    %c0_17 = arith.constant 0 : index
    %c3 = arith.constant 3 : index
    %c0_18 = arith.constant 0 : index
    %17 = vector.load %arg1[%c0_17, %c3, %c0_18] : memref<1x40x64xbf16, #tpu.memory_space<vmem>>, vector<1x18x64xbf16>
    %18 = vector.shape_cast %17 : vector<1x18x64xbf16> to vector<18x64xbf16>
    %c3_19 = arith.constant 3 : index
    %c0_20 = arith.constant 0 : index
    %c0_21 = arith.constant 0 : index
    %19 = vector.load %arg2[%c3_19, %c0_20, %c0_21] : memref<16x64x128xbf16, #tpu.memory_space<vmem>>, vector<1x64x128xbf16>
    %20 = vector.shape_cast %19 : vector<1x64x128xbf16> to vector<64x128xbf16>
    %cst_22 = arith.constant dense<0.000000e+00> : vector<18x128xf32>
    %21 = tpu.matmul %18, %20, %cst_22 {dimension_numbers = #tpu.dot_dimension_numbers<[1], [0], [0], [1], [0, 0, 1, 1], [], []>} : vector<18x64xbf16>, vector<64x128xbf16>, vector<18x128xf32> -> vector<18x128xf32>
    %22 = arith.addf %16, %21 : vector<18x128xf32>
    %c0_23 = arith.constant 0 : index
    %c6 = arith.constant 6 : index
    %c0_24 = arith.constant 0 : index
    %23 = vector.load %arg1[%c0_23, %c6, %c0_24] : memref<1x40x64xbf16, #tpu.memory_space<vmem>>, vector<1x18x64xbf16>
    %24 = vector.shape_cast %23 : vector<1x18x64xbf16> to vector<18x64xbf16>
    %c4 = arith.constant 4 : index
    %c0_25 = arith.constant 0 : index
    %c0_26 = arith.constant 0 : index
    %25 = vector.load %arg2[%c4, %c0_25, %c0_26] : memref<16x64x128xbf16, #tpu.memory_space<vmem>>, vector<1x64x128xbf16>
    %26 = vector.shape_cast %25 : vector<1x64x128xbf16> to vector<64x128xbf16>
    %cst_27 = arith.constant dense<0.000000e+00> : vector<18x128xf32>
    %27 = tpu.matmul %24, %26, %cst_27 {dimension_numbers = #tpu.dot_dimension_numbers<[1], [0], [0], [1], [0, 0, 1, 1], [], []>} : vector<18x64xbf16>, vector<64x128xbf16>, vector<18x128xf32> -> vector<18x128xf32>
    %28 = arith.addf %22, %27 : vector<18x128xf32>
    %c0_28 = arith.constant 0 : index
    %c7 = arith.constant 7 : index
    %c0_29 = arith.constant 0 : index
    %29 = vector.load %arg1[%c0_28, %c7, %c0_29] : memref<1x40x64xbf16, #tpu.memory_space<vmem>>, vector<1x18x64xbf16>
    %30 = vector.shape_cast %29 : vector<1x18x64xbf16> to vector<18x64xbf16>
    %c5 = arith.constant 5 : index
    %c0_30 = arith.constant 0 : index
    %c0_31 = arith.constant 0 : index
    %31 = vector.load %arg2[%c5, %c0_30, %c0_31] : memref<16x64x128xbf16, #tpu.memory_space<vmem>>, vector<1x64x128xbf16>
    %32 = vector.shape_cast %31 : vector<1x64x128xbf16> to vector<64x128xbf16>
    %cst_32 = arith.constant dense<0.000000e+00> : vector<18x128xf32>
    %33 = tpu.matmul %30, %32, %cst_32 {dimension_numbers = #tpu.dot_dimension_numbers<[1], [0], [0], [1], [0, 0, 1, 1], [], []>} : vector<18x64xbf16>, vector<64x128xbf16>, vector<18x128xf32> -> vector<18x128xf32>
    %34 = arith.addf %28, %33 : vector<18x128xf32>
    %c0_33 = arith.constant 0 : index
    %c8 = arith.constant 8 : index
    %c0_34 = arith.constant 0 : index
    %35 = vector.load %arg1[%c0_33, %c8, %c0_34] : memref<1x40x64xbf16, #tpu.memory_space<vmem>>, vector<1x18x64xbf16>
    %36 = vector.shape_cast %35 : vector<1x18x64xbf16> to vector<18x64xbf16>
    %c6_35 = arith.constant 6 : index
    %c0_36 = arith.constant 0 : index
    %c0_37 = arith.constant 0 : index
    %37 = vector.load %arg2[%c6_35, %c0_36, %c0_37] : memref<16x64x128xbf16, #tpu.memory_space<vmem>>, vector<1x64x128xbf16>
    %38 = vector.shape_cast %37 : vector<1x64x128xbf16> to vector<64x128xbf16>
    %cst_38 = arith.constant dense<0.000000e+00> : vector<18x128xf32>
    %39 = tpu.matmul %36, %38, %cst_38 {dimension_numbers = #tpu.dot_dimension_numbers<[1], [0], [0], [1], [0, 0, 1, 1], [], []>} : vector<18x64xbf16>, vector<64x128xbf16>, vector<18x128xf32> -> vector<18x128xf32>
    %40 = arith.addf %34, %39 : vector<18x128xf32>
    %c0_39 = arith.constant 0 : index
    %c9 = arith.constant 9 : index
    %c0_40 = arith.constant 0 : index
    %41 = vector.load %arg1[%c0_39, %c9, %c0_40] : memref<1x40x64xbf16, #tpu.memory_space<vmem>>, vector<1x18x64xbf16>
    %42 = vector.shape_cast %41 : vector<1x18x64xbf16> to vector<18x64xbf16>
    %c7_41 = arith.constant 7 : index
    %c0_42 = arith.constant 0 : index
    %c0_43 = arith.constant 0 : index
    %43 = vector.load %arg2[%c7_41, %c0_42, %c0_43] : memref<16x64x128xbf16, #tpu.memory_space<vmem>>, vector<1x64x128xbf16>
    %44 = vector.shape_cast %43 : vector<1x64x128xbf16> to vector<64x128xbf16>
    %cst_44 = arith.constant dense<0.000000e+00> : vector<18x128xf32>
    %45 = tpu.matmul %42, %44, %cst_44 {dimension_numbers = #tpu.dot_dimension_numbers<[1], [0], [0], [1], [0, 0, 1, 1], [], []>} : vector<18x64xbf16>, vector<64x128xbf16>, vector<18x128xf32> -> vector<18x128xf32>
    %46 = arith.addf %40, %45 : vector<18x128xf32>
    %c0_45 = arith.constant 0 : index
    %c12 = arith.constant 12 : index
    %c0_46 = arith.constant 0 : index
    %47 = vector.load %arg1[%c0_45, %c12, %c0_46] : memref<1x40x64xbf16, #tpu.memory_space<vmem>>, vector<1x18x64xbf16>
    %48 = vector.shape_cast %47 : vector<1x18x64xbf16> to vector<18x64xbf16>
    %c8_47 = arith.constant 8 : index
    %c0_48 = arith.constant 0 : index
    %c0_49 = arith.constant 0 : index
    %49 = vector.load %arg2[%c8_47, %c0_48, %c0_49] : memref<16x64x128xbf16, #tpu.memory_space<vmem>>, vector<1x64x128xbf16>
    %50 = vector.shape_cast %49 : vector<1x64x128xbf16> to vector<64x128xbf16>
    %cst_50 = arith.constant dense<0.000000e+00> : vector<18x128xf32>
    %51 = tpu.matmul %48, %50, %cst_50 {dimension_numbers = #tpu.dot_dimension_numbers<[1], [0], [0], [1], [0, 0, 1, 1], [], []>} : vector<18x64xbf16>, vector<64x128xbf16>, vector<18x128xf32> -> vector<18x128xf32>
    %52 = arith.addf %46, %51 : vector<18x128xf32>
    %c0_51 = arith.constant 0 : index
    %c13 = arith.constant 13 : index
    %c0_52 = arith.constant 0 : index
    %53 = vector.load %arg1[%c0_51, %c13, %c0_52] : memref<1x40x64xbf16, #tpu.memory_space<vmem>>, vector<1x18x64xbf16>
    %54 = vector.shape_cast %53 : vector<1x18x64xbf16> to vector<18x64xbf16>
    %c9_53 = arith.constant 9 : index
    %c0_54 = arith.constant 0 : index
    %c0_55 = arith.constant 0 : index
    %55 = vector.load %arg2[%c9_53, %c0_54, %c0_55] : memref<16x64x128xbf16, #tpu.memory_space<vmem>>, vector<1x64x128xbf16>
    %56 = vector.shape_cast %55 : vector<1x64x128xbf16> to vector<64x128xbf16>
    %cst_56 = arith.constant dense<0.000000e+00> : vector<18x128xf32>
    %57 = tpu.matmul %54, %56, %cst_56 {dimension_numbers = #tpu.dot_dimension_numbers<[1], [0], [0], [1], [0, 0, 1, 1], [], []>} : vector<18x64xbf16>, vector<64x128xbf16>, vector<18x128xf32> -> vector<18x128xf32>
    %58 = arith.addf %52, %57 : vector<18x128xf32>
    %c0_57 = arith.constant 0 : index
    %c14 = arith.constant 14 : index
    %c0_58 = arith.constant 0 : index
    %59 = vector.load %arg1[%c0_57, %c14, %c0_58] : memref<1x40x64xbf16, #tpu.memory_space<vmem>>, vector<1x18x64xbf16>
    %60 = vector.shape_cast %59 : vector<1x18x64xbf16> to vector<18x64xbf16>
    %c10 = arith.constant 10 : index
    %c0_59 = arith.constant 0 : index
    %c0_60 = arith.constant 0 : index
    %61 = vector.load %arg2[%c10, %c0_59, %c0_60] : memref<16x64x128xbf16, #tpu.memory_space<vmem>>, vector<1x64x128xbf16>
    %62 = vector.shape_cast %61 : vector<1x64x128xbf16> to vector<64x128xbf16>
    %cst_61 = arith.constant dense<0.000000e+00> : vector<18x128xf32>
    %63 = tpu.matmul %60, %62, %cst_61 {dimension_numbers = #tpu.dot_dimension_numbers<[1], [0], [0], [1], [0, 0, 1, 1], [], []>} : vector<18x64xbf16>, vector<64x128xbf16>, vector<18x128xf32> -> vector<18x128xf32>
    %64 = arith.addf %58, %63 : vector<18x128xf32>
    %c0_62 = arith.constant 0 : index
    %c15 = arith.constant 15 : index
    %c0_63 = arith.constant 0 : index
    %65 = vector.load %arg1[%c0_62, %c15, %c0_63] : memref<1x40x64xbf16, #tpu.memory_space<vmem>>, vector<1x18x64xbf16>
    %66 = vector.shape_cast %65 : vector<1x18x64xbf16> to vector<18x64xbf16>
    %c11 = arith.constant 11 : index
    %c0_64 = arith.constant 0 : index
    %c0_65 = arith.constant 0 : index
    %67 = vector.load %arg2[%c11, %c0_64, %c0_65] : memref<16x64x128xbf16, #tpu.memory_space<vmem>>, vector<1x64x128xbf16>
    %68 = vector.shape_cast %67 : vector<1x64x128xbf16> to vector<64x128xbf16>
    %cst_66 = arith.constant dense<0.000000e+00> : vector<18x128xf32>
    %69 = tpu.matmul %66, %68, %cst_66 {dimension_numbers = #tpu.dot_dimension_numbers<[1], [0], [0], [1], [0, 0, 1, 1], [], []>} : vector<18x64xbf16>, vector<64x128xbf16>, vector<18x128xf32> -> vector<18x128xf32>
    %70 = arith.addf %64, %69 : vector<18x128xf32>
    %c0_67 = arith.constant 0 : index
    %c18 = arith.constant 18 : index
    %c0_68 = arith.constant 0 : index
    %71 = vector.load %arg1[%c0_67, %c18, %c0_68] : memref<1x40x64xbf16, #tpu.memory_space<vmem>>, vector<1x18x64xbf16>
    %72 = vector.shape_cast %71 : vector<1x18x64xbf16> to vector<18x64xbf16>
    %c12_69 = arith.constant 12 : index
    %c0_70 = arith.constant 0 : index
    %c0_71 = arith.constant 0 : index
    %73 = vector.load %arg2[%c12_69, %c0_70, %c0_71] : memref<16x64x128xbf16, #tpu.memory_space<vmem>>, vector<1x64x128xbf16>
    %74 = vector.shape_cast %73 : vector<1x64x128xbf16> to vector<64x128xbf16>
    %cst_72 = arith.constant dense<0.000000e+00> : vector<18x128xf32>
    %75 = tpu.matmul %72, %74, %cst_72 {dimension_numbers = #tpu.dot_dimension_numbers<[1], [0], [0], [1], [0, 0, 1, 1], [], []>} : vector<18x64xbf16>, vector<64x128xbf16>, vector<18x128xf32> -> vector<18x128xf32>
    %76 = arith.addf %70, %75 : vector<18x128xf32>
    %c0_73 = arith.constant 0 : index
    %c19 = arith.constant 19 : index
    %c0_74 = arith.constant 0 : index
    %77 = vector.load %arg1[%c0_73, %c19, %c0_74] : memref<1x40x64xbf16, #tpu.memory_space<vmem>>, vector<1x18x64xbf16>
    %78 = vector.shape_cast %77 : vector<1x18x64xbf16> to vector<18x64xbf16>
    %c13_75 = arith.constant 13 : index
    %c0_76 = arith.constant 0 : index
    %c0_77 = arith.constant 0 : index
    %79 = vector.load %arg2[%c13_75, %c0_76, %c0_77] : memref<16x64x128xbf16, #tpu.memory_space<vmem>>, vector<1x64x128xbf16>
    %80 = vector.shape_cast %79 : vector<1x64x128xbf16> to vector<64x128xbf16>
    %cst_78 = arith.constant dense<0.000000e+00> : vector<18x128xf32>
    %81 = tpu.matmul %78, %80, %cst_78 {dimension_numbers = #tpu.dot_dimension_numbers<[1], [0], [0], [1], [0, 0, 1, 1], [], []>} : vector<18x64xbf16>, vector<64x128xbf16>, vector<18x128xf32> -> vector<18x128xf32>
    %82 = arith.addf %76, %81 : vector<18x128xf32>
    %c0_79 = arith.constant 0 : index
    %c20 = arith.constant 20 : index
    %c0_80 = arith.constant 0 : index
    %83 = vector.load %arg1[%c0_79, %c20, %c0_80] : memref<1x40x64xbf16, #tpu.memory_space<vmem>>, vector<1x18x64xbf16>
    %84 = vector.shape_cast %83 : vector<1x18x64xbf16> to vector<18x64xbf16>
    %c14_81 = arith.constant 14 : index
    %c0_82 = arith.constant 0 : index
    %c0_83 = arith.constant 0 : index
    %85 = vector.load %arg2[%c14_81, %c0_82, %c0_83] : memref<16x64x128xbf16, #tpu.memory_space<vmem>>, vector<1x64x128xbf16>
    %86 = vector.shape_cast %85 : vector<1x64x128xbf16> to vector<64x128xbf16>
    %cst_84 = arith.constant dense<0.000000e+00> : vector<18x128xf32>
    %87 = tpu.matmul %84, %86, %cst_84 {dimension_numbers = #tpu.dot_dimension_numbers<[1], [0], [0], [1], [0, 0, 1, 1], [], []>} : vector<18x64xbf16>, vector<64x128xbf16>, vector<18x128xf32> -> vector<18x128xf32>
    %88 = arith.addf %82, %87 : vector<18x128xf32>
    %c0_85 = arith.constant 0 : index
    %c21 = arith.constant 21 : index
    %c0_86 = arith.constant 0 : index
    %89 = vector.load %arg1[%c0_85, %c21, %c0_86] : memref<1x40x64xbf16, #tpu.memory_space<vmem>>, vector<1x18x64xbf16>
    %90 = vector.shape_cast %89 : vector<1x18x64xbf16> to vector<18x64xbf16>
    %c15_87 = arith.constant 15 : index
    %c0_88 = arith.constant 0 : index
    %c0_89 = arith.constant 0 : index
    %91 = vector.load %arg2[%c15_87, %c0_88, %c0_89] : memref<16x64x128xbf16, #tpu.memory_space<vmem>>, vector<1x64x128xbf16>
    %92 = vector.shape_cast %91 : vector<1x64x128xbf16> to vector<64x128xbf16>
    %cst_90 = arith.constant dense<0.000000e+00> : vector<18x128xf32>
    %93 = tpu.matmul %90, %92, %cst_90 {dimension_numbers = #tpu.dot_dimension_numbers<[1], [0], [0], [1], [0, 0, 1, 1], [], []>} : vector<18x64xbf16>, vector<64x128xbf16>, vector<18x128xf32> -> vector<18x128xf32>
    %94 = arith.addf %88, %93 : vector<18x128xf32>
    %c0_91 = arith.constant 0 : index
    %c0_92 = arith.constant 0 : index
    %95 = vector.load %arg3[%c0_91, %c0_92] : memref<1x128xf32, #tpu.memory_space<vmem>>, vector<1x128xf32>
    %96 = vector.broadcast %95 : vector<1x128xf32> to vector<18x128xf32>
    %97 = arith.addf %94, %96 : vector<18x128xf32>
    %98 = arith.truncf %97 : vector<18x128xf32> to vector<18x128xbf16>
    %c0_93 = arith.constant 0 : index
    %c0_94 = arith.constant 0 : index
    %c0_95 = arith.constant 0 : index
    %99 = vector.load %arg4[%c0_93, %c0_94, %c0_95] : memref<1x18x128xbf16, #tpu.memory_space<vmem>>, vector<1x18x128xbf16>
    %100 = vector.shape_cast %99 : vector<1x18x128xbf16> to vector<18x128xbf16>
    %101 = vector.shape_cast %98 : vector<18x128xbf16> to vector<1x18x128xbf16>
    tpu.vector_store %arg4[%c0_93, %c0_94, %c0_95], %101 {strides = array<i32>} : memref<1x18x128xbf16, #tpu.memory_space<vmem>>, vector<1x18x128xbf16>,
    return
  }
  func.func @transform_0(%arg0: i32) -> (i32, i32, i32) {
    %c0_i32 = arith.constant 0 : i32
    %c0_i32_0 = arith.constant 0 : i32
    %c0_i32_1 = arith.constant 0 : i32
    return %arg0, %c0_i32, %c0_i32_0 : i32, i32, i32
  }
  func.func @transform_1(%arg0: i32) -> (i32, i32, i32) {
    %c0_i32 = arith.constant 0 : i32
    %c0_i32_0 = arith.constant 0 : i32
    %c0_i32_1 = arith.constant 0 : i32
    %c0_i32_2 = arith.constant 0 : i32
    return %c0_i32, %c0_i32_0, %c0_i32_1 : i32, i32, i32
  }
  func.func @transform_2(%arg0: i32) -> (i32, i32) {
    %c0_i32 = arith.constant 0 : i32
    %c0_i32_0 = arith.constant 0 : i32
    %c0_i32_1 = arith.constant 0 : i32
    return %c0_i32, %c0_i32_0 : i32, i32
  }
  func.func @transform_3(%arg0: i32) -> (i32, i32, i32) {
    %c0_i32 = arith.constant 0 : i32
    %c0_i32_0 = arith.constant 0 : i32
    %c0_i32_1 = arith.constant 0 : i32
    return %arg0, %c0_i32, %c0_i32_0 : i32, i32, i32
  }
}

module attributes {stable_mosaic.version = 11 : i64} {
  func.func @_conv_tap_kernel(%arg0: i32, %arg1: memref<1x32x128xbf16, #tpu.memory_space<vmem>>, %arg2: memref<16x128x128xbf16, #tpu.memory_space<vmem>>, %arg3: memref<1x128xf32, #tpu.memory_space<vmem>>, %arg4: memref<1x10x128xf32, #tpu.memory_space<vmem>>) attributes {dimension_semantics = [#tpu.dimension_semantics<parallel>], iteration_bounds = array<i64: 2>, scalar_prefetch = 0 : i64, scratch_operands = 0 : i64, tpu.core_type = #tpu.core_type<tc>, window_params = [{transform_indices = @transform_0, window_bounds = array<i64: 1, 32, 128>}, {pipeline_mode = #tpu.pipeline_mode<synchronous>, transform_indices = @transform_1, window_bounds = array<i64: 16, 128, 128>}, {pipeline_mode = #tpu.pipeline_mode<synchronous>, transform_indices = @transform_2, window_bounds = array<i64: 1, 128>}, {transform_indices = @transform_3, window_bounds = array<i64: 1, 10, 128>}]} {
    %c0 = arith.constant 0 : index
    %c0_0 = arith.constant 0 : index
    %c0_1 = arith.constant 0 : index
    %0 = vector.load %arg1[%c0, %c0_0, %c0_1] : memref<1x32x128xbf16, #tpu.memory_space<vmem>>, vector<1x10x128xbf16>
    %1 = vector.shape_cast %0 : vector<1x10x128xbf16> to vector<10x128xbf16>
    %c0_2 = arith.constant 0 : index
    %c0_3 = arith.constant 0 : index
    %c0_4 = arith.constant 0 : index
    %2 = vector.load %arg2[%c0_2, %c0_3, %c0_4] : memref<16x128x128xbf16, #tpu.memory_space<vmem>>, vector<1x128x128xbf16>
    %3 = vector.shape_cast %2 : vector<1x128x128xbf16> to vector<128x128xbf16>
    %cst = arith.constant dense<0.000000e+00> : vector<10x128xf32>
    %4 = tpu.matmul %1, %3, %cst {dimension_numbers = #tpu.dot_dimension_numbers<[1], [0], [0], [1], [0, 0, 1, 1], [], []>} : vector<10x128xbf16>, vector<128x128xbf16>, vector<10x128xf32> -> vector<10x128xf32>
    %c0_5 = arith.constant 0 : index
    %c1 = arith.constant 1 : index
    %c0_6 = arith.constant 0 : index
    %5 = vector.load %arg1[%c0_5, %c1, %c0_6] : memref<1x32x128xbf16, #tpu.memory_space<vmem>>, vector<1x10x128xbf16>
    %6 = vector.shape_cast %5 : vector<1x10x128xbf16> to vector<10x128xbf16>
    %c1_7 = arith.constant 1 : index
    %c0_8 = arith.constant 0 : index
    %c0_9 = arith.constant 0 : index
    %7 = vector.load %arg2[%c1_7, %c0_8, %c0_9] : memref<16x128x128xbf16, #tpu.memory_space<vmem>>, vector<1x128x128xbf16>
    %8 = vector.shape_cast %7 : vector<1x128x128xbf16> to vector<128x128xbf16>
    %cst_10 = arith.constant dense<0.000000e+00> : vector<10x128xf32>
    %9 = tpu.matmul %6, %8, %cst_10 {dimension_numbers = #tpu.dot_dimension_numbers<[1], [0], [0], [1], [0, 0, 1, 1], [], []>} : vector<10x128xbf16>, vector<128x128xbf16>, vector<10x128xf32> -> vector<10x128xf32>
    %10 = arith.addf %4, %9 : vector<10x128xf32>
    %c0_11 = arith.constant 0 : index
    %c2 = arith.constant 2 : index
    %c0_12 = arith.constant 0 : index
    %11 = vector.load %arg1[%c0_11, %c2, %c0_12] : memref<1x32x128xbf16, #tpu.memory_space<vmem>>, vector<1x10x128xbf16>
    %12 = vector.shape_cast %11 : vector<1x10x128xbf16> to vector<10x128xbf16>
    %c2_13 = arith.constant 2 : index
    %c0_14 = arith.constant 0 : index
    %c0_15 = arith.constant 0 : index
    %13 = vector.load %arg2[%c2_13, %c0_14, %c0_15] : memref<16x128x128xbf16, #tpu.memory_space<vmem>>, vector<1x128x128xbf16>
    %14 = vector.shape_cast %13 : vector<1x128x128xbf16> to vector<128x128xbf16>
    %cst_16 = arith.constant dense<0.000000e+00> : vector<10x128xf32>
    %15 = tpu.matmul %12, %14, %cst_16 {dimension_numbers = #tpu.dot_dimension_numbers<[1], [0], [0], [1], [0, 0, 1, 1], [], []>} : vector<10x128xbf16>, vector<128x128xbf16>, vector<10x128xf32> -> vector<10x128xf32>
    %16 = arith.addf %10, %15 : vector<10x128xf32>
    %c0_17 = arith.constant 0 : index
    %c3 = arith.constant 3 : index
    %c0_18 = arith.constant 0 : index
    %17 = vector.load %arg1[%c0_17, %c3, %c0_18] : memref<1x32x128xbf16, #tpu.memory_space<vmem>>, vector<1x10x128xbf16>
    %18 = vector.shape_cast %17 : vector<1x10x128xbf16> to vector<10x128xbf16>
    %c3_19 = arith.constant 3 : index
    %c0_20 = arith.constant 0 : index
    %c0_21 = arith.constant 0 : index
    %19 = vector.load %arg2[%c3_19, %c0_20, %c0_21] : memref<16x128x128xbf16, #tpu.memory_space<vmem>>, vector<1x128x128xbf16>
    %20 = vector.shape_cast %19 : vector<1x128x128xbf16> to vector<128x128xbf16>
    %cst_22 = arith.constant dense<0.000000e+00> : vector<10x128xf32>
    %21 = tpu.matmul %18, %20, %cst_22 {dimension_numbers = #tpu.dot_dimension_numbers<[1], [0], [0], [1], [0, 0, 1, 1], [], []>} : vector<10x128xbf16>, vector<128x128xbf16>, vector<10x128xf32> -> vector<10x128xf32>
    %22 = arith.addf %16, %21 : vector<10x128xf32>
    %c0_23 = arith.constant 0 : index
    %c5 = arith.constant 5 : index
    %c0_24 = arith.constant 0 : index
    %23 = vector.load %arg1[%c0_23, %c5, %c0_24] : memref<1x32x128xbf16, #tpu.memory_space<vmem>>, vector<1x10x128xbf16>
    %24 = vector.shape_cast %23 : vector<1x10x128xbf16> to vector<10x128xbf16>
    %c4 = arith.constant 4 : index
    %c0_25 = arith.constant 0 : index
    %c0_26 = arith.constant 0 : index
    %25 = vector.load %arg2[%c4, %c0_25, %c0_26] : memref<16x128x128xbf16, #tpu.memory_space<vmem>>, vector<1x128x128xbf16>
    %26 = vector.shape_cast %25 : vector<1x128x128xbf16> to vector<128x128xbf16>
    %cst_27 = arith.constant dense<0.000000e+00> : vector<10x128xf32>
    %27 = tpu.matmul %24, %26, %cst_27 {dimension_numbers = #tpu.dot_dimension_numbers<[1], [0], [0], [1], [0, 0, 1, 1], [], []>} : vector<10x128xbf16>, vector<128x128xbf16>, vector<10x128xf32> -> vector<10x128xf32>
    %28 = arith.addf %22, %27 : vector<10x128xf32>
    %c0_28 = arith.constant 0 : index
    %c6 = arith.constant 6 : index
    %c0_29 = arith.constant 0 : index
    %29 = vector.load %arg1[%c0_28, %c6, %c0_29] : memref<1x32x128xbf16, #tpu.memory_space<vmem>>, vector<1x10x128xbf16>
    %30 = vector.shape_cast %29 : vector<1x10x128xbf16> to vector<10x128xbf16>
    %c5_30 = arith.constant 5 : index
    %c0_31 = arith.constant 0 : index
    %c0_32 = arith.constant 0 : index
    %31 = vector.load %arg2[%c5_30, %c0_31, %c0_32] : memref<16x128x128xbf16, #tpu.memory_space<vmem>>, vector<1x128x128xbf16>
    %32 = vector.shape_cast %31 : vector<1x128x128xbf16> to vector<128x128xbf16>
    %cst_33 = arith.constant dense<0.000000e+00> : vector<10x128xf32>
    %33 = tpu.matmul %30, %32, %cst_33 {dimension_numbers = #tpu.dot_dimension_numbers<[1], [0], [0], [1], [0, 0, 1, 1], [], []>} : vector<10x128xbf16>, vector<128x128xbf16>, vector<10x128xf32> -> vector<10x128xf32>
    %34 = arith.addf %28, %33 : vector<10x128xf32>
    %c0_34 = arith.constant 0 : index
    %c7 = arith.constant 7 : index
    %c0_35 = arith.constant 0 : index
    %35 = vector.load %arg1[%c0_34, %c7, %c0_35] : memref<1x32x128xbf16, #tpu.memory_space<vmem>>, vector<1x10x128xbf16>
    %36 = vector.shape_cast %35 : vector<1x10x128xbf16> to vector<10x128xbf16>
    %c6_36 = arith.constant 6 : index
    %c0_37 = arith.constant 0 : index
    %c0_38 = arith.constant 0 : index
    %37 = vector.load %arg2[%c6_36, %c0_37, %c0_38] : memref<16x128x128xbf16, #tpu.memory_space<vmem>>, vector<1x128x128xbf16>
    %38 = vector.shape_cast %37 : vector<1x128x128xbf16> to vector<128x128xbf16>
    %cst_39 = arith.constant dense<0.000000e+00> : vector<10x128xf32>
    %39 = tpu.matmul %36, %38, %cst_39 {dimension_numbers = #tpu.dot_dimension_numbers<[1], [0], [0], [1], [0, 0, 1, 1], [], []>} : vector<10x128xbf16>, vector<128x128xbf16>, vector<10x128xf32> -> vector<10x128xf32>
    %40 = arith.addf %34, %39 : vector<10x128xf32>
    %c0_40 = arith.constant 0 : index
    %c8 = arith.constant 8 : index
    %c0_41 = arith.constant 0 : index
    %41 = vector.load %arg1[%c0_40, %c8, %c0_41] : memref<1x32x128xbf16, #tpu.memory_space<vmem>>, vector<1x10x128xbf16>
    %42 = vector.shape_cast %41 : vector<1x10x128xbf16> to vector<10x128xbf16>
    %c7_42 = arith.constant 7 : index
    %c0_43 = arith.constant 0 : index
    %c0_44 = arith.constant 0 : index
    %43 = vector.load %arg2[%c7_42, %c0_43, %c0_44] : memref<16x128x128xbf16, #tpu.memory_space<vmem>>, vector<1x128x128xbf16>
    %44 = vector.shape_cast %43 : vector<1x128x128xbf16> to vector<128x128xbf16>
    %cst_45 = arith.constant dense<0.000000e+00> : vector<10x128xf32>
    %45 = tpu.matmul %42, %44, %cst_45 {dimension_numbers = #tpu.dot_dimension_numbers<[1], [0], [0], [1], [0, 0, 1, 1], [], []>} : vector<10x128xbf16>, vector<128x128xbf16>, vector<10x128xf32> -> vector<10x128xf32>
    %46 = arith.addf %40, %45 : vector<10x128xf32>
    %c0_46 = arith.constant 0 : index
    %c10 = arith.constant 10 : index
    %c0_47 = arith.constant 0 : index
    %47 = vector.load %arg1[%c0_46, %c10, %c0_47] : memref<1x32x128xbf16, #tpu.memory_space<vmem>>, vector<1x10x128xbf16>
    %48 = vector.shape_cast %47 : vector<1x10x128xbf16> to vector<10x128xbf16>
    %c8_48 = arith.constant 8 : index
    %c0_49 = arith.constant 0 : index
    %c0_50 = arith.constant 0 : index
    %49 = vector.load %arg2[%c8_48, %c0_49, %c0_50] : memref<16x128x128xbf16, #tpu.memory_space<vmem>>, vector<1x128x128xbf16>
    %50 = vector.shape_cast %49 : vector<1x128x128xbf16> to vector<128x128xbf16>
    %cst_51 = arith.constant dense<0.000000e+00> : vector<10x128xf32>
    %51 = tpu.matmul %48, %50, %cst_51 {dimension_numbers = #tpu.dot_dimension_numbers<[1], [0], [0], [1], [0, 0, 1, 1], [], []>} : vector<10x128xbf16>, vector<128x128xbf16>, vector<10x128xf32> -> vector<10x128xf32>
    %52 = arith.addf %46, %51 : vector<10x128xf32>
    %c0_52 = arith.constant 0 : index
    %c11 = arith.constant 11 : index
    %c0_53 = arith.constant 0 : index
    %53 = vector.load %arg1[%c0_52, %c11, %c0_53] : memref<1x32x128xbf16, #tpu.memory_space<vmem>>, vector<1x10x128xbf16>
    %54 = vector.shape_cast %53 : vector<1x10x128xbf16> to vector<10x128xbf16>
    %c9 = arith.constant 9 : index
    %c0_54 = arith.constant 0 : index
    %c0_55 = arith.constant 0 : index
    %55 = vector.load %arg2[%c9, %c0_54, %c0_55] : memref<16x128x128xbf16, #tpu.memory_space<vmem>>, vector<1x128x128xbf16>
    %56 = vector.shape_cast %55 : vector<1x128x128xbf16> to vector<128x128xbf16>
    %cst_56 = arith.constant dense<0.000000e+00> : vector<10x128xf32>
    %57 = tpu.matmul %54, %56, %cst_56 {dimension_numbers = #tpu.dot_dimension_numbers<[1], [0], [0], [1], [0, 0, 1, 1], [], []>} : vector<10x128xbf16>, vector<128x128xbf16>, vector<10x128xf32> -> vector<10x128xf32>
    %58 = arith.addf %52, %57 : vector<10x128xf32>
    %c0_57 = arith.constant 0 : index
    %c12 = arith.constant 12 : index
    %c0_58 = arith.constant 0 : index
    %59 = vector.load %arg1[%c0_57, %c12, %c0_58] : memref<1x32x128xbf16, #tpu.memory_space<vmem>>, vector<1x10x128xbf16>
    %60 = vector.shape_cast %59 : vector<1x10x128xbf16> to vector<10x128xbf16>
    %c10_59 = arith.constant 10 : index
    %c0_60 = arith.constant 0 : index
    %c0_61 = arith.constant 0 : index
    %61 = vector.load %arg2[%c10_59, %c0_60, %c0_61] : memref<16x128x128xbf16, #tpu.memory_space<vmem>>, vector<1x128x128xbf16>
    %62 = vector.shape_cast %61 : vector<1x128x128xbf16> to vector<128x128xbf16>
    %cst_62 = arith.constant dense<0.000000e+00> : vector<10x128xf32>
    %63 = tpu.matmul %60, %62, %cst_62 {dimension_numbers = #tpu.dot_dimension_numbers<[1], [0], [0], [1], [0, 0, 1, 1], [], []>} : vector<10x128xbf16>, vector<128x128xbf16>, vector<10x128xf32> -> vector<10x128xf32>
    %64 = arith.addf %58, %63 : vector<10x128xf32>
    %c0_63 = arith.constant 0 : index
    %c13 = arith.constant 13 : index
    %c0_64 = arith.constant 0 : index
    %65 = vector.load %arg1[%c0_63, %c13, %c0_64] : memref<1x32x128xbf16, #tpu.memory_space<vmem>>, vector<1x10x128xbf16>
    %66 = vector.shape_cast %65 : vector<1x10x128xbf16> to vector<10x128xbf16>
    %c11_65 = arith.constant 11 : index
    %c0_66 = arith.constant 0 : index
    %c0_67 = arith.constant 0 : index
    %67 = vector.load %arg2[%c11_65, %c0_66, %c0_67] : memref<16x128x128xbf16, #tpu.memory_space<vmem>>, vector<1x128x128xbf16>
    %68 = vector.shape_cast %67 : vector<1x128x128xbf16> to vector<128x128xbf16>
    %cst_68 = arith.constant dense<0.000000e+00> : vector<10x128xf32>
    %69 = tpu.matmul %66, %68, %cst_68 {dimension_numbers = #tpu.dot_dimension_numbers<[1], [0], [0], [1], [0, 0, 1, 1], [], []>} : vector<10x128xbf16>, vector<128x128xbf16>, vector<10x128xf32> -> vector<10x128xf32>
    %70 = arith.addf %64, %69 : vector<10x128xf32>
    %c0_69 = arith.constant 0 : index
    %c15 = arith.constant 15 : index
    %c0_70 = arith.constant 0 : index
    %71 = vector.load %arg1[%c0_69, %c15, %c0_70] : memref<1x32x128xbf16, #tpu.memory_space<vmem>>, vector<1x10x128xbf16>
    %72 = vector.shape_cast %71 : vector<1x10x128xbf16> to vector<10x128xbf16>
    %c12_71 = arith.constant 12 : index
    %c0_72 = arith.constant 0 : index
    %c0_73 = arith.constant 0 : index
    %73 = vector.load %arg2[%c12_71, %c0_72, %c0_73] : memref<16x128x128xbf16, #tpu.memory_space<vmem>>, vector<1x128x128xbf16>
    %74 = vector.shape_cast %73 : vector<1x128x128xbf16> to vector<128x128xbf16>
    %cst_74 = arith.constant dense<0.000000e+00> : vector<10x128xf32>
    %75 = tpu.matmul %72, %74, %cst_74 {dimension_numbers = #tpu.dot_dimension_numbers<[1], [0], [0], [1], [0, 0, 1, 1], [], []>} : vector<10x128xbf16>, vector<128x128xbf16>, vector<10x128xf32> -> vector<10x128xf32>
    %76 = arith.addf %70, %75 : vector<10x128xf32>
    %c0_75 = arith.constant 0 : index
    %c16 = arith.constant 16 : index
    %c0_76 = arith.constant 0 : index
    %77 = vector.load %arg1[%c0_75, %c16, %c0_76] : memref<1x32x128xbf16, #tpu.memory_space<vmem>>, vector<1x10x128xbf16>
    %78 = vector.shape_cast %77 : vector<1x10x128xbf16> to vector<10x128xbf16>
    %c13_77 = arith.constant 13 : index
    %c0_78 = arith.constant 0 : index
    %c0_79 = arith.constant 0 : index
    %79 = vector.load %arg2[%c13_77, %c0_78, %c0_79] : memref<16x128x128xbf16, #tpu.memory_space<vmem>>, vector<1x128x128xbf16>
    %80 = vector.shape_cast %79 : vector<1x128x128xbf16> to vector<128x128xbf16>
    %cst_80 = arith.constant dense<0.000000e+00> : vector<10x128xf32>
    %81 = tpu.matmul %78, %80, %cst_80 {dimension_numbers = #tpu.dot_dimension_numbers<[1], [0], [0], [1], [0, 0, 1, 1], [], []>} : vector<10x128xbf16>, vector<128x128xbf16>, vector<10x128xf32> -> vector<10x128xf32>
    %82 = arith.addf %76, %81 : vector<10x128xf32>
    %c0_81 = arith.constant 0 : index
    %c17 = arith.constant 17 : index
    %c0_82 = arith.constant 0 : index
    %83 = vector.load %arg1[%c0_81, %c17, %c0_82] : memref<1x32x128xbf16, #tpu.memory_space<vmem>>, vector<1x10x128xbf16>
    %84 = vector.shape_cast %83 : vector<1x10x128xbf16> to vector<10x128xbf16>
    %c14 = arith.constant 14 : index
    %c0_83 = arith.constant 0 : index
    %c0_84 = arith.constant 0 : index
    %85 = vector.load %arg2[%c14, %c0_83, %c0_84] : memref<16x128x128xbf16, #tpu.memory_space<vmem>>, vector<1x128x128xbf16>
    %86 = vector.shape_cast %85 : vector<1x128x128xbf16> to vector<128x128xbf16>
    %cst_85 = arith.constant dense<0.000000e+00> : vector<10x128xf32>
    %87 = tpu.matmul %84, %86, %cst_85 {dimension_numbers = #tpu.dot_dimension_numbers<[1], [0], [0], [1], [0, 0, 1, 1], [], []>} : vector<10x128xbf16>, vector<128x128xbf16>, vector<10x128xf32> -> vector<10x128xf32>
    %88 = arith.addf %82, %87 : vector<10x128xf32>
    %c0_86 = arith.constant 0 : index
    %c18 = arith.constant 18 : index
    %c0_87 = arith.constant 0 : index
    %89 = vector.load %arg1[%c0_86, %c18, %c0_87] : memref<1x32x128xbf16, #tpu.memory_space<vmem>>, vector<1x10x128xbf16>
    %90 = vector.shape_cast %89 : vector<1x10x128xbf16> to vector<10x128xbf16>
    %c15_88 = arith.constant 15 : index
    %c0_89 = arith.constant 0 : index
    %c0_90 = arith.constant 0 : index
    %91 = vector.load %arg2[%c15_88, %c0_89, %c0_90] : memref<16x128x128xbf16, #tpu.memory_space<vmem>>, vector<1x128x128xbf16>
    %92 = vector.shape_cast %91 : vector<1x128x128xbf16> to vector<128x128xbf16>
    %cst_91 = arith.constant dense<0.000000e+00> : vector<10x128xf32>
    %93 = tpu.matmul %90, %92, %cst_91 {dimension_numbers = #tpu.dot_dimension_numbers<[1], [0], [0], [1], [0, 0, 1, 1], [], []>} : vector<10x128xbf16>, vector<128x128xbf16>, vector<10x128xf32> -> vector<10x128xf32>
    %94 = arith.addf %88, %93 : vector<10x128xf32>
    %c0_92 = arith.constant 0 : index
    %c0_93 = arith.constant 0 : index
    %95 = vector.load %arg3[%c0_92, %c0_93] : memref<1x128xf32, #tpu.memory_space<vmem>>, vector<1x128xf32>
    %96 = vector.broadcast %95 : vector<1x128xf32> to vector<10x128xf32>
    %97 = arith.addf %94, %96 : vector<10x128xf32>
    %c0_94 = arith.constant 0 : index
    %c0_95 = arith.constant 0 : index
    %c0_96 = arith.constant 0 : index
    %98 = vector.load %arg4[%c0_94, %c0_95, %c0_96] : memref<1x10x128xf32, #tpu.memory_space<vmem>>, vector<1x10x128xf32>
    %99 = vector.shape_cast %98 : vector<1x10x128xf32> to vector<10x128xf32>
    %100 = vector.shape_cast %97 : vector<10x128xf32> to vector<1x10x128xf32>
    tpu.vector_store %arg4[%c0_94, %c0_95, %c0_96], %100 {strides = array<i32>} : memref<1x10x128xf32, #tpu.memory_space<vmem>>, vector<1x10x128xf32>,
    return
  }
  func.func @transform_0(%arg0: i32) -> (i32, i32, i32) {
    %c0_i32 = arith.constant 0 : i32
    %c0_i32_0 = arith.constant 0 : i32
    %c0_i32_1 = arith.constant 0 : i32
    return %arg0, %c0_i32, %c0_i32_0 : i32, i32, i32
  }
  func.func @transform_1(%arg0: i32) -> (i32, i32, i32) {
    %c0_i32 = arith.constant 0 : i32
    %c0_i32_0 = arith.constant 0 : i32
    %c0_i32_1 = arith.constant 0 : i32
    %c0_i32_2 = arith.constant 0 : i32
    return %c0_i32, %c0_i32_0, %c0_i32_1 : i32, i32, i32
  }
  func.func @transform_2(%arg0: i32) -> (i32, i32) {
    %c0_i32 = arith.constant 0 : i32
    %c0_i32_0 = arith.constant 0 : i32
    %c0_i32_1 = arith.constant 0 : i32
    return %c0_i32, %c0_i32_0 : i32, i32
  }
  func.func @transform_3(%arg0: i32) -> (i32, i32, i32) {
    %c0_i32 = arith.constant 0 : i32
    %c0_i32_0 = arith.constant 0 : i32
    %c0_i32_1 = arith.constant 0 : i32
    return %arg0, %c0_i32, %c0_i32_0 : i32, i32, i32
  }
}

module attributes {stable_mosaic.version = 11 : i64} {
  func.func @_gn_norm_lrelu_kernel(%arg0: i32, %arg1: i32, %arg2: memref<1x16x128xbf16, #tpu.memory_space<vmem>>, %arg3: memref<1x1x128xf32, #tpu.memory_space<vmem>>, %arg4: memref<1x1x128xf32, #tpu.memory_space<vmem>>, %arg5: memref<1x16x128xbf16, #tpu.memory_space<vmem>>) attributes {dimension_semantics = [#tpu.dimension_semantics<parallel>, #tpu.dimension_semantics<parallel>], iteration_bounds = array<i64: 2, 1>, scalar_prefetch = 0 : i64, scratch_operands = 0 : i64, tpu.core_type = #tpu.core_type<tc>, window_params = [{transform_indices = @transform_0, window_bounds = array<i64: 1, 16, 128>}, {transform_indices = @transform_1, window_bounds = array<i64: 1, 1, 128>}, {transform_indices = @transform_2, window_bounds = array<i64: 1, 1, 128>}, {transform_indices = @transform_3, window_bounds = array<i64: 1, 16, 128>}]} {
    %c0 = arith.constant 0 : index
    %c0_0 = arith.constant 0 : index
    %c0_1 = arith.constant 0 : index
    %0 = vector.load %arg2[%c0, %c0_0, %c0_1] : memref<1x16x128xbf16, #tpu.memory_space<vmem>>, vector<1x16x128xbf16>
    %1 = vector.shape_cast %0 : vector<1x16x128xbf16> to vector<16x128xbf16>
    %2 = arith.extf %1 : vector<16x128xbf16> to vector<16x128xf32>
    %c0_2 = arith.constant 0 : index
    %c0_3 = arith.constant 0 : index
    %c0_4 = arith.constant 0 : index
    %3 = vector.load %arg3[%c0_2, %c0_3, %c0_4] : memref<1x1x128xf32, #tpu.memory_space<vmem>>, vector<1x1x128xf32>
    %4 = vector.shape_cast %3 : vector<1x1x128xf32> to vector<1x128xf32>
    %5 = vector.broadcast %4 : vector<1x128xf32> to vector<16x128xf32>
    %6 = arith.mulf %2, %5 : vector<16x128xf32>
    %c0_5 = arith.constant 0 : index
    %c0_6 = arith.constant 0 : index
    %c0_7 = arith.constant 0 : index
    %7 = vector.load %arg4[%c0_5, %c0_6, %c0_7] : memref<1x1x128xf32, #tpu.memory_space<vmem>>, vector<1x1x128xf32>
    %8 = vector.shape_cast %7 : vector<1x1x128xf32> to vector<1x128xf32>
    %9 = vector.broadcast %8 : vector<1x128xf32> to vector<16x128xf32>
    %10 = arith.addf %6, %9 : vector<16x128xf32>
    %cst = arith.constant 0.000000e+00 : f32
    %11 = vector.broadcast %cst : f32 to vector<16x128xf32>
    %12 = arith.cmpf ogt, %10, %11 : vector<16x128xf32>
    %cst_8 = arith.constant 2.000000e-01 : f32
    %13 = vector.broadcast %cst_8 : f32 to vector<16x128xf32>
    %14 = arith.mulf %13, %10 : vector<16x128xf32>
    %15 = arith.select %12, %10, %14 : vector<16x128xi1>, vector<16x128xf32>
    %16 = arith.truncf %15 : vector<16x128xf32> to vector<16x128xbf16>
    %c0_9 = arith.constant 0 : index
    %c0_10 = arith.constant 0 : index
    %c0_11 = arith.constant 0 : index
    %17 = vector.load %arg5[%c0_9, %c0_10, %c0_11] : memref<1x16x128xbf16, #tpu.memory_space<vmem>>, vector<1x16x128xbf16>
    %18 = vector.shape_cast %17 : vector<1x16x128xbf16> to vector<16x128xbf16>
    %19 = vector.shape_cast %16 : vector<16x128xbf16> to vector<1x16x128xbf16>
    tpu.vector_store %arg5[%c0_9, %c0_10, %c0_11], %19 {strides = array<i32>} : memref<1x16x128xbf16, #tpu.memory_space<vmem>>, vector<1x16x128xbf16>,
    return
  }
  func.func @transform_0(%arg0: i32, %arg1: i32) -> (i32, i32, i32) {
    %c0_i32 = arith.constant 0 : i32
    %c0_i32_0 = arith.constant 0 : i32
    return %arg0, %arg1, %c0_i32 : i32, i32, i32
  }
  func.func @transform_1(%arg0: i32, %arg1: i32) -> (i32, i32, i32) {
    %c0_i32 = arith.constant 0 : i32
    %c0_i32_0 = arith.constant 0 : i32
    %c0_i32_1 = arith.constant 0 : i32
    return %arg0, %c0_i32, %c0_i32_0 : i32, i32, i32
  }
  func.func @transform_2(%arg0: i32, %arg1: i32) -> (i32, i32, i32) {
    %c0_i32 = arith.constant 0 : i32
    %c0_i32_0 = arith.constant 0 : i32
    %c0_i32_1 = arith.constant 0 : i32
    return %arg0, %c0_i32, %c0_i32_0 : i32, i32, i32
  }
  func.func @transform_3(%arg0: i32, %arg1: i32) -> (i32, i32, i32) {
    %c0_i32 = arith.constant 0 : i32
    %c0_i32_0 = arith.constant 0 : i32
    return %arg0, %arg1, %c0_i32 : i32, i32, i32
  }
}

</mosaic_0001>

<llo_original>
// kernel: _lambda_.11
$region0: #{_lambda_.11}
  #allocation0 [shape = 'u32[]', space=smem, size = 0x4, offset = 0x4, fixed_abs, tag = 'smem constant byte address 0x4 - core index']
  #allocation1 [shape = 'u32[72,128]{1,0:T(1,128)}', space=vmem, size = 0x9000, scoped, tag = 'internal scratch']
  %s0 = inlined_call_operand.vmem [shape: bf16[2,296,12], index: 0, kind: input, shape index: {}]
  %s1 = inlined_call_operand.vmem [shape: bf16[4,12,128], index: 1, kind: input, shape index: {}]
  %s2 = inlined_call_operand.vmem [shape: f32[1,128], index: 2, kind: input, shape index: {}]
  %s3 = inlined_call_operand.vmem [shape: bf16[2,272,128], index: 3, kind: output, shape index: {}]
  %s4 = sld [smem:[#allocation0]]
  $region45: #{_lambda_.11} parent=0
    _
  %s6 = ssub.s32 1, %s4
  %s7 = scalar_select 0, %s6, %s4
  loop: start=0, step=1, limit=4
  $region2: #{_lambda_.11} parent=0 // loop_pre_header
    _
  $region3: #{_lambda_.11} parent=0 // loop_header
    %s9 = sphi 0, %s13
    %p10 = scmp.ge.s32.totalorder %s9, 4
    %s19 = sphi 0, %s21
    %s22 = sphi 0, %s19
    %s23 = sphi 0, %s22
    %s39 = sphi 0, %s23
    %s43 = sphi 0, %s43
    %s45 = sphi 0, %s43
    %s46 = sphi 0, %s45
    %s60 = sphi 0, %s46
    %s64 = sphi 0, %s64
    %s66 = sphi 0, %s64
    %s67 = sphi 0, %s66
    %s81 = sphi 0, %s67
    %s87 = sphi 0, %s89
    %s90 = sphi 0, %s87
    %s91 = sphi 0, %s90
    %s107 = sphi 0, %s91
  $region4: #{_lambda_.11} parent=0 // loop_header_branch
    %12 = sbr.rel (%p10) target = $region8
  $region5: #{_lambda_.11} parent=0 // loop_body
    %s14 = ssub.s32 %s9, 1
    %s15 = ssub.s32 %s9, 2
    %s16 = sadd.s32 %s9, 1
    %s17 = ssub.s32 %s9, %s16
    %p18 = scmp.eq.s32.totalorder %s17, 0
    %s20 = sadd.s32 %s19, 1
    %s21 = scalar_select %p18, %s19, %s20
    %p24 = pneg %p18
    %p25 = scmp.eq.s32.totalorder %s9, 1
    %p26 = por %p24, %p25
    %p27 = scmp.ne.s32.totalorder %s19, %s22
    %p28 = scmp.eq.s32.totalorder %s9, 0
    %p29 = por %p27, %p28
    %p30 = scmp.ne.s32.totalorder %s19, %s22
    %p31 = scmp.eq.s32.totalorder %s14, 1
    %p32 = por %p30, %p31
    %p33 = scmp.ne.s32.totalorder %s22, %s23
    %p34 = scmp.eq.s32.totalorder %s14, 0
    %p35 = por %p33, %p34
    %p36 = scmp.ne.s32.totalorder %s22, %s23
    %p37 = scmp.eq.s32.totalorder %s15, 1
    %p38 = por %p36, %p37
    %p40 = scmp.ne.s32.totalorder %s23, %s39
    %p41 = scmp.eq.s32.totalorder %s15, 0
    %p42 = por %p40, %p41
    %s44 = sadd.s32 %s43, 1
    %p47 = scmp.eq.s32.totalorder %s9, 1
    %p48 = scmp.ne.s32.totalorder %s43, %s45
    %p49 = scmp.eq.s32.totalorder %s9, 0
    %p50 = por %p48, %p49
    %p51 = scmp.ne.s32.totalorder %s43, %s45
    %p52 = scmp.eq.s32.totalorder %s14, 1
    %p53 = por %p51, %p52
    %p54 = scmp.ne.s32.totalorder %s45, %s46
    %p55 = scmp.eq.s32.totalorder %s14, 0
    %p56 = por %p54, %p55
    %p57 = scmp.ne.s32.totalorder %s45, %s46
    %p58 = scmp.eq.s32.totalorder %s15, 1
    %p59 = por %p57, %p58
    %p61 = scmp.ne.s32.totalorder %s46, %s60
    %p62 = scmp.eq.s32.totalorder %s15, 0
    %p63 = por %p61, %p62
    %s65 = sadd.s32 %s64, 1
    %p68 = scmp.eq.s32.totalorder %s9, 1
    %p69 = scmp.ne.s32.totalorder %s64, %s66
    %p70 = scmp.eq.s32.totalorder %s9, 0
    %p71 = por %p69, %p70
    %p72 = scmp.ne.s32.totalorder %s64, %s66
    %p73 = scmp.eq.s32.totalorder %s14, 1
    %p74 = por %p72, %p73
    %p75 = scmp.ne.s32.totalorder %s66, %s67
    %p76 = scmp.eq.s32.totalorder %s14, 0
    %p77 = por %p75, %p76
    %p78 = scmp.ne.s32.totalorder %s66, %s67
    %p79 = scmp.eq.s32.totalorder %s15, 1
    %p80 = por %p78, %p79
    %p82 = scmp.ne.s32.totalorder %s67, %s81
    %p83 = scmp.eq.s32.totalorder %s15, 0
    %p84 = por %p82, %p83
    %s85 = ssub.s32 %s9, %s16
    %p86 = scmp.eq.s32.totalorder %s85, 0
    %s88 = sadd.s32 %s87, 1
    %s89 = scalar_select %p86, %s87, %s88
    %p92 = pneg %p86
    %p93 = scmp.eq.s32.totalorder %s9, 1
    %p94 = por %p92, %p93
    %p95 = scmp.ne.s32.totalorder %s87, %s90
    %p96 = scmp.eq.s32.totalorder %s9, 0
    %p97 = por %p95, %p96
    %p98 = scmp.ne.s32.totalorder %s87, %s90
    %p99 = scmp.eq.s32.totalorder %s14, 1
    %p100 = por %p98, %p99
    %p101 = scmp.ne.s32.totalorder %s90, %s91
    %p102 = scmp.eq.s32.totalorder %s14, 0
    %p103 = por %p101, %p102
    %p104 = scmp.ne.s32.totalorder %s90, %s91
    %p105 = scmp.eq.s32.totalorder %s15, 1
    %p106 = por %p104, %p105
    %p108 = scmp.ne.s32.totalorder %s91, %s107
    %p109 = scmp.eq.s32.totalorder %s15, 0
    %p110 = por %p108, %p109
    %p111 = scmp.le.s32.totalorder 1, %s9
    %p112 = scmp.lt.s32.totalorder %s9, 3
    %p113 = pnand %p111, %p112
    %p114 = pneg %p113
    // Predicated region
    $region9: #{_lambda_.11} parent=5 // pred_check
      _
    $region10: #{_lambda_.11} parent=5 // pred_check_branch
      %116 = sbr.rel (%p113) target = $region12
    $region11: #{_lambda_.11} parent=5 // pred_region
      %s117 = ssub.s32 %s9, 1
      // Predicated region
      $region13: #{_lambda_.11} parent=11 // pred_check
        %p118 = pneg %p56
      $region14: #{_lambda_.11} parent=11 // pred_check_branch
        %120 = sbr.rel (%p118) target = $region16
      $region15: #{_lambda_.11} parent=11 // pred_region
        _
      $region16: #{_lambda_.11} parent=11 // pred_fallthru
        _
      // Predicated region
      $region17: #{_lambda_.11} parent=11 // pred_check
        %p121 = pneg %p77
      $region18: #{_lambda_.11} parent=11 // pred_check_branch
        %123 = sbr.rel (%p121) target = $region20
      $region19: #{_lambda_.11} parent=11 // pred_region
        _
      $region20: #{_lambda_.11} parent=11 // pred_fallthru
        _
    $region12: #{_lambda_.11} parent=5 // pred_fallthru
      _
    %p124 = scmp.lt.s32.totalorder %s9, 2
    // Predicated region
    $region21: #{_lambda_.11} parent=5 // pred_check
      %p125 = pneg %p124
    $region22: #{_lambda_.11} parent=5 // pred_check_branch
      %127 = sbr.rel (%p125) target = $region24
    $region23: #{_lambda_.11} parent=5 // pred_region
      // Predicated region
      $region25: #{_lambda_.11} parent=23 // pred_check
        %p128 = pneg %p29
      $region26: #{_lambda_.11} parent=23 // pred_check_branch
        %130 = sbr.rel (%p128) target = $region28
      $region27: #{_lambda_.11} parent=23 // pred_region
        %p131 = scmp.lt.s32.totalorder %s9, 1
        %s132 = scalar_select %p131, %s9, 1
        %s133 = smul.addr %s132, 37
        %s134 = smul.addr %s133, 4
        %s135 = scalar_lea.vmem %s0, %s134
      $region28: #{_lambda_.11} parent=23 // pred_fallthru
        _
    $region24: #{_lambda_.11} parent=5 // pred_fallthru
      _
    %p136 = scmp.le.s32.totalorder 1, %s9
    %p137 = scmp.lt.s32.totalorder %s9, 3
    %p138 = pnand %p136, %p137
    %p139 = pneg %p138
    // Predicated region
    $region29: #{_lambda_.11} parent=5 // pred_check
      _
    $region30: #{_lambda_.11} parent=5 // pred_check_branch
      %141 = sbr.rel (%p138) target = $region32
    $region31: #{_lambda_.11} parent=5 // pred_region
      %s142 = ssub.s32 %s9, 1
      %p143 = scmp.lt.s32.totalorder %s14, 1
      %s144 = scalar_select %p143, %s14, 1
      %s145 = smul.addr %s144, 37
      %s146 = smul.addr %s145, 4
      %s147 = scalar_lea.vmem %s0, %s146
      %p148 = pneg %p35
      %p149 = pneg %p32
      %p150 = pneg %p56
      %p151 = pneg %p53
      %p152 = pneg %p77
      %p153 = pneg %p74
      %p154 = pneg %p103
      %p155 = pneg %p100
      %p156 = scmp.lt.s32.totalorder %s14, 1
      %s157 = scalar_select %p156, %s14, 1
      %s158 = smul.addr %s157, 34
      %s159 = smul.addr %s158, 4
      %s160 = scalar_lea.vmem %s3, %s159
      %p161 = scmp.lt.s32.totalorder %s14, 1
      %s162 = scalar_select %p161, %s14, 1
      %s163 = smul.addr %s162, 37
      %s164 = smul.addr %s163, 4
      %s165 = scalar_lea.vmem %s0, %s164
      %p166 = scmp.lt.s32.totalorder %s14, 1
      %s167 = scalar_select %p166, %s14, 1
      %s168 = smul.addr %s167, 34
      %s169 = smul.addr %s168, 4
      %s170 = scalar_lea.vmem %s3, %s169
      %v172 = vld [vmem:[%s165] sm:$0xf]
      %v173 = vld [vmem:[%s165 + $0x4] sm:$0xf]
      %v174 = vld [vmem:[%s165 + $0x8] sm:$0xf]
      %v175 = vld [vmem:[%s165 + $0xc] sm:$0xf]
      %v176 = vld [vmem:[%s165 + $0x10] sm:$0xf]
      %v177 = vld [vmem:[%s165 + $0x14] sm:$0xf]
      %v178 = vld [vmem:[%s165 + $0x18] sm:$0xf]
      %v179 = vld [vmem:[%s165 + $0x1c] sm:$0xf]
      %v180 = vld [vmem:[%s165 + $0x20] sm:$0xf]
      %v181 = vld [vmem:[%s165 + $0x24] sm:$0xf]
      %v182 = vld [vmem:[%s165 + $0x28] sm:$0xf]
      %v183 = vld [vmem:[%s165 + $0x2c] sm:$0xf]
      %v184 = vld [vmem:[%s165 + $0x30] sm:$0xf]
      %v185 = vld [vmem:[%s165 + $0x34] sm:$0xf]
      %v186 = vld [vmem:[%s165 + $0x38] sm:$0xf]
      %v187 = vld [vmem:[%s165 + $0x3c] sm:$0xf]
      %v188 = vld [vmem:[%s165 + $0x40] sm:$0xf]
      %v189 = vld [vmem:[%s165 + $0x44] sm:$0xf]
      %v190 = vld [vmem:[%s165 + $0x48] sm:$0xf]
      %v191 = vld [vmem:[%s165 + $0x4c] sm:$0xf]
      %v192 = vld [vmem:[%s165 + $0x50] sm:$0xf]
      %v193 = vld [vmem:[%s165 + $0x54] sm:$0xf]
      %v194 = vld [vmem:[%s165 + $0x58] sm:$0xf]
      %v195 = vld [vmem:[%s165 + $0x5c] sm:$0xf]
      %v196 = vld [vmem:[%s165 + $0x60] sm:$0xf]
      %v197 = vld [vmem:[%s165 + $0x64] sm:$0xf]
      %v198 = vld [vmem:[%s165 + $0x68] sm:$0xf]
      %v199 = vld [vmem:[%s165 + $0x6c] sm:$0xf]
      %v200 = vld [vmem:[%s165 + $0x70] sm:$0xf]
      %v201 = vld [vmem:[%s165 + $0x74] sm:$0xf]
      %v202 = vld [vmem:[%s165 + $0x78] sm:$0xf]
      %v203 = vld [vmem:[%s165 + $0x7c] sm:$0xf]
      %v204 = vld [vmem:[%s165 + $0x80] sm:$0xf]
      %v205 = vld [vmem:[%s165 + $0x84] sm:$0xf]
      %v206 = vld [vmem:[%s1] sm:$0xf]
      %v207 = vld [vmem:[%s1 + $0x4] sm:$0x3]
      %v208 = vld [vmem:[%s165 + $0x88] sm:$0x1]
      %s209 = scalar_lea.vmem %s1, 8
      %v210 = vld [vmem:[%s209] sm:$0xf]
      %v211 = vld [vmem:[%s209 + $0x4] sm:$0x3]
      %v247 = vunpack.c.l.b16 %v172
      %v248 = vunpack.c.l.b16 %v173
      %v249 = vunpack.c.l.b16 %v174
      %v250 = vunpack.c.l.b16 %v175
      %v251 = vunpack.c.l.b16 %v176
      %v252 = vunpack.c.l.b16 %v177
      %v253 = vunpack.c.l.b16 %v178
      %v254 = vunpack.c.l.b16 %v179
      %v255 = vunpack.c.l.b16 %v180
      %v256 = vunpack.c.l.b16 %v181
      %v257 = vunpack.c.l.b16 %v182
      %v258 = vunpack.c.l.b16 %v183
      %v259 = vunpack.c.l.b16 %v184
      %v260 = vunpack.c.l.b16 %v185
      %v261 = vunpack.c.l.b16 %v186
      %v262 = vunpack.c.l.b16 %v187
      %v263 = vunpack.c.l.b16 %v188
      %v264 = vunpack.c.l.b16 %v189
      %v265 = vunpack.c.l.b16 %v190
      %v266 = vunpack.c.l.b16 %v191
      %v267 = vunpack.c.l.b16 %v192
      %v268 = vunpack.c.l.b16 %v193
      %v269 = vunpack.c.l.b16 %v194
      %v270 = vunpack.c.l.b16 %v195
      %v271 = vunpack.c.l.b16 %v196
      %v272 = vunpack.c.l.b16 %v197
      %v273 = vunpack.c.l.b16 %v198
      %v274 = vunpack.c.l.b16 %v199
      %v275 = vunpack.c.l.b16 %v200
      %v276 = vunpack.c.l.b16 %v201
      %v277 = vunpack.c.l.b16 %v202
      %v278 = vunpack.c.l.b16 %v203
      %v279 = vunpack.c.l.b16 %v204
      %v280 = vunpack.c.l.b16 %v205
      %v281 = vunpack.c.l.b16 %v208
      %v282 = vpack.c.b16 %v248, %v247
      %v283 = vpack.c.b16 %v250, %v249
      %v284 = vpack.c.b16 %v252, %v251
      %v285 = vpack.c.b16 %v254, %v253
      %v286 = vpack.c.b16 %v256, %v255
      %v287 = vpack.c.b16 %v258, %v257
      %v288 = vpack.c.b16 %v260, %v259
      %v289 = vpack.c.b16 %v262, %v261
      %v290 = vpack.c.b16 %v264, %v263
      %v291 = vpack.c.b16 %v266, %v265
      %v292 = vpack.c.b16 %v268, %v267
      %v293 = vpack.c.b16 %v270, %v269
      %v294 = vpack.c.b16 %v272, %v271
      %v295 = vpack.c.b16 %v274, %v273
      %v296 = vpack.c.b16 %v276, %v275
      %v297 = vpack.c.b16 %v278, %v277
      %v298 = vpack.c.b16 %v280, %v279
      %v299 = vpack.c.b16 %v281, %v281
      %vm300 = vsmask.f32 7424
      %v302 = vshrl.u32 %v282, 16
      %v304 = vshll.u32 %v282, 16
      %v306 = vrot.slane %v304, 1
      %v307 = vor.u32 %v302, %v306
      %v309 = vshll.u32 %v283, 16
      %v311 = vrot.slane %v309, 1
      %v312 = vsel %vm300, %v307, %v311
      %v313 = vshrl.u32 %v283, 16
      %v315 = vor.u32 %v313, %v311
      %v317 = vshll.u32 %v284, 16
      %v319 = vrot.slane %v317, 1
      %v320 = vsel %vm300, %v315, %v319
      %v321 = vshrl.u32 %v284, 16
      %v323 = vor.u32 %v321, %v319
      %v325 = vshll.u32 %v285, 16
      %v327 = vrot.slane %v325, 1
      %v328 = vsel %vm300, %v323, %v327
      %v329 = vshrl.u32 %v285, 16
      %v331 = vor.u32 %v329, %v327
      %v333 = vshll.u32 %v286, 16
      %v335 = vrot.slane %v333, 1
      %v336 = vsel %vm300, %v331, %v335
      %v337 = vshrl.u32 %v286, 16
      %v339 = vor.u32 %v337, %v335
      %v341 = vshll.u32 %v287, 16
      %v343 = vrot.slane %v341, 1
      %v344 = vsel %vm300, %v339, %v343
      %v345 = vshrl.u32 %v287, 16
      %v347 = vor.u32 %v345, %v343
      %v349 = vshll.u32 %v288, 16
      %v351 = vrot.slane %v349, 1
      %v352 = vsel %vm300, %v347, %v351
      %v353 = vshrl.u32 %v288, 16
      %v355 = vor.u32 %v353, %v351
      %v357 = vshll.u32 %v289, 16
      %v359 = vrot.slane %v357, 1
      %v360 = vsel %vm300, %v355, %v359
      %v361 = vshrl.u32 %v289, 16
      %v363 = vor.u32 %v361, %v359
      %v365 = vshll.u32 %v290, 16
      %v367 = vrot.slane %v365, 1
      %v368 = vsel %vm300, %v363, %v367
      %v369 = vshrl.u32 %v290, 16
      %v371 = vor.u32 %v369, %v367
      %v373 = vshll.u32 %v291, 16
      %v375 = vrot.slane %v373, 1
      %v376 = vsel %vm300, %v371, %v375
      %v377 = vshrl.u32 %v291, 16
      %v379 = vor.u32 %v377, %v375
      %v381 = vshll.u32 %v292, 16
      %v383 = vrot.slane %v381, 1
      %v384 = vsel %vm300, %v379, %v383
      %v385 = vshrl.u32 %v292, 16
      %v387 = vor.u32 %v385, %v383
      %v389 = vshll.u32 %v293, 16
      %v391 = vrot.slane %v389, 1
      %v392 = vsel %vm300, %v387, %v391
      %v393 = vshrl.u32 %v293, 16
      %v395 = vor.u32 %v393, %v391
      %v397 = vshll.u32 %v294, 16
      %v399 = vrot.slane %v397, 1
      %v400 = vsel %vm300, %v395, %v399
      %v401 = vshrl.u32 %v294, 16
      %v403 = vor.u32 %v401, %v399
      %v405 = vshll.u32 %v295, 16
      %v407 = vrot.slane %v405, 1
      %v408 = vsel %vm300, %v403, %v407
      %v409 = vshrl.u32 %v295, 16
      %v411 = vor.u32 %v409, %v407
      %v413 = vshll.u32 %v296, 16
      %v415 = vrot.slane %v413, 1
      %v416 = vsel %vm300, %v411, %v415
      %v417 = vshrl.u32 %v296, 16
      %v419 = vor.u32 %v417, %v415
      %v421 = vshll.u32 %v297, 16
      %v423 = vrot.slane %v421, 1
      %v424 = vsel %vm300, %v419, %v423
      %v425 = vshrl.u32 %v297, 16
      %v427 = vor.u32 %v425, %v423
      %v429 = vshll.u32 %v298, 16
      %v431 = vrot.slane %v429, 1
      %v432 = vsel %vm300, %v427, %v431
      %v433 = vshrl.u32 %v298, 16
      %v435 = vor.u32 %v433, %v431
      %v437 = vshll.u32 %v299, 16
      %v439 = vrot.slane %v437, 1
      %v440 = vsel %vm300, %v435, %v439
      %v443 = vunpack.c.l.b16 %v210
      %v444 = vunpack.c.l.b16 %v211
      %v445 = vpack.c.b16 %v444, %v443
      %vm446 = vcmask 97280
      %v448 = vsel %vm446, %v312, 0
      %v451 = vsel %vm446, %v320, 0
      %v454 = vsel %vm446, %v328, 0
      %v457 = vsel %vm446, %v336, 0
      %v460 = vsel %vm446, %v344, 0
      %v463 = vsel %vm446, %v352, 0
      %v466 = vsel %vm446, %v360, 0
      %v469 = vsel %vm446, %v368, 0
      %v472 = vsel %vm446, %v376, 0
      %v475 = vsel %vm446, %v384, 0
      %v478 = vsel %vm446, %v392, 0
      %v481 = vsel %vm446, %v400, 0
      %v484 = vsel %vm446, %v408, 0
      %v487 = vsel %vm446, %v416, 0
      %v490 = vsel %vm446, %v424, 0
      %v493 = vsel %vm446, %v432, 0
      %v496 = vsel %vm446, %v440, 0
      %vm498 = vcmask 1045504
      %v500 = vsel %vm498, %v445, 0
      %502 = vmatpush.bf16.msra.mxu0 0
      %503 = vmatpush.bf16.msra.mxu0 0
      %504 = vmatpush.bf16.msra.mxu0 0
      %505 = vmatpush.bf16.msra.mxu0 0
      %506 = vmatpush.bf16.msra.mxu0 0
      %507 = vmatpush.bf16.msra.mxu0 0
      %508 = vmatpush.bf16.msra.mxu0 0
      %509 = vmatpush.bf16.msra.mxu0 %v500
      %510 = vmatmul.bf16.gmra.mxu0 %v448
      %v511 = vpop.f32.mrf.mxu0
      %v512 = vadd.f32 0.0, %v511
      %v513 = vpop.f32.mrf.mxu0
      %v514 = vadd.f32 0.0, %v513
      %515 = vmatmul.bf16.gmra.mxu0 %v451
      %v516 = vpop.f32.mrf.mxu0
      %v517 = vadd.f32 0.0, %v516
      %v518 = vpop.f32.mrf.mxu0
      %v519 = vadd.f32 0.0, %v518
      %520 = vmatmul.bf16.gmra.mxu0 %v454
      %v521 = vpop.f32.mrf.mxu0
      %v522 = vadd.f32 0.0, %v521
      %v523 = vpop.f32.mrf.mxu0
      %v524 = vadd.f32 0.0, %v523
      %525 = vmatmul.bf16.gmra.mxu0 %v457
      %v526 = vpop.f32.mrf.mxu0
      %v527 = vadd.f32 0.0, %v526
      %v528 = vpop.f32.mrf.mxu0
      %v529 = vadd.f32 0.0, %v528
      %530 = vmatmul.bf16.gmra.mxu0 %v460
      %v531 = vpop.f32.mrf.mxu0
      %v532 = vadd.f32 0.0, %v531
      %v533 = vpop.f32.mrf.mxu0
      %v534 = vadd.f32 0.0, %v533
      %535 = vmatmul.bf16.gmra.mxu0 %v463
      %v536 = vpop.f32.mrf.mxu0
      %v537 = vadd.f32 0.0, %v536
      %v538 = vpop.f32.mrf.mxu0
      %v539 = vadd.f32 0.0, %v538
      %540 = vmatmul.bf16.gmra.mxu0 %v466
      %v541 = vpop.f32.mrf.mxu0
      %v542 = vadd.f32 0.0, %v541
      %v543 = vpop.f32.mrf.mxu0
      %v544 = vadd.f32 0.0, %v543
      %545 = vmatmul.bf16.gmra.mxu0 %v469
      %v546 = vpop.f32.mrf.mxu0
      %v547 = vadd.f32 0.0, %v546
      %v548 = vpop.f32.mrf.mxu0
      %v549 = vadd.f32 0.0, %v548
      %550 = vmatmul.bf16.gmra.mxu0 %v472
      %v551 = vpop.f32.mrf.mxu0
      %v552 = vadd.f32 0.0, %v551
      %v553 = vpop.f32.mrf.mxu0
      %v554 = vadd.f32 0.0, %v553
      %555 = vmatmul.bf16.gmra.mxu0 %v475
      %v556 = vpop.f32.mrf.mxu0
      %v557 = vadd.f32 0.0, %v556
      %v558 = vpop.f32.mrf.mxu0
      %v559 = vadd.f32 0.0, %v558
      %560 = vmatmul.bf16.gmra.mxu0 %v478
      %v561 = vpop.f32.mrf.mxu0
      %v562 = vadd.f32 0.0, %v561
      %v563 = vpop.f32.mrf.mxu0
      %v564 = vadd.f32 0.0, %v563
      %565 = vmatmul.bf16.gmra.mxu0 %v481
      %v566 = vpop.f32.mrf.mxu0
      %v567 = vadd.f32 0.0, %v566
      %v568 = vpop.f32.mrf.mxu0
      %v569 = vadd.f32 0.0, %v568
      %570 = vmatmul.bf16.gmra.mxu0 %v484
      %v571 = vpop.f32.mrf.mxu0
      %v572 = vadd.f32 0.0, %v571
      %v573 = vpop.f32.mrf.mxu0
      %v574 = vadd.f32 0.0, %v573
      %575 = vmatmul.bf16.gmra.mxu0 %v487
      %v576 = vpop.f32.mrf.mxu0
      %v577 = vadd.f32 0.0, %v576
      %v578 = vpop.f32.mrf.mxu0
      %v579 = vadd.f32 0.0, %v578
      %580 = vmatmul.bf16.gmra.mxu0 %v490
      %v581 = vpop.f32.mrf.mxu0
      %v582 = vadd.f32 0.0, %v581
      %v583 = vpop.f32.mrf.mxu0
      %v584 = vadd.f32 0.0, %v583
      %585 = vmatmul.bf16.gmra.mxu0 %v493
      %v586 = vpop.f32.mrf.mxu0
      %v587 = vadd.f32 0.0, %v586
      %v588 = vpop.f32.mrf.mxu0
      %v589 = vadd.f32 0.0, %v588
      %590 = vmatmul.bf16.gmra.mxu0 %v496
      %v591 = vpop.f32.mrf.mxu0
      %v592 = vadd.f32 0.0, %v591
      %v593 = vpop.f32.mrf.mxu0
      %v594 = vadd.f32 0.0, %v593
      %595 = vdwg.mxu0
      %v598 = vunpack.c.l.b16 %v206
      %v599 = vunpack.c.l.b16 %v207
      %v600 = vpack.c.b16 %v599, %v598
      %v601 = vsel %vm446, %v282, 0
      %v603 = vsel %vm446, %v283, 0
      %v605 = vsel %vm446, %v284, 0
      %v607 = vsel %vm446, %v285, 0
      %v609 = vsel %vm446, %v286, 0
      %v611 = vsel %vm446, %v287, 0
      %v613 = vsel %vm446, %v288, 0
      %v615 = vsel %vm446, %v289, 0
      %v617 = vsel %vm446, %v290, 0
      %v619 = vsel %vm446, %v291, 0
      %v621 = vsel %vm446, %v292, 0
      %v623 = vsel %vm446, %v293, 0
      %v625 = vsel %vm446, %v294, 0
      %v627 = vsel %vm446, %v295, 0
      %v629 = vsel %vm446, %v296, 0
      %v631 = vsel %vm446, %v297, 0
      %v633 = vsel %vm446, %v298, 0
      %v636 = vsel %vm498, %v600, 0
      %638 = vmatpush.bf16.msra.mxu0 0
      %639 = vmatpush.bf16.msra.mxu0 0
      %640 = vmatpush.bf16.msra.mxu0 0
      %641 = vmatpush.bf16.msra.mxu0 0
      %642 = vmatpush.bf16.msra.mxu0 0
      %643 = vmatpush.bf16.msra.mxu0 0
      %644 = vmatpush.bf16.msra.mxu0 0
      %645 = vmatpush.bf16.msra.mxu0 %v636
      %646 = vmatmul.bf16.gmra.mxu0 %v601
      %v647 = vpop.f32.mrf.mxu0
      %v648 = vadd.f32 %v512, %v647
      %v649 = vpop.f32.mrf.mxu0
      %v650 = vadd.f32 %v514, %v649
      %651 = vmatmul.bf16.gmra.mxu0 %v603
      %v652 = vpop.f32.mrf.mxu0
      %v653 = vadd.f32 %v517, %v652
      %v654 = vpop.f32.mrf.mxu0
      %v655 = vadd.f32 %v519, %v654
      %656 = vmatmul.bf16.gmra.mxu0 %v605
      %v657 = vpop.f32.mrf.mxu0
      %v658 = vadd.f32 %v522, %v657
      %v659 = vpop.f32.mrf.mxu0
      %v660 = vadd.f32 %v524, %v659
      %661 = vmatmul.bf16.gmra.mxu0 %v607
      %v662 = vpop.f32.mrf.mxu0
      %v663 = vadd.f32 %v527, %v662
      %v664 = vpop.f32.mrf.mxu0
      %v665 = vadd.f32 %v529, %v664
      %666 = vmatmul.bf16.gmra.mxu0 %v609
      %v667 = vpop.f32.mrf.mxu0
      %v668 = vadd.f32 %v532, %v667
      %v669 = vpop.f32.mrf.mxu0
      %v670 = vadd.f32 %v534, %v669
      %671 = vmatmul.bf16.gmra.mxu0 %v611
      %v672 = vpop.f32.mrf.mxu0
      %v673 = vadd.f32 %v537, %v672
      %v674 = vpop.f32.mrf.mxu0
      %v675 = vadd.f32 %v539, %v674
      %676 = vmatmul.bf16.gmra.mxu0 %v613
      %v677 = vpop.f32.mrf.mxu0
      %v678 = vadd.f32 %v542, %v677
      %v679 = vpop.f32.mrf.mxu0
      %v680 = vadd.f32 %v544, %v679
      %681 = vmatmul.bf16.gmra.mxu0 %v615
      %v682 = vpop.f32.mrf.mxu0
      %v683 = vadd.f32 %v547, %v682
      %v684 = vpop.f32.mrf.mxu0
      %v685 = vadd.f32 %v549, %v684
      %686 = vmatmul.bf16.gmra.mxu0 %v617
      %v687 = vpop.f32.mrf.mxu0
      %v688 = vadd.f32 %v552, %v687
      %v689 = vpop.f32.mrf.mxu0
      %v690 = vadd.f32 %v554, %v689
      %691 = vmatmul.bf16.gmra.mxu0 %v619
      %v692 = vpop.f32.mrf.mxu0
      %v693 = vadd.f32 %v557, %v692
      %v694 = vpop.f32.mrf.mxu0
      %v695 = vadd.f32 %v559, %v694
      %696 = vmatmul.bf16.gmra.mxu0 %v621
      %v697 = vpop.f32.mrf.mxu0
      %v698 = vadd.f32 %v562, %v697
      %v699 = vpop.f32.mrf.mxu0
      %v700 = vadd.f32 %v564, %v699
      %701 = vmatmul.bf16.gmra.mxu0 %v623
      %v702 = vpop.f32.mrf.mxu0
      %v703 = vadd.f32 %v567, %v702
      %v704 = vpop.f32.mrf.mxu0
      %v705 = vadd.f32 %v569, %v704
      %706 = vmatmul.bf16.gmra.mxu0 %v625
      %v707 = vpop.f32.mrf.mxu0
      %v708 = vadd.f32 %v572, %v707
      %v709 = vpop.f32.mrf.mxu0
      %v710 = vadd.f32 %v574, %v709
      %711 = vmatmul.bf16.gmra.mxu0 %v627
      %v712 = vpop.f32.mrf.mxu0
      %v713 = vadd.f32 %v577, %v712
      %v714 = vpop.f32.mrf.mxu0
      %v715 = vadd.f32 %v579, %v714
      %716 = vmatmul.bf16.gmra.mxu0 %v629
      %v717 = vpop.f32.mrf.mxu0
      %v718 = vadd.f32 %v582, %v717
      %v719 = vpop.f32.mrf.mxu0
      %v720 = vadd.f32 %v584, %v719
      %721 = vmatmul.bf16.gmra.mxu0 %v631
      %v722 = vpop.f32.mrf.mxu0
      %v723 = vadd.f32 %v587, %v722
      %v724 = vpop.f32.mrf.mxu0
      %v725 = vadd.f32 %v589, %v724
      %726 = vmatmul.bf16.gmra.mxu0 %v633
      %v727 = vpop.f32.mrf.mxu0
      %v728 = vadd.f32 %v592, %v727
      %v729 = vpop.f32.mrf.mxu0
      %v730 = vadd.f32 %v594, %v729
      %731 = vdwg.mxu0
      %v732 = vld [vmem:[%s165 + $0x8] sm:$0xf]
      %v733 = vld [vmem:[%s165 + $0xc] sm:$0xf]
      %v734 = vld [vmem:[%s165 + $0x10] sm:$0xf]
      %v735 = vld [vmem:[%s165 + $0x14] sm:$0xf]
      %v736 = vld [vmem:[%s165 + $0x18] sm:$0xf]
      %v737 = vld [vmem:[%s165 + $0x1c] sm:$0xf]
      %v738 = vld [vmem:[%s165 + $0x20] sm:$0xf]
      %v739 = vld [vmem:[%s165 + $0x24] sm:$0xf]
      %v740 = vld [vmem:[%s165 + $0x28] sm:$0xf]
      %v741 = vld [vmem:[%s165 + $0x2c] sm:$0xf]
      %v742 = vld [vmem:[%s165 + $0x30] sm:$0xf]
      %v743 = vld [vmem:[%s165 + $0x34] sm:$0xf]
      %v744 = vld [vmem:[%s165 + $0x38] sm:$0xf]
      %v745 = vld [vmem:[%s165 + $0x3c] sm:$0xf]
      %v746 = vld [vmem:[%s165 + $0x40] sm:$0xf]
      %v747 = vld [vmem:[%s165 + $0x44] sm:$0xf]
      %v748 = vld [vmem:[%s165 + $0x48] sm:$0xf]
      %v749 = vld [vmem:[%s165 + $0x4c] sm:$0xf]
      %v750 = vld [vmem:[%s165 + $0x50] sm:$0xf]
      %v751 = vld [vmem:[%s165 + $0x54] sm:$0xf]
      %v752 = vld [vmem:[%s165 + $0x58] sm:$0xf]
      %v753 = vld [vmem:[%s165 + $0x5c] sm:$0xf]
      %v754 = vld [vmem:[%s165 + $0x60] sm:$0xf]
      %v755 = vld [vmem:[%s165 + $0x64] sm:$0xf]
      %v756 = vld [vmem:[%s165 + $0x68] sm:$0xf]
      %v757 = vld [vmem:[%s165 + $0x6c] sm:$0xf]
      %v758 = vld [vmem:[%s165 + $0x70] sm:$0xf]
      %v759 = vld [vmem:[%s165 + $0x74] sm:$0xf]
      %v760 = vld [vmem:[%s165 + $0x78] sm:$0xf]
      %v761 = vld [vmem:[%s165 + $0x7c] sm:$0xf]
      %v762 = vld [vmem:[%s165 + $0x80] sm:$0xf]
      %v763 = vld [vmem:[%s165 + $0x84] sm:$0xf]
      %v764 = vld [vmem:[%s165 + $0x88] sm:$0xf]
      %v765 = vld [vmem:[%s165 + $0x8c] sm:$0xf]
      %v766 = vld [vmem:[%s165 + $0x90] sm:$0x1]
      %s767 = scalar_lea.vmem %s1, 16
      %v768 = vld [vmem:[%s767] sm:$0xf]
      %v769 = vld [vmem:[%s767 + $0x4] sm:$0x3]
      %v805 = vunpack.c.l.b16 %v732
      %v806 = vunpack.c.l.b16 %v733
      %v807 = vunpack.c.l.b16 %v734
      %v808 = vunpack.c.l.b16 %v735
      %v809 = vunpack.c.l.b16 %v736
      %v810 = vunpack.c.l.b16 %v737
      %v811 = vunpack.c.l.b16 %v738
      %v812 = vunpack.c.l.b16 %v739
      %v813 = vunpack.c.l.b16 %v740
      %v814 = vunpack.c.l.b16 %v741
      %v815 = vunpack.c.l.b16 %v742
      %v816 = vunpack.c.l.b16 %v743
      %v817 = vunpack.c.l.b16 %v744
      %v818 = vunpack.c.l.b16 %v745
      %v819 = vunpack.c.l.b16 %v746
      %v820 = vunpack.c.l.b16 %v747
      %v821 = vunpack.c.l.b16 %v748
      %v822 = vunpack.c.l.b16 %v749
      %v823 = vunpack.c.l.b16 %v750
      %v824 = vunpack.c.l.b16 %v751
      %v825 = vunpack.c.l.b16 %v752
      %v826 = vunpack.c.l.b16 %v753
      %v827 = vunpack.c.l.b16 %v754
      %v828 = vunpack.c.l.b16 %v755
      %v829 = vunpack.c.l.b16 %v756
      %v830 = vunpack.c.l.b16 %v757
      %v831 = vunpack.c.l.b16 %v758
      %v832 = vunpack.c.l.b16 %v759
      %v833 = vunpack.c.l.b16 %v760
      %v834 = vunpack.c.l.b16 %v761
      %v835 = vunpack.c.l.b16 %v762
      %v836 = vunpack.c.l.b16 %v763
      %v837 = vunpack.c.l.b16 %v764
      %v838 = vunpack.c.l.b16 %v765
      %v839 = vunpack.c.l.b16 %v766
      %v840 = vpack.c.b16 %v806, %v805
      %v841 = vpack.c.b16 %v808, %v807
      %v842 = vpack.c.b16 %v810, %v809
      %v843 = vpack.c.b16 %v812, %v811
      %v844 = vpack.c.b16 %v814, %v813
      %v845 = vpack.c.b16 %v816, %v815
      %v846 = vpack.c.b16 %v818, %v817
      %v847 = vpack.c.b16 %v820, %v819
      %v848 = vpack.c.b16 %v822, %v821
      %v849 = vpack.c.b16 %v824, %v823
      %v850 = vpack.c.b16 %v826, %v825
      %v851 = vpack.c.b16 %v828, %v827
      %v852 = vpack.c.b16 %v830, %v829
      %v853 = vpack.c.b16 %v832, %v831
      %v854 = vpack.c.b16 %v834, %v833
      %v855 = vpack.c.b16 %v836, %v835
      %v856 = vpack.c.b16 %v838, %v837
      %v857 = vpack.c.b16 %v839, %v839
      %v859 = vshrl.u32 %v840, 16
      %v861 = vshll.u32 %v840, 16
      %v863 = vrot.slane %v861, 1
      %v864 = vor.u32 %v859, %v863
      %v866 = vshll.u32 %v841, 16
      %v868 = vrot.slane %v866, 1
      %v869 = vsel %vm300, %v864, %v868
      %v870 = vshrl.u32 %v841, 16
      %v872 = vor.u32 %v870, %v868
      %v874 = vshll.u32 %v842, 16
      %v876 = vrot.slane %v874, 1
      %v877 = vsel %vm300, %v872, %v876
      %v878 = vshrl.u32 %v842, 16
      %v880 = vor.u32 %v878, %v876
      %v882 = vshll.u32 %v843, 16
      %v884 = vrot.slane %v882, 1
      %v885 = vsel %vm300, %v880, %v884
      %v886 = vshrl.u32 %v843, 16
      %v888 = vor.u32 %v886, %v884
      %v890 = vshll.u32 %v844, 16
      %v892 = vrot.slane %v890, 1
      %v893 = vsel %vm300, %v888, %v892
      %v894 = vshrl.u32 %v844, 16
      %v896 = vor.u32 %v894, %v892
      %v898 = vshll.u32 %v845, 16
      %v900 = vrot.slane %v898, 1
      %v901 = vsel %vm300, %v896, %v900
      %v902 = vshrl.u32 %v845, 16
      %v904 = vor.u32 %v902, %v900
      %v906 = vshll.u32 %v846, 16
      %v908 = vrot.slane %v906, 1
      %v909 = vsel %vm300, %v904, %v908
      %v910 = vshrl.u32 %v846, 16
      %v912 = vor.u32 %v910, %v908
      %v914 = vshll.u32 %v847, 16
      %v916 = vrot.slane %v914, 1
      %v917 = vsel %vm300, %v912, %v916
      %v918 = vshrl.u32 %v847, 16
      %v920 = vor.u32 %v918, %v916
      %v922 = vshll.u32 %v848, 16
      %v924 = vrot.slane %v922, 1
      %v925 = vsel %vm300, %v920, %v924
      %v926 = vshrl.u32 %v848, 16
      %v928 = vor.u32 %v926, %v924
      %v930 = vshll.u32 %v849, 16
      %v932 = vrot.slane %v930, 1
      %v933 = vsel %vm300, %v928, %v932
      %v934 = vshrl.u32 %v849, 16
      %v936 = vor.u32 %v934, %v932
      %v938 = vshll.u32 %v850, 16
      %v940 = vrot.slane %v938, 1
      %v941 = vsel %vm300, %v936, %v940
      %v942 = vshrl.u32 %v850, 16
      %v944 = vor.u32 %v942, %v940
      %v946 = vshll.u32 %v851, 16
      %v948 = vrot.slane %v946, 1
      %v949 = vsel %vm300, %v944, %v948
      %v950 = vshrl.u32 %v851, 16
      %v952 = vor.u32 %v950, %v948
      %v954 = vshll.u32 %v852, 16
      %v956 = vrot.slane %v954, 1
      %v957 = vsel %vm300, %v952, %v956
      %v958 = vshrl.u32 %v852, 16
      %v960 = vor.u32 %v958, %v956
      %v962 = vshll.u32 %v853, 16
      %v964 = vrot.slane %v962, 1
      %v965 = vsel %vm300, %v960, %v964
      %v966 = vshrl.u32 %v853, 16
      %v968 = vor.u32 %v966, %v964
      %v970 = vshll.u32 %v854, 16
      %v972 = vrot.slane %v970, 1
      %v973 = vsel %vm300, %v968, %v972
      %v974 = vshrl.u32 %v854, 16
      %v976 = vor.u32 %v974, %v972
      %v978 = vshll.u32 %v855, 16
      %v980 = vrot.slane %v978, 1
      %v981 = vsel %vm300, %v976, %v980
      %v982 = vshrl.u32 %v855, 16
      %v984 = vor.u32 %v982, %v980
      %v986 = vshll.u32 %v856, 16
      %v988 = vrot.slane %v986, 1
      %v989 = vsel %vm300, %v984, %v988
      %v990 = vshrl.u32 %v856, 16
      %v992 = vor.u32 %v990, %v988
      %v994 = vshll.u32 %v857, 16
      %v996 = vrot.slane %v994, 1
      %v997 = vsel %vm300, %v992, %v996
      %v1000 = vunpack.c.l.b16 %v768
      %v1001 = vunpack.c.l.b16 %v769
      %v1002 = vpack.c.b16 %v1001, %v1000
      %v1004 = vsel %vm446, %v869, 0
      %v1007 = vsel %vm446, %v877, 0
      %v1010 = vsel %vm446, %v885, 0
      %v1013 = vsel %vm446, %v893, 0
      %v1016 = vsel %vm446, %v901, 0
      %v1019 = vsel %vm446, %v909, 0
      %v1022 = vsel %vm446, %v917, 0
      %v1025 = vsel %vm446, %v925, 0
      %v1028 = vsel %vm446, %v933, 0
      %v1031 = vsel %vm446, %v941, 0
      %v1034 = vsel %vm446, %v949, 0
      %v1037 = vsel %vm446, %v957, 0
      %v1040 = vsel %vm446, %v965, 0
      %v1043 = vsel %vm446, %v973, 0
      %v1046 = vsel %vm446, %v981, 0
      %v1049 = vsel %vm446, %v989, 0
      %v1052 = vsel %vm446, %v997, 0
      %v1055 = vsel %vm498, %v1002, 0
      %1057 = vmatpush.bf16.msra.mxu0 0
      %1058 = vmatpush.bf16.msra.mxu0 0
      %1059 = vmatpush.bf16.msra.mxu0 0
      %1060 = vmatpush.bf16.msra.mxu0 0
      %1061 = vmatpush.bf16.msra.mxu0 0
      %1062 = vmatpush.bf16.msra.mxu0 0
      %1063 = vmatpush.bf16.msra.mxu0 0
      %1064 = vmatpush.bf16.msra.mxu0 %v1055
      %1065 = vmatmul.bf16.gmra.mxu0 %v1004
      %v1066 = vpop.f32.mrf.mxu0
      %v1067 = vadd.f32 0.0, %v1066
      %v1068 = vpop.f32.mrf.mxu0
      %v1069 = vadd.f32 0.0, %v1068
      %1070 = vmatmul.bf16.gmra.mxu0 %v1007
      %v1071 = vpop.f32.mrf.mxu0
      %v1072 = vadd.f32 0.0, %v1071
      %v1073 = vpop.f32.mrf.mxu0
      %v1074 = vadd.f32 0.0, %v1073
      %1075 = vmatmul.bf16.gmra.mxu0 %v1010
      %v1076 = vpop.f32.mrf.mxu0
      %v1077 = vadd.f32 0.0, %v1076
      %v1078 = vpop.f32.mrf.mxu0
      %v1079 = vadd.f32 0.0, %v1078
      %1080 = vmatmul.bf16.gmra.mxu0 %v1013
      %v1081 = vpop.f32.mrf.mxu0
      %v1082 = vadd.f32 0.0, %v1081
      %v1083 = vpop.f32.mrf.mxu0
      %v1084 = vadd.f32 0.0, %v1083
      %1085 = vmatmul.bf16.gmra.mxu0 %v1016
      %v1086 = vpop.f32.mrf.mxu0
      %v1087 = vadd.f32 0.0, %v1086
      %v1088 = vpop.f32.mrf.mxu0
      %v1089 = vadd.f32 0.0, %v1088
      %1090 = vmatmul.bf16.gmra.mxu0 %v1019
      %v1091 = vpop.f32.mrf.mxu0
      %v1092 = vadd.f32 0.0, %v1091
      %v1093 = vpop.f32.mrf.mxu0
      %v1094 = vadd.f32 0.0, %v1093
      %1095 = vmatmul.bf16.gmra.mxu0 %v1022
      %v1096 = vpop.f32.mrf.mxu0
      %v1097 = vadd.f32 0.0, %v1096
      %v1098 = vpop.f32.mrf.mxu0
      %v1099 = vadd.f32 0.0, %v1098
      %1100 = vmatmul.bf16.gmra.mxu0 %v1025
      %v1101 = vpop.f32.mrf.mxu0
      %v1102 = vadd.f32 0.0, %v1101
      %v1103 = vpop.f32.mrf.mxu0
      %v1104 = vadd.f32 0.0, %v1103
      %1105 = vmatmul.bf16.gmra.mxu0 %v1028
      %v1106 = vpop.f32.mrf.mxu0
      %v1107 = vadd.f32 0.0, %v1106
      %v1108 = vpop.f32.mrf.mxu0
      %v1109 = vadd.f32 0.0, %v1108
      %1110 = vmatmul.bf16.gmra.mxu0 %v1031
      %v1111 = vpop.f32.mrf.mxu0
      %v1112 = vadd.f32 0.0, %v1111
      %v1113 = vpop.f32.mrf.mxu0
      %v1114 = vadd.f32 0.0, %v1113
      %1115 = vmatmul.bf16.gmra.mxu0 %v1034
      %v1116 = vpop.f32.mrf.mxu0
      %v1117 = vadd.f32 0.0, %v1116
      %v1118 = vpop.f32.mrf.mxu0
      %v1119 = vadd.f32 0.0, %v1118
      %1120 = vmatmul.bf16.gmra.mxu0 %v1037
      %v1121 = vpop.f32.mrf.mxu0
      %v1122 = vadd.f32 0.0, %v1121
      %v1123 = vpop.f32.mrf.mxu0
      %v1124 = vadd.f32 0.0, %v1123
      %1125 = vmatmul.bf16.gmra.mxu0 %v1040
      %v1126 = vpop.f32.mrf.mxu0
      %v1127 = vadd.f32 0.0, %v1126
      %v1128 = vpop.f32.mrf.mxu0
      %v1129 = vadd.f32 0.0, %v1128
      %1130 = vmatmul.bf16.gmra.mxu0 %v1043
      %v1131 = vpop.f32.mrf.mxu0
      %v1132 = vadd.f32 0.0, %v1131
      %v1133 = vpop.f32.mrf.mxu0
      %v1134 = vadd.f32 0.0, %v1133
      %1135 = vmatmul.bf16.gmra.mxu0 %v1046
      %v1136 = vpop.f32.mrf.mxu0
      %v1137 = vadd.f32 0.0, %v1136
      %v1138 = vpop.f32.mrf.mxu0
      %v1139 = vadd.f32 0.0, %v1138
      %1140 = vmatmul.bf16.gmra.mxu0 %v1049
      %v1141 = vpop.f32.mrf.mxu0
      %v1142 = vadd.f32 0.0, %v1141
      %v1143 = vpop.f32.mrf.mxu0
      %v1144 = vadd.f32 0.0, %v1143
      %1145 = vmatmul.bf16.gmra.mxu0 %v1052
      %v1146 = vpop.f32.mrf.mxu0
      %v1147 = vadd.f32 0.0, %v1146
      %v1148 = vpop.f32.mrf.mxu0
      %v1149 = vadd.f32 0.0, %v1148
      %1150 = vdwg.mxu0
      %v1151 = vadd.f32 %v648, %v1067
      %v1152 = vadd.f32 %v650, %v1069
      %v1153 = vadd.f32 %v653, %v1072
      %v1154 = vadd.f32 %v655, %v1074
      %v1155 = vadd.f32 %v658, %v1077
      %v1156 = vadd.f32 %v660, %v1079
      %v1157 = vadd.f32 %v663, %v1082
      %v1158 = vadd.f32 %v665, %v1084
      %v1159 = vadd.f32 %v668, %v1087
      %v1160 = vadd.f32 %v670, %v1089
      %v1161 = vadd.f32 %v673, %v1092
      %v1162 = vadd.f32 %v675, %v1094
      %v1163 = vadd.f32 %v678, %v1097
      %v1164 = vadd.f32 %v680, %v1099
      %v1165 = vadd.f32 %v683, %v1102
      %v1166 = vadd.f32 %v685, %v1104
      %v1167 = vadd.f32 %v688, %v1107
      %v1168 = vadd.f32 %v690, %v1109
      %v1169 = vadd.f32 %v693, %v1112
      %v1170 = vadd.f32 %v695, %v1114
      %v1171 = vadd.f32 %v698, %v1117
      %v1172 = vadd.f32 %v700, %v1119
      %v1173 = vadd.f32 %v703, %v1122
      %v1174 = vadd.f32 %v705, %v1124
      %v1175 = vadd.f32 %v708, %v1127
      %v1176 = vadd.f32 %v710, %v1129
      %v1177 = vadd.f32 %v713, %v1132
      %v1178 = vadd.f32 %v715, %v1134
      %v1179 = vadd.f32 %v718, %v1137
      %v1180 = vadd.f32 %v720, %v1139
      %v1181 = vadd.f32 %v723, %v1142
      %v1182 = vadd.f32 %v725, %v1144
      %v1183 = vadd.f32 %v728, %v1147
      %v1184 = vadd.f32 %v730, %v1149
      %v1185 = vld [vmem:[%s165 + $0x8] sm:$0xe]
      %s1186 = scalar_lea.vmem %s1, 24
      %v1187 = vld [vmem:[%s1186] sm:$0xf]
      %v1188 = vld [vmem:[%s1186 + $0x4] sm:$0x3]
      %v1190 = vunpack.c.l.b16 %v1185
      %v1191 = vpack.c.b16 %v806, %v1190
      %vm1192 = vcmask 1046528
      %v1193 = vrot.slane %v1191, 1
      %v1194 = vrot.slane %v841, 1
      %v1195 = vsel %vm1192, %v1193, %v1194
      %v1196 = vrot.slane %v842, 1
      %v1197 = vsel %vm1192, %v1194, %v1196
      %v1198 = vrot.slane %v843, 1
      %v1199 = vsel %vm1192, %v1196, %v1198
      %v1200 = vrot.slane %v844, 1
      %v1201 = vsel %vm1192, %v1198, %v1200
      %v1202 = vrot.slane %v845, 1
      %v1203 = vsel %vm1192, %v1200, %v1202
      %v1204 = vrot.slane %v846, 1
      %v1205 = vsel %vm1192, %v1202, %v1204
      %v1206 = vrot.slane %v847, 1
      %v1207 = vsel %vm1192, %v1204, %v1206
      %v1208 = vrot.slane %v848, 1
      %v1209 = vsel %vm1192, %v1206, %v1208
      %v1210 = vrot.slane %v849, 1
      %v1211 = vsel %vm1192, %v1208, %v1210
      %v1212 = vrot.slane %v850, 1
      %v1213 = vsel %vm1192, %v1210, %v1212
      %v1214 = vrot.slane %v851, 1
      %v1215 = vsel %vm1192, %v1212, %v1214
      %v1216 = vrot.slane %v852, 1
      %v1217 = vsel %vm1192, %v1214, %v1216
      %v1218 = vrot.slane %v853, 1
      %v1219 = vsel %vm1192, %v1216, %v1218
      %v1220 = vrot.slane %v854, 1
      %v1221 = vsel %vm1192, %v1218, %v1220
      %v1222 = vrot.slane %v855, 1
      %v1223 = vsel %vm1192, %v1220, %v1222
      %v1224 = vrot.slane %v856, 1
      %v1225 = vsel %vm1192, %v1222, %v1224
      %v1226 = vrot.slane %v857, 1
      %v1227 = vsel %vm1192, %v1224, %v1226
      %v1230 = vunpack.c.l.b16 %v1187
      %v1231 = vunpack.c.l.b16 %v1188
      %v1232 = vpack.c.b16 %v1231, %v1230
      %v1234 = vsel %vm446, %v1195, 0
      %v1237 = vsel %vm446, %v1197, 0
      %v1240 = vsel %vm446, %v1199, 0
      %v1243 = vsel %vm446, %v1201, 0
      %v1246 = vsel %vm446, %v1203, 0
      %v1249 = vsel %vm446, %v1205, 0
      %v1252 = vsel %vm446, %v1207, 0
      %v1255 = vsel %vm446, %v1209, 0
      %v1258 = vsel %vm446, %v1211, 0
      %v1261 = vsel %vm446, %v1213, 0
      %v1264 = vsel %vm446, %v1215, 0
      %v1267 = vsel %vm446, %v1217, 0
      %v1270 = vsel %vm446, %v1219, 0
      %v1273 = vsel %vm446, %v1221, 0
      %v1276 = vsel %vm446, %v1223, 0
      %v1279 = vsel %vm446, %v1225, 0
      %v1282 = vsel %vm446, %v1227, 0
      %v1285 = vsel %vm498, %v1232, 0
      %1287 = vmatpush.bf16.msra.mxu0 0
      %1288 = vmatpush.bf16.msra.mxu0 0
      %1289 = vmatpush.bf16.msra.mxu0 0
      %1290 = vmatpush.bf16.msra.mxu0 0
      %1291 = vmatpush.bf16.msra.mxu0 0
      %1292 = vmatpush.bf16.msra.mxu0 0
      %1293 = vmatpush.bf16.msra.mxu0 0
      %1294 = vmatpush.bf16.msra.mxu0 %v1285
      %1295 = vmatmul.bf16.gmra.mxu0 %v1234
      %v1296 = vpop.f32.mrf.mxu0
      %v1297 = vadd.f32 0.0, %v1296
      %v1298 = vpop.f32.mrf.mxu0
      %v1299 = vadd.f32 0.0, %v1298
      %1300 = vmatmul.bf16.gmra.mxu0 %v1237
      %v1301 = vpop.f32.mrf.mxu0
      %v1302 = vadd.f32 0.0, %v1301
      %v1303 = vpop.f32.mrf.mxu0
      %v1304 = vadd.f32 0.0, %v1303
      %1305 = vmatmul.bf16.gmra.mxu0 %v1240
      %v1306 = vpop.f32.mrf.mxu0
      %v1307 = vadd.f32 0.0, %v1306
      %v1308 = vpop.f32.mrf.mxu0
      %v1309 = vadd.f32 0.0, %v1308
      %1310 = vmatmul.bf16.gmra.mxu0 %v1243
      %v1311 = vpop.f32.mrf.mxu0
      %v1312 = vadd.f32 0.0, %v1311
      %v1313 = vpop.f32.mrf.mxu0
      %v1314 = vadd.f32 0.0, %v1313
      %1315 = vmatmul.bf16.gmra.mxu0 %v1246
      %v1316 = vpop.f32.mrf.mxu0
      %v1317 = vadd.f32 0.0, %v1316
      %v1318 = vpop.f32.mrf.mxu0
      %v1319 = vadd.f32 0.0, %v1318
      %1320 = vmatmul.bf16.gmra.mxu0 %v1249
      %v1321 = vpop.f32.mrf.mxu0
      %v1322 = vadd.f32 0.0, %v1321
      %v1323 = vpop.f32.mrf.mxu0
      %v1324 = vadd.f32 0.0, %v1323
      %1325 = vmatmul.bf16.gmra.mxu0 %v1252
      %v1326 = vpop.f32.mrf.mxu0
      %v1327 = vadd.f32 0.0, %v1326
      %v1328 = vpop.f32.mrf.mxu0
      %v1329 = vadd.f32 0.0, %v1328
      %1330 = vmatmul.bf16.gmra.mxu0 %v1255
      %v1331 = vpop.f32.mrf.mxu0
      %v1332 = vadd.f32 0.0, %v1331
      %v1333 = vpop.f32.mrf.mxu0
      %v1334 = vadd.f32 0.0, %v1333
      %1335 = vmatmul.bf16.gmra.mxu0 %v1258
      %v1336 = vpop.f32.mrf.mxu0
      %v1337 = vadd.f32 0.0, %v1336
      %v1338 = vpop.f32.mrf.mxu0
      %v1339 = vadd.f32 0.0, %v1338
      %1340 = vmatmul.bf16.gmra.mxu0 %v1261
      %v1341 = vpop.f32.mrf.mxu0
      %v1342 = vadd.f32 0.0, %v1341
      %v1343 = vpop.f32.mrf.mxu0
      %v1344 = vadd.f32 0.0, %v1343
      %1345 = vmatmul.bf16.gmra.mxu0 %v1264
      %v1346 = vpop.f32.mrf.mxu0
      %v1347 = vadd.f32 0.0, %v1346
      %v1348 = vpop.f32.mrf.mxu0
      %v1349 = vadd.f32 0.0, %v1348
      %1350 = vmatmul.bf16.gmra.mxu0 %v1267
      %v1351 = vpop.f32.mrf.mxu0
      %v1352 = vadd.f32 0.0, %v1351
      %v1353 = vpop.f32.mrf.mxu0
      %v1354 = vadd.f32 0.0, %v1353
      %1355 = vmatmul.bf16.gmra.mxu0 %v1270
      %v1356 = vpop.f32.mrf.mxu0
      %v1357 = vadd.f32 0.0, %v1356
      %v1358 = vpop.f32.mrf.mxu0
      %v1359 = vadd.f32 0.0, %v1358
      %1360 = vmatmul.bf16.gmra.mxu0 %v1273
      %v1361 = vpop.f32.mrf.mxu0
      %v1362 = vadd.f32 0.0, %v1361
      %v1363 = vpop.f32.mrf.mxu0
      %v1364 = vadd.f32 0.0, %v1363
      %1365 = vmatmul.bf16.gmra.mxu0 %v1276
      %v1366 = vpop.f32.mrf.mxu0
      %v1367 = vadd.f32 0.0, %v1366
      %v1368 = vpop.f32.mrf.mxu0
      %v1369 = vadd.f32 0.0, %v1368
      %1370 = vmatmul.bf16.gmra.mxu0 %v1279
      %v1371 = vpop.f32.mrf.mxu0
      %v1372 = vadd.f32 0.0, %v1371
      %v1373 = vpop.f32.mrf.mxu0
      %v1374 = vadd.f32 0.0, %v1373
      %1375 = vmatmul.bf16.gmra.mxu0 %v1282
      %v1376 = vpop.f32.mrf.mxu0
      %v1377 = vadd.f32 0.0, %v1376
      %v1378 = vpop.f32.mrf.mxu0
      %v1379 = vadd.f32 0.0, %v1378
      %1380 = vdwg.mxu0
      %v1381 = vadd.f32 %v1151, %v1297
      %v1382 = vadd.f32 %v1152, %v1299
      %v1383 = vadd.f32 %v1153, %v1302
      %v1384 = vadd.f32 %v1154, %v1304
      %v1385 = vadd.f32 %v1155, %v1307
      %v1386 = vadd.f32 %v1156, %v1309
      %v1387 = vadd.f32 %v1157, %v1312
      %v1388 = vadd.f32 %v1158, %v1314
      %v1389 = vadd.f32 %v1159, %v1317
      %v1390 = vadd.f32 %v1160, %v1319
      %v1391 = vadd.f32 %v1161, %v1322
      %v1392 = vadd.f32 %v1162, %v1324
      %v1393 = vadd.f32 %v1163, %v1327
      %v1394 = vadd.f32 %v1164, %v1329
      %v1395 = vadd.f32 %v1165, %v1332
      %v1396 = vadd.f32 %v1166, %v1334
      %v1397 = vadd.f32 %v1167, %v1337
      %v1398 = vadd.f32 %v1168, %v1339
      %v1399 = vadd.f32 %v1169, %v1342
      %v1400 = vadd.f32 %v1170, %v1344
      %v1401 = vadd.f32 %v1171, %v1347
      %v1402 = vadd.f32 %v1172, %v1349
      %v1403 = vadd.f32 %v1173, %v1352
      %v1404 = vadd.f32 %v1174, %v1354
      %v1405 = vadd.f32 %v1175, %v1357
      %v1406 = vadd.f32 %v1176, %v1359
      %v1407 = vadd.f32 %v1177, %v1362
      %v1408 = vadd.f32 %v1178, %v1364
      %v1409 = vadd.f32 %v1179, %v1367
      %v1410 = vadd.f32 %v1180, %v1369
      %v1411 = vadd.f32 %v1181, %v1372
      %v1412 = vadd.f32 %v1182, %v1374
      %v1413 = vadd.f32 %v1183, %v1377
      %v1414 = vadd.f32 %v1184, %v1379
      %v1415 = vld [vmem:[%s2] sm:$0x1]
      %v1417 = vperm.slane %v1415, 0
      %v1419 = vadd.f32 %v1381, %v1417
      %v1420 = vadd.f32 %v1382, %v1417
      %v1421 = vadd.f32 %v1383, %v1417
      %v1422 = vadd.f32 %v1384, %v1417
      %v1423 = vadd.f32 %v1385, %v1417
      %v1424 = vadd.f32 %v1386, %v1417
      %v1425 = vadd.f32 %v1387, %v1417
      %v1426 = vadd.f32 %v1388, %v1417
      %v1427 = vadd.f32 %v1389, %v1417
      %v1428 = vadd.f32 %v1390, %v1417
      %v1429 = vadd.f32 %v1391, %v1417
      %v1430 = vadd.f32 %v1392, %v1417
      %v1431 = vadd.f32 %v1393, %v1417
      %v1432 = vadd.f32 %v1394, %v1417
      %v1433 = vadd.f32 %v1395, %v1417
      %v1434 = vadd.f32 %v1396, %v1417
      %v1435 = vadd.f32 %v1397, %v1417
      %v1436 = vadd.f32 %v1398, %v1417
      %v1437 = vadd.f32 %v1399, %v1417
      %v1438 = vadd.f32 %v1400, %v1417
      %v1439 = vadd.f32 %v1401, %v1417
      %v1440 = vadd.f32 %v1402, %v1417
      %v1441 = vadd.f32 %v1403, %v1417
      %v1442 = vadd.f32 %v1404, %v1417
      %v1443 = vadd.f32 %v1405, %v1417
      %v1444 = vadd.f32 %v1406, %v1417
      %v1445 = vadd.f32 %v1407, %v1417
      %v1446 = vadd.f32 %v1408, %v1417
      %v1447 = vadd.f32 %v1409, %v1417
      %v1448 = vadd.f32 %v1410, %v1417
      %v1449 = vadd.f32 %v1411, %v1417
      %v1450 = vadd.f32 %v1412, %v1417
      %v1451 = vadd.f32 %v1413, %v1417
      %v1452 = vadd.f32 %v1414, %v1417
      %vm1453 = vcmp.gt.f32.partialorder %v1419, 0.0
      %vm1454 = vcmp.gt.f32.partialorder %v1420, 0.0
      %vm1455 = vcmp.gt.f32.partialorder %v1421, 0.0
      %vm1456 = vcmp.gt.f32.partialorder %v1422, 0.0
      %vm1457 = vcmp.gt.f32.partialorder %v1423, 0.0
      %vm1458 = vcmp.gt.f32.partialorder %v1424, 0.0
      %vm1459 = vcmp.gt.f32.partialorder %v1425, 0.0
      %vm1460 = vcmp.gt.f32.partialorder %v1426, 0.0
      %vm1461 = vcmp.gt.f32.partialorder %v1427, 0.0
      %vm1462 = vcmp.gt.f32.partialorder %v1428, 0.0
      %vm1463 = vcmp.gt.f32.partialorder %v1429, 0.0
      %vm1464 = vcmp.gt.f32.partialorder %v1430, 0.0
      %vm1465 = vcmp.gt.f32.partialorder %v1431, 0.0
      %vm1466 = vcmp.gt.f32.partialorder %v1432, 0.0
      %vm1467 = vcmp.gt.f32.partialorder %v1433, 0.0
      %vm1468 = vcmp.gt.f32.partialorder %v1434, 0.0
      %vm1469 = vcmp.gt.f32.partialorder %v1435, 0.0
      %vm1470 = vcmp.gt.f32.partialorder %v1436, 0.0
      %vm1471 = vcmp.gt.f32.partialorder %v1437, 0.0
      %vm1472 = vcmp.gt.f32.partialorder %v1438, 0.0
      %vm1473 = vcmp.gt.f32.partialorder %v1439, 0.0
      %vm1474 = vcmp.gt.f32.partialorder %v1440, 0.0
      %vm1475 = vcmp.gt.f32.partialorder %v1441, 0.0
      %vm1476 = vcmp.gt.f32.partialorder %v1442, 0.0
      %vm1477 = vcmp.gt.f32.partialorder %v1443, 0.0
      %vm1478 = vcmp.gt.f32.partialorder %v1444, 0.0
      %vm1479 = vcmp.gt.f32.partialorder %v1445, 0.0
      %vm1480 = vcmp.gt.f32.partialorder %v1446, 0.0
      %vm1481 = vcmp.gt.f32.partialorder %v1447, 0.0
      %vm1482 = vcmp.gt.f32.partialorder %v1448, 0.0
      %vm1483 = vcmp.gt.f32.partialorder %v1449, 0.0
      %vm1484 = vcmp.gt.f32.partialorder %v1450, 0.0
      %vm1485 = vcmp.gt.f32.partialorder %v1451, 0.0
      %vm1486 = vcmp.gt.f32.partialorder %v1452, 0.0
      %v1487 = vmul.f32 %v1419, 0.2
      %v1488 = vmul.f32 %v1420, 0.2
      %v1489 = vmul.f32 %v1421, 0.2
      %v1490 = vmul.f32 %v1422, 0.2
      %v1491 = vmul.f32 %v1423, 0.2
      %v1492 = vmul.f32 %v1424, 0.2
      %v1493 = vmul.f32 %v1425, 0.2
      %v1494 = vmul.f32 %v1426, 0.2
      %v1495 = vmul.f32 %v1427, 0.2
      %v1496 = vmul.f32 %v1428, 0.2
      %v1497 = vmul.f32 %v1429, 0.2
      %v1498 = vmul.f32 %v1430, 0.2
      %v1499 = vmul.f32 %v1431, 0.2
      %v1500 = vmul.f32 %v1432, 0.2
      %v1501 = vmul.f32 %v1433, 0.2
      %v1502 = vmul.f32 %v1434, 0.2
      %v1503 = vmul.f32 %v1435, 0.2
      %v1504 = vmul.f32 %v1436, 0.2
      %v1505 = vmul.f32 %v1437, 0.2
      %v1506 = vmul.f32 %v1438, 0.2
      %v1507 = vmul.f32 %v1439, 0.2
      %v1508 = vmul.f32 %v1440, 0.2
      %v1509 = vmul.f32 %v1441, 0.2
      %v1510 = vmul.f32 %v1442, 0.2
      %v1511 = vmul.f32 %v1443, 0.2
      %v1512 = vmul.f32 %v1444, 0.2
      %v1513 = vmul.f32 %v1445, 0.2
      %v1514 = vmul.f32 %v1446, 0.2
      %v1515 = vmul.f32 %v1447, 0.2
      %v1516 = vmul.f32 %v1448, 0.2
      %v1517 = vmul.f32 %v1449, 0.2
      %v1518 = vmul.f32 %v1450, 0.2
      %v1519 = vmul.f32 %v1451, 0.2
      %v1520 = vmul.f32 %v1452, 0.2
      %v1521 = vsel %vm1453, %v1419, %v1487
      %v1522 = vsel %vm1454, %v1420, %v1488
      %v1523 = vsel %vm1455, %v1421, %v1489
      %v1524 = vsel %vm1456, %v1422, %v1490
      %v1525 = vsel %vm1457, %v1423, %v1491
      %v1526 = vsel %vm1458, %v1424, %v1492
      %v1527 = vsel %vm1459, %v1425, %v1493
      %v1528 = vsel %vm1460, %v1426, %v1494
      %v1529 = vsel %vm1461, %v1427, %v1495
      %v1530 = vsel %vm1462, %v1428, %v1496
      %v1531 = vsel %vm1463, %v1429, %v1497
      %v1532 = vsel %vm1464, %v1430, %v1498
      %v1533 = vsel %vm1465, %v1431, %v1499
      %v1534 = vsel %vm1466, %v1432, %v1500
      %v1535 = vsel %vm1467, %v1433, %v1501
      %v1536 = vsel %vm1468, %v1434, %v1502
      %v1537 = vsel %vm1469, %v1435, %v1503
      %v1538 = vsel %vm1470, %v1436, %v1504
      %v1539 = vsel %vm1471, %v1437, %v1505
      %v1540 = vsel %vm1472, %v1438, %v1506
      %v1541 = vsel %vm1473, %v1439, %v1507
      %v1542 = vsel %vm1474, %v1440, %v1508
      %v1543 = vsel %vm1475, %v1441, %v1509
      %v1544 = vsel %vm1476, %v1442, %v1510
      %v1545 = vsel %vm1477, %v1443, %v1511
      %v1546 = vsel %vm1478, %v1444, %v1512
      %v1547 = vsel %vm1479, %v1445, %v1513
      %v1548 = vsel %vm1480, %v1446, %v1514
      %v1549 = vsel %vm1481, %v1447, %v1515
      %v1550 = vsel %vm1482, %v1448, %v1516
      %v1551 = vsel %vm1483, %v1449, %v1517
      %v1552 = vsel %vm1484, %v1450, %v1518
      %v1553 = vsel %vm1485, %v1451, %v1519
      %v1554 = vsel %vm1486, %v1452, %v1520
      %v1555 = vpack.c.bf16 %v1521, %v1521
      %v1556 = vpack.c.bf16 %v1522, %v1522
      %v1557 = vpack.c.bf16 %v1523, %v1523
      %v1558 = vpack.c.bf16 %v1524, %v1524
      %v1559 = vpack.c.bf16 %v1525, %v1525
      %v1560 = vpack.c.bf16 %v1526, %v1526
      %v1561 = vpack.c.bf16 %v1527, %v1527
      %v1562 = vpack.c.bf16 %v1528, %v1528
      %v1563 = vpack.c.bf16 %v1529, %v1529
      %v1564 = vpack.c.bf16 %v1530, %v1530
      %v1565 = vpack.c.bf16 %v1531, %v1531
      %v1566 = vpack.c.bf16 %v1532, %v1532
      %v1567 = vpack.c.bf16 %v1533, %v1533
      %v1568 = vpack.c.bf16 %v1534, %v1534
      %v1569 = vpack.c.bf16 %v1535, %v1535
      %v1570 = vpack.c.bf16 %v1536, %v1536
      %v1571 = vpack.c.bf16 %v1537, %v1537
      %v1572 = vpack.c.bf16 %v1538, %v1538
      %v1573 = vpack.c.bf16 %v1539, %v1539
      %v1574 = vpack.c.bf16 %v1540, %v1540
      %v1575 = vpack.c.bf16 %v1541, %v1541
      %v1576 = vpack.c.bf16 %v1542, %v1542
      %v1577 = vpack.c.bf16 %v1543, %v1543
      %v1578 = vpack.c.bf16 %v1544, %v1544
      %v1579 = vpack.c.bf16 %v1545, %v1545
      %v1580 = vpack.c.bf16 %v1546, %v1546
      %v1581 = vpack.c.bf16 %v1547, %v1547
      %v1582 = vpack.c.bf16 %v1548, %v1548
      %v1583 = vpack.c.bf16 %v1549, %v1549
      %v1584 = vpack.c.bf16 %v1550, %v1550
      %v1585 = vpack.c.bf16 %v1551, %v1551
      %v1586 = vpack.c.bf16 %v1552, %v1552
      %v1587 = vpack.c.bf16 %v1553, %v1553
      %v1588 = vpack.c.bf16 %v1554, %v1554
      %1589 = vst [vmem:[%s170] sm:$0xf] %v1555
      %1590 = vst [vmem:[%s170 + $0x4] sm:$0xf] %v1556
      %1591 = vst [vmem:[%s170 + $0x8] sm:$0xf] %v1557
      %1592 = vst [vmem:[%s170 + $0xc] sm:$0xf] %v1558
      %1593 = vst [vmem:[%s170 + $0x10] sm:$0xf] %v1559
      %1594 = vst [vmem:[%s170 + $0x14] sm:$0xf] %v1560
      %1595 = vst [vmem:[%s170 + $0x18] sm:$0xf] %v1561
      %1596 = vst [vmem:[%s170 + $0x1c] sm:$0xf] %v1562
      %1597 = vst [vmem:[%s170 + $0x20] sm:$0xf] %v1563
      %1598 = vst [vmem:[%s170 + $0x24] sm:$0xf] %v1564
      %1599 = vst [vmem:[%s170 + $0x28] sm:$0xf] %v1565
      %1600 = vst [vmem:[%s170 + $0x2c] sm:$0xf] %v1566
      %1601 = vst [vmem:[%s170 + $0x30] sm:$0xf] %v1567
      %1602 = vst [vmem:[%s170 + $0x34] sm:$0xf] %v1568
      %1603 = vst [vmem:[%s170 + $0x38] sm:$0xf] %v1569
      %1604 = vst [vmem:[%s170 + $0x3c] sm:$0xf] %v1570
      %1605 = vst [vmem:[%s170 + $0x40] sm:$0xf] %v1571
      %1606 = vst [vmem:[%s170 + $0x44] sm:$0xf] %v1572
      %1607 = vst [vmem:[%s170 + $0x48] sm:$0xf] %v1573
      %1608 = vst [vmem:[%s170 + $0x4c] sm:$0xf] %v1574
      %1609 = vst [vmem:[%s170 + $0x50] sm:$0xf] %v1575
      %1610 = vst [vmem:[%s170 + $0x54] sm:$0xf] %v1576
      %1611 = vst [vmem:[%s170 + $0x58] sm:$0xf] %v1577
      %1612 = vst [vmem:[%s170 + $0x5c] sm:$0xf] %v1578
      %1613 = vst [vmem:[%s170 + $0x60] sm:$0xf] %v1579
      %1614 = vst [vmem:[%s170 + $0x64] sm:$0xf] %v1580
      %1615 = vst [vmem:[%s170 + $0x68] sm:$0xf] %v1581
      %1616 = vst [vmem:[%s170 + $0x6c] sm:$0xf] %v1582
      %1617 = vst [vmem:[%s170 + $0x70] sm:$0xf] %v1583
      %1618 = vst [vmem:[%s170 + $0x74] sm:$0xf] %v1584
      %1619 = vst [vmem:[%s170 + $0x78] sm:$0xf] %v1585
      %1620 = vst [vmem:[%s170 + $0x7c] sm:$0xf] %v1586
      %1621 = vst [vmem:[%s170 + $0x80] sm:$0xf] %v1587
      %1622 = vst [vmem:[%s170 + $0x84] sm:$0xf] %v1588
      %p1623 = scmp.lt.s32.totalorder %s14, 1
      %s1624 = scalar_select %p1623, %s14, 1
      %s1625 = smul.addr %s1624, 34
      %s1626 = smul.addr %s1625, 4
      %s1627 = scalar_lea.vmem %s3, %s1626
      // Predicated region
      $region33: #{_lambda_.11} parent=31 // pred_check
        %p1628 = pneg %p100
      $region34: #{_lambda_.11} parent=31 // pred_check_branch
        %1630 = sbr.rel (%p1628) target = $region36
      $region35: #{_lambda_.11} parent=31 // pred_region
        _
      $region36: #{_lambda_.11} parent=31 // pred_fallthru
        _
    $region32: #{_lambda_.11} parent=5 // pred_fallthru
      _
    %p1631 = scmp.le.s32.totalorder 2, %s9
    // Predicated region
    $region37: #{_lambda_.11} parent=5 // pred_check
      %p1632 = pneg %p1631
    $region38: #{_lambda_.11} parent=5 // pred_check_branch
      %1634 = sbr.rel (%p1632) target = $region40
    $region39: #{_lambda_.11} parent=5 // pred_region
      %s1635 = ssub.s32 %s9, 2
      // Predicated region
      $region41: #{_lambda_.11} parent=39 // pred_check
        %p1636 = pneg %p106
      $region42: #{_lambda_.11} parent=39 // pred_check_branch
        %1638 = sbr.rel (%p1636) target = $region44
      $region43: #{_lambda_.11} parent=39 // pred_region
        %p1639 = scmp.lt.s32.totalorder %s15, 1
        %s1640 = scalar_select %p1639, %s15, 1
        %s1641 = smul.addr %s1640, 34
        %s1642 = smul.addr %s1641, 4
        %s1643 = scalar_lea.vmem %s3, %s1642
      $region44: #{_lambda_.11} parent=39 // pred_fallthru
        _
    $region40: #{_lambda_.11} parent=5 // pred_fallthru
      _
  $region6: #{_lambda_.11} parent=0 // loop_footer
    %s13 = sadd.s32 1, %s9
  $region7: #{_lambda_.11} parent=0 // loop_footer_branch
    %8 = sbr.rel target = $region3
  $region8: #{_lambda_.11} parent=0 // loop_exit
    _

// kernel: _lambda_.12
$region0: #{_lambda_.12}
  #allocation0 [shape = 'u32[]', space=smem, size = 0x4, offset = 0x4, fixed_abs, tag = 'smem constant byte address 0x4 - core index']
  #allocation1 [shape = 'u32[72,128]{1,0:T(1,128)}', space=vmem, size = 0x9000, scoped, tag = 'internal scratch']
  %s0 = inlined_call_operand.vmem [shape: bf16[2,88,64], index: 0, kind: input, shape index: {}]
  %s1 = inlined_call_operand.vmem [shape: bf16[4,64,128], index: 1, kind: input, shape index: {}]
  %s2 = inlined_call_operand.vmem [shape: f32[1,128], index: 2, kind: input, shape index: {}]
  %s3 = inlined_call_operand.vmem [shape: bf16[2,72,128], index: 3, kind: output, shape index: {}]
  %s4 = sld [smem:[#allocation0]]
  $region45: #{_lambda_.12} parent=0
    _
  %s6 = ssub.s32 1, %s4
  %s7 = scalar_select 0, %s6, %s4
  loop: start=0, step=1, limit=4
  $region2: #{_lambda_.12} parent=0 // loop_pre_header
    _
  $region3: #{_lambda_.12} parent=0 // loop_header
    %s9 = sphi 0, %s13
    %p10 = scmp.ge.s32.totalorder %s9, 4
    %s19 = sphi 0, %s21
    %s22 = sphi 0, %s19
    %s23 = sphi 0, %s22
    %s39 = sphi 0, %s23
    %s43 = sphi 0, %s43
    %s45 = sphi 0, %s43
    %s46 = sphi 0, %s45
    %s60 = sphi 0, %s46
    %s64 = sphi 0, %s64
    %s66 = sphi 0, %s64
    %s67 = sphi 0, %s66
    %s81 = sphi 0, %s67
    %s87 = sphi 0, %s89
    %s90 = sphi 0, %s87
    %s91 = sphi 0, %s90
    %s107 = sphi 0, %s91
  $region4: #{_lambda_.12} parent=0 // loop_header_branch
    %12 = sbr.rel (%p10) target = $region8
  $region5: #{_lambda_.12} parent=0 // loop_body
    %s14 = ssub.s32 %s9, 1
    %s15 = ssub.s32 %s9, 2
    %s16 = sadd.s32 %s9, 1
    %s17 = ssub.s32 %s9, %s16
    %p18 = scmp.eq.s32.totalorder %s17, 0
    %s20 = sadd.s32 %s19, 1
    %s21 = scalar_select %p18, %s19, %s20
    %p24 = pneg %p18
    %p25 = scmp.eq.s32.totalorder %s9, 1
    %p26 = por %p24, %p25
    %p27 = scmp.ne.s32.totalorder %s19, %s22
    %p28 = scmp.eq.s32.totalorder %s9, 0
    %p29 = por %p27, %p28
    %p30 = scmp.ne.s32.totalorder %s19, %s22
    %p31 = scmp.eq.s32.totalorder %s14, 1
    %p32 = por %p30, %p31
    %p33 = scmp.ne.s32.totalorder %s22, %s23
    %p34 = scmp.eq.s32.totalorder %s14, 0
    %p35 = por %p33, %p34
    %p36 = scmp.ne.s32.totalorder %s22, %s23
    %p37 = scmp.eq.s32.totalorder %s15, 1
    %p38 = por %p36, %p37
    %p40 = scmp.ne.s32.totalorder %s23, %s39
    %p41 = scmp.eq.s32.totalorder %s15, 0
    %p42 = por %p40, %p41
    %s44 = sadd.s32 %s43, 1
    %p47 = scmp.eq.s32.totalorder %s9, 1
    %p48 = scmp.ne.s32.totalorder %s43, %s45
    %p49 = scmp.eq.s32.totalorder %s9, 0
    %p50 = por %p48, %p49
    %p51 = scmp.ne.s32.totalorder %s43, %s45
    %p52 = scmp.eq.s32.totalorder %s14, 1
    %p53 = por %p51, %p52
    %p54 = scmp.ne.s32.totalorder %s45, %s46
    %p55 = scmp.eq.s32.totalorder %s14, 0
    %p56 = por %p54, %p55
    %p57 = scmp.ne.s32.totalorder %s45, %s46
    %p58 = scmp.eq.s32.totalorder %s15, 1
    %p59 = por %p57, %p58
    %p61 = scmp.ne.s32.totalorder %s46, %s60
    %p62 = scmp.eq.s32.totalorder %s15, 0
    %p63 = por %p61, %p62
    %s65 = sadd.s32 %s64, 1
    %p68 = scmp.eq.s32.totalorder %s9, 1
    %p69 = scmp.ne.s32.totalorder %s64, %s66
    %p70 = scmp.eq.s32.totalorder %s9, 0
    %p71 = por %p69, %p70
    %p72 = scmp.ne.s32.totalorder %s64, %s66
    %p73 = scmp.eq.s32.totalorder %s14, 1
    %p74 = por %p72, %p73
    %p75 = scmp.ne.s32.totalorder %s66, %s67
    %p76 = scmp.eq.s32.totalorder %s14, 0
    %p77 = por %p75, %p76
    %p78 = scmp.ne.s32.totalorder %s66, %s67
    %p79 = scmp.eq.s32.totalorder %s15, 1
    %p80 = por %p78, %p79
    %p82 = scmp.ne.s32.totalorder %s67, %s81
    %p83 = scmp.eq.s32.totalorder %s15, 0
    %p84 = por %p82, %p83
    %s85 = ssub.s32 %s9, %s16
    %p86 = scmp.eq.s32.totalorder %s85, 0
    %s88 = sadd.s32 %s87, 1
    %s89 = scalar_select %p86, %s87, %s88
    %p92 = pneg %p86
    %p93 = scmp.eq.s32.totalorder %s9, 1
    %p94 = por %p92, %p93
    %p95 = scmp.ne.s32.totalorder %s87, %s90
    %p96 = scmp.eq.s32.totalorder %s9, 0
    %p97 = por %p95, %p96
    %p98 = scmp.ne.s32.totalorder %s87, %s90
    %p99 = scmp.eq.s32.totalorder %s14, 1
    %p100 = por %p98, %p99
    %p101 = scmp.ne.s32.totalorder %s90, %s91
    %p102 = scmp.eq.s32.totalorder %s14, 0
    %p103 = por %p101, %p102
    %p104 = scmp.ne.s32.totalorder %s90, %s91
    %p105 = scmp.eq.s32.totalorder %s15, 1
    %p106 = por %p104, %p105
    %p108 = scmp.ne.s32.totalorder %s91, %s107
    %p109 = scmp.eq.s32.totalorder %s15, 0
    %p110 = por %p108, %p109
    %p111 = scmp.le.s32.totalorder 1, %s9
    %p112 = scmp.lt.s32.totalorder %s9, 3
    %p113 = pnand %p111, %p112
    %p114 = pneg %p113
    // Predicated region
    $region9: #{_lambda_.12} parent=5 // pred_check
      _
    $region10: #{_lambda_.12} parent=5 // pred_check_branch
      %116 = sbr.rel (%p113) target = $region12
    $region11: #{_lambda_.12} parent=5 // pred_region
      %s117 = ssub.s32 %s9, 1
      // Predicated region
      $region13: #{_lambda_.12} parent=11 // pred_check
        %p118 = pneg %p56
      $region14: #{_lambda_.12} parent=11 // pred_check_branch
        %120 = sbr.rel (%p118) target = $region16
      $region15: #{_lambda_.12} parent=11 // pred_region
        _
      $region16: #{_lambda_.12} parent=11 // pred_fallthru
        _
      // Predicated region
      $region17: #{_lambda_.12} parent=11 // pred_check
        %p121 = pneg %p77
      $region18: #{_lambda_.12} parent=11 // pred_check_branch
        %123 = sbr.rel (%p121) target = $region20
      $region19: #{_lambda_.12} parent=11 // pred_region
        _
      $region20: #{_lambda_.12} parent=11 // pred_fallthru
        _
    $region12: #{_lambda_.12} parent=5 // pred_fallthru
      _
    %p124 = scmp.lt.s32.totalorder %s9, 2
    // Predicated region
    $region21: #{_lambda_.12} parent=5 // pred_check
      %p125 = pneg %p124
    $region22: #{_lambda_.12} parent=5 // pred_check_branch
      %127 = sbr.rel (%p125) target = $region24
    $region23: #{_lambda_.12} parent=5 // pred_region
      // Predicated region
      $region25: #{_lambda_.12} parent=23 // pred_check
        %p128 = pneg %p29
      $region26: #{_lambda_.12} parent=23 // pred_check_branch
        %130 = sbr.rel (%p128) target = $region28
      $region27: #{_lambda_.12} parent=23 // pred_region
        %p131 = scmp.lt.s32.totalorder %s9, 1
        %s132 = scalar_select %p131, %s9, 1
        %s133 = smul.addr %s132, 11
        %s134 = smul.addr %s133, 4
        %s135 = scalar_lea.vmem %s0, %s134
      $region28: #{_lambda_.12} parent=23 // pred_fallthru
        _
    $region24: #{_lambda_.12} parent=5 // pred_fallthru
      _
    %p136 = scmp.le.s32.totalorder 1, %s9
    %p137 = scmp.lt.s32.totalorder %s9, 3
    %p138 = pnand %p136, %p137
    %p139 = pneg %p138
    // Predicated region
    $region29: #{_lambda_.12} parent=5 // pred_check
      _
    $region30: #{_lambda_.12} parent=5 // pred_check_branch
      %141 = sbr.rel (%p138) target = $region32
    $region31: #{_lambda_.12} parent=5 // pred_region
      %s142 = ssub.s32 %s9, 1
      %p143 = scmp.lt.s32.totalorder %s14, 1
      %s144 = scalar_select %p143, %s14, 1
      %s145 = smul.addr %s144, 11
      %s146 = smul.addr %s145, 4
      %s147 = scalar_lea.vmem %s0, %s146
      %p148 = pneg %p35
      %p149 = pneg %p32
      %p150 = pneg %p56
      %p151 = pneg %p53
      %p152 = pneg %p77
      %p153 = pneg %p74
      %p154 = pneg %p103
      %p155 = pneg %p100
      %p156 = scmp.lt.s32.totalorder %s14, 1
      %s157 = scalar_select %p156, %s14, 1
      %s158 = smul.addr %s157, 9
      %s159 = smul.addr %s158, 4
      %s160 = scalar_lea.vmem %s3, %s159
      %p161 = scmp.lt.s32.totalorder %s14, 1
      %s162 = scalar_select %p161, %s14, 1
      %s163 = smul.addr %s162, 11
      %s164 = smul.addr %s163, 4
      %s165 = scalar_lea.vmem %s0, %s164
      %p166 = scmp.lt.s32.totalorder %s14, 1
      %s167 = scalar_select %p166, %s14, 1
      %s168 = smul.addr %s167, 9
      %s169 = smul.addr %s168, 4
      %s170 = scalar_lea.vmem %s3, %s169
      %v172 = vld [vmem:[%s165] sm:$0xf]
      %v173 = vld [vmem:[%s165 + $0x4] sm:$0xf]
      %v174 = vld [vmem:[%s165 + $0x8] sm:$0xf]
      %v175 = vld [vmem:[%s165 + $0xc] sm:$0xf]
      %v176 = vld [vmem:[%s165 + $0x10] sm:$0xf]
      %v177 = vld [vmem:[%s165 + $0x14] sm:$0xf]
      %v178 = vld [vmem:[%s165 + $0x18] sm:$0xf]
      %v179 = vld [vmem:[%s165 + $0x1c] sm:$0xf]
      %v180 = vld [vmem:[%s165 + $0x20] sm:$0xf]
      %v181 = vld [vmem:[%s1] sm:$0xf]
      %v182 = vld [vmem:[%s1 + $0x4] sm:$0xf]
      %v183 = vld [vmem:[%s1 + $0x8] sm:$0xf]
      %v184 = vld [vmem:[%s1 + $0xc] sm:$0xf]
      %v185 = vld [vmem:[%s1 + $0x10] sm:$0xf]
      %v186 = vld [vmem:[%s1 + $0x14] sm:$0xf]
      %v187 = vld [vmem:[%s1 + $0x18] sm:$0xf]
      %v188 = vld [vmem:[%s1 + $0x1c] sm:$0xf]
      %v189 = vld [vmem:[%s165 + $0x24] sm:$0x1]
      %s190 = scalar_lea.vmem %s1, 32
      %v191 = vld [vmem:[%s190] sm:$0xf]
      %v192 = vld [vmem:[%s190 + $0x4] sm:$0xf]
      %v193 = vld [vmem:[%s190 + $0x8] sm:$0xf]
      %v194 = vld [vmem:[%s190 + $0xc] sm:$0xf]
      %v195 = vld [vmem:[%s190 + $0x10] sm:$0xf]
      %v196 = vld [vmem:[%s190 + $0x14] sm:$0xf]
      %v197 = vld [vmem:[%s190 + $0x18] sm:$0xf]
      %v198 = vld [vmem:[%s190 + $0x1c] sm:$0xf]
      %v209 = vunpack.c.l.b16 %v172
      %v210 = vunpack.c.l.b16 %v173
      %v211 = vunpack.c.l.b16 %v174
      %v212 = vunpack.c.l.b16 %v175
      %v213 = vunpack.c.l.b16 %v176
      %v214 = vunpack.c.l.b16 %v177
      %v215 = vunpack.c.l.b16 %v178
      %v216 = vunpack.c.l.b16 %v179
      %v217 = vunpack.c.l.b16 %v180
      %v218 = vunpack.c.l.b16 %v189
      %v219 = vpack.c.b16 %v210, %v209
      %v220 = vpack.c.b16 %v212, %v211
      %v221 = vpack.c.b16 %v214, %v213
      %v222 = vpack.c.b16 %v216, %v215
      %v223 = vpack.c.b16 %v218, %v217
      %vm224 = vsmask.f32 7424
      %v226 = vshrl.u32 %v219, 16
      %v228 = vshll.u32 %v219, 16
      %v230 = vrot.slane %v228, 1
      %v231 = vor.u32 %v226, %v230
      %v233 = vshll.u32 %v220, 16
      %v235 = vrot.slane %v233, 1
      %v236 = vsel %vm224, %v231, %v235
      %v237 = vshrl.u32 %v220, 16
      %v239 = vor.u32 %v237, %v235
      %v241 = vshll.u32 %v221, 16
      %v243 = vrot.slane %v241, 1
      %v244 = vsel %vm224, %v239, %v243
      %v245 = vshrl.u32 %v221, 16
      %v247 = vor.u32 %v245, %v243
      %v249 = vshll.u32 %v222, 16
      %v251 = vrot.slane %v249, 1
      %v252 = vsel %vm224, %v247, %v251
      %v253 = vshrl.u32 %v222, 16
      %v255 = vor.u32 %v253, %v251
      %v257 = vshll.u32 %v223, 16
      %v259 = vrot.slane %v257, 1
      %v260 = vsel %vm224, %v255, %v259
      %v261 = vshrl.u32 %v223, 16
      %v263 = vor.u32 %v261, %v259
      %v272 = vunpack.c.l.b16 %v191
      %v273 = vunpack.c.l.b16 %v192
      %v274 = vunpack.c.l.b16 %v193
      %v275 = vunpack.c.l.b16 %v194
      %v276 = vunpack.c.l.b16 %v195
      %v277 = vunpack.c.l.b16 %v196
      %v278 = vunpack.c.l.b16 %v197
      %v279 = vunpack.c.l.b16 %v198
      %v280 = vpack.c.b16 %v273, %v272
      %v281 = vpack.c.b16 %v275, %v274
      %v282 = vpack.c.b16 %v277, %v276
      %v283 = vpack.c.b16 %v279, %v278
      %vm288 = vcmask 523264
      %v290 = vsel %vm288, %v236, 0
      %v293 = vsel %vm288, %v244, 0
      %v296 = vsel %vm288, %v252, 0
      %v299 = vsel %vm288, %v260, 0
      %v302 = vsel %vm288, %v263, 0
      %304 = vmatpush.bf16.msra.mxu0 0
      %305 = vmatpush.bf16.msra.mxu0 0
      %306 = vmatpush.bf16.msra.mxu0 0
      %307 = vmatpush.bf16.msra.mxu0 0
      %308 = vmatpush.bf16.msra.mxu0 %v283
      %309 = vmatpush.bf16.msra.mxu0 %v282
      %310 = vmatpush.bf16.msra.mxu0 %v281
      %311 = vmatpush.bf16.msra.mxu0 %v280
      %312 = vmatmul.bf16.gmra.mxu0 %v290
      %v313 = vpop.f32.mrf.mxu0
      %v314 = vadd.f32 0.0, %v313
      %v315 = vpop.f32.mrf.mxu0
      %v316 = vadd.f32 0.0, %v315
      %317 = vmatmul.bf16.gmra.mxu0 %v293
      %v318 = vpop.f32.mrf.mxu0
      %v319 = vadd.f32 0.0, %v318
      %v320 = vpop.f32.mrf.mxu0
      %v321 = vadd.f32 0.0, %v320
      %322 = vmatmul.bf16.gmra.mxu0 %v296
      %v323 = vpop.f32.mrf.mxu0
      %v324 = vadd.f32 0.0, %v323
      %v325 = vpop.f32.mrf.mxu0
      %v326 = vadd.f32 0.0, %v325
      %327 = vmatmul.bf16.gmra.mxu0 %v299
      %v328 = vpop.f32.mrf.mxu0
      %v329 = vadd.f32 0.0, %v328
      %v330 = vpop.f32.mrf.mxu0
      %v331 = vadd.f32 0.0, %v330
      %332 = vmatmul.bf16.gmra.mxu0 %v302
      %v333 = vpop.f32.mrf.mxu0
      %v334 = vadd.f32 0.0, %v333
      %v335 = vpop.f32.mrf.mxu0
      %336 = vdwg.mxu0
      %v337 = vpack.c.b16 %v217, %v217
      %v346 = vunpack.c.l.b16 %v181
      %v347 = vunpack.c.l.b16 %v182
      %v348 = vunpack.c.l.b16 %v183
      %v349 = vunpack.c.l.b16 %v184
      %v350 = vunpack.c.l.b16 %v185
      %v351 = vunpack.c.l.b16 %v186
      %v352 = vunpack.c.l.b16 %v187
      %v353 = vunpack.c.l.b16 %v188
      %v354 = vpack.c.b16 %v347, %v346
      %v355 = vpack.c.b16 %v349, %v348
      %v356 = vpack.c.b16 %v351, %v350
      %v357 = vpack.c.b16 %v353, %v352
      %v362 = vsel %vm288, %v219, 0
      %v364 = vsel %vm288, %v220, 0
      %v366 = vsel %vm288, %v221, 0
      %v368 = vsel %vm288, %v222, 0
      %v371 = vsel %vm288, %v337, 0
      %373 = vmatpush.bf16.msra.mxu0 0
      %374 = vmatpush.bf16.msra.mxu0 0
      %375 = vmatpush.bf16.msra.mxu0 0
      %376 = vmatpush.bf16.msra.mxu0 0
      %377 = vmatpush.bf16.msra.mxu0 %v357
      %378 = vmatpush.bf16.msra.mxu0 %v356
      %379 = vmatpush.bf16.msra.mxu0 %v355
      %380 = vmatpush.bf16.msra.mxu0 %v354
      %381 = vmatmul.bf16.gmra.mxu0 %v362
      %v382 = vpop.f32.mrf.mxu0
      %v383 = vadd.f32 %v314, %v382
      %v384 = vpop.f32.mrf.mxu0
      %v385 = vadd.f32 %v316, %v384
      %386 = vmatmul.bf16.gmra.mxu0 %v364
      %v387 = vpop.f32.mrf.mxu0
      %v388 = vadd.f32 %v319, %v387
      %v389 = vpop.f32.mrf.mxu0
      %v390 = vadd.f32 %v321, %v389
      %391 = vmatmul.bf16.gmra.mxu0 %v366
      %v392 = vpop.f32.mrf.mxu0
      %v393 = vadd.f32 %v324, %v392
      %v394 = vpop.f32.mrf.mxu0
      %v395 = vadd.f32 %v326, %v394
      %396 = vmatmul.bf16.gmra.mxu0 %v368
      %v397 = vpop.f32.mrf.mxu0
      %v398 = vadd.f32 %v329, %v397
      %v399 = vpop.f32.mrf.mxu0
      %v400 = vadd.f32 %v331, %v399
      %401 = vmatmul.bf16.gmra.mxu0 %v371
      %v402 = vpop.f32.mrf.mxu0
      %v403 = vadd.f32 %v334, %v402
      %v404 = vpop.f32.mrf.mxu0
      %405 = vdwg.mxu0
      %v406 = vld [vmem:[%s165 + $0x4] sm:$0xf]
      %v407 = vld [vmem:[%s165 + $0x8] sm:$0xf]
      %v408 = vld [vmem:[%s165 + $0xc] sm:$0xf]
      %v409 = vld [vmem:[%s165 + $0x10] sm:$0xf]
      %v410 = vld [vmem:[%s165 + $0x14] sm:$0xf]
      %v411 = vld [vmem:[%s165 + $0x18] sm:$0xf]
      %v412 = vld [vmem:[%s165 + $0x1c] sm:$0xf]
      %v413 = vld [vmem:[%s165 + $0x20] sm:$0xf]
      %v414 = vld [vmem:[%s165 + $0x24] sm:$0xf]
      %v415 = vld [vmem:[%s165 + $0x28] sm:$0x1]
      %s416 = scalar_lea.vmem %s1, 64
      %v417 = vld [vmem:[%s416] sm:$0xf]
      %v418 = vld [vmem:[%s416 + $0x4] sm:$0xf]
      %v419 = vld [vmem:[%s416 + $0x8] sm:$0xf]
      %v420 = vld [vmem:[%s416 + $0xc] sm:$0xf]
      %v421 = vld [vmem:[%s416 + $0x10] sm:$0xf]
      %v422 = vld [vmem:[%s416 + $0x14] sm:$0xf]
      %v423 = vld [vmem:[%s416 + $0x18] sm:$0xf]
      %v424 = vld [vmem:[%s416 + $0x1c] sm:$0xf]
      %v435 = vunpack.c.l.b16 %v406
      %v436 = vunpack.c.l.b16 %v407
      %v437 = vunpack.c.l.b16 %v408
      %v438 = vunpack.c.l.b16 %v409
      %v439 = vunpack.c.l.b16 %v410
      %v440 = vunpack.c.l.b16 %v411
      %v441 = vunpack.c.l.b16 %v412
      %v442 = vunpack.c.l.b16 %v413
      %v443 = vunpack.c.l.b16 %v414
      %v444 = vunpack.c.l.b16 %v415
      %v445 = vpack.c.b16 %v436, %v435
      %v446 = vpack.c.b16 %v438, %v437
      %v447 = vpack.c.b16 %v440, %v439
      %v448 = vpack.c.b16 %v442, %v441
      %v449 = vpack.c.b16 %v444, %v443
      %v451 = vshrl.u32 %v445, 16
      %v453 = vshll.u32 %v445, 16
      %v455 = vrot.slane %v453, 1
      %v456 = vor.u32 %v451, %v455
      %v458 = vshll.u32 %v446, 16
      %v460 = vrot.slane %v458, 1
      %v461 = vsel %vm224, %v456, %v460
      %v462 = vshrl.u32 %v446, 16
      %v464 = vor.u32 %v462, %v460
      %v466 = vshll.u32 %v447, 16
      %v468 = vrot.slane %v466, 1
      %v469 = vsel %vm224, %v464, %v468
      %v470 = vshrl.u32 %v447, 16
      %v472 = vor.u32 %v470, %v468
      %v474 = vshll.u32 %v448, 16
      %v476 = vrot.slane %v474, 1
      %v477 = vsel %vm224, %v472, %v476
      %v478 = vshrl.u32 %v448, 16
      %v480 = vor.u32 %v478, %v476
      %v482 = vshll.u32 %v449, 16
      %v484 = vrot.slane %v482, 1
      %v485 = vsel %vm224, %v480, %v484
      %v486 = vshrl.u32 %v449, 16
      %v488 = vor.u32 %v486, %v484
      %v497 = vunpack.c.l.b16 %v417
      %v498 = vunpack.c.l.b16 %v418
      %v499 = vunpack.c.l.b16 %v419
      %v500 = vunpack.c.l.b16 %v420
      %v501 = vunpack.c.l.b16 %v421
      %v502 = vunpack.c.l.b16 %v422
      %v503 = vunpack.c.l.b16 %v423
      %v504 = vunpack.c.l.b16 %v424
      %v505 = vpack.c.b16 %v498, %v497
      %v506 = vpack.c.b16 %v500, %v499
      %v507 = vpack.c.b16 %v502, %v501
      %v508 = vpack.c.b16 %v504, %v503
      %v514 = vsel %vm288, %v461, 0
      %v517 = vsel %vm288, %v469, 0
      %v520 = vsel %vm288, %v477, 0
      %v523 = vsel %vm288, %v485, 0
      %v526 = vsel %vm288, %v488, 0
      %528 = vmatpush.bf16.msra.mxu0 0
      %529 = vmatpush.bf16.msra.mxu0 0
      %530 = vmatpush.bf16.msra.mxu0 0
      %531 = vmatpush.bf16.msra.mxu0 0
      %532 = vmatpush.bf16.msra.mxu0 %v508
      %533 = vmatpush.bf16.msra.mxu0 %v507
      %534 = vmatpush.bf16.msra.mxu0 %v506
      %535 = vmatpush.bf16.msra.mxu0 %v505
      %536 = vmatmul.bf16.gmra.mxu0 %v514
      %v537 = vpop.f32.mrf.mxu0
      %v538 = vadd.f32 0.0, %v537
      %v539 = vpop.f32.mrf.mxu0
      %v540 = vadd.f32 0.0, %v539
      %541 = vmatmul.bf16.gmra.mxu0 %v517
      %v542 = vpop.f32.mrf.mxu0
      %v543 = vadd.f32 0.0, %v542
      %v544 = vpop.f32.mrf.mxu0
      %v545 = vadd.f32 0.0, %v544
      %546 = vmatmul.bf16.gmra.mxu0 %v520
      %v547 = vpop.f32.mrf.mxu0
      %v548 = vadd.f32 0.0, %v547
      %v549 = vpop.f32.mrf.mxu0
      %v550 = vadd.f32 0.0, %v549
      %551 = vmatmul.bf16.gmra.mxu0 %v523
      %v552 = vpop.f32.mrf.mxu0
      %v553 = vadd.f32 0.0, %v552
      %v554 = vpop.f32.mrf.mxu0
      %v555 = vadd.f32 0.0, %v554
      %556 = vmatmul.bf16.gmra.mxu0 %v526
      %v557 = vpop.f32.mrf.mxu0
      %v558 = vadd.f32 0.0, %v557
      %v559 = vpop.f32.mrf.mxu0
      %560 = vdwg.mxu0
      %v561 = vadd.f32 %v383, %v538
      %v562 = vadd.f32 %v385, %v540
      %v563 = vadd.f32 %v388, %v543
      %v564 = vadd.f32 %v390, %v545
      %v565 = vadd.f32 %v393, %v548
      %v566 = vadd.f32 %v395, %v550
      %v567 = vadd.f32 %v398, %v553
      %v568 = vadd.f32 %v400, %v555
      %v569 = vadd.f32 %v403, %v558
      %v570 = vld [vmem:[%s165 + $0x4] sm:$0xe]
      %s571 = scalar_lea.vmem %s1, 96
      %v572 = vld [vmem:[%s571] sm:$0xf]
      %v573 = vld [vmem:[%s571 + $0x4] sm:$0xf]
      %v574 = vld [vmem:[%s571 + $0x8] sm:$0xf]
      %v575 = vld [vmem:[%s571 + $0xc] sm:$0xf]
      %v576 = vld [vmem:[%s571 + $0x10] sm:$0xf]
      %v577 = vld [vmem:[%s571 + $0x14] sm:$0xf]
      %v578 = vld [vmem:[%s571 + $0x18] sm:$0xf]
      %v579 = vld [vmem:[%s571 + $0x1c] sm:$0xf]
      %v581 = vunpack.c.l.b16 %v570
      %v582 = vpack.c.b16 %v436, %v581
      %vm583 = vcmask 1046528
      %v584 = vrot.slane %v582, 1
      %v585 = vrot.slane %v446, 1
      %v586 = vsel %vm583, %v584, %v585
      %v587 = vrot.slane %v447, 1
      %v588 = vsel %vm583, %v585, %v587
      %v589 = vrot.slane %v448, 1
      %v590 = vsel %vm583, %v587, %v589
      %v591 = vrot.slane %v449, 1
      %v592 = vsel %vm583, %v589, %v591
      %v601 = vunpack.c.l.b16 %v572
      %v602 = vunpack.c.l.b16 %v573
      %v603 = vunpack.c.l.b16 %v574
      %v604 = vunpack.c.l.b16 %v575
      %v605 = vunpack.c.l.b16 %v576
      %v606 = vunpack.c.l.b16 %v577
      %v607 = vunpack.c.l.b16 %v578
      %v608 = vunpack.c.l.b16 %v579
      %v609 = vpack.c.b16 %v602, %v601
      %v610 = vpack.c.b16 %v604, %v603
      %v611 = vpack.c.b16 %v606, %v605
      %v612 = vpack.c.b16 %v608, %v607
      %v618 = vsel %vm288, %v586, 0
      %v621 = vsel %vm288, %v588, 0
      %v624 = vsel %vm288, %v590, 0
      %v627 = vsel %vm288, %v592, 0
      %v630 = vsel %vm288, %v591, 0
      %632 = vmatpush.bf16.msra.mxu0 0
      %633 = vmatpush.bf16.msra.mxu0 0
      %634 = vmatpush.bf16.msra.mxu0 0
      %635 = vmatpush.bf16.msra.mxu0 0
      %636 = vmatpush.bf16.msra.mxu0 %v612
      %637 = vmatpush.bf16.msra.mxu0 %v611
      %638 = vmatpush.bf16.msra.mxu0 %v610
      %639 = vmatpush.bf16.msra.mxu0 %v609
      %640 = vmatmul.bf16.gmra.mxu0 %v618
      %v641 = vpop.f32.mrf.mxu0
      %v642 = vadd.f32 0.0, %v641
      %v643 = vpop.f32.mrf.mxu0
      %v644 = vadd.f32 0.0, %v643
      %645 = vmatmul.bf16.gmra.mxu0 %v621
      %v646 = vpop.f32.mrf.mxu0
      %v647 = vadd.f32 0.0, %v646
      %v648 = vpop.f32.mrf.mxu0
      %v649 = vadd.f32 0.0, %v648
      %650 = vmatmul.bf16.gmra.mxu0 %v624
      %v651 = vpop.f32.mrf.mxu0
      %v652 = vadd.f32 0.0, %v651
      %v653 = vpop.f32.mrf.mxu0
      %v654 = vadd.f32 0.0, %v653
      %655 = vmatmul.bf16.gmra.mxu0 %v627
      %v656 = vpop.f32.mrf.mxu0
      %v657 = vadd.f32 0.0, %v656
      %v658 = vpop.f32.mrf.mxu0
      %v659 = vadd.f32 0.0, %v658
      %660 = vmatmul.bf16.gmra.mxu0 %v630
      %v661 = vpop.f32.mrf.mxu0
      %v662 = vadd.f32 0.0, %v661
      %v663 = vpop.f32.mrf.mxu0
      %664 = vdwg.mxu0
      %v665 = vadd.f32 %v561, %v642
      %v666 = vadd.f32 %v562, %v644
      %v667 = vadd.f32 %v563, %v647
      %v668 = vadd.f32 %v564, %v649
      %v669 = vadd.f32 %v565, %v652
      %v670 = vadd.f32 %v566, %v654
      %v671 = vadd.f32 %v567, %v657
      %v672 = vadd.f32 %v568, %v659
      %v673 = vadd.f32 %v569, %v662
      %v674 = vld [vmem:[%s2] sm:$0x1]
      %v676 = vperm.slane %v674, 0
      %v678 = vadd.f32 %v665, %v676
      %v679 = vadd.f32 %v666, %v676
      %v680 = vadd.f32 %v667, %v676
      %v681 = vadd.f32 %v668, %v676
      %v682 = vadd.f32 %v669, %v676
      %v683 = vadd.f32 %v670, %v676
      %v684 = vadd.f32 %v671, %v676
      %v685 = vadd.f32 %v672, %v676
      %v686 = vadd.f32 %v673, %v676
      %v687 = vpack.c.bf16 %v678, %v678
      %v688 = vpack.c.bf16 %v679, %v679
      %v689 = vpack.c.bf16 %v680, %v680
      %v690 = vpack.c.bf16 %v681, %v681
      %v691 = vpack.c.bf16 %v682, %v682
      %v692 = vpack.c.bf16 %v683, %v683
      %v693 = vpack.c.bf16 %v684, %v684
      %v694 = vpack.c.bf16 %v685, %v685
      %v695 = vpack.c.bf16 %v686, %v686
      %696 = vst [vmem:[%s170] sm:$0xf] %v687
      %697 = vst [vmem:[%s170 + $0x4] sm:$0xf] %v688
      %698 = vst [vmem:[%s170 + $0x8] sm:$0xf] %v689
      %699 = vst [vmem:[%s170 + $0xc] sm:$0xf] %v690
      %700 = vst [vmem:[%s170 + $0x10] sm:$0xf] %v691
      %701 = vst [vmem:[%s170 + $0x14] sm:$0xf] %v692
      %702 = vst [vmem:[%s170 + $0x18] sm:$0xf] %v693
      %703 = vst [vmem:[%s170 + $0x1c] sm:$0xf] %v694
      %704 = vst [vmem:[%s170 + $0x20] sm:$0xf] %v695
      %p705 = scmp.lt.s32.totalorder %s14, 1
      %s706 = scalar_select %p705, %s14, 1
      %s707 = smul.addr %s706, 9
      %s708 = smul.addr %s707, 4
      %s709 = scalar_lea.vmem %s3, %s708
      // Predicated region
      $region33: #{_lambda_.12} parent=31 // pred_check
        %p710 = pneg %p100
      $region34: #{_lambda_.12} parent=31 // pred_check_branch
        %712 = sbr.rel (%p710) target = $region36
      $region35: #{_lambda_.12} parent=31 // pred_region
        _
      $region36: #{_lambda_.12} parent=31 // pred_fallthru
        _
    $region32: #{_lambda_.12} parent=5 // pred_fallthru
      _
    %p713 = scmp.le.s32.totalorder 2, %s9
    // Predicated region
    $region37: #{_lambda_.12} parent=5 // pred_check
      %p714 = pneg %p713
    $region38: #{_lambda_.12} parent=5 // pred_check_branch
      %716 = sbr.rel (%p714) target = $region40
    $region39: #{_lambda_.12} parent=5 // pred_region
      %s717 = ssub.s32 %s9, 2
      // Predicated region
      $region41: #{_lambda_.12} parent=39 // pred_check
        %p718 = pneg %p106
      $region42: #{_lambda_.12} parent=39 // pred_check_branch
        %720 = sbr.rel (%p718) target = $region44
      $region43: #{_lambda_.12} parent=39 // pred_region
        %p721 = scmp.lt.s32.totalorder %s15, 1
        %s722 = scalar_select %p721, %s15, 1
        %s723 = smul.addr %s722, 9
        %s724 = smul.addr %s723, 4
        %s725 = scalar_lea.vmem %s3, %s724
      $region44: #{_lambda_.12} parent=39 // pred_fallthru
        _
    $region40: #{_lambda_.12} parent=5 // pred_fallthru
      _
  $region6: #{_lambda_.12} parent=0 // loop_footer
    %s13 = sadd.s32 1, %s9
  $region7: #{_lambda_.12} parent=0 // loop_footer_branch
    %8 = sbr.rel target = $region3
  $region8: #{_lambda_.12} parent=0 // loop_exit
    _

// kernel: squeeze.6
$region0: #{squeeze.6}
  %s0 = inlined_call_operand.vmem [shape: f32[2,32], index: 0, kind: input, shape index: {}]
  %s1 = inlined_call_operand.vmem [shape: f32[2,8,4], index: 1, kind: output, shape index: {}]
  $region1: #{squeeze.6} parent=0
    #allocation0 [shape = 'u8[4096]{0}', space=vmem, size = 0x1000, scoped, tag = 'scoped mem for input reshape']
    %s3 = ssub.s32 4, 1
    %v4 = vld [vmem:[%s0] sm:%s3]
    %5 = vst [vmem:[#allocation0] sm:%s3] %v4
    %v6 = vld [vmem:[#allocation0] sm:$0x3]
    %vm7 = vcmask 31744
    %8 = vst.msk [vmem:[%s1] ss:$8 sm:$0x3] %vm7, %v6
    %v9 = vld [vmem:[#allocation0] sm:$0x3]
    %10 = vrot.lane.b32.xlu0 %v9, 124
    %v11 = vpop.permute.xlu0 %10
    %vm12 = vcmask 31744
    %s13 = scalar_lea.vmem %s1, 1
    %14 = vst.msk [vmem:[%s13] ss:$8 sm:$0x3] %vm12, %v11
    %v15 = vld [vmem:[#allocation0] sm:$0x3]
    %16 = vrot.lane.b32.xlu0 %v15, 120
    %v17 = vpop.permute.xlu0 %16
    %vm18 = vcmask 31744
    %s19 = scalar_lea.vmem %s1, 2
    %20 = vst.msk [vmem:[%s19] ss:$8 sm:$0x3] %vm18, %v17
    %v21 = vld [vmem:[#allocation0] sm:$0x3]
    %22 = vrot.lane.b32.xlu0 %v21, 116
    %v23 = vpop.permute.xlu0 %22
    %vm24 = vcmask 31744
    %s25 = scalar_lea.vmem %s1, 3
    %26 = vst.msk [vmem:[%s25] ss:$8 sm:$0x3] %vm24, %v23
    %v27 = vld [vmem:[#allocation0] sm:$0x3]
    %28 = vrot.lane.b32.xlu0 %v27, 112
    %v29 = vpop.permute.xlu0 %28
    %vm30 = vcmask 31744
    %s31 = scalar_lea.vmem %s1, 4
    %32 = vst.msk [vmem:[%s31] ss:$8 sm:$0x3] %vm30, %v29
    %v33 = vld [vmem:[#allocation0] sm:$0x3]
    %34 = vrot.lane.b32.xlu0 %v33, 108
    %v35 = vpop.permute.xlu0 %34
    %vm36 = vcmask 31744
    %s37 = scalar_lea.vmem %s1, 5
    %38 = vst.msk [vmem:[%s37] ss:$8 sm:$0x3] %vm36, %v35
    %v39 = vld [vmem:[#allocation0] sm:$0x3]
    %40 = vrot.lane.b32.xlu0 %v39, 104
    %v41 = vpop.permute.xlu0 %40
    %vm42 = vcmask 31744
    %s43 = scalar_lea.vmem %s1, 6
    %44 = vst.msk [vmem:[%s43] ss:$8 sm:$0x3] %vm42, %v41
    %v45 = vld [vmem:[#allocation0] sm:$0x3]
    %46 = vrot.lane.b32.xlu0 %v45, 100
    %v47 = vpop.permute.xlu0 %46
    %vm48 = vcmask 31744
    %s49 = scalar_lea.vmem %s1, 7
    %50 = vst.msk [vmem:[%s49] ss:$8 sm:$0x3] %vm48, %v47

// kernel: _lambda_.14
$region0: #{_lambda_.14}
  #allocation0 [shape = 'u32[]', space=smem, size = 0x4, offset = 0x4, fixed_abs, tag = 'smem constant byte address 0x4 - core index']
  #allocation1 [shape = 'u32[72,128]{1,0:T(1,128)}', space=vmem, size = 0x9000, scoped, tag = 'internal scratch']
  %s0 = inlined_call_operand.vmem [shape: bf16[2,64,32], index: 0, kind: input, shape index: {}]
  %s1 = inlined_call_operand.vmem [shape: f32[2,1,32], index: 1, kind: input, shape index: {}]
  %s2 = inlined_call_operand.vmem [shape: f32[2,1,32], index: 2, kind: input, shape index: {}]
  %s3 = inlined_call_operand.vmem [shape: bf16[2,64,32], index: 3, kind: output, shape index: {}]
  %s4 = sld [smem:[#allocation0]]
  $region45: #{_lambda_.14} parent=0
    _
  %s6 = ssub.s32 1, %s4
  %s7 = scalar_select 0, %s6, %s4
  loop: start=0, step=1, limit=4
  $region2: #{_lambda_.14} parent=0 // loop_pre_header
    _
  $region3: #{_lambda_.14} parent=0 // loop_header
    %s9 = sphi 0, %s13
    %p10 = scmp.ge.s32.totalorder %s9, 4
    %s16 = sphi 0, %s28
    %s17 = sphi 0, %s24
    %s18 = sphi 0, %s16
    %s19 = sphi 0, %s17
    %s20 = sphi 0, %s18
    %s21 = sphi 0, %s19
    %s33 = sphi 0, %s35
    %s36 = sphi 0, %s33
    %s37 = sphi 0, %s36
    %s53 = sphi 0, %s37
    %s59 = sphi 0, %s61
    %s62 = sphi 0, %s59
    %s63 = sphi 0, %s62
    %s79 = sphi 0, %s63
    %s85 = sphi 0, %s87
    %s88 = sphi 0, %s85
    %s89 = sphi 0, %s88
    %s105 = sphi 0, %s89
    %s113 = sphi 0, %s115
    %s116 = sphi 0, %s113
    %s117 = sphi 0, %s116
    %s133 = sphi 0, %s117
  $region4: #{_lambda_.14} parent=0 // loop_header_branch
    %12 = sbr.rel (%p10) target = $region8
  $region5: #{_lambda_.14} parent=0 // loop_body
    %s14 = ssub.s32 %s9, 1
    %s15 = ssub.s32 %s9, 2
    %s22 = sadd.s32 1, %s17
    %p23 = scmp.ge.s32.totalorder %s22, 1
    %s24 = scalar_select %p23, 0, %s22
    %s25 = sadd.s32 1, %s16
    %s26 = scalar_select %p23, %s25, %s16
    %p27 = scmp.ge.s32.totalorder %s26, 2
    %s28 = scalar_select %p27, 0, %s26
    %s29 = ssub.s32 %s16, %s28
    %s30 = ssub.s32 %s17, %s24
    %s31 = sor.u32 %s29, %s30
    %p32 = scmp.eq.s32.totalorder %s31, 0
    %s34 = sadd.s32 %s33, 1
    %s35 = scalar_select %p32, %s33, %s34
    %p38 = pneg %p32
    %p39 = scmp.eq.s32.totalorder %s9, 1
    %p40 = por %p38, %p39
    %p41 = scmp.ne.s32.totalorder %s33, %s36
    %p42 = scmp.eq.s32.totalorder %s9, 0
    %p43 = por %p41, %p42
    %p44 = scmp.ne.s32.totalorder %s33, %s36
    %p45 = scmp.eq.s32.totalorder %s14, 1
    %p46 = por %p44, %p45
    %p47 = scmp.ne.s32.totalorder %s36, %s37
    %p48 = scmp.eq.s32.totalorder %s14, 0
    %p49 = por %p47, %p48
    %p50 = scmp.ne.s32.totalorder %s36, %s37
    %p51 = scmp.eq.s32.totalorder %s15, 1
    %p52 = por %p50, %p51
    %p54 = scmp.ne.s32.totalorder %s37, %s53
    %p55 = scmp.eq.s32.totalorder %s15, 0
    %p56 = por %p54, %p55
    %s57 = ssub.s32 %s16, %s28
    %p58 = scmp.eq.s32.totalorder %s57, 0
    %s60 = sadd.s32 %s59, 1
    %s61 = scalar_select %p58, %s59, %s60
    %p64 = pneg %p58
    %p65 = scmp.eq.s32.totalorder %s9, 1
    %p66 = por %p64, %p65
    %p67 = scmp.ne.s32.totalorder %s59, %s62
    %p68 = scmp.eq.s32.totalorder %s9, 0
    %p69 = por %p67, %p68
    %p70 = scmp.ne.s32.totalorder %s59, %s62
    %p71 = scmp.eq.s32.totalorder %s14, 1
    %p72 = por %p70, %p71
    %p73 = scmp.ne.s32.totalorder %s62, %s63
    %p74 = scmp.eq.s32.totalorder %s14, 0
    %p75 = por %p73, %p74
    %p76 = scmp.ne.s32.totalorder %s62, %s63
    %p77 = scmp.eq.s32.totalorder %s15, 1
    %p78 = por %p76, %p77
    %p80 = scmp.ne.s32.totalorder %s63, %s79
    %p81 = scmp.eq.s32.totalorder %s15, 0
    %p82 = por %p80, %p81
    %s83 = ssub.s32 %s16, %s28
    %p84 = scmp.eq.s32.totalorder %s83, 0
    %s86 = sadd.s32 %s85, 1
    %s87 = scalar_select %p84, %s85, %s86
    %p90 = pneg %p84
    %p91 = scmp.eq.s32.totalorder %s9, 1
    %p92 = por %p90, %p91
    %p93 = scmp.ne.s32.totalorder %s85, %s88
    %p94 = scmp.eq.s32.totalorder %s9, 0
    %p95 = por %p93, %p94
    %p96 = scmp.ne.s32.totalorder %s85, %s88
    %p97 = scmp.eq.s32.totalorder %s14, 1
    %p98 = por %p96, %p97
    %p99 = scmp.ne.s32.totalorder %s88, %s89
    %p100 = scmp.eq.s32.totalorder %s14, 0
    %p101 = por %p99, %p100
    %p102 = scmp.ne.s32.totalorder %s88, %s89
    %p103 = scmp.eq.s32.totalorder %s15, 1
    %p104 = por %p102, %p103
    %p106 = scmp.ne.s32.totalorder %s89, %s105
    %p107 = scmp.eq.s32.totalorder %s15, 0
    %p108 = por %p106, %p107
    %s109 = ssub.s32 %s16, %s28
    %s110 = ssub.s32 %s17, %s24
    %s111 = sor.u32 %s109, %s110
    %p112 = scmp.eq.s32.totalorder %s111, 0
    %s114 = sadd.s32 %s113, 1
    %s115 = scalar_select %p112, %s113, %s114
    %p118 = pneg %p112
    %p119 = scmp.eq.s32.totalorder %s9, 1
    %p120 = por %p118, %p119
    %p121 = scmp.ne.s32.totalorder %s113, %s116
    %p122 = scmp.eq.s32.totalorder %s9, 0
    %p123 = por %p121, %p122
    %p124 = scmp.ne.s32.totalorder %s113, %s116
    %p125 = scmp.eq.s32.totalorder %s14, 1
    %p126 = por %p124, %p125
    %p127 = scmp.ne.s32.totalorder %s116, %s117
    %p128 = scmp.eq.s32.totalorder %s14, 0
    %p129 = por %p127, %p128
    %p130 = scmp.ne.s32.totalorder %s116, %s117
    %p131 = scmp.eq.s32.totalorder %s15, 1
    %p132 = por %p130, %p131
    %p134 = scmp.ne.s32.totalorder %s117, %s133
    %p135 = scmp.eq.s32.totalorder %s15, 0
    %p136 = por %p134, %p135
    %p137 = scmp.le.s32.totalorder 1, %s9
    %p138 = scmp.lt.s32.totalorder %s9, 3
    %p139 = pnand %p137, %p138
    %p140 = pneg %p139
    // Predicated region
    $region9: #{_lambda_.14} parent=5 // pred_check
      _
    $region10: #{_lambda_.14} parent=5 // pred_check_branch
      %142 = sbr.rel (%p139) target = $region12
    $region11: #{_lambda_.14} parent=5 // pred_region
      %s143 = ssub.s32 %s9, 1
    $region12: #{_lambda_.14} parent=5 // pred_fallthru
      _
    %p144 = scmp.lt.s32.totalorder %s9, 2
    // Predicated region
    $region13: #{_lambda_.14} parent=5 // pred_check
      %p145 = pneg %p144
    $region14: #{_lambda_.14} parent=5 // pred_check_branch
      %147 = sbr.rel (%p145) target = $region16
    $region15: #{_lambda_.14} parent=5 // pred_region
      // Predicated region
      $region17: #{_lambda_.14} parent=15 // pred_check
        %p148 = pneg %p43
      $region18: #{_lambda_.14} parent=15 // pred_check_branch
        %150 = sbr.rel (%p148) target = $region20
      $region19: #{_lambda_.14} parent=15 // pred_region
        %s151 = smul.u32 8, %s17
        %p152 = scmp.lt.s32.totalorder %s16, 1
        %s153 = scalar_select %p152, %s16, 1
        %p154 = scmp.lt.s32.totalorder %s151, 7
        %s155 = scalar_select %p154, %s151, 7
        %s156 = smul.addr %s153, 8
        %s157 = sadd.s32 %s155, %s156
        %s158 = smul.addr %s157, 4
        %s159 = scalar_lea.vmem %s0, %s158
        %s160 = smul.u32 8, %s17
      $region20: #{_lambda_.14} parent=15 // pred_fallthru
        _
      // Predicated region
      $region21: #{_lambda_.14} parent=15 // pred_check
        %p161 = pneg %p69
      $region22: #{_lambda_.14} parent=15 // pred_check_branch
        %163 = sbr.rel (%p161) target = $region24
      $region23: #{_lambda_.14} parent=15 // pred_region
        %p164 = scmp.lt.s32.totalorder %s16, 1
        %s165 = scalar_select %p164, %s16, 1
        %s166 = scalar_lea.vmem %s1, %s165
      $region24: #{_lambda_.14} parent=15 // pred_fallthru
        _
      // Predicated region
      $region25: #{_lambda_.14} parent=15 // pred_check
        %p167 = pneg %p95
      $region26: #{_lambda_.14} parent=15 // pred_check_branch
        %169 = sbr.rel (%p167) target = $region28
      $region27: #{_lambda_.14} parent=15 // pred_region
        %p170 = scmp.lt.s32.totalorder %s16, 1
        %s171 = scalar_select %p170, %s16, 1
        %s172 = scalar_lea.vmem %s2, %s171
      $region28: #{_lambda_.14} parent=15 // pred_fallthru
        _
    $region16: #{_lambda_.14} parent=5 // pred_fallthru
      _
    %p173 = scmp.le.s32.totalorder 1, %s9
    %p174 = scmp.lt.s32.totalorder %s9, 3
    %p175 = pnand %p173, %p174
    %p176 = pneg %p175
    // Predicated region
    $region29: #{_lambda_.14} parent=5 // pred_check
      _
    $region30: #{_lambda_.14} parent=5 // pred_check_branch
      %178 = sbr.rel (%p175) target = $region32
    $region31: #{_lambda_.14} parent=5 // pred_region
      %s179 = ssub.s32 %s9, 1
      %s180 = smul.u32 8, %s19
      %p181 = scmp.lt.s32.totalorder %s18, 1
      %s182 = scalar_select %p181, %s18, 1
      %p183 = scmp.lt.s32.totalorder %s180, 7
      %s184 = scalar_select %p183, %s180, 7
      %s185 = smul.addr %s182, 8
      %s186 = sadd.s32 %s184, %s185
      %s187 = smul.addr %s186, 4
      %s188 = scalar_lea.vmem %s0, %s187
      %p189 = pneg %p49
      %p190 = pneg %p46
      %p191 = scmp.lt.s32.totalorder %s18, 1
      %s192 = scalar_select %p191, %s18, 1
      %s193 = scalar_lea.vmem %s1, %s192
      %p194 = pneg %p75
      %p195 = pneg %p72
      %p196 = scmp.lt.s32.totalorder %s18, 1
      %s197 = scalar_select %p196, %s18, 1
      %s198 = scalar_lea.vmem %s2, %s197
      %p199 = pneg %p101
      %p200 = pneg %p98
      %p201 = pneg %p129
      %p202 = pneg %p126
      %s203 = smul.u32 8, %s19
      %p204 = scmp.lt.s32.totalorder %s18, 1
      %s205 = scalar_select %p204, %s18, 1
      %p206 = scmp.lt.s32.totalorder %s203, 7
      %s207 = scalar_select %p206, %s203, 7
      %s208 = smul.addr %s205, 8
      %s209 = sadd.s32 %s207, %s208
      %s210 = smul.addr %s209, 4
      %s211 = scalar_lea.vmem %s3, %s210
      %s212 = smul.u32 8, %s19
      %p213 = scmp.lt.s32.totalorder %s18, 1
      %s214 = scalar_select %p213, %s18, 1
      %p215 = scmp.lt.s32.totalorder %s212, 7
      %s216 = scalar_select %p215, %s212, 7
      %s217 = smul.addr %s214, 8
      %s218 = sadd.s32 %s216, %s217
      %s219 = smul.addr %s218, 4
      %s220 = scalar_lea.vmem %s0, %s219
      %s221 = smul.u32 8, %s19
      %p222 = scmp.lt.s32.totalorder %s18, 1
      %s223 = scalar_select %p222, %s18, 1
      %s224 = scalar_lea.vmem %s1, %s223
      %p225 = scmp.lt.s32.totalorder %s18, 1
      %s226 = scalar_select %p225, %s18, 1
      %s227 = scalar_lea.vmem %s2, %s226
      %s228 = smul.u32 8, %s19
      %p229 = scmp.lt.s32.totalorder %s18, 1
      %s230 = scalar_select %p229, %s18, 1
      %p231 = scmp.lt.s32.totalorder %s228, 7
      %s232 = scalar_select %p231, %s228, 7
      %s233 = smul.addr %s230, 8
      %s234 = sadd.s32 %s232, %s233
      %s235 = smul.addr %s234, 4
      %s236 = scalar_lea.vmem %s3, %s235
      %s237 = smul.u32 8, %s19
      %v238 = vld [vmem:[%s220] sm:$0xf]
      %v239 = vld [vmem:[%s220 + $0x4] sm:$0xf]
      %v240 = vld [vmem:[%s220 + $0x8] sm:$0xf]
      %v241 = vld [vmem:[%s220 + $0xc] sm:$0xf]
      %v242 = vld [vmem:[%s220 + $0x10] sm:$0xf]
      %v243 = vld [vmem:[%s220 + $0x14] sm:$0xf]
      %v244 = vld [vmem:[%s220 + $0x18] sm:$0xf]
      %v245 = vld [vmem:[%s220 + $0x1c] sm:$0xf]
      %v246 = vunpack.c.l.bf16 %v238
      %v247 = vunpack.c.l.bf16 %v239
      %v248 = vunpack.c.l.bf16 %v240
      %v249 = vunpack.c.l.bf16 %v241
      %v250 = vunpack.c.l.bf16 %v242
      %v251 = vunpack.c.l.bf16 %v243
      %v252 = vunpack.c.l.bf16 %v244
      %v253 = vunpack.c.l.bf16 %v245
      %v254 = vld [vmem:[%s224] sm:$0x1]
      %v256 = vperm.slane %v254, 0
      %v258 = vmul.f32 %v246, %v256
      %v259 = vmul.f32 %v247, %v256
      %v260 = vmul.f32 %v248, %v256
      %v261 = vmul.f32 %v249, %v256
      %v262 = vmul.f32 %v250, %v256
      %v263 = vmul.f32 %v251, %v256
      %v264 = vmul.f32 %v252, %v256
      %v265 = vmul.f32 %v253, %v256
      %v266 = vld [vmem:[%s227] sm:$0x1]
      %v268 = vperm.slane %v266, 0
      %v270 = vadd.f32 %v258, %v268
      %v271 = vadd.f32 %v259, %v268
      %v272 = vadd.f32 %v260, %v268
      %v273 = vadd.f32 %v261, %v268
      %v274 = vadd.f32 %v262, %v268
      %v275 = vadd.f32 %v263, %v268
      %v276 = vadd.f32 %v264, %v268
      %v277 = vadd.f32 %v265, %v268
      %vm278 = vcmp.gt.f32.partialorder %v270, 0.0
      %vm279 = vcmp.gt.f32.partialorder %v271, 0.0
      %vm280 = vcmp.gt.f32.partialorder %v272, 0.0
      %vm281 = vcmp.gt.f32.partialorder %v273, 0.0
      %vm282 = vcmp.gt.f32.partialorder %v274, 0.0
      %vm283 = vcmp.gt.f32.partialorder %v275, 0.0
      %vm284 = vcmp.gt.f32.partialorder %v276, 0.0
      %vm285 = vcmp.gt.f32.partialorder %v277, 0.0
      %v286 = vmul.f32 %v270, 0.2
      %v287 = vmul.f32 %v271, 0.2
      %v288 = vmul.f32 %v272, 0.2
      %v289 = vmul.f32 %v273, 0.2
      %v290 = vmul.f32 %v274, 0.2
      %v291 = vmul.f32 %v275, 0.2
      %v292 = vmul.f32 %v276, 0.2
      %v293 = vmul.f32 %v277, 0.2
      %v294 = vsel %vm278, %v270, %v286
      %v295 = vsel %vm279, %v271, %v287
      %v296 = vsel %vm280, %v272, %v288
      %v297 = vsel %vm281, %v273, %v289
      %v298 = vsel %vm282, %v274, %v290
      %v299 = vsel %vm283, %v275, %v291
      %v300 = vsel %vm284, %v276, %v292
      %v301 = vsel %vm285, %v277, %v293
      %v302 = vpack.c.bf16 %v294, %v294
      %v303 = vpack.c.bf16 %v295, %v295
      %v304 = vpack.c.bf16 %v296, %v296
      %v305 = vpack.c.bf16 %v297, %v297
      %v306 = vpack.c.bf16 %v298, %v298
      %v307 = vpack.c.bf16 %v299, %v299
      %v308 = vpack.c.bf16 %v300, %v300
      %v309 = vpack.c.bf16 %v301, %v301
      %vm310 = vcmask 257024
      %311 = vst.msk [vmem:[%s236] sm:$0xf] %vm310, %v302
      %312 = vst.msk [vmem:[%s236 + $0x4] sm:$0xf] %vm310, %v303
      %313 = vst.msk [vmem:[%s236 + $0x8] sm:$0xf] %vm310, %v304
      %314 = vst.msk [vmem:[%s236 + $0xc] sm:$0xf] %vm310, %v305
      %315 = vst.msk [vmem:[%s236 + $0x10] sm:$0xf] %vm310, %v306
      %316 = vst.msk [vmem:[%s236 + $0x14] sm:$0xf] %vm310, %v307
      %317 = vst.msk [vmem:[%s236 + $0x18] sm:$0xf] %vm310, %v308
      %318 = vst.msk [vmem:[%s236 + $0x1c] sm:$0xf] %vm310, %v309
      %s319 = smul.u32 8, %s19
      %p320 = scmp.lt.s32.totalorder %s18, 1
      %s321 = scalar_select %p320, %s18, 1
      %p322 = scmp.lt.s32.totalorder %s319, 7
      %s323 = scalar_select %p322, %s319, 7
      %s324 = smul.addr %s321, 8
      %s325 = sadd.s32 %s323, %s324
      %s326 = smul.addr %s325, 4
      %s327 = scalar_lea.vmem %s3, %s326
      // Predicated region
      $region33: #{_lambda_.14} parent=31 // pred_check
        %p328 = pneg %p126
      $region34: #{_lambda_.14} parent=31 // pred_check_branch
        %330 = sbr.rel (%p328) target = $region36
      $region35: #{_lambda_.14} parent=31 // pred_region
        %s331 = smul.u32 8, %s19
      $region36: #{_lambda_.14} parent=31 // pred_fallthru
        _
    $region32: #{_lambda_.14} parent=5 // pred_fallthru
      _
    %p332 = scmp.le.s32.totalorder 2, %s9
    // Predicated region
    $region37: #{_lambda_.14} parent=5 // pred_check
      %p333 = pneg %p332
    $region38: #{_lambda_.14} parent=5 // pred_check_branch
      %335 = sbr.rel (%p333) target = $region40
    $region39: #{_lambda_.14} parent=5 // pred_region
      %s336 = ssub.s32 %s9, 2
      // Predicated region
      $region41: #{_lambda_.14} parent=39 // pred_check
        %p337 = pneg %p132
      $region42: #{_lambda_.14} parent=39 // pred_check_branch
        %339 = sbr.rel (%p337) target = $region44
      $region43: #{_lambda_.14} parent=39 // pred_region
        %s340 = smul.u32 8, %s21
        %p341 = scmp.lt.s32.totalorder %s20, 1
        %s342 = scalar_select %p341, %s20, 1
        %p343 = scmp.lt.s32.totalorder %s340, 7
        %s344 = scalar_select %p343, %s340, 7
        %s345 = smul.addr %s342, 8
        %s346 = sadd.s32 %s344, %s345
        %s347 = smul.addr %s346, 4
        %s348 = scalar_lea.vmem %s3, %s347
      $region44: #{_lambda_.14} parent=39 // pred_fallthru
        _
    $region40: #{_lambda_.14} parent=5 // pred_fallthru
      _
  $region6: #{_lambda_.14} parent=0 // loop_footer
    %s13 = sadd.s32 1, %s9
  $region7: #{_lambda_.14} parent=0 // loop_footer_branch
    %8 = sbr.rel target = $region3
  $region8: #{_lambda_.14} parent=0 // loop_exit
    _

// kernel: _lambda_.13
$region0: #{_lambda_.13}
  #allocation0 [shape = 'u32[]', space=smem, size = 0x4, offset = 0x4, fixed_abs, tag = 'smem constant byte address 0x4 - core index']
  #allocation1 [shape = 'u32[72,128]{1,0:T(1,128)}', space=vmem, size = 0x9000, scoped, tag = 'internal scratch']
  %s0 = inlined_call_operand.vmem [shape: bf16[2,64,32], index: 0, kind: input, shape index: {}]
  %s1 = inlined_call_operand.vmem [shape: f32[2,2,32], index: 1, kind: output, shape index: {}]
  %s2 = sld [smem:[#allocation0]]
  $region41: #{_lambda_.13} parent=0
    _
  %s4 = ssub.s32 1, %s2
  %s5 = scalar_select 0, %s4, %s2
  loop: start=0, step=1, limit=4
  $region2: #{_lambda_.13} parent=0 // loop_pre_header
    _
  $region3: #{_lambda_.13} parent=0 // loop_header
    %s7 = sphi 0, %s11
    %p8 = scmp.ge.s32.totalorder %s7, 4
    %s14 = sphi 0, %s26
    %s15 = sphi 0, %s22
    %s16 = sphi 0, %s14
    %s17 = sphi 0, %s15
    %s18 = sphi 0, %s16
    %s19 = sphi 0, %s17
    %s31 = sphi 0, %s33
    %s34 = sphi 0, %s31
    %s35 = sphi 0, %s34
    %s51 = sphi 0, %s35
    %s57 = sphi 0, %s59
    %s60 = sphi 0, %s57
    %s61 = sphi 0, %s60
    %s77 = sphi 0, %s61
  $region4: #{_lambda_.13} parent=0 // loop_header_branch
    %10 = sbr.rel (%p8) target = $region8
  $region5: #{_lambda_.13} parent=0 // loop_body
    %s12 = ssub.s32 %s7, 1
    %s13 = ssub.s32 %s7, 2
    %s20 = sadd.s32 1, %s15
    %p21 = scmp.ge.s32.totalorder %s20, 1
    %s22 = scalar_select %p21, 0, %s20
    %s23 = sadd.s32 1, %s14
    %s24 = scalar_select %p21, %s23, %s14
    %p25 = scmp.ge.s32.totalorder %s24, 2
    %s26 = scalar_select %p25, 0, %s24
    %s27 = ssub.s32 %s14, %s26
    %s28 = ssub.s32 %s15, %s22
    %s29 = sor.u32 %s27, %s28
    %p30 = scmp.eq.s32.totalorder %s29, 0
    %s32 = sadd.s32 %s31, 1
    %s33 = scalar_select %p30, %s31, %s32
    %p36 = pneg %p30
    %p37 = scmp.eq.s32.totalorder %s7, 1
    %p38 = por %p36, %p37
    %p39 = scmp.ne.s32.totalorder %s31, %s34
    %p40 = scmp.eq.s32.totalorder %s7, 0
    %p41 = por %p39, %p40
    %p42 = scmp.ne.s32.totalorder %s31, %s34
    %p43 = scmp.eq.s32.totalorder %s12, 1
    %p44 = por %p42, %p43
    %p45 = scmp.ne.s32.totalorder %s34, %s35
    %p46 = scmp.eq.s32.totalorder %s12, 0
    %p47 = por %p45, %p46
    %p48 = scmp.ne.s32.totalorder %s34, %s35
    %p49 = scmp.eq.s32.totalorder %s13, 1
    %p50 = por %p48, %p49
    %p52 = scmp.ne.s32.totalorder %s35, %s51
    %p53 = scmp.eq.s32.totalorder %s13, 0
    %p54 = por %p52, %p53
    %s55 = ssub.s32 %s14, %s26
    %p56 = scmp.eq.s32.totalorder %s55, 0
    %s58 = sadd.s32 %s57, 1
    %s59 = scalar_select %p56, %s57, %s58
    %p62 = pneg %p56
    %p63 = scmp.eq.s32.totalorder %s7, 1
    %p64 = por %p62, %p63
    %p65 = scmp.ne.s32.totalorder %s57, %s60
    %p66 = scmp.eq.s32.totalorder %s7, 0
    %p67 = por %p65, %p66
    %p68 = scmp.ne.s32.totalorder %s57, %s60
    %p69 = scmp.eq.s32.totalorder %s12, 1
    %p70 = por %p68, %p69
    %p71 = scmp.ne.s32.totalorder %s60, %s61
    %p72 = scmp.eq.s32.totalorder %s12, 0
    %p73 = por %p71, %p72
    %p74 = scmp.ne.s32.totalorder %s60, %s61
    %p75 = scmp.eq.s32.totalorder %s13, 1
    %p76 = por %p74, %p75
    %p78 = scmp.ne.s32.totalorder %s61, %s77
    %p79 = scmp.eq.s32.totalorder %s13, 0
    %p80 = por %p78, %p79
    %p81 = scmp.le.s32.totalorder 1, %s7
    %p82 = scmp.lt.s32.totalorder %s7, 3
    %p83 = pnand %p81, %p82
    %p84 = pneg %p83
    // Predicated region
    $region9: #{_lambda_.13} parent=5 // pred_check
      _
    $region10: #{_lambda_.13} parent=5 // pred_check_branch
      %86 = sbr.rel (%p83) target = $region12
    $region11: #{_lambda_.13} parent=5 // pred_region
      %s87 = ssub.s32 %s7, 1
    $region12: #{_lambda_.13} parent=5 // pred_fallthru
      _
    %p88 = scmp.lt.s32.totalorder %s7, 2
    // Predicated region
    $region13: #{_lambda_.13} parent=5 // pred_check
      %p89 = pneg %p88
    $region14: #{_lambda_.13} parent=5 // pred_check_branch
      %91 = sbr.rel (%p89) target = $region16
    $region15: #{_lambda_.13} parent=5 // pred_region
      // Predicated region
      $region17: #{_lambda_.13} parent=15 // pred_check
        %p92 = pneg %p41
      $region18: #{_lambda_.13} parent=15 // pred_check_branch
        %94 = sbr.rel (%p92) target = $region20
      $region19: #{_lambda_.13} parent=15 // pred_region
        %s95 = smul.u32 8, %s15
        %p96 = scmp.lt.s32.totalorder %s14, 1
        %s97 = scalar_select %p96, %s14, 1
        %p98 = scmp.lt.s32.totalorder %s95, 7
        %s99 = scalar_select %p98, %s95, 7
        %s100 = smul.addr %s97, 8
        %s101 = sadd.s32 %s99, %s100
        %s102 = smul.addr %s101, 4
        %s103 = scalar_lea.vmem %s0, %s102
        %s104 = smul.u32 8, %s15
      $region20: #{_lambda_.13} parent=15 // pred_fallthru
        _
    $region16: #{_lambda_.13} parent=5 // pred_fallthru
      _
    %p105 = scmp.le.s32.totalorder 1, %s7
    %p106 = scmp.lt.s32.totalorder %s7, 3
    %p107 = pnand %p105, %p106
    %p108 = pneg %p107
    // Predicated region
    $region21: #{_lambda_.13} parent=5 // pred_check
      _
    $region22: #{_lambda_.13} parent=5 // pred_check_branch
      %110 = sbr.rel (%p107) target = $region24
    $region23: #{_lambda_.13} parent=5 // pred_region
      %s111 = ssub.s32 %s7, 1
      %s112 = smul.u32 8, %s17
      %p113 = scmp.lt.s32.totalorder %s16, 1
      %s114 = scalar_select %p113, %s16, 1
      %p115 = scmp.lt.s32.totalorder %s112, 7
      %s116 = scalar_select %p115, %s112, 7
      %s117 = smul.addr %s114, 8
      %s118 = sadd.s32 %s116, %s117
      %s119 = smul.addr %s118, 4
      %s120 = scalar_lea.vmem %s0, %s119
      %p121 = pneg %p47
      %p122 = pneg %p44
      %p123 = pneg %p73
      %p124 = pneg %p70
      %p125 = scmp.lt.s32.totalorder %s16, 1
      %s126 = scalar_select %p125, %s16, 1
      %s127 = smul.addr %s126, 2
      %s128 = scalar_lea.vmem %s1, %s127
      %s129 = smul.u32 8, %s17
      %p130 = scmp.lt.s32.totalorder %s16, 1
      %s131 = scalar_select %p130, %s16, 1
      %p132 = scmp.lt.s32.totalorder %s129, 7
      %s133 = scalar_select %p132, %s129, 7
      %s134 = smul.addr %s131, 8
      %s135 = sadd.s32 %s133, %s134
      %s136 = smul.addr %s135, 4
      %s137 = scalar_lea.vmem %s0, %s136
      %s138 = smul.u32 8, %s17
      %p139 = scmp.lt.s32.totalorder %s16, 1
      %s140 = scalar_select %p139, %s16, 1
      %s141 = smul.addr %s140, 2
      %s142 = scalar_lea.vmem %s1, %s141
      %p143 = scmp.eq.s32.totalorder %s17, 0
      // Predicated region
      $region25: #{_lambda_.13} parent=23 // pred_check
        %p144 = pneg %p143
      $region26: #{_lambda_.13} parent=23 // pred_check_branch
        %146 = sbr.rel (%p144) target = $region28
      $region27: #{_lambda_.13} parent=23 // pred_region
        %vm147 = vcmask 254976
        %148 = vst.msk [vmem:[%s142] sm:$0x3] %vm147, 0.0
      $region28: #{_lambda_.13} parent=23 // pred_fallthru
        _
      %v149 = vld [vmem:[%s137] sm:$0xf]
      %v150 = vld [vmem:[%s137 + $0x4] sm:$0xf]
      %v151 = vld [vmem:[%s137 + $0x8] sm:$0xf]
      %v152 = vld [vmem:[%s137 + $0xc] sm:$0xf]
      %v153 = vld [vmem:[%s137 + $0x10] sm:$0xf]
      %v154 = vld [vmem:[%s137 + $0x14] sm:$0xf]
      %v155 = vld [vmem:[%s137 + $0x18] sm:$0xf]
      %v156 = vld [vmem:[%s137 + $0x1c] sm:$0xf]
      %v157 = vunpack.c.l.bf16 %v149
      %v158 = vunpack.c.l.bf16 %v150
      %v159 = vunpack.c.l.bf16 %v151
      %v160 = vunpack.c.l.bf16 %v152
      %v161 = vunpack.c.l.bf16 %v153
      %v162 = vunpack.c.l.bf16 %v154
      %v163 = vunpack.c.l.bf16 %v155
      %v164 = vunpack.c.l.bf16 %v156
      %vm165 = vcmask 261120
      %v166 = vsel %vm165, %v157, 0.0
      %v167 = vsel %vm165, %v158, 0.0
      %v168 = vadd.f32 %v166, %v167
      %v169 = vsel %vm165, %v159, 0.0
      %v170 = vadd.f32 %v168, %v169
      %v171 = vsel %vm165, %v160, 0.0
      %v172 = vadd.f32 %v170, %v171
      %v173 = vsel %vm165, %v161, 0.0
      %v174 = vadd.f32 %v172, %v173
      %v175 = vsel %vm165, %v162, 0.0
      %v176 = vadd.f32 %v174, %v175
      %v177 = vsel %vm165, %v163, 0.0
      %v178 = vadd.f32 %v176, %v177
      %v179 = vsel %vm165, %v164, 0.0
      %v180 = vadd.f32 %v178, %v179
      %v181 = vrot.slane %v180, 4
      %v182 = vadd.f32 %v180, %v181
      %v183 = vrot.slane %v182, 2
      %v184 = vadd.f32 %v182, %v183
      %v185 = vrot.slane %v184, 1
      %v186 = vadd.f32 %v184, %v185
      %v187 = vmul.f32 %v157, %v157
      %v188 = vmul.f32 %v158, %v158
      %v189 = vmul.f32 %v159, %v159
      %v190 = vmul.f32 %v160, %v160
      %v191 = vmul.f32 %v161, %v161
      %v192 = vmul.f32 %v162, %v162
      %v193 = vmul.f32 %v163, %v163
      %v194 = vmul.f32 %v164, %v164
      %v195 = vsel %vm165, %v187, 0.0
      %v196 = vsel %vm165, %v188, 0.0
      %v197 = vadd.f32 %v195, %v196
      %v198 = vsel %vm165, %v189, 0.0
      %v199 = vadd.f32 %v197, %v198
      %v200 = vsel %vm165, %v190, 0.0
      %v201 = vadd.f32 %v199, %v200
      %v202 = vsel %vm165, %v191, 0.0
      %v203 = vadd.f32 %v201, %v202
      %v204 = vsel %vm165, %v192, 0.0
      %v205 = vadd.f32 %v203, %v204
      %v206 = vsel %vm165, %v193, 0.0
      %v207 = vadd.f32 %v205, %v206
      %v208 = vsel %vm165, %v194, 0.0
      %v209 = vadd.f32 %v207, %v208
      %v210 = vrot.slane %v209, 4
      %v211 = vadd.f32 %v209, %v210
      %v212 = vrot.slane %v211, 2
      %v213 = vadd.f32 %v211, %v212
      %v214 = vrot.slane %v213, 1
      %v215 = vadd.f32 %v213, %v214
      %v216 = vld [vmem:[%s142] sm:$0x3]
      %vm217 = vcmask 1040384
      %v218 = vsel %vm217, %v186, %v215
      %v219 = vadd.f32 %v216, %v218
      %vm220 = vcmask 254976
      %221 = vst.msk [vmem:[%s142] sm:$0x3] %vm220, %v219
      %p222 = scmp.lt.s32.totalorder %s16, 1
      %s223 = scalar_select %p222, %s16, 1
      %s224 = smul.addr %s223, 2
      %s225 = scalar_lea.vmem %s1, %s224
      // Predicated region
      $region29: #{_lambda_.13} parent=23 // pred_check
        %p226 = pneg %p70
      $region30: #{_lambda_.13} parent=23 // pred_check_branch
        %228 = sbr.rel (%p226) target = $region32
      $region31: #{_lambda_.13} parent=23 // pred_region
        _
      $region32: #{_lambda_.13} parent=23 // pred_fallthru
        _
    $region24: #{_lambda_.13} parent=5 // pred_fallthru
      _
    %p229 = scmp.le.s32.totalorder 2, %s7
    // Predicated region
    $region33: #{_lambda_.13} parent=5 // pred_check
      %p230 = pneg %p229
    $region34: #{_lambda_.13} parent=5 // pred_check_branch
      %232 = sbr.rel (%p230) target = $region36
    $region35: #{_lambda_.13} parent=5 // pred_region
      %s233 = ssub.s32 %s7, 2
      // Predicated region
      $region37: #{_lambda_.13} parent=35 // pred_check
        %p234 = pneg %p76
      $region38: #{_lambda_.13} parent=35 // pred_check_branch
        %236 = sbr.rel (%p234) target = $region40
      $region39: #{_lambda_.13} parent=35 // pred_region
        %p237 = scmp.lt.s32.totalorder %s18, 1
        %s238 = scalar_select %p237, %s18, 1
        %s239 = smul.addr %s238, 2
        %s240 = scalar_lea.vmem %s1, %s239
      $region40: #{_lambda_.13} parent=35 // pred_fallthru
        _
    $region36: #{_lambda_.13} parent=5 // pred_fallthru
      _
  $region6: #{_lambda_.13} parent=0 // loop_footer
    %s11 = sadd.s32 1, %s7
  $region7: #{_lambda_.13} parent=0 // loop_footer_branch
    %6 = sbr.rel target = $region3
  $region8: #{_lambda_.13} parent=0 // loop_exit
    _

// kernel: squeeze.8
$region0: #{squeeze.8}
  %s0 = inlined_call_operand.vmem [shape: f32[2,64], index: 0, kind: input, shape index: {}]
  %s1 = inlined_call_operand.vmem [shape: f32[2,8,8], index: 1, kind: output, shape index: {}]
  $region1: #{squeeze.8} parent=0
    #allocation0 [shape = 'u8[4096]{0}', space=vmem, size = 0x1000, scoped, tag = 'scoped mem for input reshape']
    %s3 = ssub.s32 4, 1
    %v4 = vld [vmem:[%s0] sm:%s3]
    %5 = vst [vmem:[#allocation0] sm:%s3] %v4
    %v6 = vld [vmem:[#allocation0] sm:$0x3]
    %vm7 = vcmask 64512
    %8 = vst.msk [vmem:[%s1] ss:$8 sm:$0x3] %vm7, %v6
    %v9 = vld [vmem:[#allocation0] sm:$0x3]
    %10 = vrot.lane.b32.xlu0 %v9, 120
    %v11 = vpop.permute.xlu0 %10
    %vm12 = vcmask 64512
    %s13 = scalar_lea.vmem %s1, 1
    %14 = vst.msk [vmem:[%s13] ss:$8 sm:$0x3] %vm12, %v11
    %v15 = vld [vmem:[#allocation0] sm:$0x3]
    %16 = vrot.lane.b32.xlu0 %v15, 112
    %v17 = vpop.permute.xlu0 %16
    %vm18 = vcmask 64512
    %s19 = scalar_lea.vmem %s1, 2
    %20 = vst.msk [vmem:[%s19] ss:$8 sm:$0x3] %vm18, %v17
    %v21 = vld [vmem:[#allocation0] sm:$0x3]
    %22 = vrot.lane.b32.xlu0 %v21, 104
    %v23 = vpop.permute.xlu0 %22
    %vm24 = vcmask 64512
    %s25 = scalar_lea.vmem %s1, 3
    %26 = vst.msk [vmem:[%s25] ss:$8 sm:$0x3] %vm24, %v23
    %v27 = vld [vmem:[#allocation0] sm:$0x3]
    %28 = vrot.lane.b32.xlu0 %v27, 96
    %v29 = vpop.permute.xlu0 %28
    %vm30 = vcmask 64512
    %s31 = scalar_lea.vmem %s1, 4
    %32 = vst.msk [vmem:[%s31] ss:$8 sm:$0x3] %vm30, %v29
    %v33 = vld [vmem:[#allocation0] sm:$0x3]
    %34 = vrot.lane.b32.xlu0 %v33, 88
    %v35 = vpop.permute.xlu0 %34
    %vm36 = vcmask 64512
    %s37 = scalar_lea.vmem %s1, 5
    %38 = vst.msk [vmem:[%s37] ss:$8 sm:$0x3] %vm36, %v35
    %v39 = vld [vmem:[#allocation0] sm:$0x3]
    %40 = vrot.lane.b32.xlu0 %v39, 80
    %v41 = vpop.permute.xlu0 %40
    %vm42 = vcmask 64512
    %s43 = scalar_lea.vmem %s1, 6
    %44 = vst.msk [vmem:[%s43] ss:$8 sm:$0x3] %vm42, %v41
    %v45 = vld [vmem:[#allocation0] sm:$0x3]
    %46 = vrot.lane.b32.xlu0 %v45, 72
    %v47 = vpop.permute.xlu0 %46
    %vm48 = vcmask 64512
    %s49 = scalar_lea.vmem %s1, 7
    %50 = vst.msk [vmem:[%s49] ss:$8 sm:$0x3] %vm48, %v47

// kernel: _lambda_.15
$region0: #{_lambda_.15}
  #allocation0 [shape = 'u32[]', space=smem, size = 0x4, offset = 0x4, fixed_abs, tag = 'smem constant byte address 0x4 - core index']
  #allocation1 [shape = 'u32[72,128]{1,0:T(1,128)}', space=vmem, size = 0x9000, scoped, tag = 'internal scratch']
  %s0 = inlined_call_operand.vmem [shape: bf16[2,32,128], index: 0, kind: input, shape index: {}]
  %s1 = inlined_call_operand.vmem [shape: bf16[4,128,128], index: 1, kind: input, shape index: {}]
  %s2 = inlined_call_operand.vmem [shape: f32[1,128], index: 2, kind: input, shape index: {}]
  %s3 = inlined_call_operand.vmem [shape: bf16[2,20,128], index: 3, kind: output, shape index: {}]
  %s4 = sld [smem:[#allocation0]]
  $region45: #{_lambda_.15} parent=0
    _
  %s6 = ssub.s32 1, %s4
  %s7 = scalar_select 0, %s6, %s4
  loop: start=0, step=1, limit=4
  $region2: #{_lambda_.15} parent=0 // loop_pre_header
    _
  $region3: #{_lambda_.15} parent=0 // loop_header
    %s9 = sphi 0, %s13
    %p10 = scmp.ge.s32.totalorder %s9, 4
    %s19 = sphi 0, %s21
    %s22 = sphi 0, %s19
    %s23 = sphi 0, %s22
    %s39 = sphi 0, %s23
    %s43 = sphi 0, %s43
    %s45 = sphi 0, %s43
    %s46 = sphi 0, %s45
    %s60 = sphi 0, %s46
    %s64 = sphi 0, %s64
    %s66 = sphi 0, %s64
    %s67 = sphi 0, %s66
    %s81 = sphi 0, %s67
    %s87 = sphi 0, %s89
    %s90 = sphi 0, %s87
    %s91 = sphi 0, %s90
    %s107 = sphi 0, %s91
  $region4: #{_lambda_.15} parent=0 // loop_header_branch
    %12 = sbr.rel (%p10) target = $region8
  $region5: #{_lambda_.15} parent=0 // loop_body
    %s14 = ssub.s32 %s9, 1
    %s15 = ssub.s32 %s9, 2
    %s16 = sadd.s32 %s9, 1
    %s17 = ssub.s32 %s9, %s16
    %p18 = scmp.eq.s32.totalorder %s17, 0
    %s20 = sadd.s32 %s19, 1
    %s21 = scalar_select %p18, %s19, %s20
    %p24 = pneg %p18
    %p25 = scmp.eq.s32.totalorder %s9, 1
    %p26 = por %p24, %p25
    %p27 = scmp.ne.s32.totalorder %s19, %s22
    %p28 = scmp.eq.s32.totalorder %s9, 0
    %p29 = por %p27, %p28
    %p30 = scmp.ne.s32.totalorder %s19, %s22
    %p31 = scmp.eq.s32.totalorder %s14, 1
    %p32 = por %p30, %p31
    %p33 = scmp.ne.s32.totalorder %s22, %s23
    %p34 = scmp.eq.s32.totalorder %s14, 0
    %p35 = por %p33, %p34
    %p36 = scmp.ne.s32.totalorder %s22, %s23
    %p37 = scmp.eq.s32.totalorder %s15, 1
    %p38 = por %p36, %p37
    %p40 = scmp.ne.s32.totalorder %s23, %s39
    %p41 = scmp.eq.s32.totalorder %s15, 0
    %p42 = por %p40, %p41
    %s44 = sadd.s32 %s43, 1
    %p47 = scmp.eq.s32.totalorder %s9, 1
    %p48 = scmp.ne.s32.totalorder %s43, %s45
    %p49 = scmp.eq.s32.totalorder %s9, 0
    %p50 = por %p48, %p49
    %p51 = scmp.ne.s32.totalorder %s43, %s45
    %p52 = scmp.eq.s32.totalorder %s14, 1
    %p53 = por %p51, %p52
    %p54 = scmp.ne.s32.totalorder %s45, %s46
    %p55 = scmp.eq.s32.totalorder %s14, 0
    %p56 = por %p54, %p55
    %p57 = scmp.ne.s32.totalorder %s45, %s46
    %p58 = scmp.eq.s32.totalorder %s15, 1
    %p59 = por %p57, %p58
    %p61 = scmp.ne.s32.totalorder %s46, %s60
    %p62 = scmp.eq.s32.totalorder %s15, 0
    %p63 = por %p61, %p62
    %s65 = sadd.s32 %s64, 1
    %p68 = scmp.eq.s32.totalorder %s9, 1
    %p69 = scmp.ne.s32.totalorder %s64, %s66
    %p70 = scmp.eq.s32.totalorder %s9, 0
    %p71 = por %p69, %p70
    %p72 = scmp.ne.s32.totalorder %s64, %s66
    %p73 = scmp.eq.s32.totalorder %s14, 1
    %p74 = por %p72, %p73
    %p75 = scmp.ne.s32.totalorder %s66, %s67
    %p76 = scmp.eq.s32.totalorder %s14, 0
    %p77 = por %p75, %p76
    %p78 = scmp.ne.s32.totalorder %s66, %s67
    %p79 = scmp.eq.s32.totalorder %s15, 1
    %p80 = por %p78, %p79
    %p82 = scmp.ne.s32.totalorder %s67, %s81
    %p83 = scmp.eq.s32.totalorder %s15, 0
    %p84 = por %p82, %p83
    %s85 = ssub.s32 %s9, %s16
    %p86 = scmp.eq.s32.totalorder %s85, 0
    %s88 = sadd.s32 %s87, 1
    %s89 = scalar_select %p86, %s87, %s88
    %p92 = pneg %p86
    %p93 = scmp.eq.s32.totalorder %s9, 1
    %p94 = por %p92, %p93
    %p95 = scmp.ne.s32.totalorder %s87, %s90
    %p96 = scmp.eq.s32.totalorder %s9, 0
    %p97 = por %p95, %p96
    %p98 = scmp.ne.s32.totalorder %s87, %s90
    %p99 = scmp.eq.s32.totalorder %s14, 1
    %p100 = por %p98, %p99
    %p101 = scmp.ne.s32.totalorder %s90, %s91
    %p102 = scmp.eq.s32.totalorder %s14, 0
    %p103 = por %p101, %p102
    %p104 = scmp.ne.s32.totalorder %s90, %s91
    %p105 = scmp.eq.s32.totalorder %s15, 1
    %p106 = por %p104, %p105
    %p108 = scmp.ne.s32.totalorder %s91, %s107
    %p109 = scmp.eq.s32.totalorder %s15, 0
    %p110 = por %p108, %p109
    %p111 = scmp.le.s32.totalorder 1, %s9
    %p112 = scmp.lt.s32.totalorder %s9, 3
    %p113 = pnand %p111, %p112
    %p114 = pneg %p113
    // Predicated region
    $region9: #{_lambda_.15} parent=5 // pred_check
      _
    $region10: #{_lambda_.15} parent=5 // pred_check_branch
      %116 = sbr.rel (%p113) target = $region12
    $region11: #{_lambda_.15} parent=5 // pred_region
      %s117 = ssub.s32 %s9, 1
      // Predicated region
      $region13: #{_lambda_.15} parent=11 // pred_check
        %p118 = pneg %p56
      $region14: #{_lambda_.15} parent=11 // pred_check_branch
        %120 = sbr.rel (%p118) target = $region16
      $region15: #{_lambda_.15} parent=11 // pred_region
        _
      $region16: #{_lambda_.15} parent=11 // pred_fallthru
        _
      // Predicated region
      $region17: #{_lambda_.15} parent=11 // pred_check
        %p121 = pneg %p77
      $region18: #{_lambda_.15} parent=11 // pred_check_branch
        %123 = sbr.rel (%p121) target = $region20
      $region19: #{_lambda_.15} parent=11 // pred_region
        _
      $region20: #{_lambda_.15} parent=11 // pred_fallthru
        _
    $region12: #{_lambda_.15} parent=5 // pred_fallthru
      _
    %p124 = scmp.lt.s32.totalorder %s9, 2
    // Predicated region
    $region21: #{_lambda_.15} parent=5 // pred_check
      %p125 = pneg %p124
    $region22: #{_lambda_.15} parent=5 // pred_check_branch
      %127 = sbr.rel (%p125) target = $region24
    $region23: #{_lambda_.15} parent=5 // pred_region
      // Predicated region
      $region25: #{_lambda_.15} parent=23 // pred_check
        %p128 = pneg %p29
      $region26: #{_lambda_.15} parent=23 // pred_check_branch
        %130 = sbr.rel (%p128) target = $region28
      $region27: #{_lambda_.15} parent=23 // pred_region
        %p131 = scmp.lt.s32.totalorder %s9, 1
        %s132 = scalar_select %p131, %s9, 1
        %s133 = smul.addr %s132, 4
        %s134 = smul.addr %s133, 4
        %s135 = scalar_lea.vmem %s0, %s134
      $region28: #{_lambda_.15} parent=23 // pred_fallthru
        _
    $region24: #{_lambda_.15} parent=5 // pred_fallthru
      _
    %p136 = scmp.le.s32.totalorder 1, %s9
    %p137 = scmp.lt.s32.totalorder %s9, 3
    %p138 = pnand %p136, %p137
    %p139 = pneg %p138
    // Predicated region
    $region29: #{_lambda_.15} parent=5 // pred_check
      _
    $region30: #{_lambda_.15} parent=5 // pred_check_branch
      %141 = sbr.rel (%p138) target = $region32
    $region31: #{_lambda_.15} parent=5 // pred_region
      %s142 = ssub.s32 %s9, 1
      %p143 = scmp.lt.s32.totalorder %s14, 1
      %s144 = scalar_select %p143, %s14, 1
      %s145 = smul.addr %s144, 4
      %s146 = smul.addr %s145, 4
      %s147 = scalar_lea.vmem %s0, %s146
      %p148 = pneg %p35
      %p149 = pneg %p32
      %p150 = pneg %p56
      %p151 = pneg %p53
      %p152 = pneg %p77
      %p153 = pneg %p74
      %p154 = pneg %p103
      %p155 = pneg %p100
      %p156 = scmp.lt.s32.totalorder %s14, 1
      %s157 = scalar_select %p156, %s14, 1
      %s158 = smul.addr %s157, 3
      %s159 = smul.addr %s158, 4
      %s160 = scalar_lea.vmem %s3, %s159
      %p161 = scmp.lt.s32.totalorder %s14, 1
      %s162 = scalar_select %p161, %s14, 1
      %s163 = smul.addr %s162, 4
      %s164 = smul.addr %s163, 4
      %s165 = scalar_lea.vmem %s0, %s164
      %p166 = scmp.lt.s32.totalorder %s14, 1
      %s167 = scalar_select %p166, %s14, 1
      %s168 = smul.addr %s167, 3
      %s169 = smul.addr %s168, 4
      %s170 = scalar_lea.vmem %s3, %s169
      %v171 = vld [vmem:[%s165] sm:$0xf]
      %v172 = vld [vmem:[%s165 + $0x4] sm:$0xf]
      %v173 = vld [vmem:[%s165 + $0x8] sm:$0x3]
      %v174 = vld [vmem:[%s1] sm:$0xf]
      %v175 = vld [vmem:[%s1 + $0x4] sm:$0xf]
      %v176 = vld [vmem:[%s1 + $0x8] sm:$0xf]
      %v177 = vld [vmem:[%s1 + $0xc] sm:$0xf]
      %v178 = vld [vmem:[%s1 + $0x10] sm:$0xf]
      %v179 = vld [vmem:[%s1 + $0x14] sm:$0xf]
      %v180 = vld [vmem:[%s1 + $0x18] sm:$0xf]
      %v181 = vld [vmem:[%s1 + $0x1c] sm:$0xf]
      %v182 = vld [vmem:[%s1 + $0x20] sm:$0xf]
      %v183 = vld [vmem:[%s1 + $0x24] sm:$0xf]
      %v184 = vld [vmem:[%s1 + $0x28] sm:$0xf]
      %v185 = vld [vmem:[%s1 + $0x2c] sm:$0xf]
      %v186 = vld [vmem:[%s1 + $0x30] sm:$0xf]
      %v187 = vld [vmem:[%s1 + $0x34] sm:$0xf]
      %v188 = vld [vmem:[%s1 + $0x38] sm:$0xf]
      %v189 = vld [vmem:[%s1 + $0x3c] sm:$0xf]
      %v190 = vld [vmem:[%s165 + $0x8] sm:$0x7]
      %s191 = scalar_lea.vmem %s1, 64
      %v192 = vld [vmem:[%s191] sm:$0xf]
      %v193 = vld [vmem:[%s191 + $0x4] sm:$0xf]
      %v194 = vld [vmem:[%s191 + $0x8] sm:$0xf]
      %v195 = vld [vmem:[%s191 + $0xc] sm:$0xf]
      %v196 = vld [vmem:[%s191 + $0x10] sm:$0xf]
      %v197 = vld [vmem:[%s191 + $0x14] sm:$0xf]
      %v198 = vld [vmem:[%s191 + $0x18] sm:$0xf]
      %v199 = vld [vmem:[%s191 + $0x1c] sm:$0xf]
      %v200 = vld [vmem:[%s191 + $0x20] sm:$0xf]
      %v201 = vld [vmem:[%s191 + $0x24] sm:$0xf]
      %v202 = vld [vmem:[%s191 + $0x28] sm:$0xf]
      %v203 = vld [vmem:[%s191 + $0x2c] sm:$0xf]
      %v204 = vld [vmem:[%s191 + $0x30] sm:$0xf]
      %v205 = vld [vmem:[%s191 + $0x34] sm:$0xf]
      %v206 = vld [vmem:[%s191 + $0x38] sm:$0xf]
      %v207 = vld [vmem:[%s191 + $0x3c] sm:$0xf]
      %v211 = vunpack.c.l.b16 %v171
      %v212 = vunpack.c.l.b16 %v172
      %v213 = vunpack.c.l.b16 %v190
      %v214 = vpack.c.b16 %v212, %v211
      %v215 = vpack.c.b16 %v213, %v213
      %vm216 = vsmask.f32 7424
      %v218 = vshrl.u32 %v214, 16
      %v220 = vshll.u32 %v214, 16
      %v222 = vrot.slane %v220, 1
      %v223 = vor.u32 %v218, %v222
      %v225 = vshll.u32 %v215, 16
      %v227 = vrot.slane %v225, 1
      %v228 = vsel %vm216, %v223, %v227
      %v229 = vshrl.u32 %v215, 16
      %v231 = vor.u32 %v229, %v227
      %v250 = vunpack.c.l.b16 %v192
      %v251 = vunpack.c.l.b16 %v193
      %v252 = vunpack.c.l.b16 %v194
      %v253 = vunpack.c.l.b16 %v195
      %v254 = vunpack.c.l.b16 %v196
      %v255 = vunpack.c.l.b16 %v197
      %v256 = vunpack.c.l.b16 %v198
      %v257 = vunpack.c.l.b16 %v199
      %v258 = vunpack.c.l.b16 %v200
      %v259 = vunpack.c.l.b16 %v201
      %v260 = vunpack.c.l.b16 %v202
      %v261 = vunpack.c.l.b16 %v203
      %v262 = vunpack.c.l.b16 %v204
      %v263 = vunpack.c.l.b16 %v205
      %v264 = vunpack.c.l.b16 %v206
      %v265 = vunpack.c.l.b16 %v207
      %v266 = vpack.c.b16 %v251, %v250
      %v267 = vpack.c.b16 %v253, %v252
      %v268 = vpack.c.b16 %v255, %v254
      %v269 = vpack.c.b16 %v257, %v256
      %v270 = vpack.c.b16 %v259, %v258
      %v271 = vpack.c.b16 %v261, %v260
      %v272 = vpack.c.b16 %v263, %v262
      %v273 = vpack.c.b16 %v265, %v264
      %282 = vmatpush.bf16.msra.mxu0 %v273
      %283 = vmatpush.bf16.msra.mxu0 %v272
      %284 = vmatpush.bf16.msra.mxu0 %v271
      %285 = vmatpush.bf16.msra.mxu0 %v270
      %286 = vmatpush.bf16.msra.mxu0 %v269
      %287 = vmatpush.bf16.msra.mxu0 %v268
      %288 = vmatpush.bf16.msra.mxu0 %v267
      %289 = vmatpush.bf16.msra.mxu0 %v266
      %290 = vmatmul.bf16.gmra.mxu0 %v228
      %v291 = vpop.f32.mrf.mxu0
      %v292 = vadd.f32 0.0, %v291
      %v293 = vpop.f32.mrf.mxu0
      %v294 = vadd.f32 0.0, %v293
      %295 = vmatmul.bf16.gmra.mxu0 %v231
      %v296 = vpop.f32.mrf.mxu0
      %v297 = vadd.f32 0.0, %v296
      %v298 = vpop.f32.mrf.mxu0
      %299 = vdwg.mxu0
      %v301 = vunpack.c.l.b16 %v173
      %v302 = vpack.c.b16 %v301, %v301
      %v321 = vunpack.c.l.b16 %v174
      %v322 = vunpack.c.l.b16 %v175
      %v323 = vunpack.c.l.b16 %v176
      %v324 = vunpack.c.l.b16 %v177
      %v325 = vunpack.c.l.b16 %v178
      %v326 = vunpack.c.l.b16 %v179
      %v327 = vunpack.c.l.b16 %v180
      %v328 = vunpack.c.l.b16 %v181
      %v329 = vunpack.c.l.b16 %v182
      %v330 = vunpack.c.l.b16 %v183
      %v331 = vunpack.c.l.b16 %v184
      %v332 = vunpack.c.l.b16 %v185
      %v333 = vunpack.c.l.b16 %v186
      %v334 = vunpack.c.l.b16 %v187
      %v335 = vunpack.c.l.b16 %v188
      %v336 = vunpack.c.l.b16 %v189
      %v337 = vpack.c.b16 %v322, %v321
      %v338 = vpack.c.b16 %v324, %v323
      %v339 = vpack.c.b16 %v326, %v325
      %v340 = vpack.c.b16 %v328, %v327
      %v341 = vpack.c.b16 %v330, %v329
      %v342 = vpack.c.b16 %v332, %v331
      %v343 = vpack.c.b16 %v334, %v333
      %v344 = vpack.c.b16 %v336, %v335
      %353 = vmatpush.bf16.msra.mxu0 %v344
      %354 = vmatpush.bf16.msra.mxu0 %v343
      %355 = vmatpush.bf16.msra.mxu0 %v342
      %356 = vmatpush.bf16.msra.mxu0 %v341
      %357 = vmatpush.bf16.msra.mxu0 %v340
      %358 = vmatpush.bf16.msra.mxu0 %v339
      %359 = vmatpush.bf16.msra.mxu0 %v338
      %360 = vmatpush.bf16.msra.mxu0 %v337
      %361 = vmatmul.bf16.gmra.mxu0 %v214
      %v362 = vpop.f32.mrf.mxu0
      %v363 = vadd.f32 %v292, %v362
      %v364 = vpop.f32.mrf.mxu0
      %v365 = vadd.f32 %v294, %v364
      %366 = vmatmul.bf16.gmra.mxu0 %v302
      %v367 = vpop.f32.mrf.mxu0
      %v368 = vadd.f32 %v297, %v367
      %v369 = vpop.f32.mrf.mxu0
      %370 = vdwg.mxu0
      %v371 = vld [vmem:[%s165] sm:$0xc]
      %v372 = vld [vmem:[%s165 + $0x4] sm:$0xf]
      %v373 = vld [vmem:[%s165 + $0x8] sm:$0xf]
      %v374 = vld [vmem:[%s165 + $0xc] sm:$0x1]
      %s375 = scalar_lea.vmem %s1, 128
      %v376 = vld [vmem:[%s375] sm:$0xf]
      %v377 = vld [vmem:[%s375 + $0x4] sm:$0xf]
      %v378 = vld [vmem:[%s375 + $0x8] sm:$0xf]
      %v379 = vld [vmem:[%s375 + $0xc] sm:$0xf]
      %v380 = vld [vmem:[%s375 + $0x10] sm:$0xf]
      %v381 = vld [vmem:[%s375 + $0x14] sm:$0xf]
      %v382 = vld [vmem:[%s375 + $0x18] sm:$0xf]
      %v383 = vld [vmem:[%s375 + $0x1c] sm:$0xf]
      %v384 = vld [vmem:[%s375 + $0x20] sm:$0xf]
      %v385 = vld [vmem:[%s375 + $0x24] sm:$0xf]
      %v386 = vld [vmem:[%s375 + $0x28] sm:$0xf]
      %v387 = vld [vmem:[%s375 + $0x2c] sm:$0xf]
      %v388 = vld [vmem:[%s375 + $0x30] sm:$0xf]
      %v389 = vld [vmem:[%s375 + $0x34] sm:$0xf]
      %v390 = vld [vmem:[%s375 + $0x38] sm:$0xf]
      %v391 = vld [vmem:[%s375 + $0x3c] sm:$0xf]
      %v396 = vunpack.c.l.b16 %v371
      %v397 = vunpack.c.l.b16 %v372
      %v398 = vunpack.c.l.b16 %v373
      %v399 = vunpack.c.l.b16 %v374
      %v400 = vpack.c.b16 %v397, %v396
      %v401 = vpack.c.b16 %v399, %v398
      %vm402 = vsmask.f32 5376
      %v404 = vshrl.u32 %v400, 16
      %v406 = vrot.slane %v404, 2
      %v407 = vshll.u32 %v400, 16
      %v409 = vrot.slane %v407, 3
      %v410 = vor.u32 %v406, %v409
      %v412 = vshrl.u32 %v401, 16
      %v414 = vrot.slane %v412, 2
      %v415 = vshll.u32 %v401, 16
      %v417 = vrot.slane %v415, 3
      %v418 = vor.u32 %v414, %v417
      %v419 = vsel %vm402, %v410, %v418
      %v438 = vunpack.c.l.b16 %v376
      %v439 = vunpack.c.l.b16 %v377
      %v440 = vunpack.c.l.b16 %v378
      %v441 = vunpack.c.l.b16 %v379
      %v442 = vunpack.c.l.b16 %v380
      %v443 = vunpack.c.l.b16 %v381
      %v444 = vunpack.c.l.b16 %v382
      %v445 = vunpack.c.l.b16 %v383
      %v446 = vunpack.c.l.b16 %v384
      %v447 = vunpack.c.l.b16 %v385
      %v448 = vunpack.c.l.b16 %v386
      %v449 = vunpack.c.l.b16 %v387
      %v450 = vunpack.c.l.b16 %v388
      %v451 = vunpack.c.l.b16 %v389
      %v452 = vunpack.c.l.b16 %v390
      %v453 = vunpack.c.l.b16 %v391
      %v454 = vpack.c.b16 %v439, %v438
      %v455 = vpack.c.b16 %v441, %v440
      %v456 = vpack.c.b16 %v443, %v442
      %v457 = vpack.c.b16 %v445, %v444
      %v458 = vpack.c.b16 %v447, %v446
      %v459 = vpack.c.b16 %v449, %v448
      %v460 = vpack.c.b16 %v451, %v450
      %v461 = vpack.c.b16 %v453, %v452
      %470 = vmatpush.bf16.msra.mxu0 %v461
      %471 = vmatpush.bf16.msra.mxu0 %v460
      %472 = vmatpush.bf16.msra.mxu0 %v459
      %473 = vmatpush.bf16.msra.mxu0 %v458
      %474 = vmatpush.bf16.msra.mxu0 %v457
      %475 = vmatpush.bf16.msra.mxu0 %v456
      %476 = vmatpush.bf16.msra.mxu0 %v455
      %477 = vmatpush.bf16.msra.mxu0 %v454
      %478 = vmatmul.bf16.gmra.mxu0 %v419
      %v479 = vpop.f32.mrf.mxu0
      %v480 = vadd.f32 0.0, %v479
      %v481 = vpop.f32.mrf.mxu0
      %v482 = vadd.f32 0.0, %v481
      %483 = vmatmul.bf16.gmra.mxu0 %v418
      %v484 = vpop.f32.mrf.mxu0
      %v485 = vadd.f32 0.0, %v484
      %v486 = vpop.f32.mrf.mxu0
      %487 = vdwg.mxu0
      %v488 = vadd.f32 %v363, %v480
      %v489 = vadd.f32 %v365, %v482
      %v490 = vadd.f32 %v368, %v485
      %v491 = vld [vmem:[%s165] sm:$0x8]
      %s492 = scalar_lea.vmem %s1, 192
      %v493 = vld [vmem:[%s492] sm:$0xf]
      %v494 = vld [vmem:[%s492 + $0x4] sm:$0xf]
      %v495 = vld [vmem:[%s492 + $0x8] sm:$0xf]
      %v496 = vld [vmem:[%s492 + $0xc] sm:$0xf]
      %v497 = vld [vmem:[%s492 + $0x10] sm:$0xf]
      %v498 = vld [vmem:[%s492 + $0x14] sm:$0xf]
      %v499 = vld [vmem:[%s492 + $0x18] sm:$0xf]
      %v500 = vld [vmem:[%s492 + $0x1c] sm:$0xf]
      %v501 = vld [vmem:[%s492 + $0x20] sm:$0xf]
      %v502 = vld [vmem:[%s492 + $0x24] sm:$0xf]
      %v503 = vld [vmem:[%s492 + $0x28] sm:$0xf]
      %v504 = vld [vmem:[%s492 + $0x2c] sm:$0xf]
      %v505 = vld [vmem:[%s492 + $0x30] sm:$0xf]
      %v506 = vld [vmem:[%s492 + $0x34] sm:$0xf]
      %v507 = vld [vmem:[%s492 + $0x38] sm:$0xf]
      %v508 = vld [vmem:[%s492 + $0x3c] sm:$0xf]
      %v510 = vunpack.c.l.b16 %v491
      %v511 = vpack.c.b16 %v397, %v510
      %vm512 = vcmask 1044480
      %v513 = vrot.slane %v511, 3
      %v514 = vrot.slane %v401, 3
      %v515 = vsel %vm512, %v513, %v514
      %v534 = vunpack.c.l.b16 %v493
      %v535 = vunpack.c.l.b16 %v494
      %v536 = vunpack.c.l.b16 %v495
      %v537 = vunpack.c.l.b16 %v496
      %v538 = vunpack.c.l.b16 %v497
      %v539 = vunpack.c.l.b16 %v498
      %v540 = vunpack.c.l.b16 %v499
      %v541 = vunpack.c.l.b16 %v500
      %v542 = vunpack.c.l.b16 %v501
      %v543 = vunpack.c.l.b16 %v502
      %v544 = vunpack.c.l.b16 %v503
      %v545 = vunpack.c.l.b16 %v504
      %v546 = vunpack.c.l.b16 %v505
      %v547 = vunpack.c.l.b16 %v506
      %v548 = vunpack.c.l.b16 %v507
      %v549 = vunpack.c.l.b16 %v508
      %v550 = vpack.c.b16 %v535, %v534
      %v551 = vpack.c.b16 %v537, %v536
      %v552 = vpack.c.b16 %v539, %v538
      %v553 = vpack.c.b16 %v541, %v540
      %v554 = vpack.c.b16 %v543, %v542
      %v555 = vpack.c.b16 %v545, %v544
      %v556 = vpack.c.b16 %v547, %v546
      %v557 = vpack.c.b16 %v549, %v548
      %566 = vmatpush.bf16.msra.mxu0 %v557
      %567 = vmatpush.bf16.msra.mxu0 %v556
      %568 = vmatpush.bf16.msra.mxu0 %v555
      %569 = vmatpush.bf16.msra.mxu0 %v554
      %570 = vmatpush.bf16.msra.mxu0 %v553
      %571 = vmatpush.bf16.msra.mxu0 %v552
      %572 = vmatpush.bf16.msra.mxu0 %v551
      %573 = vmatpush.bf16.msra.mxu0 %v550
      %574 = vmatmul.bf16.gmra.mxu0 %v515
      %v575 = vpop.f32.mrf.mxu0
      %v576 = vadd.f32 0.0, %v575
      %v577 = vpop.f32.mrf.mxu0
      %v578 = vadd.f32 0.0, %v577
      %579 = vmatmul.bf16.gmra.mxu0 %v514
      %v580 = vpop.f32.mrf.mxu0
      %v581 = vadd.f32 0.0, %v580
      %v582 = vpop.f32.mrf.mxu0
      %583 = vdwg.mxu0
      %v584 = vadd.f32 %v488, %v576
      %v585 = vadd.f32 %v489, %v578
      %v586 = vadd.f32 %v490, %v581
      %v587 = vld [vmem:[%s2] sm:$0x1]
      %v589 = vperm.slane %v587, 0
      %v591 = vadd.f32 %v584, %v589
      %v592 = vadd.f32 %v585, %v589
      %v593 = vadd.f32 %v586, %v589
      %v594 = vpack.c.bf16 %v591, %v591
      %v595 = vpack.c.bf16 %v592, %v592
      %v596 = vpack.c.bf16 %v593, %v593
      %597 = vst [vmem:[%s170] sm:$0xf] %v594
      %598 = vst [vmem:[%s170 + $0x4] sm:$0xf] %v595
      %599 = vst [vmem:[%s170 + $0x8] sm:$0x3] %v596
      %p600 = scmp.lt.s32.totalorder %s14, 1
      %s601 = scalar_select %p600, %s14, 1
      %s602 = smul.addr %s601, 3
      %s603 = smul.addr %s602, 4
      %s604 = scalar_lea.vmem %s3, %s603
      // Predicated region
      $region33: #{_lambda_.15} parent=31 // pred_check
        %p605 = pneg %p100
      $region34: #{_lambda_.15} parent=31 // pred_check_branch
        %607 = sbr.rel (%p605) target = $region36
      $region35: #{_lambda_.15} parent=31 // pred_region
        _
      $region36: #{_lambda_.15} parent=31 // pred_fallthru
        _
    $region32: #{_lambda_.15} parent=5 // pred_fallthru
      _
    %p608 = scmp.le.s32.totalorder 2, %s9
    // Predicated region
    $region37: #{_lambda_.15} parent=5 // pred_check
      %p609 = pneg %p608
    $region38: #{_lambda_.15} parent=5 // pred_check_branch
      %611 = sbr.rel (%p609) target = $region40
    $region39: #{_lambda_.15} parent=5 // pred_region
      %s612 = ssub.s32 %s9, 2
      // Predicated region
      $region41: #{_lambda_.15} parent=39 // pred_check
        %p613 = pneg %p106
      $region42: #{_lambda_.15} parent=39 // pred_check_branch
        %615 = sbr.rel (%p613) target = $region44
      $region43: #{_lambda_.15} parent=39 // pred_region
        %p616 = scmp.lt.s32.totalorder %s15, 1
        %s617 = scalar_select %p616, %s15, 1
        %s618 = smul.addr %s617, 3
        %s619 = smul.addr %s618, 4
        %s620 = scalar_lea.vmem %s3, %s619
      $region44: #{_lambda_.15} parent=39 // pred_fallthru
        _
    $region40: #{_lambda_.15} parent=5 // pred_fallthru
      _
  $region6: #{_lambda_.15} parent=0 // loop_footer
    %s13 = sadd.s32 1, %s9
  $region7: #{_lambda_.15} parent=0 // loop_footer_branch
    %8 = sbr.rel target = $region3
  $region8: #{_lambda_.15} parent=0 // loop_exit
    _

// kernel: _lambda_.16
$region0: #{_lambda_.16}
  #allocation0 [shape = 'u32[]', space=smem, size = 0x4, offset = 0x4, fixed_abs, tag = 'smem constant byte address 0x4 - core index']
  #allocation1 [shape = 'u32[72,128]{1,0:T(1,128)}', space=vmem, size = 0x9000, scoped, tag = 'internal scratch']
  %s0 = inlined_call_operand.vmem [shape: bf16[2,16,64], index: 0, kind: input, shape index: {}]
  %s1 = inlined_call_operand.vmem [shape: f32[2,2,64], index: 1, kind: output, shape index: {}]
  %s2 = sld [smem:[#allocation0]]
  $region41: #{_lambda_.16} parent=0
    _
  %s4 = ssub.s32 1, %s2
  %s5 = scalar_select 0, %s4, %s2
  loop: start=0, step=1, limit=4
  $region2: #{_lambda_.16} parent=0 // loop_pre_header
    _
  $region3: #{_lambda_.16} parent=0 // loop_header
    %s7 = sphi 0, %s11
    %p8 = scmp.ge.s32.totalorder %s7, 4
    %s14 = sphi 0, %s26
    %s15 = sphi 0, %s22
    %s16 = sphi 0, %s14
    %s17 = sphi 0, %s15
    %s18 = sphi 0, %s16
    %s19 = sphi 0, %s17
    %s31 = sphi 0, %s33
    %s34 = sphi 0, %s31
    %s35 = sphi 0, %s34
    %s51 = sphi 0, %s35
    %s57 = sphi 0, %s59
    %s60 = sphi 0, %s57
    %s61 = sphi 0, %s60
    %s77 = sphi 0, %s61
  $region4: #{_lambda_.16} parent=0 // loop_header_branch
    %10 = sbr.rel (%p8) target = $region8
  $region5: #{_lambda_.16} parent=0 // loop_body
    %s12 = ssub.s32 %s7, 1
    %s13 = ssub.s32 %s7, 2
    %s20 = sadd.s32 1, %s15
    %p21 = scmp.ge.s32.totalorder %s20, 1
    %s22 = scalar_select %p21, 0, %s20
    %s23 = sadd.s32 1, %s14
    %s24 = scalar_select %p21, %s23, %s14
    %p25 = scmp.ge.s32.totalorder %s24, 2
    %s26 = scalar_select %p25, 0, %s24
    %s27 = ssub.s32 %s14, %s26
    %s28 = ssub.s32 %s15, %s22
    %s29 = sor.u32 %s27, %s28
    %p30 = scmp.eq.s32.totalorder %s29, 0
    %s32 = sadd.s32 %s31, 1
    %s33 = scalar_select %p30, %s31, %s32
    %p36 = pneg %p30
    %p37 = scmp.eq.s32.totalorder %s7, 1
    %p38 = por %p36, %p37
    %p39 = scmp.ne.s32.totalorder %s31, %s34
    %p40 = scmp.eq.s32.totalorder %s7, 0
    %p41 = por %p39, %p40
    %p42 = scmp.ne.s32.totalorder %s31, %s34
    %p43 = scmp.eq.s32.totalorder %s12, 1
    %p44 = por %p42, %p43
    %p45 = scmp.ne.s32.totalorder %s34, %s35
    %p46 = scmp.eq.s32.totalorder %s12, 0
    %p47 = por %p45, %p46
    %p48 = scmp.ne.s32.totalorder %s34, %s35
    %p49 = scmp.eq.s32.totalorder %s13, 1
    %p50 = por %p48, %p49
    %p52 = scmp.ne.s32.totalorder %s35, %s51
    %p53 = scmp.eq.s32.totalorder %s13, 0
    %p54 = por %p52, %p53
    %s55 = ssub.s32 %s14, %s26
    %p56 = scmp.eq.s32.totalorder %s55, 0
    %s58 = sadd.s32 %s57, 1
    %s59 = scalar_select %p56, %s57, %s58
    %p62 = pneg %p56
    %p63 = scmp.eq.s32.totalorder %s7, 1
    %p64 = por %p62, %p63
    %p65 = scmp.ne.s32.totalorder %s57, %s60
    %p66 = scmp.eq.s32.totalorder %s7, 0
    %p67 = por %p65, %p66
    %p68 = scmp.ne.s32.totalorder %s57, %s60
    %p69 = scmp.eq.s32.totalorder %s12, 1
    %p70 = por %p68, %p69
    %p71 = scmp.ne.s32.totalorder %s60, %s61
    %p72 = scmp.eq.s32.totalorder %s12, 0
    %p73 = por %p71, %p72
    %p74 = scmp.ne.s32.totalorder %s60, %s61
    %p75 = scmp.eq.s32.totalorder %s13, 1
    %p76 = por %p74, %p75
    %p78 = scmp.ne.s32.totalorder %s61, %s77
    %p79 = scmp.eq.s32.totalorder %s13, 0
    %p80 = por %p78, %p79
    %p81 = scmp.le.s32.totalorder 1, %s7
    %p82 = scmp.lt.s32.totalorder %s7, 3
    %p83 = pnand %p81, %p82
    %p84 = pneg %p83
    // Predicated region
    $region9: #{_lambda_.16} parent=5 // pred_check
      _
    $region10: #{_lambda_.16} parent=5 // pred_check_branch
      %86 = sbr.rel (%p83) target = $region12
    $region11: #{_lambda_.16} parent=5 // pred_region
      %s87 = ssub.s32 %s7, 1
    $region12: #{_lambda_.16} parent=5 // pred_fallthru
      _
    %p88 = scmp.lt.s32.totalorder %s7, 2
    // Predicated region
    $region13: #{_lambda_.16} parent=5 // pred_check
      %p89 = pneg %p88
    $region14: #{_lambda_.16} parent=5 // pred_check_branch
      %91 = sbr.rel (%p89) target = $region16
    $region15: #{_lambda_.16} parent=5 // pred_region
      // Predicated region
      $region17: #{_lambda_.16} parent=15 // pred_check
        %p92 = pneg %p41
      $region18: #{_lambda_.16} parent=15 // pred_check_branch
        %94 = sbr.rel (%p92) target = $region20
      $region19: #{_lambda_.16} parent=15 // pred_region
        %s95 = smul.u32 2, %s15
        %p96 = scmp.lt.s32.totalorder %s14, 1
        %s97 = scalar_select %p96, %s14, 1
        %p98 = scmp.lt.s32.totalorder %s95, 1
        %s99 = scalar_select %p98, %s95, 1
        %s100 = smul.addr %s97, 2
        %s101 = sadd.s32 %s99, %s100
        %s102 = smul.addr %s101, 4
        %s103 = scalar_lea.vmem %s0, %s102
        %s104 = smul.u32 2, %s15
      $region20: #{_lambda_.16} parent=15 // pred_fallthru
        _
    $region16: #{_lambda_.16} parent=5 // pred_fallthru
      _
    %p105 = scmp.le.s32.totalorder 1, %s7
    %p106 = scmp.lt.s32.totalorder %s7, 3
    %p107 = pnand %p105, %p106
    %p108 = pneg %p107
    // Predicated region
    $region21: #{_lambda_.16} parent=5 // pred_check
      _
    $region22: #{_lambda_.16} parent=5 // pred_check_branch
      %110 = sbr.rel (%p107) target = $region24
    $region23: #{_lambda_.16} parent=5 // pred_region
      %s111 = ssub.s32 %s7, 1
      %s112 = smul.u32 2, %s17
      %p113 = scmp.lt.s32.totalorder %s16, 1
      %s114 = scalar_select %p113, %s16, 1
      %p115 = scmp.lt.s32.totalorder %s112, 1
      %s116 = scalar_select %p115, %s112, 1
      %s117 = smul.addr %s114, 2
      %s118 = sadd.s32 %s116, %s117
      %s119 = smul.addr %s118, 4
      %s120 = scalar_lea.vmem %s0, %s119
      %p121 = pneg %p47
      %p122 = pneg %p44
      %p123 = pneg %p73
      %p124 = pneg %p70
      %p125 = scmp.lt.s32.totalorder %s16, 1
      %s126 = scalar_select %p125, %s16, 1
      %s127 = smul.addr %s126, 2
      %s128 = scalar_lea.vmem %s1, %s127
      %s129 = smul.u32 2, %s17
      %p130 = scmp.lt.s32.totalorder %s16, 1
      %s131 = scalar_select %p130, %s16, 1
      %p132 = scmp.lt.s32.totalorder %s129, 1
      %s133 = scalar_select %p132, %s129, 1
      %s134 = smul.addr %s131, 2
      %s135 = sadd.s32 %s133, %s134
      %s136 = smul.addr %s135, 4
      %s137 = scalar_lea.vmem %s0, %s136
      %s138 = smul.u32 2, %s17
      %p139 = scmp.lt.s32.totalorder %s16, 1
      %s140 = scalar_select %p139, %s16, 1
      %s141 = smul.addr %s140, 2
      %s142 = scalar_lea.vmem %s1, %s141
      %p143 = scmp.eq.s32.totalorder %s17, 0
      // Predicated region
      $region25: #{_lambda_.16} parent=23 // pred_check
        %p144 = pneg %p143
      $region26: #{_lambda_.16} parent=23 // pred_check_branch
        %146 = sbr.rel (%p144) target = $region28
      $region27: #{_lambda_.16} parent=23 // pred_region
        %vm147 = vcmask 517120
        %148 = vst.msk [vmem:[%s142] sm:$0x3] %vm147, 0.0
      $region28: #{_lambda_.16} parent=23 // pred_fallthru
        _
      %v149 = vld [vmem:[%s137] sm:$0xf]
      %v150 = vld [vmem:[%s137 + $0x4] sm:$0xf]
      %v151 = vunpack.c.l.bf16 %v149
      %v152 = vunpack.c.l.bf16 %v150
      %vm153 = vcmask 523264
      %v154 = vsel %vm153, %v151, 0.0
      %v155 = vsel %vm153, %v152, 0.0
      %v156 = vadd.f32 %v154, %v155
      %v157 = vrot.slane %v156, 4
      %v158 = vadd.f32 %v156, %v157
      %v159 = vrot.slane %v158, 2
      %v160 = vadd.f32 %v158, %v159
      %v161 = vrot.slane %v160, 1
      %v162 = vadd.f32 %v160, %v161
      %v163 = vmul.f32 %v151, %v151
      %v164 = vmul.f32 %v152, %v152
      %v165 = vsel %vm153, %v163, 0.0
      %v166 = vsel %vm153, %v164, 0.0
      %v167 = vadd.f32 %v165, %v166
      %v168 = vrot.slane %v167, 4
      %v169 = vadd.f32 %v167, %v168
      %v170 = vrot.slane %v169, 2
      %v171 = vadd.f32 %v169, %v170
      %v172 = vrot.slane %v171, 1
      %v173 = vadd.f32 %v171, %v172
      %v174 = vld [vmem:[%s142] sm:$0x3]
      %vm175 = vcmask 1040384
      %v176 = vsel %vm175, %v162, %v173
      %v177 = vadd.f32 %v174, %v176
      %vm178 = vcmask 517120
      %179 = vst.msk [vmem:[%s142] sm:$0x3] %vm178, %v177
      %p180 = scmp.lt.s32.totalorder %s16, 1
      %s181 = scalar_select %p180, %s16, 1
      %s182 = smul.addr %s181, 2
      %s183 = scalar_lea.vmem %s1, %s182
      // Predicated region
      $region29: #{_lambda_.16} parent=23 // pred_check
        %p184 = pneg %p70
      $region30: #{_lambda_.16} parent=23 // pred_check_branch
        %186 = sbr.rel (%p184) target = $region32
      $region31: #{_lambda_.16} parent=23 // pred_region
        _
      $region32: #{_lambda_.16} parent=23 // pred_fallthru
        _
    $region24: #{_lambda_.16} parent=5 // pred_fallthru
      _
    %p187 = scmp.le.s32.totalorder 2, %s7
    // Predicated region
    $region33: #{_lambda_.16} parent=5 // pred_check
      %p188 = pneg %p187
    $region34: #{_lambda_.16} parent=5 // pred_check_branch
      %190 = sbr.rel (%p188) target = $region36
    $region35: #{_lambda_.16} parent=5 // pred_region
      %s191 = ssub.s32 %s7, 2
      // Predicated region
      $region37: #{_lambda_.16} parent=35 // pred_check
        %p192 = pneg %p76
      $region38: #{_lambda_.16} parent=35 // pred_check_branch
        %194 = sbr.rel (%p192) target = $region40
      $region39: #{_lambda_.16} parent=35 // pred_region
        %p195 = scmp.lt.s32.totalorder %s18, 1
        %s196 = scalar_select %p195, %s18, 1
        %s197 = smul.addr %s196, 2
        %s198 = scalar_lea.vmem %s1, %s197
      $region40: #{_lambda_.16} parent=35 // pred_fallthru
        _
    $region36: #{_lambda_.16} parent=5 // pred_fallthru
      _
  $region6: #{_lambda_.16} parent=0 // loop_footer
    %s11 = sadd.s32 1, %s7
  $region7: #{_lambda_.16} parent=0 // loop_footer_branch
    %6 = sbr.rel target = $region3
  $region8: #{_lambda_.16} parent=0 // loop_exit
    _

// kernel: squeeze.10
$region0: #{squeeze.10}
  %s0 = inlined_call_operand.vmem [shape: f32[2,128], index: 0, kind: input, shape index: {}]
  %s1 = inlined_call_operand.vmem [shape: f32[2,8,16], index: 1, kind: output, shape index: {}]
  $region1: #{squeeze.10} parent=0
    #allocation0 [shape = 'u8[4096]{0}', space=vmem, size = 0x1000, scoped, tag = 'scoped mem for input reshape']
    %s3 = ssub.s32 4, 1
    %v4 = vld [vmem:[%s0] sm:%s3]
    %5 = vst [vmem:[#allocation0] sm:%s3] %v4
    %v6 = vld [vmem:[#allocation0] sm:$0x3]
    %vm7 = vcmask 130048
    %8 = vst.msk [vmem:[%s1] ss:$8 sm:$0x3] %vm7, %v6
    %v9 = vld [vmem:[#allocation0] sm:$0x3]
    %10 = vrot.lane.b32.xlu0 %v9, 112
    %v11 = vpop.permute.xlu0 %10
    %vm12 = vcmask 130048
    %s13 = scalar_lea.vmem %s1, 1
    %14 = vst.msk [vmem:[%s13] ss:$8 sm:$0x3] %vm12, %v11
    %v15 = vld [vmem:[#allocation0] sm:$0x3]
    %16 = vrot.lane.b32.xlu0 %v15, 96
    %v17 = vpop.permute.xlu0 %16
    %vm18 = vcmask 130048
    %s19 = scalar_lea.vmem %s1, 2
    %20 = vst.msk [vmem:[%s19] ss:$8 sm:$0x3] %vm18, %v17
    %v21 = vld [vmem:[#allocation0] sm:$0x3]
    %22 = vrot.lane.b32.xlu0 %v21, 80
    %v23 = vpop.permute.xlu0 %22
    %vm24 = vcmask 130048
    %s25 = scalar_lea.vmem %s1, 3
    %26 = vst.msk [vmem:[%s25] ss:$8 sm:$0x3] %vm24, %v23
    %v27 = vld [vmem:[#allocation0] sm:$0x3]
    %28 = vrot.lane.b32.xlu0 %v27, 64
    %v29 = vpop.permute.xlu0 %28
    %vm30 = vcmask 130048
    %s31 = scalar_lea.vmem %s1, 4
    %32 = vst.msk [vmem:[%s31] ss:$8 sm:$0x3] %vm30, %v29
    %v33 = vld [vmem:[#allocation0] sm:$0x3]
    %34 = vrot.lane.b32.xlu0 %v33, 48
    %v35 = vpop.permute.xlu0 %34
    %vm36 = vcmask 130048
    %s37 = scalar_lea.vmem %s1, 5
    %38 = vst.msk [vmem:[%s37] ss:$8 sm:$0x3] %vm36, %v35
    %v39 = vld [vmem:[#allocation0] sm:$0x3]
    %40 = vrot.lane.b32.xlu0 %v39, 32
    %v41 = vpop.permute.xlu0 %40
    %vm42 = vcmask 130048
    %s43 = scalar_lea.vmem %s1, 6
    %44 = vst.msk [vmem:[%s43] ss:$8 sm:$0x3] %vm42, %v41
    %v45 = vld [vmem:[#allocation0] sm:$0x3]
    %46 = vrot.lane.b32.xlu0 %v45, 16
    %v47 = vpop.permute.xlu0 %46
    %vm48 = vcmask 130048
    %s49 = scalar_lea.vmem %s1, 7
    %50 = vst.msk [vmem:[%s49] ss:$8 sm:$0x3] %vm48, %v47

// kernel: _lambda_.17
$region0: #{_lambda_.17}
  #allocation0 [shape = 'u32[]', space=smem, size = 0x4, offset = 0x4, fixed_abs, tag = 'smem constant byte address 0x4 - core index']
  #allocation1 [shape = 'u32[72,128]{1,0:T(1,128)}', space=vmem, size = 0x9000, scoped, tag = 'internal scratch']
  %s0 = inlined_call_operand.vmem [shape: bf16[2,16,64], index: 0, kind: input, shape index: {}]
  %s1 = inlined_call_operand.vmem [shape: f32[2,1,64], index: 1, kind: input, shape index: {}]
  %s2 = inlined_call_operand.vmem [shape: f32[2,1,64], index: 2, kind: input, shape index: {}]
  %s3 = inlined_call_operand.vmem [shape: bf16[2,16,64], index: 3, kind: output, shape index: {}]
  %s4 = sld [smem:[#allocation0]]
  $region45: #{_lambda_.17} parent=0
    _
  %s6 = ssub.s32 1, %s4
  %s7 = scalar_select 0, %s6, %s4
  loop: start=0, step=1, limit=4
  $region2: #{_lambda_.17} parent=0 // loop_pre_header
    _
  $region3: #{_lambda_.17} parent=0 // loop_header
    %s9 = sphi 0, %s13
    %p10 = scmp.ge.s32.totalorder %s9, 4
    %s16 = sphi 0, %s28
    %s17 = sphi 0, %s24
    %s18 = sphi 0, %s16
    %s19 = sphi 0, %s17
    %s20 = sphi 0, %s18
    %s21 = sphi 0, %s19
    %s33 = sphi 0, %s35
    %s36 = sphi 0, %s33
    %s37 = sphi 0, %s36
    %s53 = sphi 0, %s37
    %s59 = sphi 0, %s61
    %s62 = sphi 0, %s59
    %s63 = sphi 0, %s62
    %s79 = sphi 0, %s63
    %s85 = sphi 0, %s87
    %s88 = sphi 0, %s85
    %s89 = sphi 0, %s88
    %s105 = sphi 0, %s89
    %s113 = sphi 0, %s115
    %s116 = sphi 0, %s113
    %s117 = sphi 0, %s116
    %s133 = sphi 0, %s117
  $region4: #{_lambda_.17} parent=0 // loop_header_branch
    %12 = sbr.rel (%p10) target = $region8
  $region5: #{_lambda_.17} parent=0 // loop_body
    %s14 = ssub.s32 %s9, 1
    %s15 = ssub.s32 %s9, 2
    %s22 = sadd.s32 1, %s17
    %p23 = scmp.ge.s32.totalorder %s22, 1
    %s24 = scalar_select %p23, 0, %s22
    %s25 = sadd.s32 1, %s16
    %s26 = scalar_select %p23, %s25, %s16
    %p27 = scmp.ge.s32.totalorder %s26, 2
    %s28 = scalar_select %p27, 0, %s26
    %s29 = ssub.s32 %s16, %s28
    %s30 = ssub.s32 %s17, %s24
    %s31 = sor.u32 %s29, %s30
    %p32 = scmp.eq.s32.totalorder %s31, 0
    %s34 = sadd.s32 %s33, 1
    %s35 = scalar_select %p32, %s33, %s34
    %p38 = pneg %p32
    %p39 = scmp.eq.s32.totalorder %s9, 1
    %p40 = por %p38, %p39
    %p41 = scmp.ne.s32.totalorder %s33, %s36
    %p42 = scmp.eq.s32.totalorder %s9, 0
    %p43 = por %p41, %p42
    %p44 = scmp.ne.s32.totalorder %s33, %s36
    %p45 = scmp.eq.s32.totalorder %s14, 1
    %p46 = por %p44, %p45
    %p47 = scmp.ne.s32.totalorder %s36, %s37
    %p48 = scmp.eq.s32.totalorder %s14, 0
    %p49 = por %p47, %p48
    %p50 = scmp.ne.s32.totalorder %s36, %s37
    %p51 = scmp.eq.s32.totalorder %s15, 1
    %p52 = por %p50, %p51
    %p54 = scmp.ne.s32.totalorder %s37, %s53
    %p55 = scmp.eq.s32.totalorder %s15, 0
    %p56 = por %p54, %p55
    %s57 = ssub.s32 %s16, %s28
    %p58 = scmp.eq.s32.totalorder %s57, 0
    %s60 = sadd.s32 %s59, 1
    %s61 = scalar_select %p58, %s59, %s60
    %p64 = pneg %p58
    %p65 = scmp.eq.s32.totalorder %s9, 1
    %p66 = por %p64, %p65
    %p67 = scmp.ne.s32.totalorder %s59, %s62
    %p68 = scmp.eq.s32.totalorder %s9, 0
    %p69 = por %p67, %p68
    %p70 = scmp.ne.s32.totalorder %s59, %s62
    %p71 = scmp.eq.s32.totalorder %s14, 1
    %p72 = por %p70, %p71
    %p73 = scmp.ne.s32.totalorder %s62, %s63
    %p74 = scmp.eq.s32.totalorder %s14, 0
    %p75 = por %p73, %p74
    %p76 = scmp.ne.s32.totalorder %s62, %s63
    %p77 = scmp.eq.s32.totalorder %s15, 1
    %p78 = por %p76, %p77
    %p80 = scmp.ne.s32.totalorder %s63, %s79
    %p81 = scmp.eq.s32.totalorder %s15, 0
    %p82 = por %p80, %p81
    %s83 = ssub.s32 %s16, %s28
    %p84 = scmp.eq.s32.totalorder %s83, 0
    %s86 = sadd.s32 %s85, 1
    %s87 = scalar_select %p84, %s85, %s86
    %p90 = pneg %p84
    %p91 = scmp.eq.s32.totalorder %s9, 1
    %p92 = por %p90, %p91
    %p93 = scmp.ne.s32.totalorder %s85, %s88
    %p94 = scmp.eq.s32.totalorder %s9, 0
    %p95 = por %p93, %p94
    %p96 = scmp.ne.s32.totalorder %s85, %s88
    %p97 = scmp.eq.s32.totalorder %s14, 1
    %p98 = por %p96, %p97
    %p99 = scmp.ne.s32.totalorder %s88, %s89
    %p100 = scmp.eq.s32.totalorder %s14, 0
    %p101 = por %p99, %p100
    %p102 = scmp.ne.s32.totalorder %s88, %s89
    %p103 = scmp.eq.s32.totalorder %s15, 1
    %p104 = por %p102, %p103
    %p106 = scmp.ne.s32.totalorder %s89, %s105
    %p107 = scmp.eq.s32.totalorder %s15, 0
    %p108 = por %p106, %p107
    %s109 = ssub.s32 %s16, %s28
    %s110 = ssub.s32 %s17, %s24
    %s111 = sor.u32 %s109, %s110
    %p112 = scmp.eq.s32.totalorder %s111, 0
    %s114 = sadd.s32 %s113, 1
    %s115 = scalar_select %p112, %s113, %s114
    %p118 = pneg %p112
    %p119 = scmp.eq.s32.totalorder %s9, 1
    %p120 = por %p118, %p119
    %p121 = scmp.ne.s32.totalorder %s113, %s116
    %p122 = scmp.eq.s32.totalorder %s9, 0
    %p123 = por %p121, %p122
    %p124 = scmp.ne.s32.totalorder %s113, %s116
    %p125 = scmp.eq.s32.totalorder %s14, 1
    %p126 = por %p124, %p125
    %p127 = scmp.ne.s32.totalorder %s116, %s117
    %p128 = scmp.eq.s32.totalorder %s14, 0
    %p129 = por %p127, %p128
    %p130 = scmp.ne.s32.totalorder %s116, %s117
    %p131 = scmp.eq.s32.totalorder %s15, 1
    %p132 = por %p130, %p131
    %p134 = scmp.ne.s32.totalorder %s117, %s133
    %p135 = scmp.eq.s32.totalorder %s15, 0
    %p136 = por %p134, %p135
    %p137 = scmp.le.s32.totalorder 1, %s9
    %p138 = scmp.lt.s32.totalorder %s9, 3
    %p139 = pnand %p137, %p138
    %p140 = pneg %p139
    // Predicated region
    $region9: #{_lambda_.17} parent=5 // pred_check
      _
    $region10: #{_lambda_.17} parent=5 // pred_check_branch
      %142 = sbr.rel (%p139) target = $region12
    $region11: #{_lambda_.17} parent=5 // pred_region
      %s143 = ssub.s32 %s9, 1
    $region12: #{_lambda_.17} parent=5 // pred_fallthru
      _
    %p144 = scmp.lt.s32.totalorder %s9, 2
    // Predicated region
    $region13: #{_lambda_.17} parent=5 // pred_check
      %p145 = pneg %p144
    $region14: #{_lambda_.17} parent=5 // pred_check_branch
      %147 = sbr.rel (%p145) target = $region16
    $region15: #{_lambda_.17} parent=5 // pred_region
      // Predicated region
      $region17: #{_lambda_.17} parent=15 // pred_check
        %p148 = pneg %p43
      $region18: #{_lambda_.17} parent=15 // pred_check_branch
        %150 = sbr.rel (%p148) target = $region20
      $region19: #{_lambda_.17} parent=15 // pred_region
        %s151 = smul.u32 2, %s17
        %p152 = scmp.lt.s32.totalorder %s16, 1
        %s153 = scalar_select %p152, %s16, 1
        %p154 = scmp.lt.s32.totalorder %s151, 1
        %s155 = scalar_select %p154, %s151, 1
        %s156 = smul.addr %s153, 2
        %s157 = sadd.s32 %s155, %s156
        %s158 = smul.addr %s157, 4
        %s159 = scalar_lea.vmem %s0, %s158
        %s160 = smul.u32 2, %s17
      $region20: #{_lambda_.17} parent=15 // pred_fallthru
        _
      // Predicated region
      $region21: #{_lambda_.17} parent=15 // pred_check
        %p161 = pneg %p69
      $region22: #{_lambda_.17} parent=15 // pred_check_branch
        %163 = sbr.rel (%p161) target = $region24
      $region23: #{_lambda_.17} parent=15 // pred_region
        %p164 = scmp.lt.s32.totalorder %s16, 1
        %s165 = scalar_select %p164, %s16, 1
        %s166 = scalar_lea.vmem %s1, %s165
      $region24: #{_lambda_.17} parent=15 // pred_fallthru
        _
      // Predicated region
      $region25: #{_lambda_.17} parent=15 // pred_check
        %p167 = pneg %p95
      $region26: #{_lambda_.17} parent=15 // pred_check_branch
        %169 = sbr.rel (%p167) target = $region28
      $region27: #{_lambda_.17} parent=15 // pred_region
        %p170 = scmp.lt.s32.totalorder %s16, 1
        %s171 = scalar_select %p170, %s16, 1
        %s172 = scalar_lea.vmem %s2, %s171
      $region28: #{_lambda_.17} parent=15 // pred_fallthru
        _
    $region16: #{_lambda_.17} parent=5 // pred_fallthru
      _
    %p173 = scmp.le.s32.totalorder 1, %s9
    %p174 = scmp.lt.s32.totalorder %s9, 3
    %p175 = pnand %p173, %p174
    %p176 = pneg %p175
    // Predicated region
    $region29: #{_lambda_.17} parent=5 // pred_check
      _
    $region30: #{_lambda_.17} parent=5 // pred_check_branch
      %178 = sbr.rel (%p175) target = $region32
    $region31: #{_lambda_.17} parent=5 // pred_region
      %s179 = ssub.s32 %s9, 1
      %s180 = smul.u32 2, %s19
      %p181 = scmp.lt.s32.totalorder %s18, 1
      %s182 = scalar_select %p181, %s18, 1
      %p183 = scmp.lt.s32.totalorder %s180, 1
      %s184 = scalar_select %p183, %s180, 1
      %s185 = smul.addr %s182, 2
      %s186 = sadd.s32 %s184, %s185
      %s187 = smul.addr %s186, 4
      %s188 = scalar_lea.vmem %s0, %s187
      %p189 = pneg %p49
      %p190 = pneg %p46
      %p191 = scmp.lt.s32.totalorder %s18, 1
      %s192 = scalar_select %p191, %s18, 1
      %s193 = scalar_lea.vmem %s1, %s192
      %p194 = pneg %p75
      %p195 = pneg %p72
      %p196 = scmp.lt.s32.totalorder %s18, 1
      %s197 = scalar_select %p196, %s18, 1
      %s198 = scalar_lea.vmem %s2, %s197
      %p199 = pneg %p101
      %p200 = pneg %p98
      %p201 = pneg %p129
      %p202 = pneg %p126
      %s203 = smul.u32 2, %s19
      %p204 = scmp.lt.s32.totalorder %s18, 1
      %s205 = scalar_select %p204, %s18, 1
      %p206 = scmp.lt.s32.totalorder %s203, 1
      %s207 = scalar_select %p206, %s203, 1
      %s208 = smul.addr %s205, 2
      %s209 = sadd.s32 %s207, %s208
      %s210 = smul.addr %s209, 4
      %s211 = scalar_lea.vmem %s3, %s210
      %s212 = smul.u32 2, %s19
      %p213 = scmp.lt.s32.totalorder %s18, 1
      %s214 = scalar_select %p213, %s18, 1
      %p215 = scmp.lt.s32.totalorder %s212, 1
      %s216 = scalar_select %p215, %s212, 1
      %s217 = smul.addr %s214, 2
      %s218 = sadd.s32 %s216, %s217
      %s219 = smul.addr %s218, 4
      %s220 = scalar_lea.vmem %s0, %s219
      %s221 = smul.u32 2, %s19
      %p222 = scmp.lt.s32.totalorder %s18, 1
      %s223 = scalar_select %p222, %s18, 1
      %s224 = scalar_lea.vmem %s1, %s223
      %p225 = scmp.lt.s32.totalorder %s18, 1
      %s226 = scalar_select %p225, %s18, 1
      %s227 = scalar_lea.vmem %s2, %s226
      %s228 = smul.u32 2, %s19
      %p229 = scmp.lt.s32.totalorder %s18, 1
      %s230 = scalar_select %p229, %s18, 1
      %p231 = scmp.lt.s32.totalorder %s228, 1
      %s232 = scalar_select %p231, %s228, 1
      %s233 = smul.addr %s230, 2
      %s234 = sadd.s32 %s232, %s233
      %s235 = smul.addr %s234, 4
      %s236 = scalar_lea.vmem %s3, %s235
      %s237 = smul.u32 2, %s19
      %v238 = vld [vmem:[%s220] sm:$0xf]
      %v239 = vld [vmem:[%s220 + $0x4] sm:$0xf]
      %v240 = vunpack.c.l.bf16 %v238
      %v241 = vunpack.c.l.bf16 %v239
      %v242 = vld [vmem:[%s224] sm:$0x1]
      %v244 = vperm.slane %v242, 0
      %v246 = vmul.f32 %v240, %v244
      %v247 = vmul.f32 %v241, %v244
      %v248 = vld [vmem:[%s227] sm:$0x1]
      %v250 = vperm.slane %v248, 0
      %v252 = vadd.f32 %v246, %v250
      %v253 = vadd.f32 %v247, %v250
      %vm254 = vcmp.gt.f32.partialorder %v252, 0.0
      %vm255 = vcmp.gt.f32.partialorder %v253, 0.0
      %v256 = vmul.f32 %v252, 0.2
      %v257 = vmul.f32 %v253, 0.2
      %v258 = vsel %vm254, %v252, %v256
      %v259 = vsel %vm255, %v253, %v257
      %v260 = vpack.c.bf16 %v258, %v258
      %v261 = vpack.c.bf16 %v259, %v259
      %vm262 = vcmask 519168
      %263 = vst.msk [vmem:[%s236] sm:$0xf] %vm262, %v260
      %264 = vst.msk [vmem:[%s236 + $0x4] sm:$0xf] %vm262, %v261
      %s265 = smul.u32 2, %s19
      %p266 = scmp.lt.s32.totalorder %s18, 1
      %s267 = scalar_select %p266, %s18, 1
      %p268 = scmp.lt.s32.totalorder %s265, 1
      %s269 = scalar_select %p268, %s265, 1
      %s270 = smul.addr %s267, 2
      %s271 = sadd.s32 %s269, %s270
      %s272 = smul.addr %s271, 4
      %s273 = scalar_lea.vmem %s3, %s272
      // Predicated region
      $region33: #{_lambda_.17} parent=31 // pred_check
        %p274 = pneg %p126
      $region34: #{_lambda_.17} parent=31 // pred_check_branch
        %276 = sbr.rel (%p274) target = $region36
      $region35: #{_lambda_.17} parent=31 // pred_region
        %s277 = smul.u32 2, %s19
      $region36: #{_lambda_.17} parent=31 // pred_fallthru
        _
    $region32: #{_lambda_.17} parent=5 // pred_fallthru
      _
    %p278 = scmp.le.s32.totalorder 2, %s9
    // Predicated region
    $region37: #{_lambda_.17} parent=5 // pred_check
      %p279 = pneg %p278
    $region38: #{_lambda_.17} parent=5 // pred_check_branch
      %281 = sbr.rel (%p279) target = $region40
    $region39: #{_lambda_.17} parent=5 // pred_region
      %s282 = ssub.s32 %s9, 2
      // Predicated region
      $region41: #{_lambda_.17} parent=39 // pred_check
        %p283 = pneg %p132
      $region42: #{_lambda_.17} parent=39 // pred_check_branch
        %285 = sbr.rel (%p283) target = $region44
      $region43: #{_lambda_.17} parent=39 // pred_region
        %s286 = smul.u32 2, %s21
        %p287 = scmp.lt.s32.totalorder %s20, 1
        %s288 = scalar_select %p287, %s20, 1
        %p289 = scmp.lt.s32.totalorder %s286, 1
        %s290 = scalar_select %p289, %s286, 1
        %s291 = smul.addr %s288, 2
        %s292 = sadd.s32 %s290, %s291
        %s293 = smul.addr %s292, 4
        %s294 = scalar_lea.vmem %s3, %s293
      $region44: #{_lambda_.17} parent=39 // pred_fallthru
        _
    $region40: #{_lambda_.17} parent=5 // pred_fallthru
      _
  $region6: #{_lambda_.17} parent=0 // loop_footer
    %s13 = sadd.s32 1, %s9
  $region7: #{_lambda_.17} parent=0 // loop_footer_branch
    %8 = sbr.rel target = $region3
  $region8: #{_lambda_.17} parent=0 // loop_exit
    _

// kernel: _lambda_.19
$region0: #{_lambda_.19}
  #allocation0 [shape = 'u32[]', space=smem, size = 0x4, offset = 0x4, fixed_abs, tag = 'smem constant byte address 0x4 - core index']
  #allocation1 [shape = 'u32[72,128]{1,0:T(1,128)}', space=vmem, size = 0x9000, scoped, tag = 'internal scratch']
  %s0 = inlined_call_operand.vmem [shape: bf16[2,16,128], index: 0, kind: input, shape index: {}]
  %s1 = inlined_call_operand.vmem [shape: f32[2,2,128], index: 1, kind: output, shape index: {}]
  %s2 = sld [smem:[#allocation0]]
  $region41: #{_lambda_.19} parent=0
    _
  %s4 = ssub.s32 1, %s2
  %s5 = scalar_select 0, %s4, %s2
  loop: start=0, step=1, limit=4
  $region2: #{_lambda_.19} parent=0 // loop_pre_header
    _
  $region3: #{_lambda_.19} parent=0 // loop_header
    %s7 = sphi 0, %s11
    %p8 = scmp.ge.s32.totalorder %s7, 4
    %s14 = sphi 0, %s26
    %s15 = sphi 0, %s22
    %s16 = sphi 0, %s14
    %s17 = sphi 0, %s15
    %s18 = sphi 0, %s16
    %s19 = sphi 0, %s17
    %s31 = sphi 0, %s33
    %s34 = sphi 0, %s31
    %s35 = sphi 0, %s34
    %s51 = sphi 0, %s35
    %s57 = sphi 0, %s59
    %s60 = sphi 0, %s57
    %s61 = sphi 0, %s60
    %s77 = sphi 0, %s61
  $region4: #{_lambda_.19} parent=0 // loop_header_branch
    %10 = sbr.rel (%p8) target = $region8
  $region5: #{_lambda_.19} parent=0 // loop_body
    %s12 = ssub.s32 %s7, 1
    %s13 = ssub.s32 %s7, 2
    %s20 = sadd.s32 1, %s15
    %p21 = scmp.ge.s32.totalorder %s20, 1
    %s22 = scalar_select %p21, 0, %s20
    %s23 = sadd.s32 1, %s14
    %s24 = scalar_select %p21, %s23, %s14
    %p25 = scmp.ge.s32.totalorder %s24, 2
    %s26 = scalar_select %p25, 0, %s24
    %s27 = ssub.s32 %s14, %s26
    %s28 = ssub.s32 %s15, %s22
    %s29 = sor.u32 %s27, %s28
    %p30 = scmp.eq.s32.totalorder %s29, 0
    %s32 = sadd.s32 %s31, 1
    %s33 = scalar_select %p30, %s31, %s32
    %p36 = pneg %p30
    %p37 = scmp.eq.s32.totalorder %s7, 1
    %p38 = por %p36, %p37
    %p39 = scmp.ne.s32.totalorder %s31, %s34
    %p40 = scmp.eq.s32.totalorder %s7, 0
    %p41 = por %p39, %p40
    %p42 = scmp.ne.s32.totalorder %s31, %s34
    %p43 = scmp.eq.s32.totalorder %s12, 1
    %p44 = por %p42, %p43
    %p45 = scmp.ne.s32.totalorder %s34, %s35
    %p46 = scmp.eq.s32.totalorder %s12, 0
    %p47 = por %p45, %p46
    %p48 = scmp.ne.s32.totalorder %s34, %s35
    %p49 = scmp.eq.s32.totalorder %s13, 1
    %p50 = por %p48, %p49
    %p52 = scmp.ne.s32.totalorder %s35, %s51
    %p53 = scmp.eq.s32.totalorder %s13, 0
    %p54 = por %p52, %p53
    %s55 = ssub.s32 %s14, %s26
    %p56 = scmp.eq.s32.totalorder %s55, 0
    %s58 = sadd.s32 %s57, 1
    %s59 = scalar_select %p56, %s57, %s58
    %p62 = pneg %p56
    %p63 = scmp.eq.s32.totalorder %s7, 1
    %p64 = por %p62, %p63
    %p65 = scmp.ne.s32.totalorder %s57, %s60
    %p66 = scmp.eq.s32.totalorder %s7, 0
    %p67 = por %p65, %p66
    %p68 = scmp.ne.s32.totalorder %s57, %s60
    %p69 = scmp.eq.s32.totalorder %s12, 1
    %p70 = por %p68, %p69
    %p71 = scmp.ne.s32.totalorder %s60, %s61
    %p72 = scmp.eq.s32.totalorder %s12, 0
    %p73 = por %p71, %p72
    %p74 = scmp.ne.s32.totalorder %s60, %s61
    %p75 = scmp.eq.s32.totalorder %s13, 1
    %p76 = por %p74, %p75
    %p78 = scmp.ne.s32.totalorder %s61, %s77
    %p79 = scmp.eq.s32.totalorder %s13, 0
    %p80 = por %p78, %p79
    %p81 = scmp.le.s32.totalorder 1, %s7
    %p82 = scmp.lt.s32.totalorder %s7, 3
    %p83 = pnand %p81, %p82
    %p84 = pneg %p83
    // Predicated region
    $region9: #{_lambda_.19} parent=5 // pred_check
      _
    $region10: #{_lambda_.19} parent=5 // pred_check_branch
      %86 = sbr.rel (%p83) target = $region12
    $region11: #{_lambda_.19} parent=5 // pred_region
      %s87 = ssub.s32 %s7, 1
    $region12: #{_lambda_.19} parent=5 // pred_fallthru
      _
    %p88 = scmp.lt.s32.totalorder %s7, 2
    // Predicated region
    $region13: #{_lambda_.19} parent=5 // pred_check
      %p89 = pneg %p88
    $region14: #{_lambda_.19} parent=5 // pred_check_branch
      %91 = sbr.rel (%p89) target = $region16
    $region15: #{_lambda_.19} parent=5 // pred_region
      // Predicated region
      $region17: #{_lambda_.19} parent=15 // pred_check
        %p92 = pneg %p41
      $region18: #{_lambda_.19} parent=15 // pred_check_branch
        %94 = sbr.rel (%p92) target = $region20
      $region19: #{_lambda_.19} parent=15 // pred_region
        %s95 = smul.u32 2, %s15
        %p96 = scmp.lt.s32.totalorder %s14, 1
        %s97 = scalar_select %p96, %s14, 1
        %p98 = scmp.lt.s32.totalorder %s95, 1
        %s99 = scalar_select %p98, %s95, 1
        %s100 = smul.addr %s97, 2
        %s101 = sadd.s32 %s99, %s100
        %s102 = smul.addr %s101, 4
        %s103 = scalar_lea.vmem %s0, %s102
        %s104 = smul.u32 2, %s15
      $region20: #{_lambda_.19} parent=15 // pred_fallthru
        _
    $region16: #{_lambda_.19} parent=5 // pred_fallthru
      _
    %p105 = scmp.le.s32.totalorder 1, %s7
    %p106 = scmp.lt.s32.totalorder %s7, 3
    %p107 = pnand %p105, %p106
    %p108 = pneg %p107
    // Predicated region
    $region21: #{_lambda_.19} parent=5 // pred_check
      _
    $region22: #{_lambda_.19} parent=5 // pred_check_branch
      %110 = sbr.rel (%p107) target = $region24
    $region23: #{_lambda_.19} parent=5 // pred_region
      %s111 = ssub.s32 %s7, 1
      %s112 = smul.u32 2, %s17
      %p113 = scmp.lt.s32.totalorder %s16, 1
      %s114 = scalar_select %p113, %s16, 1
      %p115 = scmp.lt.s32.totalorder %s112, 1
      %s116 = scalar_select %p115, %s112, 1
      %s117 = smul.addr %s114, 2
      %s118 = sadd.s32 %s116, %s117
      %s119 = smul.addr %s118, 4
      %s120 = scalar_lea.vmem %s0, %s119
      %p121 = pneg %p47
      %p122 = pneg %p44
      %p123 = pneg %p73
      %p124 = pneg %p70
      %p125 = scmp.lt.s32.totalorder %s16, 1
      %s126 = scalar_select %p125, %s16, 1
      %s127 = smul.addr %s126, 2
      %s128 = scalar_lea.vmem %s1, %s127
      %s129 = smul.u32 2, %s17
      %p130 = scmp.lt.s32.totalorder %s16, 1
      %s131 = scalar_select %p130, %s16, 1
      %p132 = scmp.lt.s32.totalorder %s129, 1
      %s133 = scalar_select %p132, %s129, 1
      %s134 = smul.addr %s131, 2
      %s135 = sadd.s32 %s133, %s134
      %s136 = smul.addr %s135, 4
      %s137 = scalar_lea.vmem %s0, %s136
      %s138 = smul.u32 2, %s17
      %p139 = scmp.lt.s32.totalorder %s16, 1
      %s140 = scalar_select %p139, %s16, 1
      %s141 = smul.addr %s140, 2
      %s142 = scalar_lea.vmem %s1, %s141
      %p143 = scmp.eq.s32.totalorder %s17, 0
      // Predicated region
      $region25: #{_lambda_.19} parent=23 // pred_check
        %p144 = pneg %p143
      $region26: #{_lambda_.19} parent=23 // pred_check_branch
        %146 = sbr.rel (%p144) target = $region28
      $region27: #{_lambda_.19} parent=23 // pred_region
        %147 = vst [vmem:[%s142] sm:$0x3] 0.0
      $region28: #{_lambda_.19} parent=23 // pred_fallthru
        _
      %v148 = vld [vmem:[%s137] sm:$0xf]
      %v149 = vld [vmem:[%s137 + $0x4] sm:$0xf]
      %v150 = vunpack.c.l.bf16 %v148
      %v151 = vunpack.c.l.bf16 %v149
      %v152 = vadd.f32 %v150, %v151
      %v153 = vrot.slane %v152, 4
      %v154 = vadd.f32 %v152, %v153
      %v155 = vrot.slane %v154, 2
      %v156 = vadd.f32 %v154, %v155
      %v157 = vrot.slane %v156, 1
      %v158 = vadd.f32 %v156, %v157
      %v159 = vmul.f32 %v150, %v150
      %v160 = vmul.f32 %v151, %v151
      %v161 = vadd.f32 %v159, %v160
      %v162 = vrot.slane %v161, 4
      %v163 = vadd.f32 %v161, %v162
      %v164 = vrot.slane %v163, 2
      %v165 = vadd.f32 %v163, %v164
      %v166 = vrot.slane %v165, 1
      %v167 = vadd.f32 %v165, %v166
      %v168 = vld [vmem:[%s142] sm:$0x3]
      %vm169 = vcmask 1040384
      %v170 = vsel %vm169, %v158, %v167
      %v171 = vadd.f32 %v168, %v170
      %172 = vst [vmem:[%s142] sm:$0x3] %v171
      %p173 = scmp.lt.s32.totalorder %s16, 1
      %s174 = scalar_select %p173, %s16, 1
      %s175 = smul.addr %s174, 2
      %s176 = scalar_lea.vmem %s1, %s175
      // Predicated region
      $region29: #{_lambda_.19} parent=23 // pred_check
        %p177 = pneg %p70
      $region30: #{_lambda_.19} parent=23 // pred_check_branch
        %179 = sbr.rel (%p177) target = $region32
      $region31: #{_lambda_.19} parent=23 // pred_region
        _
      $region32: #{_lambda_.19} parent=23 // pred_fallthru
        _
    $region24: #{_lambda_.19} parent=5 // pred_fallthru
      _
    %p180 = scmp.le.s32.totalorder 2, %s7
    // Predicated region
    $region33: #{_lambda_.19} parent=5 // pred_check
      %p181 = pneg %p180
    $region34: #{_lambda_.19} parent=5 // pred_check_branch
      %183 = sbr.rel (%p181) target = $region36
    $region35: #{_lambda_.19} parent=5 // pred_region
      %s184 = ssub.s32 %s7, 2
      // Predicated region
      $region37: #{_lambda_.19} parent=35 // pred_check
        %p185 = pneg %p76
      $region38: #{_lambda_.19} parent=35 // pred_check_branch
        %187 = sbr.rel (%p185) target = $region40
      $region39: #{_lambda_.19} parent=35 // pred_region
        %p188 = scmp.lt.s32.totalorder %s18, 1
        %s189 = scalar_select %p188, %s18, 1
        %s190 = smul.addr %s189, 2
        %s191 = scalar_lea.vmem %s1, %s190
      $region40: #{_lambda_.19} parent=35 // pred_fallthru
        _
    $region36: #{_lambda_.19} parent=5 // pred_fallthru
      _
  $region6: #{_lambda_.19} parent=0 // loop_footer
    %s11 = sadd.s32 1, %s7
  $region7: #{_lambda_.19} parent=0 // loop_footer_branch
    %6 = sbr.rel target = $region3
  $region8: #{_lambda_.19} parent=0 // loop_exit
    _

// kernel: _lambda_.20
$region0: #{_lambda_.20}
  #allocation0 [shape = 'u32[]', space=smem, size = 0x4, offset = 0x4, fixed_abs, tag = 'smem constant byte address 0x4 - core index']
  #allocation1 [shape = 'u32[72,128]{1,0:T(1,128)}', space=vmem, size = 0x9000, scoped, tag = 'internal scratch']
  %s0 = inlined_call_operand.vmem [shape: bf16[2,16,128], index: 0, kind: input, shape index: {}]
  %s1 = inlined_call_operand.vmem [shape: f32[2,1,128], index: 1, kind: input, shape index: {}]
  %s2 = inlined_call_operand.vmem [shape: f32[2,1,128], index: 2, kind: input, shape index: {}]
  %s3 = inlined_call_operand.vmem [shape: bf16[2,16,128], index: 3, kind: output, shape index: {}]
  %s4 = sld [smem:[#allocation0]]
  $region45: #{_lambda_.20} parent=0
    _
  %s6 = ssub.s32 1, %s4
  %s7 = scalar_select 0, %s6, %s4
  loop: start=0, step=1, limit=4
  $region2: #{_lambda_.20} parent=0 // loop_pre_header
    _
  $region3: #{_lambda_.20} parent=0 // loop_header
    %s9 = sphi 0, %s13
    %p10 = scmp.ge.s32.totalorder %s9, 4
    %s16 = sphi 0, %s28
    %s17 = sphi 0, %s24
    %s18 = sphi 0, %s16
    %s19 = sphi 0, %s17
    %s20 = sphi 0, %s18
    %s21 = sphi 0, %s19
    %s33 = sphi 0, %s35
    %s36 = sphi 0, %s33
    %s37 = sphi 0, %s36
    %s53 = sphi 0, %s37
    %s59 = sphi 0, %s61
    %s62 = sphi 0, %s59
    %s63 = sphi 0, %s62
    %s79 = sphi 0, %s63
    %s85 = sphi 0, %s87
    %s88 = sphi 0, %s85
    %s89 = sphi 0, %s88
    %s105 = sphi 0, %s89
    %s113 = sphi 0, %s115
    %s116 = sphi 0, %s113
    %s117 = sphi 0, %s116
    %s133 = sphi 0, %s117
  $region4: #{_lambda_.20} parent=0 // loop_header_branch
    %12 = sbr.rel (%p10) target = $region8
  $region5: #{_lambda_.20} parent=0 // loop_body
    %s14 = ssub.s32 %s9, 1
    %s15 = ssub.s32 %s9, 2
    %s22 = sadd.s32 1, %s17
    %p23 = scmp.ge.s32.totalorder %s22, 1
    %s24 = scalar_select %p23, 0, %s22
    %s25 = sadd.s32 1, %s16
    %s26 = scalar_select %p23, %s25, %s16
    %p27 = scmp.ge.s32.totalorder %s26, 2
    %s28 = scalar_select %p27, 0, %s26
    %s29 = ssub.s32 %s16, %s28
    %s30 = ssub.s32 %s17, %s24
    %s31 = sor.u32 %s29, %s30
    %p32 = scmp.eq.s32.totalorder %s31, 0
    %s34 = sadd.s32 %s33, 1
    %s35 = scalar_select %p32, %s33, %s34
    %p38 = pneg %p32
    %p39 = scmp.eq.s32.totalorder %s9, 1
    %p40 = por %p38, %p39
    %p41 = scmp.ne.s32.totalorder %s33, %s36
    %p42 = scmp.eq.s32.totalorder %s9, 0
    %p43 = por %p41, %p42
    %p44 = scmp.ne.s32.totalorder %s33, %s36
    %p45 = scmp.eq.s32.totalorder %s14, 1
    %p46 = por %p44, %p45
    %p47 = scmp.ne.s32.totalorder %s36, %s37
    %p48 = scmp.eq.s32.totalorder %s14, 0
    %p49 = por %p47, %p48
    %p50 = scmp.ne.s32.totalorder %s36, %s37
    %p51 = scmp.eq.s32.totalorder %s15, 1
    %p52 = por %p50, %p51
    %p54 = scmp.ne.s32.totalorder %s37, %s53
    %p55 = scmp.eq.s32.totalorder %s15, 0
    %p56 = por %p54, %p55
    %s57 = ssub.s32 %s16, %s28
    %p58 = scmp.eq.s32.totalorder %s57, 0
    %s60 = sadd.s32 %s59, 1
    %s61 = scalar_select %p58, %s59, %s60
    %p64 = pneg %p58
    %p65 = scmp.eq.s32.totalorder %s9, 1
    %p66 = por %p64, %p65
    %p67 = scmp.ne.s32.totalorder %s59, %s62
    %p68 = scmp.eq.s32.totalorder %s9, 0
    %p69 = por %p67, %p68
    %p70 = scmp.ne.s32.totalorder %s59, %s62
    %p71 = scmp.eq.s32.totalorder %s14, 1
    %p72 = por %p70, %p71
    %p73 = scmp.ne.s32.totalorder %s62, %s63
    %p74 = scmp.eq.s32.totalorder %s14, 0
    %p75 = por %p73, %p74
    %p76 = scmp.ne.s32.totalorder %s62, %s63
    %p77 = scmp.eq.s32.totalorder %s15, 1
    %p78 = por %p76, %p77
    %p80 = scmp.ne.s32.totalorder %s63, %s79
    %p81 = scmp.eq.s32.totalorder %s15, 0
    %p82 = por %p80, %p81
    %s83 = ssub.s32 %s16, %s28
    %p84 = scmp.eq.s32.totalorder %s83, 0
    %s86 = sadd.s32 %s85, 1
    %s87 = scalar_select %p84, %s85, %s86
    %p90 = pneg %p84
    %p91 = scmp.eq.s32.totalorder %s9, 1
    %p92 = por %p90, %p91
    %p93 = scmp.ne.s32.totalorder %s85, %s88
    %p94 = scmp.eq.s32.totalorder %s9, 0
    %p95 = por %p93, %p94
    %p96 = scmp.ne.s32.totalorder %s85, %s88
    %p97 = scmp.eq.s32.totalorder %s14, 1
    %p98 = por %p96, %p97
    %p99 = scmp.ne.s32.totalorder %s88, %s89
    %p100 = scmp.eq.s32.totalorder %s14, 0
    %p101 = por %p99, %p100
    %p102 = scmp.ne.s32.totalorder %s88, %s89
    %p103 = scmp.eq.s32.totalorder %s15, 1
    %p104 = por %p102, %p103
    %p106 = scmp.ne.s32.totalorder %s89, %s105
    %p107 = scmp.eq.s32.totalorder %s15, 0
    %p108 = por %p106, %p107
    %s109 = ssub.s32 %s16, %s28
    %s110 = ssub.s32 %s17, %s24
    %s111 = sor.u32 %s109, %s110
    %p112 = scmp.eq.s32.totalorder %s111, 0
    %s114 = sadd.s32 %s113, 1
    %s115 = scalar_select %p112, %s113, %s114
    %p118 = pneg %p112
    %p119 = scmp.eq.s32.totalorder %s9, 1
    %p120 = por %p118, %p119
    %p121 = scmp.ne.s32.totalorder %s113, %s116
    %p122 = scmp.eq.s32.totalorder %s9, 0
    %p123 = por %p121, %p122
    %p124 = scmp.ne.s32.totalorder %s113, %s116
    %p125 = scmp.eq.s32.totalorder %s14, 1
    %p126 = por %p124, %p125
    %p127 = scmp.ne.s32.totalorder %s116, %s117
    %p128 = scmp.eq.s32.totalorder %s14, 0
    %p129 = por %p127, %p128
    %p130 = scmp.ne.s32.totalorder %s116, %s117
    %p131 = scmp.eq.s32.totalorder %s15, 1
    %p132 = por %p130, %p131
    %p134 = scmp.ne.s32.totalorder %s117, %s133
    %p135 = scmp.eq.s32.totalorder %s15, 0
    %p136 = por %p134, %p135
    %p137 = scmp.le.s32.totalorder 1, %s9
    %p138 = scmp.lt.s32.totalorder %s9, 3
    %p139 = pnand %p137, %p138
    %p140 = pneg %p139
    // Predicated region
    $region9: #{_lambda_.20} parent=5 // pred_check
      _
    $region10: #{_lambda_.20} parent=5 // pred_check_branch
      %142 = sbr.rel (%p139) target = $region12
    $region11: #{_lambda_.20} parent=5 // pred_region
      %s143 = ssub.s32 %s9, 1
    $region12: #{_lambda_.20} parent=5 // pred_fallthru
      _
    %p144 = scmp.lt.s32.totalorder %s9, 2
    // Predicated region
    $region13: #{_lambda_.20} parent=5 // pred_check
      %p145 = pneg %p144
    $region14: #{_lambda_.20} parent=5 // pred_check_branch
      %147 = sbr.rel (%p145) target = $region16
    $region15: #{_lambda_.20} parent=5 // pred_region
      // Predicated region
      $region17: #{_lambda_.20} parent=15 // pred_check
        %p148 = pneg %p43
      $region18: #{_lambda_.20} parent=15 // pred_check_branch
        %150 = sbr.rel (%p148) target = $region20
      $region19: #{_lambda_.20} parent=15 // pred_region
        %s151 = smul.u32 2, %s17
        %p152 = scmp.lt.s32.totalorder %s16, 1
        %s153 = scalar_select %p152, %s16, 1
        %p154 = scmp.lt.s32.totalorder %s151, 1
        %s155 = scalar_select %p154, %s151, 1
        %s156 = smul.addr %s153, 2
        %s157 = sadd.s32 %s155, %s156
        %s158 = smul.addr %s157, 4
        %s159 = scalar_lea.vmem %s0, %s158
        %s160 = smul.u32 2, %s17
      $region20: #{_lambda_.20} parent=15 // pred_fallthru
        _
      // Predicated region
      $region21: #{_lambda_.20} parent=15 // pred_check
        %p161 = pneg %p69
      $region22: #{_lambda_.20} parent=15 // pred_check_branch
        %163 = sbr.rel (%p161) target = $region24
      $region23: #{_lambda_.20} parent=15 // pred_region
        %p164 = scmp.lt.s32.totalorder %s16, 1
        %s165 = scalar_select %p164, %s16, 1
        %s166 = scalar_lea.vmem %s1, %s165
      $region24: #{_lambda_.20} parent=15 // pred_fallthru
        _
      // Predicated region
      $region25: #{_lambda_.20} parent=15 // pred_check
        %p167 = pneg %p95
      $region26: #{_lambda_.20} parent=15 // pred_check_branch
        %169 = sbr.rel (%p167) target = $region28
      $region27: #{_lambda_.20} parent=15 // pred_region
        %p170 = scmp.lt.s32.totalorder %s16, 1
        %s171 = scalar_select %p170, %s16, 1
        %s172 = scalar_lea.vmem %s2, %s171
      $region28: #{_lambda_.20} parent=15 // pred_fallthru
        _
    $region16: #{_lambda_.20} parent=5 // pred_fallthru
      _
    %p173 = scmp.le.s32.totalorder 1, %s9
    %p174 = scmp.lt.s32.totalorder %s9, 3
    %p175 = pnand %p173, %p174
    %p176 = pneg %p175
    // Predicated region
    $region29: #{_lambda_.20} parent=5 // pred_check
      _
    $region30: #{_lambda_.20} parent=5 // pred_check_branch
      %178 = sbr.rel (%p175) target = $region32
    $region31: #{_lambda_.20} parent=5 // pred_region
      %s179 = ssub.s32 %s9, 1
      %s180 = smul.u32 2, %s19
      %p181 = scmp.lt.s32.totalorder %s18, 1
      %s182 = scalar_select %p181, %s18, 1
      %p183 = scmp.lt.s32.totalorder %s180, 1
      %s184 = scalar_select %p183, %s180, 1
      %s185 = smul.addr %s182, 2
      %s186 = sadd.s32 %s184, %s185
      %s187 = smul.addr %s186, 4
      %s188 = scalar_lea.vmem %s0, %s187
      %p189 = pneg %p49
      %p190 = pneg %p46
      %p191 = scmp.lt.s32.totalorder %s18, 1
      %s192 = scalar_select %p191, %s18, 1
      %s193 = scalar_lea.vmem %s1, %s192
      %p194 = pneg %p75
      %p195 = pneg %p72
      %p196 = scmp.lt.s32.totalorder %s18, 1
      %s197 = scalar_select %p196, %s18, 1
      %s198 = scalar_lea.vmem %s2, %s197
      %p199 = pneg %p101
      %p200 = pneg %p98
      %p201 = pneg %p129
      %p202 = pneg %p126
      %s203 = smul.u32 2, %s19
      %p204 = scmp.lt.s32.totalorder %s18, 1
      %s205 = scalar_select %p204, %s18, 1
      %p206 = scmp.lt.s32.totalorder %s203, 1
      %s207 = scalar_select %p206, %s203, 1
      %s208 = smul.addr %s205, 2
      %s209 = sadd.s32 %s207, %s208
      %s210 = smul.addr %s209, 4
      %s211 = scalar_lea.vmem %s3, %s210
      %s212 = smul.u32 2, %s19
      %p213 = scmp.lt.s32.totalorder %s18, 1
      %s214 = scalar_select %p213, %s18, 1
      %p215 = scmp.lt.s32.totalorder %s212, 1
      %s216 = scalar_select %p215, %s212, 1
      %s217 = smul.addr %s214, 2
      %s218 = sadd.s32 %s216, %s217
      %s219 = smul.addr %s218, 4
      %s220 = scalar_lea.vmem %s0, %s219
      %s221 = smul.u32 2, %s19
      %p222 = scmp.lt.s32.totalorder %s18, 1
      %s223 = scalar_select %p222, %s18, 1
      %s224 = scalar_lea.vmem %s1, %s223
      %p225 = scmp.lt.s32.totalorder %s18, 1
      %s226 = scalar_select %p225, %s18, 1
      %s227 = scalar_lea.vmem %s2, %s226
      %s228 = smul.u32 2, %s19
      %p229 = scmp.lt.s32.totalorder %s18, 1
      %s230 = scalar_select %p229, %s18, 1
      %p231 = scmp.lt.s32.totalorder %s228, 1
      %s232 = scalar_select %p231, %s228, 1
      %s233 = smul.addr %s230, 2
      %s234 = sadd.s32 %s232, %s233
      %s235 = smul.addr %s234, 4
      %s236 = scalar_lea.vmem %s3, %s235
      %s237 = smul.u32 2, %s19
      %v238 = vld [vmem:[%s220] sm:$0xf]
      %v239 = vld [vmem:[%s220 + $0x4] sm:$0xf]
      %v240 = vunpack.c.l.bf16 %v238
      %v241 = vunpack.c.l.bf16 %v239
      %v242 = vld [vmem:[%s224] sm:$0x1]
      %v244 = vperm.slane %v242, 0
      %v246 = vmul.f32 %v240, %v244
      %v247 = vmul.f32 %v241, %v244
      %v248 = vld [vmem:[%s227] sm:$0x1]
      %v250 = vperm.slane %v248, 0
      %v252 = vadd.f32 %v246, %v250
      %v253 = vadd.f32 %v247, %v250
      %vm254 = vcmp.gt.f32.partialorder %v252, 0.0
      %vm255 = vcmp.gt.f32.partialorder %v253, 0.0
      %v256 = vmul.f32 %v252, 0.2
      %v257 = vmul.f32 %v253, 0.2
      %v258 = vsel %vm254, %v252, %v256
      %v259 = vsel %vm255, %v253, %v257
      %v260 = vpack.c.bf16 %v258, %v258
      %v261 = vpack.c.bf16 %v259, %v259
      %262 = vst [vmem:[%s236] sm:$0xf] %v260
      %263 = vst [vmem:[%s236 + $0x4] sm:$0xf] %v261
      %s264 = smul.u32 2, %s19
      %p265 = scmp.lt.s32.totalorder %s18, 1
      %s266 = scalar_select %p265, %s18, 1
      %p267 = scmp.lt.s32.totalorder %s264, 1
      %s268 = scalar_select %p267, %s264, 1
      %s269 = smul.addr %s266, 2
      %s270 = sadd.s32 %s268, %s269
      %s271 = smul.addr %s270, 4
      %s272 = scalar_lea.vmem %s3, %s271
      // Predicated region
      $region33: #{_lambda_.20} parent=31 // pred_check
        %p273 = pneg %p126
      $region34: #{_lambda_.20} parent=31 // pred_check_branch
        %275 = sbr.rel (%p273) target = $region36
      $region35: #{_lambda_.20} parent=31 // pred_region
        %s276 = smul.u32 2, %s19
      $region36: #{_lambda_.20} parent=31 // pred_fallthru
        _
    $region32: #{_lambda_.20} parent=5 // pred_fallthru
      _
    %p277 = scmp.le.s32.totalorder 2, %s9
    // Predicated region
    $region37: #{_lambda_.20} parent=5 // pred_check
      %p278 = pneg %p277
    $region38: #{_lambda_.20} parent=5 // pred_check_branch
      %280 = sbr.rel (%p278) target = $region40
    $region39: #{_lambda_.20} parent=5 // pred_region
      %s281 = ssub.s32 %s9, 2
      // Predicated region
      $region41: #{_lambda_.20} parent=39 // pred_check
        %p282 = pneg %p132
      $region42: #{_lambda_.20} parent=39 // pred_check_branch
        %284 = sbr.rel (%p282) target = $region44
      $region43: #{_lambda_.20} parent=39 // pred_region
        %s285 = smul.u32 2, %s21
        %p286 = scmp.lt.s32.totalorder %s20, 1
        %s287 = scalar_select %p286, %s20, 1
        %p288 = scmp.lt.s32.totalorder %s285, 1
        %s289 = scalar_select %p288, %s285, 1
        %s290 = smul.addr %s287, 2
        %s291 = sadd.s32 %s289, %s290
        %s292 = smul.addr %s291, 4
        %s293 = scalar_lea.vmem %s3, %s292
      $region44: #{_lambda_.20} parent=39 // pred_fallthru
        _
    $region40: #{_lambda_.20} parent=5 // pred_fallthru
      _
  $region6: #{_lambda_.20} parent=0 // loop_footer
    %s13 = sadd.s32 1, %s9
  $region7: #{_lambda_.20} parent=0 // loop_footer_branch
    %8 = sbr.rel target = $region3
  $region8: #{_lambda_.20} parent=0 // loop_exit
    _

// kernel: _lambda_.18
$region0: #{_lambda_.18}
  #allocation0 [shape = 'u32[]', space=smem, size = 0x4, offset = 0x4, fixed_abs, tag = 'smem constant byte address 0x4 - core index']
  #allocation1 [shape = 'u32[72,128]{1,0:T(1,128)}', space=vmem, size = 0x9000, scoped, tag = 'internal scratch']
  %s0 = inlined_call_operand.vmem [shape: bf16[2,40,64], index: 0, kind: input, shape index: {}]
  %s1 = inlined_call_operand.vmem [shape: bf16[16,64,128], index: 1, kind: input, shape index: {}]
  %s2 = inlined_call_operand.vmem [shape: f32[1,128], index: 2, kind: input, shape index: {}]
  %s3 = inlined_call_operand.vmem [shape: bf16[2,18,128], index: 3, kind: output, shape index: {}]
  %s4 = sld [smem:[#allocation0]]
  $region45: #{_lambda_.18} parent=0
    _
  %s6 = ssub.s32 1, %s4
  %s7 = scalar_select 0, %s6, %s4
  loop: start=0, step=1, limit=4
  $region2: #{_lambda_.18} parent=0 // loop_pre_header
    _
  $region3: #{_lambda_.18} parent=0 // loop_header
    %s9 = sphi 0, %s13
    %p10 = scmp.ge.s32.totalorder %s9, 4
    %s19 = sphi 0, %s21
    %s22 = sphi 0, %s19
    %s23 = sphi 0, %s22
    %s39 = sphi 0, %s23
    %s43 = sphi 0, %s43
    %s45 = sphi 0, %s43
    %s46 = sphi 0, %s45
    %s60 = sphi 0, %s46
    %s64 = sphi 0, %s64
    %s66 = sphi 0, %s64
    %s67 = sphi 0, %s66
    %s81 = sphi 0, %s67
    %s87 = sphi 0, %s89
    %s90 = sphi 0, %s87
    %s91 = sphi 0, %s90
    %s107 = sphi 0, %s91
  $region4: #{_lambda_.18} parent=0 // loop_header_branch
    %12 = sbr.rel (%p10) target = $region8
  $region5: #{_lambda_.18} parent=0 // loop_body
    %s14 = ssub.s32 %s9, 1
    %s15 = ssub.s32 %s9, 2
    %s16 = sadd.s32 %s9, 1
    %s17 = ssub.s32 %s9, %s16
    %p18 = scmp.eq.s32.totalorder %s17, 0
    %s20 = sadd.s32 %s19, 1
    %s21 = scalar_select %p18, %s19, %s20
    %p24 = pneg %p18
    %p25 = scmp.eq.s32.totalorder %s9, 1
    %p26 = por %p24, %p25
    %p27 = scmp.ne.s32.totalorder %s19, %s22
    %p28 = scmp.eq.s32.totalorder %s9, 0
    %p29 = por %p27, %p28
    %p30 = scmp.ne.s32.totalorder %s19, %s22
    %p31 = scmp.eq.s32.totalorder %s14, 1
    %p32 = por %p30, %p31
    %p33 = scmp.ne.s32.totalorder %s22, %s23
    %p34 = scmp.eq.s32.totalorder %s14, 0
    %p35 = por %p33, %p34
    %p36 = scmp.ne.s32.totalorder %s22, %s23
    %p37 = scmp.eq.s32.totalorder %s15, 1
    %p38 = por %p36, %p37
    %p40 = scmp.ne.s32.totalorder %s23, %s39
    %p41 = scmp.eq.s32.totalorder %s15, 0
    %p42 = por %p40, %p41
    %s44 = sadd.s32 %s43, 1
    %p47 = scmp.eq.s32.totalorder %s9, 1
    %p48 = scmp.ne.s32.totalorder %s43, %s45
    %p49 = scmp.eq.s32.totalorder %s9, 0
    %p50 = por %p48, %p49
    %p51 = scmp.ne.s32.totalorder %s43, %s45
    %p52 = scmp.eq.s32.totalorder %s14, 1
    %p53 = por %p51, %p52
    %p54 = scmp.ne.s32.totalorder %s45, %s46
    %p55 = scmp.eq.s32.totalorder %s14, 0
    %p56 = por %p54, %p55
    %p57 = scmp.ne.s32.totalorder %s45, %s46
    %p58 = scmp.eq.s32.totalorder %s15, 1
    %p59 = por %p57, %p58
    %p61 = scmp.ne.s32.totalorder %s46, %s60
    %p62 = scmp.eq.s32.totalorder %s15, 0
    %p63 = por %p61, %p62
    %s65 = sadd.s32 %s64, 1
    %p68 = scmp.eq.s32.totalorder %s9, 1
    %p69 = scmp.ne.s32.totalorder %s64, %s66
    %p70 = scmp.eq.s32.totalorder %s9, 0
    %p71 = por %p69, %p70
    %p72 = scmp.ne.s32.totalorder %s64, %s66
    %p73 = scmp.eq.s32.totalorder %s14, 1
    %p74 = por %p72, %p73
    %p75 = scmp.ne.s32.totalorder %s66, %s67
    %p76 = scmp.eq.s32.totalorder %s14, 0
    %p77 = por %p75, %p76
    %p78 = scmp.ne.s32.totalorder %s66, %s67
    %p79 = scmp.eq.s32.totalorder %s15, 1
    %p80 = por %p78, %p79
    %p82 = scmp.ne.s32.totalorder %s67, %s81
    %p83 = scmp.eq.s32.totalorder %s15, 0
    %p84 = por %p82, %p83
    %s85 = ssub.s32 %s9, %s16
    %p86 = scmp.eq.s32.totalorder %s85, 0
    %s88 = sadd.s32 %s87, 1
    %s89 = scalar_select %p86, %s87, %s88
    %p92 = pneg %p86
    %p93 = scmp.eq.s32.totalorder %s9, 1
    %p94 = por %p92, %p93
    %p95 = scmp.ne.s32.totalorder %s87, %s90
    %p96 = scmp.eq.s32.totalorder %s9, 0
    %p97 = por %p95, %p96
    %p98 = scmp.ne.s32.totalorder %s87, %s90
    %p99 = scmp.eq.s32.totalorder %s14, 1
    %p100 = por %p98, %p99
    %p101 = scmp.ne.s32.totalorder %s90, %s91
    %p102 = scmp.eq.s32.totalorder %s14, 0
    %p103 = por %p101, %p102
    %p104 = scmp.ne.s32.totalorder %s90, %s91
    %p105 = scmp.eq.s32.totalorder %s15, 1
    %p106 = por %p104, %p105
    %p108 = scmp.ne.s32.totalorder %s91, %s107
    %p109 = scmp.eq.s32.totalorder %s15, 0
    %p110 = por %p108, %p109
    %p111 = scmp.le.s32.totalorder 1, %s9
    %p112 = scmp.lt.s32.totalorder %s9, 3
    %p113 = pnand %p111, %p112
    %p114 = pneg %p113
    // Predicated region
    $region9: #{_lambda_.18} parent=5 // pred_check
      _
    $region10: #{_lambda_.18} parent=5 // pred_check_branch
      %116 = sbr.rel (%p113) target = $region12
    $region11: #{_lambda_.18} parent=5 // pred_region
      %s117 = ssub.s32 %s9, 1
      // Predicated region
      $region13: #{_lambda_.18} parent=11 // pred_check
        %p118 = pneg %p56
      $region14: #{_lambda_.18} parent=11 // pred_check_branch
        %120 = sbr.rel (%p118) target = $region16
      $region15: #{_lambda_.18} parent=11 // pred_region
        _
      $region16: #{_lambda_.18} parent=11 // pred_fallthru
        _
      // Predicated region
      $region17: #{_lambda_.18} parent=11 // pred_check
        %p121 = pneg %p77
      $region18: #{_lambda_.18} parent=11 // pred_check_branch
        %123 = sbr.rel (%p121) target = $region20
      $region19: #{_lambda_.18} parent=11 // pred_region
        _
      $region20: #{_lambda_.18} parent=11 // pred_fallthru
        _
    $region12: #{_lambda_.18} parent=5 // pred_fallthru
      _
    %p124 = scmp.lt.s32.totalorder %s9, 2
    // Predicated region
    $region21: #{_lambda_.18} parent=5 // pred_check
      %p125 = pneg %p124
    $region22: #{_lambda_.18} parent=5 // pred_check_branch
      %127 = sbr.rel (%p125) target = $region24
    $region23: #{_lambda_.18} parent=5 // pred_region
      // Predicated region
      $region25: #{_lambda_.18} parent=23 // pred_check
        %p128 = pneg %p29
      $region26: #{_lambda_.18} parent=23 // pred_check_branch
        %130 = sbr.rel (%p128) target = $region28
      $region27: #{_lambda_.18} parent=23 // pred_region
        %p131 = scmp.lt.s32.totalorder %s9, 1
        %s132 = scalar_select %p131, %s9, 1
        %s133 = smul.addr %s132, 5
        %s134 = smul.addr %s133, 4
        %s135 = scalar_lea.vmem %s0, %s134
      $region28: #{_lambda_.18} parent=23 // pred_fallthru
        _
    $region24: #{_lambda_.18} parent=5 // pred_fallthru
      _
    %p136 = scmp.le.s32.totalorder 1, %s9
    %p137 = scmp.lt.s32.totalorder %s9, 3
    %p138 = pnand %p136, %p137
    %p139 = pneg %p138
    // Predicated region
    $region29: #{_lambda_.18} parent=5 // pred_check
      _
    $region30: #{_lambda_.18} parent=5 // pred_check_branch
      %141 = sbr.rel (%p138) target = $region32
    $region31: #{_lambda_.18} parent=5 // pred_region
      %s142 = ssub.s32 %s9, 1
      %p143 = scmp.lt.s32.totalorder %s14, 1
      %s144 = scalar_select %p143, %s14, 1
      %s145 = smul.addr %s144, 5
      %s146 = smul.addr %s145, 4
      %s147 = scalar_lea.vmem %s0, %s146
      %p148 = pneg %p35
      %p149 = pneg %p32
      %p150 = pneg %p56
      %p151 = pneg %p53
      %p152 = pneg %p77
      %p153 = pneg %p74
      %p154 = pneg %p103
      %p155 = pneg %p100
      %p156 = scmp.lt.s32.totalorder %s14, 1
      %s157 = scalar_select %p156, %s14, 1
      %s158 = smul.addr %s157, 3
      %s159 = smul.addr %s158, 4
      %s160 = scalar_lea.vmem %s3, %s159
      %p161 = scmp.lt.s32.totalorder %s14, 1
      %s162 = scalar_select %p161, %s14, 1
      %s163 = smul.addr %s162, 5
      %s164 = smul.addr %s163, 4
      %s165 = scalar_lea.vmem %s0, %s164
      %p166 = scmp.lt.s32.totalorder %s14, 1
      %s167 = scalar_select %p166, %s14, 1
      %s168 = smul.addr %s167, 3
      %s169 = smul.addr %s168, 4
      %s170 = scalar_lea.vmem %s3, %s169
      %v172 = vld [vmem:[%s165] sm:$0xf]
      %v173 = vld [vmem:[%s165 + $0x4] sm:$0xf]
      %v174 = vld [vmem:[%s165 + $0x8] sm:$0x1]
      %v175 = vld [vmem:[%s1] sm:$0xf]
      %v176 = vld [vmem:[%s1 + $0x4] sm:$0xf]
      %v177 = vld [vmem:[%s1 + $0x8] sm:$0xf]
      %v178 = vld [vmem:[%s1 + $0xc] sm:$0xf]
      %v179 = vld [vmem:[%s1 + $0x10] sm:$0xf]
      %v180 = vld [vmem:[%s1 + $0x14] sm:$0xf]
      %v181 = vld [vmem:[%s1 + $0x18] sm:$0xf]
      %v182 = vld [vmem:[%s1 + $0x1c] sm:$0xf]
      %v183 = vld [vmem:[%s165 + $0x8] sm:$0x3]
      %s184 = scalar_lea.vmem %s1, 32
      %v185 = vld [vmem:[%s184] sm:$0xf]
      %v186 = vld [vmem:[%s184 + $0x4] sm:$0xf]
      %v187 = vld [vmem:[%s184 + $0x8] sm:$0xf]
      %v188 = vld [vmem:[%s184 + $0xc] sm:$0xf]
      %v189 = vld [vmem:[%s184 + $0x10] sm:$0xf]
      %v190 = vld [vmem:[%s184 + $0x14] sm:$0xf]
      %v191 = vld [vmem:[%s184 + $0x18] sm:$0xf]
      %v192 = vld [vmem:[%s184 + $0x1c] sm:$0xf]
      %v196 = vunpack.c.l.b16 %v172
      %v197 = vunpack.c.l.b16 %v173
      %v198 = vunpack.c.l.b16 %v183
      %v199 = vpack.c.b16 %v197, %v196
      %v200 = vpack.c.b16 %v198, %v198
      %vm201 = vsmask.f32 7424
      %v203 = vshrl.u32 %v199, 16
      %v205 = vshll.u32 %v199, 16
      %v207 = vrot.slane %v205, 1
      %v208 = vor.u32 %v203, %v207
      %v210 = vshll.u32 %v200, 16
      %v212 = vrot.slane %v210, 1
      %v213 = vsel %vm201, %v208, %v212
      %v214 = vshrl.u32 %v200, 16
      %v216 = vor.u32 %v214, %v212
      %v225 = vunpack.c.l.b16 %v185
      %v226 = vunpack.c.l.b16 %v186
      %v227 = vunpack.c.l.b16 %v187
      %v228 = vunpack.c.l.b16 %v188
      %v229 = vunpack.c.l.b16 %v189
      %v230 = vunpack.c.l.b16 %v190
      %v231 = vunpack.c.l.b16 %v191
      %v232 = vunpack.c.l.b16 %v192
      %v233 = vpack.c.b16 %v226, %v225
      %v234 = vpack.c.b16 %v228, %v227
      %v235 = vpack.c.b16 %v230, %v229
      %v236 = vpack.c.b16 %v232, %v231
      %vm241 = vcmask 523264
      %v243 = vsel %vm241, %v213, 0
      %v246 = vsel %vm241, %v216, 0
      %248 = vmatpush.bf16.msra.mxu0 0
      %249 = vmatpush.bf16.msra.mxu0 0
      %250 = vmatpush.bf16.msra.mxu0 0
      %251 = vmatpush.bf16.msra.mxu0 0
      %252 = vmatpush.bf16.msra.mxu0 %v236
      %253 = vmatpush.bf16.msra.mxu0 %v235
      %254 = vmatpush.bf16.msra.mxu0 %v234
      %255 = vmatpush.bf16.msra.mxu0 %v233
      %256 = vmatmul.bf16.gmra.mxu0 %v243
      %v257 = vpop.f32.mrf.mxu0
      %v258 = vadd.f32 0.0, %v257
      %v259 = vpop.f32.mrf.mxu0
      %v260 = vadd.f32 0.0, %v259
      %261 = vmatmul.bf16.gmra.mxu0 %v246
      %v262 = vpop.f32.mrf.mxu0
      %v263 = vadd.f32 0.0, %v262
      %v264 = vpop.f32.mrf.mxu0
      %265 = vdwg.mxu0
      %v267 = vunpack.c.l.b16 %v174
      %v268 = vpack.c.b16 %v267, %v267
      %v277 = vunpack.c.l.b16 %v175
      %v278 = vunpack.c.l.b16 %v176
      %v279 = vunpack.c.l.b16 %v177
      %v280 = vunpack.c.l.b16 %v178
      %v281 = vunpack.c.l.b16 %v179
      %v282 = vunpack.c.l.b16 %v180
      %v283 = vunpack.c.l.b16 %v181
      %v284 = vunpack.c.l.b16 %v182
      %v285 = vpack.c.b16 %v278, %v277
      %v286 = vpack.c.b16 %v280, %v279
      %v287 = vpack.c.b16 %v282, %v281
      %v288 = vpack.c.b16 %v284, %v283
      %v293 = vsel %vm241, %v199, 0
      %v296 = vsel %vm241, %v268, 0
      %298 = vmatpush.bf16.msra.mxu0 0
      %299 = vmatpush.bf16.msra.mxu0 0
      %300 = vmatpush.bf16.msra.mxu0 0
      %301 = vmatpush.bf16.msra.mxu0 0
      %302 = vmatpush.bf16.msra.mxu0 %v288
      %303 = vmatpush.bf16.msra.mxu0 %v287
      %304 = vmatpush.bf16.msra.mxu0 %v286
      %305 = vmatpush.bf16.msra.mxu0 %v285
      %306 = vmatmul.bf16.gmra.mxu0 %v293
      %v307 = vpop.f32.mrf.mxu0
      %v308 = vadd.f32 %v258, %v307
      %v309 = vpop.f32.mrf.mxu0
      %v310 = vadd.f32 %v260, %v309
      %311 = vmatmul.bf16.gmra.mxu0 %v296
      %v312 = vpop.f32.mrf.mxu0
      %v313 = vadd.f32 %v263, %v312
      %v314 = vpop.f32.mrf.mxu0
      %315 = vdwg.mxu0
      %v316 = vld [vmem:[%s165] sm:$0xe]
      %s317 = scalar_lea.vmem %s1, 64
      %v318 = vld [vmem:[%s317] sm:$0xf]
      %v319 = vld [vmem:[%s317 + $0x4] sm:$0xf]
      %v320 = vld [vmem:[%s317 + $0x8] sm:$0xf]
      %v321 = vld [vmem:[%s317 + $0xc] sm:$0xf]
      %v322 = vld [vmem:[%s317 + $0x10] sm:$0xf]
      %v323 = vld [vmem:[%s317 + $0x14] sm:$0xf]
      %v324 = vld [vmem:[%s317 + $0x18] sm:$0xf]
      %v325 = vld [vmem:[%s317 + $0x1c] sm:$0xf]
      %v327 = vunpack.c.l.b16 %v316
      %v328 = vpack.c.b16 %v197, %v327
      %vm329 = vcmask 1046528
      %v330 = vrot.slane %v328, 1
      %v331 = vrot.slane %v200, 1
      %v332 = vsel %vm329, %v330, %v331
      %v341 = vunpack.c.l.b16 %v318
      %v342 = vunpack.c.l.b16 %v319
      %v343 = vunpack.c.l.b16 %v320
      %v344 = vunpack.c.l.b16 %v321
      %v345 = vunpack.c.l.b16 %v322
      %v346 = vunpack.c.l.b16 %v323
      %v347 = vunpack.c.l.b16 %v324
      %v348 = vunpack.c.l.b16 %v325
      %v349 = vpack.c.b16 %v342, %v341
      %v350 = vpack.c.b16 %v344, %v343
      %v351 = vpack.c.b16 %v346, %v345
      %v352 = vpack.c.b16 %v348, %v347
      %v358 = vsel %vm241, %v332, 0
      %v361 = vsel %vm241, %v331, 0
      %363 = vmatpush.bf16.msra.mxu0 0
      %364 = vmatpush.bf16.msra.mxu0 0
      %365 = vmatpush.bf16.msra.mxu0 0
      %366 = vmatpush.bf16.msra.mxu0 0
      %367 = vmatpush.bf16.msra.mxu0 %v352
      %368 = vmatpush.bf16.msra.mxu0 %v351
      %369 = vmatpush.bf16.msra.mxu0 %v350
      %370 = vmatpush.bf16.msra.mxu0 %v349
      %371 = vmatmul.bf16.gmra.mxu0 %v358
      %v372 = vpop.f32.mrf.mxu0
      %v373 = vadd.f32 0.0, %v372
      %v374 = vpop.f32.mrf.mxu0
      %v375 = vadd.f32 0.0, %v374
      %376 = vmatmul.bf16.gmra.mxu0 %v361
      %v377 = vpop.f32.mrf.mxu0
      %v378 = vadd.f32 0.0, %v377
      %v379 = vpop.f32.mrf.mxu0
      %380 = vdwg.mxu0
      %v381 = vadd.f32 %v308, %v373
      %v382 = vadd.f32 %v310, %v375
      %v383 = vadd.f32 %v313, %v378
      %v384 = vld [vmem:[%s165 + $0x8] sm:$0x7]
      %s385 = scalar_lea.vmem %s1, 96
      %v386 = vld [vmem:[%s385] sm:$0xf]
      %v387 = vld [vmem:[%s385 + $0x4] sm:$0xf]
      %v388 = vld [vmem:[%s385 + $0x8] sm:$0xf]
      %v389 = vld [vmem:[%s385 + $0xc] sm:$0xf]
      %v390 = vld [vmem:[%s385 + $0x10] sm:$0xf]
      %v391 = vld [vmem:[%s385 + $0x14] sm:$0xf]
      %v392 = vld [vmem:[%s385 + $0x18] sm:$0xf]
      %v393 = vld [vmem:[%s385 + $0x1c] sm:$0xf]
      %v395 = vunpack.c.l.b16 %v384
      %v396 = vpack.c.b16 %v395, %v395
      %vm397 = vsmask.f32 6400
      %v399 = vshrl.u32 %v328, 16
      %v401 = vrot.slane %v399, 1
      %v402 = vshll.u32 %v328, 16
      %v404 = vrot.slane %v402, 2
      %v405 = vor.u32 %v401, %v404
      %v407 = vshrl.u32 %v396, 16
      %v409 = vrot.slane %v407, 1
      %v410 = vshll.u32 %v396, 16
      %v412 = vrot.slane %v410, 2
      %v413 = vor.u32 %v409, %v412
      %v414 = vsel %vm397, %v405, %v413
      %v423 = vunpack.c.l.b16 %v386
      %v424 = vunpack.c.l.b16 %v387
      %v425 = vunpack.c.l.b16 %v388
      %v426 = vunpack.c.l.b16 %v389
      %v427 = vunpack.c.l.b16 %v390
      %v428 = vunpack.c.l.b16 %v391
      %v429 = vunpack.c.l.b16 %v392
      %v430 = vunpack.c.l.b16 %v393
      %v431 = vpack.c.b16 %v424, %v423
      %v432 = vpack.c.b16 %v426, %v425
      %v433 = vpack.c.b16 %v428, %v427
      %v434 = vpack.c.b16 %v430, %v429
      %v440 = vsel %vm241, %v414, 0
      %v443 = vsel %vm241, %v413, 0
      %445 = vmatpush.bf16.msra.mxu0 0
      %446 = vmatpush.bf16.msra.mxu0 0
      %447 = vmatpush.bf16.msra.mxu0 0
      %448 = vmatpush.bf16.msra.mxu0 0
      %449 = vmatpush.bf16.msra.mxu0 %v434
      %450 = vmatpush.bf16.msra.mxu0 %v433
      %451 = vmatpush.bf16.msra.mxu0 %v432
      %452 = vmatpush.bf16.msra.mxu0 %v431
      %453 = vmatmul.bf16.gmra.mxu0 %v440
      %v454 = vpop.f32.mrf.mxu0
      %v455 = vadd.f32 0.0, %v454
      %v456 = vpop.f32.mrf.mxu0
      %v457 = vadd.f32 0.0, %v456
      %458 = vmatmul.bf16.gmra.mxu0 %v443
      %v459 = vpop.f32.mrf.mxu0
      %v460 = vadd.f32 0.0, %v459
      %v461 = vpop.f32.mrf.mxu0
      %462 = vdwg.mxu0
      %v463 = vadd.f32 %v381, %v455
      %v464 = vadd.f32 %v382, %v457
      %v465 = vadd.f32 %v383, %v460
      %v466 = vld [vmem:[%s165] sm:$0x8]
      %v467 = vld [vmem:[%s165 + $0x8] sm:$0xf]
      %s468 = scalar_lea.vmem %s1, 128
      %v469 = vld [vmem:[%s468] sm:$0xf]
      %v470 = vld [vmem:[%s468 + $0x4] sm:$0xf]
      %v471 = vld [vmem:[%s468 + $0x8] sm:$0xf]
      %v472 = vld [vmem:[%s468 + $0xc] sm:$0xf]
      %v473 = vld [vmem:[%s468 + $0x10] sm:$0xf]
      %v474 = vld [vmem:[%s468 + $0x14] sm:$0xf]
      %v475 = vld [vmem:[%s468 + $0x18] sm:$0xf]
      %v476 = vld [vmem:[%s468 + $0x1c] sm:$0xf]
      %v479 = vunpack.c.l.b16 %v466
      %v480 = vunpack.c.l.b16 %v467
      %v481 = vpack.c.b16 %v197, %v479
      %v482 = vpack.c.b16 %v480, %v480
      %vm483 = vcmask 1044480
      %v484 = vrot.slane %v481, 3
      %v485 = vrot.slane %v482, 3
      %v486 = vsel %vm483, %v484, %v485
      %v495 = vunpack.c.l.b16 %v469
      %v496 = vunpack.c.l.b16 %v470
      %v497 = vunpack.c.l.b16 %v471
      %v498 = vunpack.c.l.b16 %v472
      %v499 = vunpack.c.l.b16 %v473
      %v500 = vunpack.c.l.b16 %v474
      %v501 = vunpack.c.l.b16 %v475
      %v502 = vunpack.c.l.b16 %v476
      %v503 = vpack.c.b16 %v496, %v495
      %v504 = vpack.c.b16 %v498, %v497
      %v505 = vpack.c.b16 %v500, %v499
      %v506 = vpack.c.b16 %v502, %v501
      %v512 = vsel %vm241, %v486, 0
      %v515 = vsel %vm241, %v485, 0
      %517 = vmatpush.bf16.msra.mxu0 0
      %518 = vmatpush.bf16.msra.mxu0 0
      %519 = vmatpush.bf16.msra.mxu0 0
      %520 = vmatpush.bf16.msra.mxu0 0
      %521 = vmatpush.bf16.msra.mxu0 %v506
      %522 = vmatpush.bf16.msra.mxu0 %v505
      %523 = vmatpush.bf16.msra.mxu0 %v504
      %524 = vmatpush.bf16.msra.mxu0 %v503
      %525 = vmatmul.bf16.gmra.mxu0 %v512
      %v526 = vpop.f32.mrf.mxu0
      %v527 = vadd.f32 0.0, %v526
      %v528 = vpop.f32.mrf.mxu0
      %v529 = vadd.f32 0.0, %v528
      %530 = vmatmul.bf16.gmra.mxu0 %v515
      %v531 = vpop.f32.mrf.mxu0
      %v532 = vadd.f32 0.0, %v531
      %v533 = vpop.f32.mrf.mxu0
      %534 = vdwg.mxu0
      %v535 = vadd.f32 %v463, %v527
      %v536 = vadd.f32 %v464, %v529
      %v537 = vadd.f32 %v465, %v532
      %v538 = vld [vmem:[%s165] sm:$0x8]
      %v539 = vld [vmem:[%s165 + $0x4] sm:$0xf]
      %v540 = vld [vmem:[%s165 + $0x8] sm:$0xf]
      %v541 = vld [vmem:[%s165 + $0xc] sm:$0x1]
      %s542 = scalar_lea.vmem %s1, 160
      %v543 = vld [vmem:[%s542] sm:$0xf]
      %v544 = vld [vmem:[%s542 + $0x4] sm:$0xf]
      %v545 = vld [vmem:[%s542 + $0x8] sm:$0xf]
      %v546 = vld [vmem:[%s542 + $0xc] sm:$0xf]
      %v547 = vld [vmem:[%s542 + $0x10] sm:$0xf]
      %v548 = vld [vmem:[%s542 + $0x14] sm:$0xf]
      %v549 = vld [vmem:[%s542 + $0x18] sm:$0xf]
      %v550 = vld [vmem:[%s542 + $0x1c] sm:$0xf]
      %v555 = vunpack.c.l.b16 %v538
      %v556 = vunpack.c.l.b16 %v539
      %v557 = vunpack.c.l.b16 %v540
      %v558 = vunpack.c.l.b16 %v541
      %v559 = vpack.c.b16 %v556, %v555
      %v560 = vpack.c.b16 %v558, %v557
      %vm561 = vsmask.f32 4352
      %v563 = vshrl.u32 %v559, 16
      %v565 = vrot.slane %v563, 3
      %v566 = vshll.u32 %v559, 16
      %v568 = vrot.slane %v566, 4
      %v569 = vor.u32 %v565, %v568
      %v571 = vshrl.u32 %v560, 16
      %v573 = vrot.slane %v571, 3
      %v574 = vshll.u32 %v560, 16
      %v576 = vrot.slane %v574, 4
      %v577 = vor.u32 %v573, %v576
      %v578 = vsel %vm561, %v569, %v577
      %v587 = vunpack.c.l.b16 %v543
      %v588 = vunpack.c.l.b16 %v544
      %v589 = vunpack.c.l.b16 %v545
      %v590 = vunpack.c.l.b16 %v546
      %v591 = vunpack.c.l.b16 %v547
      %v592 = vunpack.c.l.b16 %v548
      %v593 = vunpack.c.l.b16 %v549
      %v594 = vunpack.c.l.b16 %v550
      %v595 = vpack.c.b16 %v588, %v587
      %v596 = vpack.c.b16 %v590, %v589
      %v597 = vpack.c.b16 %v592, %v591
      %v598 = vpack.c.b16 %v594, %v593
      %v604 = vsel %vm241, %v578, 0
      %v607 = vsel %vm241, %v577, 0
      %609 = vmatpush.bf16.msra.mxu0 0
      %610 = vmatpush.bf16.msra.mxu0 0
      %611 = vmatpush.bf16.msra.mxu0 0
      %612 = vmatpush.bf16.msra.mxu0 0
      %613 = vmatpush.bf16.msra.mxu0 %v598
      %614 = vmatpush.bf16.msra.mxu0 %v597
      %615 = vmatpush.bf16.msra.mxu0 %v596
      %616 = vmatpush.bf16.msra.mxu0 %v595
      %617 = vmatmul.bf16.gmra.mxu0 %v604
      %v618 = vpop.f32.mrf.mxu0
      %v619 = vadd.f32 0.0, %v618
      %v620 = vpop.f32.mrf.mxu0
      %v621 = vadd.f32 0.0, %v620
      %622 = vmatmul.bf16.gmra.mxu0 %v607
      %v623 = vpop.f32.mrf.mxu0
      %v624 = vadd.f32 0.0, %v623
      %v625 = vpop.f32.mrf.mxu0
      %626 = vdwg.mxu0
      %v627 = vadd.f32 %v535, %v619
      %v628 = vadd.f32 %v536, %v621
      %v629 = vadd.f32 %v537, %v624
      %s630 = scalar_lea.vmem %s1, 192
      %v631 = vld [vmem:[%s630] sm:$0xf]
      %v632 = vld [vmem:[%s630 + $0x4] sm:$0xf]
      %v633 = vld [vmem:[%s630 + $0x8] sm:$0xf]
      %v634 = vld [vmem:[%s630 + $0xc] sm:$0xf]
      %v635 = vld [vmem:[%s630 + $0x10] sm:$0xf]
      %v636 = vld [vmem:[%s630 + $0x14] sm:$0xf]
      %v637 = vld [vmem:[%s630 + $0x18] sm:$0xf]
      %v638 = vld [vmem:[%s630 + $0x1c] sm:$0xf]
      %v639 = vpack.c.b16 %v557, %v556
      %v640 = vpack.c.b16 %v558, %v558
      %v649 = vunpack.c.l.b16 %v631
      %v650 = vunpack.c.l.b16 %v632
      %v651 = vunpack.c.l.b16 %v633
      %v652 = vunpack.c.l.b16 %v634
      %v653 = vunpack.c.l.b16 %v635
      %v654 = vunpack.c.l.b16 %v636
      %v655 = vunpack.c.l.b16 %v637
      %v656 = vunpack.c.l.b16 %v638
      %v657 = vpack.c.b16 %v650, %v649
      %v658 = vpack.c.b16 %v652, %v651
      %v659 = vpack.c.b16 %v654, %v653
      %v660 = vpack.c.b16 %v656, %v655
      %v666 = vsel %vm241, %v639, 0
      %v669 = vsel %vm241, %v640, 0
      %671 = vmatpush.bf16.msra.mxu0 0
      %672 = vmatpush.bf16.msra.mxu0 0
      %673 = vmatpush.bf16.msra.mxu0 0
      %674 = vmatpush.bf16.msra.mxu0 0
      %675 = vmatpush.bf16.msra.mxu0 %v660
      %676 = vmatpush.bf16.msra.mxu0 %v659
      %677 = vmatpush.bf16.msra.mxu0 %v658
      %678 = vmatpush.bf16.msra.mxu0 %v657
      %679 = vmatmul.bf16.gmra.mxu0 %v666
      %v680 = vpop.f32.mrf.mxu0
      %v681 = vadd.f32 0.0, %v680
      %v682 = vpop.f32.mrf.mxu0
      %v683 = vadd.f32 0.0, %v682
      %684 = vmatmul.bf16.gmra.mxu0 %v669
      %v685 = vpop.f32.mrf.mxu0
      %v686 = vadd.f32 0.0, %v685
      %v687 = vpop.f32.mrf.mxu0
      %688 = vdwg.mxu0
      %v689 = vadd.f32 %v627, %v681
      %v690 = vadd.f32 %v628, %v683
      %v691 = vadd.f32 %v629, %v686
      %v692 = vld [vmem:[%s165 + $0xc] sm:$0x3]
      %s693 = scalar_lea.vmem %s1, 224
      %v694 = vld [vmem:[%s693] sm:$0xf]
      %v695 = vld [vmem:[%s693 + $0x4] sm:$0xf]
      %v696 = vld [vmem:[%s693 + $0x8] sm:$0xf]
      %v697 = vld [vmem:[%s693 + $0xc] sm:$0xf]
      %v698 = vld [vmem:[%s693 + $0x10] sm:$0xf]
      %v699 = vld [vmem:[%s693 + $0x14] sm:$0xf]
      %v700 = vld [vmem:[%s693 + $0x18] sm:$0xf]
      %v701 = vld [vmem:[%s693 + $0x1c] sm:$0xf]
      %v703 = vunpack.c.l.b16 %v692
      %v704 = vpack.c.b16 %v703, %v703
      %v705 = vshrl.u32 %v639, 16
      %v707 = vshll.u32 %v639, 16
      %v709 = vrot.slane %v707, 1
      %v710 = vor.u32 %v705, %v709
      %v712 = vshll.u32 %v704, 16
      %v714 = vrot.slane %v712, 1
      %v715 = vsel %vm201, %v710, %v714
      %v716 = vshrl.u32 %v704, 16
      %v718 = vor.u32 %v716, %v714
      %v727 = vunpack.c.l.b16 %v694
      %v728 = vunpack.c.l.b16 %v695
      %v729 = vunpack.c.l.b16 %v696
      %v730 = vunpack.c.l.b16 %v697
      %v731 = vunpack.c.l.b16 %v698
      %v732 = vunpack.c.l.b16 %v699
      %v733 = vunpack.c.l.b16 %v700
      %v734 = vunpack.c.l.b16 %v701
      %v735 = vpack.c.b16 %v728, %v727
      %v736 = vpack.c.b16 %v730, %v729
      %v737 = vpack.c.b16 %v732, %v731
      %v738 = vpack.c.b16 %v734, %v733
      %v744 = vsel %vm241, %v715, 0
      %v747 = vsel %vm241, %v718, 0
      %749 = vmatpush.bf16.msra.mxu0 0
      %750 = vmatpush.bf16.msra.mxu0 0
      %751 = vmatpush.bf16.msra.mxu0 0
      %752 = vmatpush.bf16.msra.mxu0 0
      %753 = vmatpush.bf16.msra.mxu0 %v738
      %754 = vmatpush.bf16.msra.mxu0 %v737
      %755 = vmatpush.bf16.msra.mxu0 %v736
      %756 = vmatpush.bf16.msra.mxu0 %v735
      %757 = vmatmul.bf16.gmra.mxu0 %v744
      %v758 = vpop.f32.mrf.mxu0
      %v759 = vadd.f32 0.0, %v758
      %v760 = vpop.f32.mrf.mxu0
      %v761 = vadd.f32 0.0, %v760
      %762 = vmatmul.bf16.gmra.mxu0 %v747
      %v763 = vpop.f32.mrf.mxu0
      %v764 = vadd.f32 0.0, %v763
      %v765 = vpop.f32.mrf.mxu0
      %766 = vdwg.mxu0
      %v767 = vadd.f32 %v689, %v759
      %v768 = vadd.f32 %v690, %v761
      %v769 = vadd.f32 %v691, %v764
      %v770 = vld [vmem:[%s165 + $0x4] sm:$0xc]
      %v771 = vld [vmem:[%s165 + $0xc] sm:$0x7]
      %s772 = scalar_lea.vmem %s1, 256
      %v773 = vld [vmem:[%s772] sm:$0xf]
      %v774 = vld [vmem:[%s772 + $0x4] sm:$0xf]
      %v775 = vld [vmem:[%s772 + $0x8] sm:$0xf]
      %v776 = vld [vmem:[%s772 + $0xc] sm:$0xf]
      %v777 = vld [vmem:[%s772 + $0x10] sm:$0xf]
      %v778 = vld [vmem:[%s772 + $0x14] sm:$0xf]
      %v779 = vld [vmem:[%s772 + $0x18] sm:$0xf]
      %v780 = vld [vmem:[%s772 + $0x1c] sm:$0xf]
      %v783 = vunpack.c.l.b16 %v770
      %v784 = vunpack.c.l.b16 %v771
      %v785 = vpack.c.b16 %v557, %v783
      %v786 = vpack.c.b16 %v784, %v784
      %vm787 = vcmask 1045504
      %v788 = vrot.slane %v785, 2
      %v789 = vrot.slane %v786, 2
      %v790 = vsel %vm787, %v788, %v789
      %v799 = vunpack.c.l.b16 %v773
      %v800 = vunpack.c.l.b16 %v774
      %v801 = vunpack.c.l.b16 %v775
      %v802 = vunpack.c.l.b16 %v776
      %v803 = vunpack.c.l.b16 %v777
      %v804 = vunpack.c.l.b16 %v778
      %v805 = vunpack.c.l.b16 %v779
      %v806 = vunpack.c.l.b16 %v780
      %v807 = vpack.c.b16 %v800, %v799
      %v808 = vpack.c.b16 %v802, %v801
      %v809 = vpack.c.b16 %v804, %v803
      %v810 = vpack.c.b16 %v806, %v805
      %v816 = vsel %vm241, %v790, 0
      %v819 = vsel %vm241, %v789, 0
      %821 = vmatpush.bf16.msra.mxu0 0
      %822 = vmatpush.bf16.msra.mxu0 0
      %823 = vmatpush.bf16.msra.mxu0 0
      %824 = vmatpush.bf16.msra.mxu0 0
      %825 = vmatpush.bf16.msra.mxu0 %v810
      %826 = vmatpush.bf16.msra.mxu0 %v809
      %827 = vmatpush.bf16.msra.mxu0 %v808
      %828 = vmatpush.bf16.msra.mxu0 %v807
      %829 = vmatmul.bf16.gmra.mxu0 %v816
      %v830 = vpop.f32.mrf.mxu0
      %v831 = vadd.f32 0.0, %v830
      %v832 = vpop.f32.mrf.mxu0
      %v833 = vadd.f32 0.0, %v832
      %834 = vmatmul.bf16.gmra.mxu0 %v819
      %v835 = vpop.f32.mrf.mxu0
      %v836 = vadd.f32 0.0, %v835
      %v837 = vpop.f32.mrf.mxu0
      %838 = vdwg.mxu0
      %v839 = vadd.f32 %v767, %v831
      %v840 = vadd.f32 %v768, %v833
      %v841 = vadd.f32 %v769, %v836
      %v842 = vld [vmem:[%s165 + $0xc] sm:$0xf]
      %s843 = scalar_lea.vmem %s1, 288
      %v844 = vld [vmem:[%s843] sm:$0xf]
      %v845 = vld [vmem:[%s843 + $0x4] sm:$0xf]
      %v846 = vld [vmem:[%s843 + $0x8] sm:$0xf]
      %v847 = vld [vmem:[%s843 + $0xc] sm:$0xf]
      %v848 = vld [vmem:[%s843 + $0x10] sm:$0xf]
      %v849 = vld [vmem:[%s843 + $0x14] sm:$0xf]
      %v850 = vld [vmem:[%s843 + $0x18] sm:$0xf]
      %v851 = vld [vmem:[%s843 + $0x1c] sm:$0xf]
      %v853 = vunpack.c.l.b16 %v842
      %v854 = vpack.c.b16 %v853, %v853
      %vm855 = vsmask.f32 5376
      %v857 = vshrl.u32 %v785, 16
      %v859 = vrot.slane %v857, 2
      %v860 = vshll.u32 %v785, 16
      %v862 = vrot.slane %v860, 3
      %v863 = vor.u32 %v859, %v862
      %v865 = vshrl.u32 %v854, 16
      %v867 = vrot.slane %v865, 2
      %v868 = vshll.u32 %v854, 16
      %v870 = vrot.slane %v868, 3
      %v871 = vor.u32 %v867, %v870
      %v872 = vsel %vm855, %v863, %v871
      %v881 = vunpack.c.l.b16 %v844
      %v882 = vunpack.c.l.b16 %v845
      %v883 = vunpack.c.l.b16 %v846
      %v884 = vunpack.c.l.b16 %v847
      %v885 = vunpack.c.l.b16 %v848
      %v886 = vunpack.c.l.b16 %v849
      %v887 = vunpack.c.l.b16 %v850
      %v888 = vunpack.c.l.b16 %v851
      %v889 = vpack.c.b16 %v882, %v881
      %v890 = vpack.c.b16 %v884, %v883
      %v891 = vpack.c.b16 %v886, %v885
      %v892 = vpack.c.b16 %v888, %v887
      %v898 = vsel %vm241, %v872, 0
      %v901 = vsel %vm241, %v871, 0
      %903 = vmatpush.bf16.msra.mxu0 0
      %904 = vmatpush.bf16.msra.mxu0 0
      %905 = vmatpush.bf16.msra.mxu0 0
      %906 = vmatpush.bf16.msra.mxu0 0
      %907 = vmatpush.bf16.msra.mxu0 %v892
      %908 = vmatpush.bf16.msra.mxu0 %v891
      %909 = vmatpush.bf16.msra.mxu0 %v890
      %910 = vmatpush.bf16.msra.mxu0 %v889
      %911 = vmatmul.bf16.gmra.mxu0 %v898
      %v912 = vpop.f32.mrf.mxu0
      %v913 = vadd.f32 0.0, %v912
      %v914 = vpop.f32.mrf.mxu0
      %v915 = vadd.f32 0.0, %v914
      %916 = vmatmul.bf16.gmra.mxu0 %v901
      %v917 = vpop.f32.mrf.mxu0
      %v918 = vadd.f32 0.0, %v917
      %v919 = vpop.f32.mrf.mxu0
      %920 = vdwg.mxu0
      %v921 = vadd.f32 %v839, %v913
      %v922 = vadd.f32 %v840, %v915
      %v923 = vadd.f32 %v841, %v918
      %v924 = vld [vmem:[%s165 + $0x4] sm:$0x8]
      %s925 = scalar_lea.vmem %s1, 320
      %v926 = vld [vmem:[%s925] sm:$0xf]
      %v927 = vld [vmem:[%s925 + $0x4] sm:$0xf]
      %v928 = vld [vmem:[%s925 + $0x8] sm:$0xf]
      %v929 = vld [vmem:[%s925 + $0xc] sm:$0xf]
      %v930 = vld [vmem:[%s925 + $0x10] sm:$0xf]
      %v931 = vld [vmem:[%s925 + $0x14] sm:$0xf]
      %v932 = vld [vmem:[%s925 + $0x18] sm:$0xf]
      %v933 = vld [vmem:[%s925 + $0x1c] sm:$0xf]
      %v935 = vunpack.c.l.b16 %v924
      %v936 = vpack.c.b16 %v557, %v935
      %v937 = vrot.slane %v936, 3
      %v938 = vrot.slane %v854, 3
      %v939 = vsel %vm483, %v937, %v938
      %v948 = vunpack.c.l.b16 %v926
      %v949 = vunpack.c.l.b16 %v927
      %v950 = vunpack.c.l.b16 %v928
      %v951 = vunpack.c.l.b16 %v929
      %v952 = vunpack.c.l.b16 %v930
      %v953 = vunpack.c.l.b16 %v931
      %v954 = vunpack.c.l.b16 %v932
      %v955 = vunpack.c.l.b16 %v933
      %v956 = vpack.c.b16 %v949, %v948
      %v957 = vpack.c.b16 %v951, %v950
      %v958 = vpack.c.b16 %v953, %v952
      %v959 = vpack.c.b16 %v955, %v954
      %v965 = vsel %vm241, %v939, 0
      %v968 = vsel %vm241, %v938, 0
      %970 = vmatpush.bf16.msra.mxu0 0
      %971 = vmatpush.bf16.msra.mxu0 0
      %972 = vmatpush.bf16.msra.mxu0 0
      %973 = vmatpush.bf16.msra.mxu0 0
      %974 = vmatpush.bf16.msra.mxu0 %v959
      %975 = vmatpush.bf16.msra.mxu0 %v958
      %976 = vmatpush.bf16.msra.mxu0 %v957
      %977 = vmatpush.bf16.msra.mxu0 %v956
      %978 = vmatmul.bf16.gmra.mxu0 %v965
      %v979 = vpop.f32.mrf.mxu0
      %v980 = vadd.f32 0.0, %v979
      %v981 = vpop.f32.mrf.mxu0
      %v982 = vadd.f32 0.0, %v981
      %983 = vmatmul.bf16.gmra.mxu0 %v968
      %v984 = vpop.f32.mrf.mxu0
      %v985 = vadd.f32 0.0, %v984
      %v986 = vpop.f32.mrf.mxu0
      %987 = vdwg.mxu0
      %v988 = vadd.f32 %v921, %v980
      %v989 = vadd.f32 %v922, %v982
      %v990 = vadd.f32 %v923, %v985
      %v991 = vld [vmem:[%s165 + $0x4] sm:$0x8]
      %v992 = vld [vmem:[%s165 + $0x8] sm:$0xf]
      %v993 = vld [vmem:[%s165 + $0xc] sm:$0xf]
      %v994 = vld [vmem:[%s165 + $0x10] sm:$0x1]
      %s995 = scalar_lea.vmem %s1, 352
      %v996 = vld [vmem:[%s995] sm:$0xf]
      %v997 = vld [vmem:[%s995 + $0x4] sm:$0xf]
      %v998 = vld [vmem:[%s995 + $0x8] sm:$0xf]
      %v999 = vld [vmem:[%s995 + $0xc] sm:$0xf]
      %v1000 = vld [vmem:[%s995 + $0x10] sm:$0xf]
      %v1001 = vld [vmem:[%s995 + $0x14] sm:$0xf]
      %v1002 = vld [vmem:[%s995 + $0x18] sm:$0xf]
      %v1003 = vld [vmem:[%s995 + $0x1c] sm:$0xf]
      %v1008 = vunpack.c.l.b16 %v991
      %v1009 = vunpack.c.l.b16 %v992
      %v1010 = vunpack.c.l.b16 %v993
      %v1011 = vunpack.c.l.b16 %v994
      %v1012 = vpack.c.b16 %v1009, %v1008
      %v1013 = vpack.c.b16 %v1011, %v1010
      %v1015 = vshrl.u32 %v1012, 16
      %v1017 = vrot.slane %v1015, 3
      %v1018 = vshll.u32 %v1012, 16
      %v1020 = vrot.slane %v1018, 4
      %v1021 = vor.u32 %v1017, %v1020
      %v1023 = vshrl.u32 %v1013, 16
      %v1025 = vrot.slane %v1023, 3
      %v1026 = vshll.u32 %v1013, 16
      %v1028 = vrot.slane %v1026, 4
      %v1029 = vor.u32 %v1025, %v1028
      %v1030 = vsel %vm561, %v1021, %v1029
      %v1039 = vunpack.c.l.b16 %v996
      %v1040 = vunpack.c.l.b16 %v997
      %v1041 = vunpack.c.l.b16 %v998
      %v1042 = vunpack.c.l.b16 %v999
      %v1043 = vunpack.c.l.b16 %v1000
      %v1044 = vunpack.c.l.b16 %v1001
      %v1045 = vunpack.c.l.b16 %v1002
      %v1046 = vunpack.c.l.b16 %v1003
      %v1047 = vpack.c.b16 %v1040, %v1039
      %v1048 = vpack.c.b16 %v1042, %v1041
      %v1049 = vpack.c.b16 %v1044, %v1043
      %v1050 = vpack.c.b16 %v1046, %v1045
      %v1056 = vsel %vm241, %v1030, 0
      %v1059 = vsel %vm241, %v1029, 0
      %1061 = vmatpush.bf16.msra.mxu0 0
      %1062 = vmatpush.bf16.msra.mxu0 0
      %1063 = vmatpush.bf16.msra.mxu0 0
      %1064 = vmatpush.bf16.msra.mxu0 0
      %1065 = vmatpush.bf16.msra.mxu0 %v1050
      %1066 = vmatpush.bf16.msra.mxu0 %v1049
      %1067 = vmatpush.bf16.msra.mxu0 %v1048
      %1068 = vmatpush.bf16.msra.mxu0 %v1047
      %1069 = vmatmul.bf16.gmra.mxu0 %v1056
      %v1070 = vpop.f32.mrf.mxu0
      %v1071 = vadd.f32 0.0, %v1070
      %v1072 = vpop.f32.mrf.mxu0
      %v1073 = vadd.f32 0.0, %v1072
      %1074 = vmatmul.bf16.gmra.mxu0 %v1059
      %v1075 = vpop.f32.mrf.mxu0
      %v1076 = vadd.f32 0.0, %v1075
      %v1077 = vpop.f32.mrf.mxu0
      %1078 = vdwg.mxu0
      %v1079 = vadd.f32 %v988, %v1071
      %v1080 = vadd.f32 %v989, %v1073
      %v1081 = vadd.f32 %v990, %v1076
      %v1082 = vld [vmem:[%s165 + $0x8] sm:$0xe]
      %v1083 = vld [vmem:[%s165 + $0x10] sm:$0x3]
      %s1084 = scalar_lea.vmem %s1, 384
      %v1085 = vld [vmem:[%s1084] sm:$0xf]
      %v1086 = vld [vmem:[%s1084 + $0x4] sm:$0xf]
      %v1087 = vld [vmem:[%s1084 + $0x8] sm:$0xf]
      %v1088 = vld [vmem:[%s1084 + $0xc] sm:$0xf]
      %v1089 = vld [vmem:[%s1084 + $0x10] sm:$0xf]
      %v1090 = vld [vmem:[%s1084 + $0x14] sm:$0xf]
      %v1091 = vld [vmem:[%s1084 + $0x18] sm:$0xf]
      %v1092 = vld [vmem:[%s1084 + $0x1c] sm:$0xf]
      %v1095 = vunpack.c.l.b16 %v1082
      %v1096 = vunpack.c.l.b16 %v1083
      %v1097 = vpack.c.b16 %v1010, %v1095
      %v1098 = vpack.c.b16 %v1096, %v1096
      %v1099 = vrot.slane %v1097, 1
      %v1100 = vrot.slane %v1098, 1
      %v1101 = vsel %vm329, %v1099, %v1100
      %v1110 = vunpack.c.l.b16 %v1085
      %v1111 = vunpack.c.l.b16 %v1086
      %v1112 = vunpack.c.l.b16 %v1087
      %v1113 = vunpack.c.l.b16 %v1088
      %v1114 = vunpack.c.l.b16 %v1089
      %v1115 = vunpack.c.l.b16 %v1090
      %v1116 = vunpack.c.l.b16 %v1091
      %v1117 = vunpack.c.l.b16 %v1092
      %v1118 = vpack.c.b16 %v1111, %v1110
      %v1119 = vpack.c.b16 %v1113, %v1112
      %v1120 = vpack.c.b16 %v1115, %v1114
      %v1121 = vpack.c.b16 %v1117, %v1116
      %v1127 = vsel %vm241, %v1101, 0
      %v1130 = vsel %vm241, %v1100, 0
      %1132 = vmatpush.bf16.msra.mxu0 0
      %1133 = vmatpush.bf16.msra.mxu0 0
      %1134 = vmatpush.bf16.msra.mxu0 0
      %1135 = vmatpush.bf16.msra.mxu0 0
      %1136 = vmatpush.bf16.msra.mxu0 %v1121
      %1137 = vmatpush.bf16.msra.mxu0 %v1120
      %1138 = vmatpush.bf16.msra.mxu0 %v1119
      %1139 = vmatpush.bf16.msra.mxu0 %v1118
      %1140 = vmatmul.bf16.gmra.mxu0 %v1127
      %v1141 = vpop.f32.mrf.mxu0
      %v1142 = vadd.f32 0.0, %v1141
      %v1143 = vpop.f32.mrf.mxu0
      %v1144 = vadd.f32 0.0, %v1143
      %1145 = vmatmul.bf16.gmra.mxu0 %v1130
      %v1146 = vpop.f32.mrf.mxu0
      %v1147 = vadd.f32 0.0, %v1146
      %v1148 = vpop.f32.mrf.mxu0
      %1149 = vdwg.mxu0
      %v1150 = vadd.f32 %v1079, %v1142
      %v1151 = vadd.f32 %v1080, %v1144
      %v1152 = vadd.f32 %v1081, %v1147
      %v1153 = vld [vmem:[%s165 + $0x10] sm:$0x7]
      %s1154 = scalar_lea.vmem %s1, 416
      %v1155 = vld [vmem:[%s1154] sm:$0xf]
      %v1156 = vld [vmem:[%s1154 + $0x4] sm:$0xf]
      %v1157 = vld [vmem:[%s1154 + $0x8] sm:$0xf]
      %v1158 = vld [vmem:[%s1154 + $0xc] sm:$0xf]
      %v1159 = vld [vmem:[%s1154 + $0x10] sm:$0xf]
      %v1160 = vld [vmem:[%s1154 + $0x14] sm:$0xf]
      %v1161 = vld [vmem:[%s1154 + $0x18] sm:$0xf]
      %v1162 = vld [vmem:[%s1154 + $0x1c] sm:$0xf]
      %v1164 = vunpack.c.l.b16 %v1153
      %v1165 = vpack.c.b16 %v1164, %v1164
      %v1167 = vshrl.u32 %v1097, 16
      %v1169 = vrot.slane %v1167, 1
      %v1170 = vshll.u32 %v1097, 16
      %v1172 = vrot.slane %v1170, 2
      %v1173 = vor.u32 %v1169, %v1172
      %v1175 = vshrl.u32 %v1165, 16
      %v1177 = vrot.slane %v1175, 1
      %v1178 = vshll.u32 %v1165, 16
      %v1180 = vrot.slane %v1178, 2
      %v1181 = vor.u32 %v1177, %v1180
      %v1182 = vsel %vm397, %v1173, %v1181
      %v1191 = vunpack.c.l.b16 %v1155
      %v1192 = vunpack.c.l.b16 %v1156
      %v1193 = vunpack.c.l.b16 %v1157
      %v1194 = vunpack.c.l.b16 %v1158
      %v1195 = vunpack.c.l.b16 %v1159
      %v1196 = vunpack.c.l.b16 %v1160
      %v1197 = vunpack.c.l.b16 %v1161
      %v1198 = vunpack.c.l.b16 %v1162
      %v1199 = vpack.c.b16 %v1192, %v1191
      %v1200 = vpack.c.b16 %v1194, %v1193
      %v1201 = vpack.c.b16 %v1196, %v1195
      %v1202 = vpack.c.b16 %v1198, %v1197
      %v1208 = vsel %vm241, %v1182, 0
      %v1211 = vsel %vm241, %v1181, 0
      %1213 = vmatpush.bf16.msra.mxu0 0
      %1214 = vmatpush.bf16.msra.mxu0 0
      %1215 = vmatpush.bf16.msra.mxu0 0
      %1216 = vmatpush.bf16.msra.mxu0 0
      %1217 = vmatpush.bf16.msra.mxu0 %v1202
      %1218 = vmatpush.bf16.msra.mxu0 %v1201
      %1219 = vmatpush.bf16.msra.mxu0 %v1200
      %1220 = vmatpush.bf16.msra.mxu0 %v1199
      %1221 = vmatmul.bf16.gmra.mxu0 %v1208
      %v1222 = vpop.f32.mrf.mxu0
      %v1223 = vadd.f32 0.0, %v1222
      %v1224 = vpop.f32.mrf.mxu0
      %v1225 = vadd.f32 0.0, %v1224
      %1226 = vmatmul.bf16.gmra.mxu0 %v1211
      %v1227 = vpop.f32.mrf.mxu0
      %v1228 = vadd.f32 0.0, %v1227
      %v1229 = vpop.f32.mrf.mxu0
      %1230 = vdwg.mxu0
      %v1231 = vadd.f32 %v1150, %v1223
      %v1232 = vadd.f32 %v1151, %v1225
      %v1233 = vadd.f32 %v1152, %v1228
      %v1234 = vld [vmem:[%s165 + $0x8] sm:$0xc]
      %s1235 = scalar_lea.vmem %s1, 448
      %v1236 = vld [vmem:[%s1235] sm:$0xf]
      %v1237 = vld [vmem:[%s1235 + $0x4] sm:$0xf]
      %v1238 = vld [vmem:[%s1235 + $0x8] sm:$0xf]
      %v1239 = vld [vmem:[%s1235 + $0xc] sm:$0xf]
      %v1240 = vld [vmem:[%s1235 + $0x10] sm:$0xf]
      %v1241 = vld [vmem:[%s1235 + $0x14] sm:$0xf]
      %v1242 = vld [vmem:[%s1235 + $0x18] sm:$0xf]
      %v1243 = vld [vmem:[%s1235 + $0x1c] sm:$0xf]
      %v1245 = vunpack.c.l.b16 %v1234
      %v1246 = vpack.c.b16 %v1010, %v1245
      %v1247 = vrot.slane %v1246, 2
      %v1248 = vrot.slane %v1165, 2
      %v1249 = vsel %vm787, %v1247, %v1248
      %v1258 = vunpack.c.l.b16 %v1236
      %v1259 = vunpack.c.l.b16 %v1237
      %v1260 = vunpack.c.l.b16 %v1238
      %v1261 = vunpack.c.l.b16 %v1239
      %v1262 = vunpack.c.l.b16 %v1240
      %v1263 = vunpack.c.l.b16 %v1241
      %v1264 = vunpack.c.l.b16 %v1242
      %v1265 = vunpack.c.l.b16 %v1243
      %v1266 = vpack.c.b16 %v1259, %v1258
      %v1267 = vpack.c.b16 %v1261, %v1260
      %v1268 = vpack.c.b16 %v1263, %v1262
      %v1269 = vpack.c.b16 %v1265, %v1264
      %v1275 = vsel %vm241, %v1249, 0
      %v1278 = vsel %vm241, %v1248, 0
      %1280 = vmatpush.bf16.msra.mxu0 0
      %1281 = vmatpush.bf16.msra.mxu0 0
      %1282 = vmatpush.bf16.msra.mxu0 0
      %1283 = vmatpush.bf16.msra.mxu0 0
      %1284 = vmatpush.bf16.msra.mxu0 %v1269
      %1285 = vmatpush.bf16.msra.mxu0 %v1268
      %1286 = vmatpush.bf16.msra.mxu0 %v1267
      %1287 = vmatpush.bf16.msra.mxu0 %v1266
      %1288 = vmatmul.bf16.gmra.mxu0 %v1275
      %v1289 = vpop.f32.mrf.mxu0
      %v1290 = vadd.f32 0.0, %v1289
      %v1291 = vpop.f32.mrf.mxu0
      %v1292 = vadd.f32 0.0, %v1291
      %1293 = vmatmul.bf16.gmra.mxu0 %v1278
      %v1294 = vpop.f32.mrf.mxu0
      %v1295 = vadd.f32 0.0, %v1294
      %v1296 = vpop.f32.mrf.mxu0
      %1297 = vdwg.mxu0
      %v1298 = vadd.f32 %v1231, %v1290
      %v1299 = vadd.f32 %v1232, %v1292
      %v1300 = vadd.f32 %v1233, %v1295
      %v1301 = vld [vmem:[%s165 + $0x10] sm:$0xf]
      %s1302 = scalar_lea.vmem %s1, 480
      %v1303 = vld [vmem:[%s1302] sm:$0xf]
      %v1304 = vld [vmem:[%s1302 + $0x4] sm:$0xf]
      %v1305 = vld [vmem:[%s1302 + $0x8] sm:$0xf]
      %v1306 = vld [vmem:[%s1302 + $0xc] sm:$0xf]
      %v1307 = vld [vmem:[%s1302 + $0x10] sm:$0xf]
      %v1308 = vld [vmem:[%s1302 + $0x14] sm:$0xf]
      %v1309 = vld [vmem:[%s1302 + $0x18] sm:$0xf]
      %v1310 = vld [vmem:[%s1302 + $0x1c] sm:$0xf]
      %v1312 = vunpack.c.l.b16 %v1301
      %v1313 = vpack.c.b16 %v1312, %v1312
      %v1315 = vshrl.u32 %v1246, 16
      %v1317 = vrot.slane %v1315, 2
      %v1318 = vshll.u32 %v1246, 16
      %v1320 = vrot.slane %v1318, 3
      %v1321 = vor.u32 %v1317, %v1320
      %v1323 = vshrl.u32 %v1313, 16
      %v1325 = vrot.slane %v1323, 2
      %v1326 = vshll.u32 %v1313, 16
      %v1328 = vrot.slane %v1326, 3
      %v1329 = vor.u32 %v1325, %v1328
      %v1330 = vsel %vm855, %v1321, %v1329
      %v1339 = vunpack.c.l.b16 %v1303
      %v1340 = vunpack.c.l.b16 %v1304
      %v1341 = vunpack.c.l.b16 %v1305
      %v1342 = vunpack.c.l.b16 %v1306
      %v1343 = vunpack.c.l.b16 %v1307
      %v1344 = vunpack.c.l.b16 %v1308
      %v1345 = vunpack.c.l.b16 %v1309
      %v1346 = vunpack.c.l.b16 %v1310
      %v1347 = vpack.c.b16 %v1340, %v1339
      %v1348 = vpack.c.b16 %v1342, %v1341
      %v1349 = vpack.c.b16 %v1344, %v1343
      %v1350 = vpack.c.b16 %v1346, %v1345
      %v1356 = vsel %vm241, %v1330, 0
      %v1359 = vsel %vm241, %v1329, 0
      %1361 = vmatpush.bf16.msra.mxu0 0
      %1362 = vmatpush.bf16.msra.mxu0 0
      %1363 = vmatpush.bf16.msra.mxu0 0
      %1364 = vmatpush.bf16.msra.mxu0 0
      %1365 = vmatpush.bf16.msra.mxu0 %v1350
      %1366 = vmatpush.bf16.msra.mxu0 %v1349
      %1367 = vmatpush.bf16.msra.mxu0 %v1348
      %1368 = vmatpush.bf16.msra.mxu0 %v1347
      %1369 = vmatmul.bf16.gmra.mxu0 %v1356
      %v1370 = vpop.f32.mrf.mxu0
      %v1371 = vadd.f32 0.0, %v1370
      %v1372 = vpop.f32.mrf.mxu0
      %v1373 = vadd.f32 0.0, %v1372
      %1374 = vmatmul.bf16.gmra.mxu0 %v1359
      %v1375 = vpop.f32.mrf.mxu0
      %v1376 = vadd.f32 0.0, %v1375
      %v1377 = vpop.f32.mrf.mxu0
      %1378 = vdwg.mxu0
      %v1379 = vadd.f32 %v1298, %v1371
      %v1380 = vadd.f32 %v1299, %v1373
      %v1381 = vadd.f32 %v1300, %v1376
      %v1382 = vld [vmem:[%s2] sm:$0x1]
      %v1384 = vperm.slane %v1382, 0
      %v1386 = vadd.f32 %v1379, %v1384
      %v1387 = vadd.f32 %v1380, %v1384
      %v1388 = vadd.f32 %v1381, %v1384
      %v1389 = vpack.c.bf16 %v1386, %v1386
      %v1390 = vpack.c.bf16 %v1387, %v1387
      %v1391 = vpack.c.bf16 %v1388, %v1388
      %1392 = vst [vmem:[%s170] sm:$0xf] %v1389
      %1393 = vst [vmem:[%s170 + $0x4] sm:$0xf] %v1390
      %1394 = vst [vmem:[%s170 + $0x8] sm:$0x1] %v1391
      %p1395 = scmp.lt.s32.totalorder %s14, 1
      %s1396 = scalar_select %p1395, %s14, 1
      %s1397 = smul.addr %s1396, 3
      %s1398 = smul.addr %s1397, 4
      %s1399 = scalar_lea.vmem %s3, %s1398
      // Predicated region
      $region33: #{_lambda_.18} parent=31 // pred_check
        %p1400 = pneg %p100
      $region34: #{_lambda_.18} parent=31 // pred_check_branch
        %1402 = sbr.rel (%p1400) target = $region36
      $region35: #{_lambda_.18} parent=31 // pred_region
        _
      $region36: #{_lambda_.18} parent=31 // pred_fallthru
        _
    $region32: #{_lambda_.18} parent=5 // pred_fallthru
      _
    %p1403 = scmp.le.s32.totalorder 2, %s9
    // Predicated region
    $region37: #{_lambda_.18} parent=5 // pred_check
      %p1404 = pneg %p1403
    $region38: #{_lambda_.18} parent=5 // pred_check_branch
      %1406 = sbr.rel (%p1404) target = $region40
    $region39: #{_lambda_.18} parent=5 // pred_region
      %s1407 = ssub.s32 %s9, 2
      // Predicated region
      $region41: #{_lambda_.18} parent=39 // pred_check
        %p1408 = pneg %p106
      $region42: #{_lambda_.18} parent=39 // pred_check_branch
        %1410 = sbr.rel (%p1408) target = $region44
      $region43: #{_lambda_.18} parent=39 // pred_region
        %p1411 = scmp.lt.s32.totalorder %s15, 1
        %s1412 = scalar_select %p1411, %s15, 1
        %s1413 = smul.addr %s1412, 3
        %s1414 = smul.addr %s1413, 4
        %s1415 = scalar_lea.vmem %s3, %s1414
      $region44: #{_lambda_.18} parent=39 // pred_fallthru
        _
    $region40: #{_lambda_.18} parent=5 // pred_fallthru
      _
  $region6: #{_lambda_.18} parent=0 // loop_footer
    %s13 = sadd.s32 1, %s9
  $region7: #{_lambda_.18} parent=0 // loop_footer_branch
    %8 = sbr.rel target = $region3
  $region8: #{_lambda_.18} parent=0 // loop_exit
    _

// kernel: _lambda_.21
$region0: #{_lambda_.21}
  #allocation0 [shape = 'u32[]', space=smem, size = 0x4, offset = 0x4, fixed_abs, tag = 'smem constant byte address 0x4 - core index']
  #allocation1 [shape = 'u32[72,128]{1,0:T(1,128)}', space=vmem, size = 0x9000, scoped, tag = 'internal scratch']
  %s0 = inlined_call_operand.vmem [shape: bf16[2,32,128], index: 0, kind: input, shape index: {}]
  %s1 = inlined_call_operand.vmem [shape: bf16[16,128,128], index: 1, kind: input, shape index: {}]
  %s2 = inlined_call_operand.vmem [shape: f32[1,128], index: 2, kind: input, shape index: {}]
  %s3 = inlined_call_operand.vmem [shape: f32[2,10,128], index: 3, kind: output, shape index: {}]
  %s4 = sld [smem:[#allocation0]]
  $region45: #{_lambda_.21} parent=0
    _
  %s6 = ssub.s32 1, %s4
  %s7 = scalar_select 0, %s6, %s4
  loop: start=0, step=1, limit=4
  $region2: #{_lambda_.21} parent=0 // loop_pre_header
    _
  $region3: #{_lambda_.21} parent=0 // loop_header
    %s9 = sphi 0, %s13
    %p10 = scmp.ge.s32.totalorder %s9, 4
    %s19 = sphi 0, %s21
    %s22 = sphi 0, %s19
    %s23 = sphi 0, %s22
    %s39 = sphi 0, %s23
    %s43 = sphi 0, %s43
    %s45 = sphi 0, %s43
    %s46 = sphi 0, %s45
    %s60 = sphi 0, %s46
    %s64 = sphi 0, %s64
    %s66 = sphi 0, %s64
    %s67 = sphi 0, %s66
    %s81 = sphi 0, %s67
    %s87 = sphi 0, %s89
    %s90 = sphi 0, %s87
    %s91 = sphi 0, %s90
    %s107 = sphi 0, %s91
  $region4: #{_lambda_.21} parent=0 // loop_header_branch
    %12 = sbr.rel (%p10) target = $region8
  $region5: #{_lambda_.21} parent=0 // loop_body
    %s14 = ssub.s32 %s9, 1
    %s15 = ssub.s32 %s9, 2
    %s16 = sadd.s32 %s9, 1
    %s17 = ssub.s32 %s9, %s16
    %p18 = scmp.eq.s32.totalorder %s17, 0
    %s20 = sadd.s32 %s19, 1
    %s21 = scalar_select %p18, %s19, %s20
    %p24 = pneg %p18
    %p25 = scmp.eq.s32.totalorder %s9, 1
    %p26 = por %p24, %p25
    %p27 = scmp.ne.s32.totalorder %s19, %s22
    %p28 = scmp.eq.s32.totalorder %s9, 0
    %p29 = por %p27, %p28
    %p30 = scmp.ne.s32.totalorder %s19, %s22
    %p31 = scmp.eq.s32.totalorder %s14, 1
    %p32 = por %p30, %p31
    %p33 = scmp.ne.s32.totalorder %s22, %s23
    %p34 = scmp.eq.s32.totalorder %s14, 0
    %p35 = por %p33, %p34
    %p36 = scmp.ne.s32.totalorder %s22, %s23
    %p37 = scmp.eq.s32.totalorder %s15, 1
    %p38 = por %p36, %p37
    %p40 = scmp.ne.s32.totalorder %s23, %s39
    %p41 = scmp.eq.s32.totalorder %s15, 0
    %p42 = por %p40, %p41
    %s44 = sadd.s32 %s43, 1
    %p47 = scmp.eq.s32.totalorder %s9, 1
    %p48 = scmp.ne.s32.totalorder %s43, %s45
    %p49 = scmp.eq.s32.totalorder %s9, 0
    %p50 = por %p48, %p49
    %p51 = scmp.ne.s32.totalorder %s43, %s45
    %p52 = scmp.eq.s32.totalorder %s14, 1
    %p53 = por %p51, %p52
    %p54 = scmp.ne.s32.totalorder %s45, %s46
    %p55 = scmp.eq.s32.totalorder %s14, 0
    %p56 = por %p54, %p55
    %p57 = scmp.ne.s32.totalorder %s45, %s46
    %p58 = scmp.eq.s32.totalorder %s15, 1
    %p59 = por %p57, %p58
    %p61 = scmp.ne.s32.totalorder %s46, %s60
    %p62 = scmp.eq.s32.totalorder %s15, 0
    %p63 = por %p61, %p62
    %s65 = sadd.s32 %s64, 1
    %p68 = scmp.eq.s32.totalorder %s9, 1
    %p69 = scmp.ne.s32.totalorder %s64, %s66
    %p70 = scmp.eq.s32.totalorder %s9, 0
    %p71 = por %p69, %p70
    %p72 = scmp.ne.s32.totalorder %s64, %s66
    %p73 = scmp.eq.s32.totalorder %s14, 1
    %p74 = por %p72, %p73
    %p75 = scmp.ne.s32.totalorder %s66, %s67
    %p76 = scmp.eq.s32.totalorder %s14, 0
    %p77 = por %p75, %p76
    %p78 = scmp.ne.s32.totalorder %s66, %s67
    %p79 = scmp.eq.s32.totalorder %s15, 1
    %p80 = por %p78, %p79
    %p82 = scmp.ne.s32.totalorder %s67, %s81
    %p83 = scmp.eq.s32.totalorder %s15, 0
    %p84 = por %p82, %p83
    %s85 = ssub.s32 %s9, %s16
    %p86 = scmp.eq.s32.totalorder %s85, 0
    %s88 = sadd.s32 %s87, 1
    %s89 = scalar_select %p86, %s87, %s88
    %p92 = pneg %p86
    %p93 = scmp.eq.s32.totalorder %s9, 1
    %p94 = por %p92, %p93
    %p95 = scmp.ne.s32.totalorder %s87, %s90
    %p96 = scmp.eq.s32.totalorder %s9, 0
    %p97 = por %p95, %p96
    %p98 = scmp.ne.s32.totalorder %s87, %s90
    %p99 = scmp.eq.s32.totalorder %s14, 1
    %p100 = por %p98, %p99
    %p101 = scmp.ne.s32.totalorder %s90, %s91
    %p102 = scmp.eq.s32.totalorder %s14, 0
    %p103 = por %p101, %p102
    %p104 = scmp.ne.s32.totalorder %s90, %s91
    %p105 = scmp.eq.s32.totalorder %s15, 1
    %p106 = por %p104, %p105
    %p108 = scmp.ne.s32.totalorder %s91, %s107
    %p109 = scmp.eq.s32.totalorder %s15, 0
    %p110 = por %p108, %p109
    %p111 = scmp.le.s32.totalorder 1, %s9
    %p112 = scmp.lt.s32.totalorder %s9, 3
    %p113 = pnand %p111, %p112
    %p114 = pneg %p113
    // Predicated region
    $region9: #{_lambda_.21} parent=5 // pred_check
      _
    $region10: #{_lambda_.21} parent=5 // pred_check_branch
      %116 = sbr.rel (%p113) target = $region12
    $region11: #{_lambda_.21} parent=5 // pred_region
      %s117 = ssub.s32 %s9, 1
      // Predicated region
      $region13: #{_lambda_.21} parent=11 // pred_check
        %p118 = pneg %p56
      $region14: #{_lambda_.21} parent=11 // pred_check_branch
        %120 = sbr.rel (%p118) target = $region16
      $region15: #{_lambda_.21} parent=11 // pred_region
        _
      $region16: #{_lambda_.21} parent=11 // pred_fallthru
        _
      // Predicated region
      $region17: #{_lambda_.21} parent=11 // pred_check
        %p121 = pneg %p77
      $region18: #{_lambda_.21} parent=11 // pred_check_branch
        %123 = sbr.rel (%p121) target = $region20
      $region19: #{_lambda_.21} parent=11 // pred_region
        _
      $region20: #{_lambda_.21} parent=11 // pred_fallthru
        _
    $region12: #{_lambda_.21} parent=5 // pred_fallthru
      _
    %p124 = scmp.lt.s32.totalorder %s9, 2
    // Predicated region
    $region21: #{_lambda_.21} parent=5 // pred_check
      %p125 = pneg %p124
    $region22: #{_lambda_.21} parent=5 // pred_check_branch
      %127 = sbr.rel (%p125) target = $region24
    $region23: #{_lambda_.21} parent=5 // pred_region
      // Predicated region
      $region25: #{_lambda_.21} parent=23 // pred_check
        %p128 = pneg %p29
      $region26: #{_lambda_.21} parent=23 // pred_check_branch
        %130 = sbr.rel (%p128) target = $region28
      $region27: #{_lambda_.21} parent=23 // pred_region
        %p131 = scmp.lt.s32.totalorder %s9, 1
        %s132 = scalar_select %p131, %s9, 1
        %s133 = smul.addr %s132, 4
        %s134 = smul.addr %s133, 4
        %s135 = scalar_lea.vmem %s0, %s134
      $region28: #{_lambda_.21} parent=23 // pred_fallthru
        _
    $region24: #{_lambda_.21} parent=5 // pred_fallthru
      _
    %p136 = scmp.le.s32.totalorder 1, %s9
    %p137 = scmp.lt.s32.totalorder %s9, 3
    %p138 = pnand %p136, %p137
    %p139 = pneg %p138
    // Predicated region
    $region29: #{_lambda_.21} parent=5 // pred_check
      _
    $region30: #{_lambda_.21} parent=5 // pred_check_branch
      %141 = sbr.rel (%p138) target = $region32
    $region31: #{_lambda_.21} parent=5 // pred_region
      %s142 = ssub.s32 %s9, 1
      %p143 = scmp.lt.s32.totalorder %s14, 1
      %s144 = scalar_select %p143, %s14, 1
      %s145 = smul.addr %s144, 4
      %s146 = smul.addr %s145, 4
      %s147 = scalar_lea.vmem %s0, %s146
      %p148 = pneg %p35
      %p149 = pneg %p32
      %p150 = pneg %p56
      %p151 = pneg %p53
      %p152 = pneg %p77
      %p153 = pneg %p74
      %p154 = pneg %p103
      %p155 = pneg %p100
      %p156 = scmp.lt.s32.totalorder %s14, 1
      %s157 = scalar_select %p156, %s14, 1
      %s158 = smul.addr %s157, 2
      %s159 = smul.addr %s158, 8
      %s160 = scalar_lea.vmem %s3, %s159
      %p161 = scmp.lt.s32.totalorder %s14, 1
      %s162 = scalar_select %p161, %s14, 1
      %s163 = smul.addr %s162, 4
      %s164 = smul.addr %s163, 4
      %s165 = scalar_lea.vmem %s0, %s164
      %p166 = scmp.lt.s32.totalorder %s14, 1
      %s167 = scalar_select %p166, %s14, 1
      %s168 = smul.addr %s167, 2
      %s169 = smul.addr %s168, 8
      %s170 = scalar_lea.vmem %s3, %s169
      %v171 = vld [vmem:[%s165] sm:$0xf]
      %v172 = vld [vmem:[%s165 + $0x4] sm:$0x1]
      %v173 = vld [vmem:[%s1] sm:$0xf]
      %v174 = vld [vmem:[%s1 + $0x4] sm:$0xf]
      %v175 = vld [vmem:[%s1 + $0x8] sm:$0xf]
      %v176 = vld [vmem:[%s1 + $0xc] sm:$0xf]
      %v177 = vld [vmem:[%s1 + $0x10] sm:$0xf]
      %v178 = vld [vmem:[%s1 + $0x14] sm:$0xf]
      %v179 = vld [vmem:[%s1 + $0x18] sm:$0xf]
      %v180 = vld [vmem:[%s1 + $0x1c] sm:$0xf]
      %v181 = vld [vmem:[%s1 + $0x20] sm:$0xf]
      %v182 = vld [vmem:[%s1 + $0x24] sm:$0xf]
      %v183 = vld [vmem:[%s1 + $0x28] sm:$0xf]
      %v184 = vld [vmem:[%s1 + $0x2c] sm:$0xf]
      %v185 = vld [vmem:[%s1 + $0x30] sm:$0xf]
      %v186 = vld [vmem:[%s1 + $0x34] sm:$0xf]
      %v187 = vld [vmem:[%s1 + $0x38] sm:$0xf]
      %v188 = vld [vmem:[%s1 + $0x3c] sm:$0xf]
      %v189 = vld [vmem:[%s165 + $0x4] sm:$0x3]
      %s190 = scalar_lea.vmem %s1, 64
      %v191 = vld [vmem:[%s190] sm:$0xf]
      %v192 = vld [vmem:[%s190 + $0x4] sm:$0xf]
      %v193 = vld [vmem:[%s190 + $0x8] sm:$0xf]
      %v194 = vld [vmem:[%s190 + $0xc] sm:$0xf]
      %v195 = vld [vmem:[%s190 + $0x10] sm:$0xf]
      %v196 = vld [vmem:[%s190 + $0x14] sm:$0xf]
      %v197 = vld [vmem:[%s190 + $0x18] sm:$0xf]
      %v198 = vld [vmem:[%s190 + $0x1c] sm:$0xf]
      %v199 = vld [vmem:[%s190 + $0x20] sm:$0xf]
      %v200 = vld [vmem:[%s190 + $0x24] sm:$0xf]
      %v201 = vld [vmem:[%s190 + $0x28] sm:$0xf]
      %v202 = vld [vmem:[%s190 + $0x2c] sm:$0xf]
      %v203 = vld [vmem:[%s190 + $0x30] sm:$0xf]
      %v204 = vld [vmem:[%s190 + $0x34] sm:$0xf]
      %v205 = vld [vmem:[%s190 + $0x38] sm:$0xf]
      %v206 = vld [vmem:[%s190 + $0x3c] sm:$0xf]
      %v209 = vunpack.c.l.b16 %v171
      %v210 = vunpack.c.l.b16 %v189
      %v211 = vpack.c.b16 %v210, %v209
      %v213 = vshrl.u32 %v211, 16
      %v215 = vshll.u32 %v211, 16
      %v217 = vrot.slane %v215, 1
      %v218 = vor.u32 %v213, %v217
      %v236 = vunpack.c.l.b16 %v191
      %v237 = vunpack.c.l.b16 %v192
      %v238 = vunpack.c.l.b16 %v193
      %v239 = vunpack.c.l.b16 %v194
      %v240 = vunpack.c.l.b16 %v195
      %v241 = vunpack.c.l.b16 %v196
      %v242 = vunpack.c.l.b16 %v197
      %v243 = vunpack.c.l.b16 %v198
      %v244 = vunpack.c.l.b16 %v199
      %v245 = vunpack.c.l.b16 %v200
      %v246 = vunpack.c.l.b16 %v201
      %v247 = vunpack.c.l.b16 %v202
      %v248 = vunpack.c.l.b16 %v203
      %v249 = vunpack.c.l.b16 %v204
      %v250 = vunpack.c.l.b16 %v205
      %v251 = vunpack.c.l.b16 %v206
      %v252 = vpack.c.b16 %v237, %v236
      %v253 = vpack.c.b16 %v239, %v238
      %v254 = vpack.c.b16 %v241, %v240
      %v255 = vpack.c.b16 %v243, %v242
      %v256 = vpack.c.b16 %v245, %v244
      %v257 = vpack.c.b16 %v247, %v246
      %v258 = vpack.c.b16 %v249, %v248
      %v259 = vpack.c.b16 %v251, %v250
      %268 = vmatpush.bf16.msra.mxu0 %v259
      %269 = vmatpush.bf16.msra.mxu0 %v258
      %270 = vmatpush.bf16.msra.mxu0 %v257
      %271 = vmatpush.bf16.msra.mxu0 %v256
      %272 = vmatpush.bf16.msra.mxu0 %v255
      %273 = vmatpush.bf16.msra.mxu0 %v254
      %274 = vmatpush.bf16.msra.mxu0 %v253
      %275 = vmatpush.bf16.msra.mxu0 %v252
      %276 = vmatmul.bf16.gmra.mxu0 %v218
      %v277 = vpop.f32.mrf.mxu0
      %v278 = vadd.f32 0.0, %v277
      %v279 = vpop.f32.mrf.mxu0
      %v280 = vadd.f32 0.0, %v279
      %281 = vdwg.mxu0
      %v283 = vunpack.c.l.b16 %v172
      %v284 = vpack.c.b16 %v283, %v209
      %v302 = vunpack.c.l.b16 %v173
      %v303 = vunpack.c.l.b16 %v174
      %v304 = vunpack.c.l.b16 %v175
      %v305 = vunpack.c.l.b16 %v176
      %v306 = vunpack.c.l.b16 %v177
      %v307 = vunpack.c.l.b16 %v178
      %v308 = vunpack.c.l.b16 %v179
      %v309 = vunpack.c.l.b16 %v180
      %v310 = vunpack.c.l.b16 %v181
      %v311 = vunpack.c.l.b16 %v182
      %v312 = vunpack.c.l.b16 %v183
      %v313 = vunpack.c.l.b16 %v184
      %v314 = vunpack.c.l.b16 %v185
      %v315 = vunpack.c.l.b16 %v186
      %v316 = vunpack.c.l.b16 %v187
      %v317 = vunpack.c.l.b16 %v188
      %v318 = vpack.c.b16 %v303, %v302
      %v319 = vpack.c.b16 %v305, %v304
      %v320 = vpack.c.b16 %v307, %v306
      %v321 = vpack.c.b16 %v309, %v308
      %v322 = vpack.c.b16 %v311, %v310
      %v323 = vpack.c.b16 %v313, %v312
      %v324 = vpack.c.b16 %v315, %v314
      %v325 = vpack.c.b16 %v317, %v316
      %334 = vmatpush.bf16.msra.mxu0 %v325
      %335 = vmatpush.bf16.msra.mxu0 %v324
      %336 = vmatpush.bf16.msra.mxu0 %v323
      %337 = vmatpush.bf16.msra.mxu0 %v322
      %338 = vmatpush.bf16.msra.mxu0 %v321
      %339 = vmatpush.bf16.msra.mxu0 %v320
      %340 = vmatpush.bf16.msra.mxu0 %v319
      %341 = vmatpush.bf16.msra.mxu0 %v318
      %342 = vmatmul.bf16.gmra.mxu0 %v284
      %v343 = vpop.f32.mrf.mxu0
      %v344 = vadd.f32 %v278, %v343
      %v345 = vpop.f32.mrf.mxu0
      %v346 = vadd.f32 %v280, %v345
      %347 = vdwg.mxu0
      %v348 = vld [vmem:[%s165] sm:$0xe]
      %s349 = scalar_lea.vmem %s1, 128
      %v350 = vld [vmem:[%s349] sm:$0xf]
      %v351 = vld [vmem:[%s349 + $0x4] sm:$0xf]
      %v352 = vld [vmem:[%s349 + $0x8] sm:$0xf]
      %v353 = vld [vmem:[%s349 + $0xc] sm:$0xf]
      %v354 = vld [vmem:[%s349 + $0x10] sm:$0xf]
      %v355 = vld [vmem:[%s349 + $0x14] sm:$0xf]
      %v356 = vld [vmem:[%s349 + $0x18] sm:$0xf]
      %v357 = vld [vmem:[%s349 + $0x1c] sm:$0xf]
      %v358 = vld [vmem:[%s349 + $0x20] sm:$0xf]
      %v359 = vld [vmem:[%s349 + $0x24] sm:$0xf]
      %v360 = vld [vmem:[%s349 + $0x28] sm:$0xf]
      %v361 = vld [vmem:[%s349 + $0x2c] sm:$0xf]
      %v362 = vld [vmem:[%s349 + $0x30] sm:$0xf]
      %v363 = vld [vmem:[%s349 + $0x34] sm:$0xf]
      %v364 = vld [vmem:[%s349 + $0x38] sm:$0xf]
      %v365 = vld [vmem:[%s349 + $0x3c] sm:$0xf]
      %v367 = vunpack.c.l.b16 %v348
      %v368 = vpack.c.b16 %v210, %v367
      %v369 = vrot.slane %v368, 1
      %v387 = vunpack.c.l.b16 %v350
      %v388 = vunpack.c.l.b16 %v351
      %v389 = vunpack.c.l.b16 %v352
      %v390 = vunpack.c.l.b16 %v353
      %v391 = vunpack.c.l.b16 %v354
      %v392 = vunpack.c.l.b16 %v355
      %v393 = vunpack.c.l.b16 %v356
      %v394 = vunpack.c.l.b16 %v357
      %v395 = vunpack.c.l.b16 %v358
      %v396 = vunpack.c.l.b16 %v359
      %v397 = vunpack.c.l.b16 %v360
      %v398 = vunpack.c.l.b16 %v361
      %v399 = vunpack.c.l.b16 %v362
      %v400 = vunpack.c.l.b16 %v363
      %v401 = vunpack.c.l.b16 %v364
      %v402 = vunpack.c.l.b16 %v365
      %v403 = vpack.c.b16 %v388, %v387
      %v404 = vpack.c.b16 %v390, %v389
      %v405 = vpack.c.b16 %v392, %v391
      %v406 = vpack.c.b16 %v394, %v393
      %v407 = vpack.c.b16 %v396, %v395
      %v408 = vpack.c.b16 %v398, %v397
      %v409 = vpack.c.b16 %v400, %v399
      %v410 = vpack.c.b16 %v402, %v401
      %419 = vmatpush.bf16.msra.mxu0 %v410
      %420 = vmatpush.bf16.msra.mxu0 %v409
      %421 = vmatpush.bf16.msra.mxu0 %v408
      %422 = vmatpush.bf16.msra.mxu0 %v407
      %423 = vmatpush.bf16.msra.mxu0 %v406
      %424 = vmatpush.bf16.msra.mxu0 %v405
      %425 = vmatpush.bf16.msra.mxu0 %v404
      %426 = vmatpush.bf16.msra.mxu0 %v403
      %427 = vmatmul.bf16.gmra.mxu0 %v369
      %v428 = vpop.f32.mrf.mxu0
      %v429 = vadd.f32 0.0, %v428
      %v430 = vpop.f32.mrf.mxu0
      %v431 = vadd.f32 0.0, %v430
      %432 = vdwg.mxu0
      %v433 = vadd.f32 %v344, %v429
      %v434 = vadd.f32 %v346, %v431
      %v435 = vld [vmem:[%s165 + $0x4] sm:$0x7]
      %s436 = scalar_lea.vmem %s1, 192
      %v437 = vld [vmem:[%s436] sm:$0xf]
      %v438 = vld [vmem:[%s436 + $0x4] sm:$0xf]
      %v439 = vld [vmem:[%s436 + $0x8] sm:$0xf]
      %v440 = vld [vmem:[%s436 + $0xc] sm:$0xf]
      %v441 = vld [vmem:[%s436 + $0x10] sm:$0xf]
      %v442 = vld [vmem:[%s436 + $0x14] sm:$0xf]
      %v443 = vld [vmem:[%s436 + $0x18] sm:$0xf]
      %v444 = vld [vmem:[%s436 + $0x1c] sm:$0xf]
      %v445 = vld [vmem:[%s436 + $0x20] sm:$0xf]
      %v446 = vld [vmem:[%s436 + $0x24] sm:$0xf]
      %v447 = vld [vmem:[%s436 + $0x28] sm:$0xf]
      %v448 = vld [vmem:[%s436 + $0x2c] sm:$0xf]
      %v449 = vld [vmem:[%s436 + $0x30] sm:$0xf]
      %v450 = vld [vmem:[%s436 + $0x34] sm:$0xf]
      %v451 = vld [vmem:[%s436 + $0x38] sm:$0xf]
      %v452 = vld [vmem:[%s436 + $0x3c] sm:$0xf]
      %v454 = vunpack.c.l.b16 %v435
      %v455 = vpack.c.b16 %v454, %v367
      %v457 = vshrl.u32 %v455, 16
      %v459 = vrot.slane %v457, 1
      %v460 = vshll.u32 %v455, 16
      %v462 = vrot.slane %v460, 2
      %v463 = vor.u32 %v459, %v462
      %v481 = vunpack.c.l.b16 %v437
      %v482 = vunpack.c.l.b16 %v438
      %v483 = vunpack.c.l.b16 %v439
      %v484 = vunpack.c.l.b16 %v440
      %v485 = vunpack.c.l.b16 %v441
      %v486 = vunpack.c.l.b16 %v442
      %v487 = vunpack.c.l.b16 %v443
      %v488 = vunpack.c.l.b16 %v444
      %v489 = vunpack.c.l.b16 %v445
      %v490 = vunpack.c.l.b16 %v446
      %v491 = vunpack.c.l.b16 %v447
      %v492 = vunpack.c.l.b16 %v448
      %v493 = vunpack.c.l.b16 %v449
      %v494 = vunpack.c.l.b16 %v450
      %v495 = vunpack.c.l.b16 %v451
      %v496 = vunpack.c.l.b16 %v452
      %v497 = vpack.c.b16 %v482, %v481
      %v498 = vpack.c.b16 %v484, %v483
      %v499 = vpack.c.b16 %v486, %v485
      %v500 = vpack.c.b16 %v488, %v487
      %v501 = vpack.c.b16 %v490, %v489
      %v502 = vpack.c.b16 %v492, %v491
      %v503 = vpack.c.b16 %v494, %v493
      %v504 = vpack.c.b16 %v496, %v495
      %513 = vmatpush.bf16.msra.mxu0 %v504
      %514 = vmatpush.bf16.msra.mxu0 %v503
      %515 = vmatpush.bf16.msra.mxu0 %v502
      %516 = vmatpush.bf16.msra.mxu0 %v501
      %517 = vmatpush.bf16.msra.mxu0 %v500
      %518 = vmatpush.bf16.msra.mxu0 %v499
      %519 = vmatpush.bf16.msra.mxu0 %v498
      %520 = vmatpush.bf16.msra.mxu0 %v497
      %521 = vmatmul.bf16.gmra.mxu0 %v463
      %v522 = vpop.f32.mrf.mxu0
      %v523 = vadd.f32 0.0, %v522
      %v524 = vpop.f32.mrf.mxu0
      %v525 = vadd.f32 0.0, %v524
      %526 = vdwg.mxu0
      %v527 = vadd.f32 %v433, %v523
      %v528 = vadd.f32 %v434, %v525
      %v529 = vld [vmem:[%s165] sm:$0xc]
      %v530 = vld [vmem:[%s165 + $0x4] sm:$0xf]
      %s531 = scalar_lea.vmem %s1, 256
      %v532 = vld [vmem:[%s531] sm:$0xf]
      %v533 = vld [vmem:[%s531 + $0x4] sm:$0xf]
      %v534 = vld [vmem:[%s531 + $0x8] sm:$0xf]
      %v535 = vld [vmem:[%s531 + $0xc] sm:$0xf]
      %v536 = vld [vmem:[%s531 + $0x10] sm:$0xf]
      %v537 = vld [vmem:[%s531 + $0x14] sm:$0xf]
      %v538 = vld [vmem:[%s531 + $0x18] sm:$0xf]
      %v539 = vld [vmem:[%s531 + $0x1c] sm:$0xf]
      %v540 = vld [vmem:[%s531 + $0x20] sm:$0xf]
      %v541 = vld [vmem:[%s531 + $0x24] sm:$0xf]
      %v542 = vld [vmem:[%s531 + $0x28] sm:$0xf]
      %v543 = vld [vmem:[%s531 + $0x2c] sm:$0xf]
      %v544 = vld [vmem:[%s531 + $0x30] sm:$0xf]
      %v545 = vld [vmem:[%s531 + $0x34] sm:$0xf]
      %v546 = vld [vmem:[%s531 + $0x38] sm:$0xf]
      %v547 = vld [vmem:[%s531 + $0x3c] sm:$0xf]
      %v550 = vunpack.c.l.b16 %v529
      %v551 = vunpack.c.l.b16 %v530
      %v552 = vpack.c.b16 %v551, %v550
      %v554 = vshrl.u32 %v552, 16
      %v556 = vrot.slane %v554, 2
      %v557 = vshll.u32 %v552, 16
      %v559 = vrot.slane %v557, 3
      %v560 = vor.u32 %v556, %v559
      %v578 = vunpack.c.l.b16 %v532
      %v579 = vunpack.c.l.b16 %v533
      %v580 = vunpack.c.l.b16 %v534
      %v581 = vunpack.c.l.b16 %v535
      %v582 = vunpack.c.l.b16 %v536
      %v583 = vunpack.c.l.b16 %v537
      %v584 = vunpack.c.l.b16 %v538
      %v585 = vunpack.c.l.b16 %v539
      %v586 = vunpack.c.l.b16 %v540
      %v587 = vunpack.c.l.b16 %v541
      %v588 = vunpack.c.l.b16 %v542
      %v589 = vunpack.c.l.b16 %v543
      %v590 = vunpack.c.l.b16 %v544
      %v591 = vunpack.c.l.b16 %v545
      %v592 = vunpack.c.l.b16 %v546
      %v593 = vunpack.c.l.b16 %v547
      %v594 = vpack.c.b16 %v579, %v578
      %v595 = vpack.c.b16 %v581, %v580
      %v596 = vpack.c.b16 %v583, %v582
      %v597 = vpack.c.b16 %v585, %v584
      %v598 = vpack.c.b16 %v587, %v586
      %v599 = vpack.c.b16 %v589, %v588
      %v600 = vpack.c.b16 %v591, %v590
      %v601 = vpack.c.b16 %v593, %v592
      %610 = vmatpush.bf16.msra.mxu0 %v601
      %611 = vmatpush.bf16.msra.mxu0 %v600
      %612 = vmatpush.bf16.msra.mxu0 %v599
      %613 = vmatpush.bf16.msra.mxu0 %v598
      %614 = vmatpush.bf16.msra.mxu0 %v597
      %615 = vmatpush.bf16.msra.mxu0 %v596
      %616 = vmatpush.bf16.msra.mxu0 %v595
      %617 = vmatpush.bf16.msra.mxu0 %v594
      %618 = vmatmul.bf16.gmra.mxu0 %v560
      %v619 = vpop.f32.mrf.mxu0
      %v620 = vadd.f32 0.0, %v619
      %v621 = vpop.f32.mrf.mxu0
      %v622 = vadd.f32 0.0, %v621
      %623 = vdwg.mxu0
      %v624 = vadd.f32 %v527, %v620
      %v625 = vadd.f32 %v528, %v622
      %v626 = vld [vmem:[%s165] sm:$0x8]
      %s627 = scalar_lea.vmem %s1, 320
      %v628 = vld [vmem:[%s627] sm:$0xf]
      %v629 = vld [vmem:[%s627 + $0x4] sm:$0xf]
      %v630 = vld [vmem:[%s627 + $0x8] sm:$0xf]
      %v631 = vld [vmem:[%s627 + $0xc] sm:$0xf]
      %v632 = vld [vmem:[%s627 + $0x10] sm:$0xf]
      %v633 = vld [vmem:[%s627 + $0x14] sm:$0xf]
      %v634 = vld [vmem:[%s627 + $0x18] sm:$0xf]
      %v635 = vld [vmem:[%s627 + $0x1c] sm:$0xf]
      %v636 = vld [vmem:[%s627 + $0x20] sm:$0xf]
      %v637 = vld [vmem:[%s627 + $0x24] sm:$0xf]
      %v638 = vld [vmem:[%s627 + $0x28] sm:$0xf]
      %v639 = vld [vmem:[%s627 + $0x2c] sm:$0xf]
      %v640 = vld [vmem:[%s627 + $0x30] sm:$0xf]
      %v641 = vld [vmem:[%s627 + $0x34] sm:$0xf]
      %v642 = vld [vmem:[%s627 + $0x38] sm:$0xf]
      %v643 = vld [vmem:[%s627 + $0x3c] sm:$0xf]
      %v645 = vunpack.c.l.b16 %v626
      %v646 = vpack.c.b16 %v551, %v645
      %v647 = vrot.slane %v646, 3
      %v665 = vunpack.c.l.b16 %v628
      %v666 = vunpack.c.l.b16 %v629
      %v667 = vunpack.c.l.b16 %v630
      %v668 = vunpack.c.l.b16 %v631
      %v669 = vunpack.c.l.b16 %v632
      %v670 = vunpack.c.l.b16 %v633
      %v671 = vunpack.c.l.b16 %v634
      %v672 = vunpack.c.l.b16 %v635
      %v673 = vunpack.c.l.b16 %v636
      %v674 = vunpack.c.l.b16 %v637
      %v675 = vunpack.c.l.b16 %v638
      %v676 = vunpack.c.l.b16 %v639
      %v677 = vunpack.c.l.b16 %v640
      %v678 = vunpack.c.l.b16 %v641
      %v679 = vunpack.c.l.b16 %v642
      %v680 = vunpack.c.l.b16 %v643
      %v681 = vpack.c.b16 %v666, %v665
      %v682 = vpack.c.b16 %v668, %v667
      %v683 = vpack.c.b16 %v670, %v669
      %v684 = vpack.c.b16 %v672, %v671
      %v685 = vpack.c.b16 %v674, %v673
      %v686 = vpack.c.b16 %v676, %v675
      %v687 = vpack.c.b16 %v678, %v677
      %v688 = vpack.c.b16 %v680, %v679
      %697 = vmatpush.bf16.msra.mxu0 %v688
      %698 = vmatpush.bf16.msra.mxu0 %v687
      %699 = vmatpush.bf16.msra.mxu0 %v686
      %700 = vmatpush.bf16.msra.mxu0 %v685
      %701 = vmatpush.bf16.msra.mxu0 %v684
      %702 = vmatpush.bf16.msra.mxu0 %v683
      %703 = vmatpush.bf16.msra.mxu0 %v682
      %704 = vmatpush.bf16.msra.mxu0 %v681
      %705 = vmatmul.bf16.gmra.mxu0 %v647
      %v706 = vpop.f32.mrf.mxu0
      %v707 = vadd.f32 0.0, %v706
      %v708 = vpop.f32.mrf.mxu0
      %v709 = vadd.f32 0.0, %v708
      %710 = vdwg.mxu0
      %v711 = vadd.f32 %v624, %v707
      %v712 = vadd.f32 %v625, %v709
      %v713 = vld [vmem:[%s165] sm:$0x8]
      %v714 = vld [vmem:[%s165 + $0x4] sm:$0xf]
      %v715 = vld [vmem:[%s165 + $0x8] sm:$0x1]
      %s716 = scalar_lea.vmem %s1, 384
      %v717 = vld [vmem:[%s716] sm:$0xf]
      %v718 = vld [vmem:[%s716 + $0x4] sm:$0xf]
      %v719 = vld [vmem:[%s716 + $0x8] sm:$0xf]
      %v720 = vld [vmem:[%s716 + $0xc] sm:$0xf]
      %v721 = vld [vmem:[%s716 + $0x10] sm:$0xf]
      %v722 = vld [vmem:[%s716 + $0x14] sm:$0xf]
      %v723 = vld [vmem:[%s716 + $0x18] sm:$0xf]
      %v724 = vld [vmem:[%s716 + $0x1c] sm:$0xf]
      %v725 = vld [vmem:[%s716 + $0x20] sm:$0xf]
      %v726 = vld [vmem:[%s716 + $0x24] sm:$0xf]
      %v727 = vld [vmem:[%s716 + $0x28] sm:$0xf]
      %v728 = vld [vmem:[%s716 + $0x2c] sm:$0xf]
      %v729 = vld [vmem:[%s716 + $0x30] sm:$0xf]
      %v730 = vld [vmem:[%s716 + $0x34] sm:$0xf]
      %v731 = vld [vmem:[%s716 + $0x38] sm:$0xf]
      %v732 = vld [vmem:[%s716 + $0x3c] sm:$0xf]
      %v736 = vunpack.c.l.b16 %v713
      %v737 = vunpack.c.l.b16 %v714
      %v738 = vunpack.c.l.b16 %v715
      %v739 = vpack.c.b16 %v737, %v736
      %v740 = vpack.c.b16 %v738, %v738
      %vm741 = vsmask.f32 4352
      %v743 = vshrl.u32 %v739, 16
      %v745 = vrot.slane %v743, 3
      %v746 = vshll.u32 %v739, 16
      %v748 = vrot.slane %v746, 4
      %v749 = vor.u32 %v745, %v748
      %v751 = vshll.u32 %v740, 16
      %v753 = vrot.slane %v751, 4
      %v754 = vsel %vm741, %v749, %v753
      %v772 = vunpack.c.l.b16 %v717
      %v773 = vunpack.c.l.b16 %v718
      %v774 = vunpack.c.l.b16 %v719
      %v775 = vunpack.c.l.b16 %v720
      %v776 = vunpack.c.l.b16 %v721
      %v777 = vunpack.c.l.b16 %v722
      %v778 = vunpack.c.l.b16 %v723
      %v779 = vunpack.c.l.b16 %v724
      %v780 = vunpack.c.l.b16 %v725
      %v781 = vunpack.c.l.b16 %v726
      %v782 = vunpack.c.l.b16 %v727
      %v783 = vunpack.c.l.b16 %v728
      %v784 = vunpack.c.l.b16 %v729
      %v785 = vunpack.c.l.b16 %v730
      %v786 = vunpack.c.l.b16 %v731
      %v787 = vunpack.c.l.b16 %v732
      %v788 = vpack.c.b16 %v773, %v772
      %v789 = vpack.c.b16 %v775, %v774
      %v790 = vpack.c.b16 %v777, %v776
      %v791 = vpack.c.b16 %v779, %v778
      %v792 = vpack.c.b16 %v781, %v780
      %v793 = vpack.c.b16 %v783, %v782
      %v794 = vpack.c.b16 %v785, %v784
      %v795 = vpack.c.b16 %v787, %v786
      %804 = vmatpush.bf16.msra.mxu0 %v795
      %805 = vmatpush.bf16.msra.mxu0 %v794
      %806 = vmatpush.bf16.msra.mxu0 %v793
      %807 = vmatpush.bf16.msra.mxu0 %v792
      %808 = vmatpush.bf16.msra.mxu0 %v791
      %809 = vmatpush.bf16.msra.mxu0 %v790
      %810 = vmatpush.bf16.msra.mxu0 %v789
      %811 = vmatpush.bf16.msra.mxu0 %v788
      %812 = vmatmul.bf16.gmra.mxu0 %v754
      %v813 = vpop.f32.mrf.mxu0
      %v814 = vadd.f32 0.0, %v813
      %v815 = vpop.f32.mrf.mxu0
      %v816 = vadd.f32 0.0, %v815
      %817 = vdwg.mxu0
      %v818 = vadd.f32 %v711, %v814
      %v819 = vadd.f32 %v712, %v816
      %s820 = scalar_lea.vmem %s1, 448
      %v821 = vld [vmem:[%s820] sm:$0xf]
      %v822 = vld [vmem:[%s820 + $0x4] sm:$0xf]
      %v823 = vld [vmem:[%s820 + $0x8] sm:$0xf]
      %v824 = vld [vmem:[%s820 + $0xc] sm:$0xf]
      %v825 = vld [vmem:[%s820 + $0x10] sm:$0xf]
      %v826 = vld [vmem:[%s820 + $0x14] sm:$0xf]
      %v827 = vld [vmem:[%s820 + $0x18] sm:$0xf]
      %v828 = vld [vmem:[%s820 + $0x1c] sm:$0xf]
      %v829 = vld [vmem:[%s820 + $0x20] sm:$0xf]
      %v830 = vld [vmem:[%s820 + $0x24] sm:$0xf]
      %v831 = vld [vmem:[%s820 + $0x28] sm:$0xf]
      %v832 = vld [vmem:[%s820 + $0x2c] sm:$0xf]
      %v833 = vld [vmem:[%s820 + $0x30] sm:$0xf]
      %v834 = vld [vmem:[%s820 + $0x34] sm:$0xf]
      %v835 = vld [vmem:[%s820 + $0x38] sm:$0xf]
      %v836 = vld [vmem:[%s820 + $0x3c] sm:$0xf]
      %v837 = vpack.c.b16 %v738, %v737
      %v855 = vunpack.c.l.b16 %v821
      %v856 = vunpack.c.l.b16 %v822
      %v857 = vunpack.c.l.b16 %v823
      %v858 = vunpack.c.l.b16 %v824
      %v859 = vunpack.c.l.b16 %v825
      %v860 = vunpack.c.l.b16 %v826
      %v861 = vunpack.c.l.b16 %v827
      %v862 = vunpack.c.l.b16 %v828
      %v863 = vunpack.c.l.b16 %v829
      %v864 = vunpack.c.l.b16 %v830
      %v865 = vunpack.c.l.b16 %v831
      %v866 = vunpack.c.l.b16 %v832
      %v867 = vunpack.c.l.b16 %v833
      %v868 = vunpack.c.l.b16 %v834
      %v869 = vunpack.c.l.b16 %v835
      %v870 = vunpack.c.l.b16 %v836
      %v871 = vpack.c.b16 %v856, %v855
      %v872 = vpack.c.b16 %v858, %v857
      %v873 = vpack.c.b16 %v860, %v859
      %v874 = vpack.c.b16 %v862, %v861
      %v875 = vpack.c.b16 %v864, %v863
      %v876 = vpack.c.b16 %v866, %v865
      %v877 = vpack.c.b16 %v868, %v867
      %v878 = vpack.c.b16 %v870, %v869
      %887 = vmatpush.bf16.msra.mxu0 %v878
      %888 = vmatpush.bf16.msra.mxu0 %v877
      %889 = vmatpush.bf16.msra.mxu0 %v876
      %890 = vmatpush.bf16.msra.mxu0 %v875
      %891 = vmatpush.bf16.msra.mxu0 %v874
      %892 = vmatpush.bf16.msra.mxu0 %v873
      %893 = vmatpush.bf16.msra.mxu0 %v872
      %894 = vmatpush.bf16.msra.mxu0 %v871
      %895 = vmatmul.bf16.gmra.mxu0 %v837
      %v896 = vpop.f32.mrf.mxu0
      %v897 = vadd.f32 0.0, %v896
      %v898 = vpop.f32.mrf.mxu0
      %v899 = vadd.f32 0.0, %v898
      %900 = vdwg.mxu0
      %v901 = vadd.f32 %v818, %v897
      %v902 = vadd.f32 %v819, %v899
      %v903 = vld [vmem:[%s165 + $0x4] sm:$0xe]
      %v904 = vld [vmem:[%s165 + $0x8] sm:$0x3]
      %s905 = scalar_lea.vmem %s1, 512
      %v906 = vld [vmem:[%s905] sm:$0xf]
      %v907 = vld [vmem:[%s905 + $0x4] sm:$0xf]
      %v908 = vld [vmem:[%s905 + $0x8] sm:$0xf]
      %v909 = vld [vmem:[%s905 + $0xc] sm:$0xf]
      %v910 = vld [vmem:[%s905 + $0x10] sm:$0xf]
      %v911 = vld [vmem:[%s905 + $0x14] sm:$0xf]
      %v912 = vld [vmem:[%s905 + $0x18] sm:$0xf]
      %v913 = vld [vmem:[%s905 + $0x1c] sm:$0xf]
      %v914 = vld [vmem:[%s905 + $0x20] sm:$0xf]
      %v915 = vld [vmem:[%s905 + $0x24] sm:$0xf]
      %v916 = vld [vmem:[%s905 + $0x28] sm:$0xf]
      %v917 = vld [vmem:[%s905 + $0x2c] sm:$0xf]
      %v918 = vld [vmem:[%s905 + $0x30] sm:$0xf]
      %v919 = vld [vmem:[%s905 + $0x34] sm:$0xf]
      %v920 = vld [vmem:[%s905 + $0x38] sm:$0xf]
      %v921 = vld [vmem:[%s905 + $0x3c] sm:$0xf]
      %v924 = vunpack.c.l.b16 %v903
      %v925 = vunpack.c.l.b16 %v904
      %v926 = vpack.c.b16 %v925, %v924
      %v927 = vrot.slane %v926, 1
      %v945 = vunpack.c.l.b16 %v906
      %v946 = vunpack.c.l.b16 %v907
      %v947 = vunpack.c.l.b16 %v908
      %v948 = vunpack.c.l.b16 %v909
      %v949 = vunpack.c.l.b16 %v910
      %v950 = vunpack.c.l.b16 %v911
      %v951 = vunpack.c.l.b16 %v912
      %v952 = vunpack.c.l.b16 %v913
      %v953 = vunpack.c.l.b16 %v914
      %v954 = vunpack.c.l.b16 %v915
      %v955 = vunpack.c.l.b16 %v916
      %v956 = vunpack.c.l.b16 %v917
      %v957 = vunpack.c.l.b16 %v918
      %v958 = vunpack.c.l.b16 %v919
      %v959 = vunpack.c.l.b16 %v920
      %v960 = vunpack.c.l.b16 %v921
      %v961 = vpack.c.b16 %v946, %v945
      %v962 = vpack.c.b16 %v948, %v947
      %v963 = vpack.c.b16 %v950, %v949
      %v964 = vpack.c.b16 %v952, %v951
      %v965 = vpack.c.b16 %v954, %v953
      %v966 = vpack.c.b16 %v956, %v955
      %v967 = vpack.c.b16 %v958, %v957
      %v968 = vpack.c.b16 %v960, %v959
      %977 = vmatpush.bf16.msra.mxu0 %v968
      %978 = vmatpush.bf16.msra.mxu0 %v967
      %979 = vmatpush.bf16.msra.mxu0 %v966
      %980 = vmatpush.bf16.msra.mxu0 %v965
      %981 = vmatpush.bf16.msra.mxu0 %v964
      %982 = vmatpush.bf16.msra.mxu0 %v963
      %983 = vmatpush.bf16.msra.mxu0 %v962
      %984 = vmatpush.bf16.msra.mxu0 %v961
      %985 = vmatmul.bf16.gmra.mxu0 %v927
      %v986 = vpop.f32.mrf.mxu0
      %v987 = vadd.f32 0.0, %v986
      %v988 = vpop.f32.mrf.mxu0
      %v989 = vadd.f32 0.0, %v988
      %990 = vdwg.mxu0
      %v991 = vadd.f32 %v901, %v987
      %v992 = vadd.f32 %v902, %v989
      %v993 = vld [vmem:[%s165 + $0x8] sm:$0x7]
      %s994 = scalar_lea.vmem %s1, 576
      %v995 = vld [vmem:[%s994] sm:$0xf]
      %v996 = vld [vmem:[%s994 + $0x4] sm:$0xf]
      %v997 = vld [vmem:[%s994 + $0x8] sm:$0xf]
      %v998 = vld [vmem:[%s994 + $0xc] sm:$0xf]
      %v999 = vld [vmem:[%s994 + $0x10] sm:$0xf]
      %v1000 = vld [vmem:[%s994 + $0x14] sm:$0xf]
      %v1001 = vld [vmem:[%s994 + $0x18] sm:$0xf]
      %v1002 = vld [vmem:[%s994 + $0x1c] sm:$0xf]
      %v1003 = vld [vmem:[%s994 + $0x20] sm:$0xf]
      %v1004 = vld [vmem:[%s994 + $0x24] sm:$0xf]
      %v1005 = vld [vmem:[%s994 + $0x28] sm:$0xf]
      %v1006 = vld [vmem:[%s994 + $0x2c] sm:$0xf]
      %v1007 = vld [vmem:[%s994 + $0x30] sm:$0xf]
      %v1008 = vld [vmem:[%s994 + $0x34] sm:$0xf]
      %v1009 = vld [vmem:[%s994 + $0x38] sm:$0xf]
      %v1010 = vld [vmem:[%s994 + $0x3c] sm:$0xf]
      %v1012 = vunpack.c.l.b16 %v993
      %v1013 = vpack.c.b16 %v1012, %v924
      %v1015 = vshrl.u32 %v1013, 16
      %v1017 = vrot.slane %v1015, 1
      %v1018 = vshll.u32 %v1013, 16
      %v1020 = vrot.slane %v1018, 2
      %v1021 = vor.u32 %v1017, %v1020
      %v1039 = vunpack.c.l.b16 %v995
      %v1040 = vunpack.c.l.b16 %v996
      %v1041 = vunpack.c.l.b16 %v997
      %v1042 = vunpack.c.l.b16 %v998
      %v1043 = vunpack.c.l.b16 %v999
      %v1044 = vunpack.c.l.b16 %v1000
      %v1045 = vunpack.c.l.b16 %v1001
      %v1046 = vunpack.c.l.b16 %v1002
      %v1047 = vunpack.c.l.b16 %v1003
      %v1048 = vunpack.c.l.b16 %v1004
      %v1049 = vunpack.c.l.b16 %v1005
      %v1050 = vunpack.c.l.b16 %v1006
      %v1051 = vunpack.c.l.b16 %v1007
      %v1052 = vunpack.c.l.b16 %v1008
      %v1053 = vunpack.c.l.b16 %v1009
      %v1054 = vunpack.c.l.b16 %v1010
      %v1055 = vpack.c.b16 %v1040, %v1039
      %v1056 = vpack.c.b16 %v1042, %v1041
      %v1057 = vpack.c.b16 %v1044, %v1043
      %v1058 = vpack.c.b16 %v1046, %v1045
      %v1059 = vpack.c.b16 %v1048, %v1047
      %v1060 = vpack.c.b16 %v1050, %v1049
      %v1061 = vpack.c.b16 %v1052, %v1051
      %v1062 = vpack.c.b16 %v1054, %v1053
      %1071 = vmatpush.bf16.msra.mxu0 %v1062
      %1072 = vmatpush.bf16.msra.mxu0 %v1061
      %1073 = vmatpush.bf16.msra.mxu0 %v1060
      %1074 = vmatpush.bf16.msra.mxu0 %v1059
      %1075 = vmatpush.bf16.msra.mxu0 %v1058
      %1076 = vmatpush.bf16.msra.mxu0 %v1057
      %1077 = vmatpush.bf16.msra.mxu0 %v1056
      %1078 = vmatpush.bf16.msra.mxu0 %v1055
      %1079 = vmatmul.bf16.gmra.mxu0 %v1021
      %v1080 = vpop.f32.mrf.mxu0
      %v1081 = vadd.f32 0.0, %v1080
      %v1082 = vpop.f32.mrf.mxu0
      %v1083 = vadd.f32 0.0, %v1082
      %1084 = vdwg.mxu0
      %v1085 = vadd.f32 %v991, %v1081
      %v1086 = vadd.f32 %v992, %v1083
      %v1087 = vld [vmem:[%s165 + $0x4] sm:$0xc]
      %s1088 = scalar_lea.vmem %s1, 640
      %v1089 = vld [vmem:[%s1088] sm:$0xf]
      %v1090 = vld [vmem:[%s1088 + $0x4] sm:$0xf]
      %v1091 = vld [vmem:[%s1088 + $0x8] sm:$0xf]
      %v1092 = vld [vmem:[%s1088 + $0xc] sm:$0xf]
      %v1093 = vld [vmem:[%s1088 + $0x10] sm:$0xf]
      %v1094 = vld [vmem:[%s1088 + $0x14] sm:$0xf]
      %v1095 = vld [vmem:[%s1088 + $0x18] sm:$0xf]
      %v1096 = vld [vmem:[%s1088 + $0x1c] sm:$0xf]
      %v1097 = vld [vmem:[%s1088 + $0x20] sm:$0xf]
      %v1098 = vld [vmem:[%s1088 + $0x24] sm:$0xf]
      %v1099 = vld [vmem:[%s1088 + $0x28] sm:$0xf]
      %v1100 = vld [vmem:[%s1088 + $0x2c] sm:$0xf]
      %v1101 = vld [vmem:[%s1088 + $0x30] sm:$0xf]
      %v1102 = vld [vmem:[%s1088 + $0x34] sm:$0xf]
      %v1103 = vld [vmem:[%s1088 + $0x38] sm:$0xf]
      %v1104 = vld [vmem:[%s1088 + $0x3c] sm:$0xf]
      %v1106 = vunpack.c.l.b16 %v1087
      %v1107 = vpack.c.b16 %v1012, %v1106
      %v1108 = vrot.slane %v1107, 2
      %v1126 = vunpack.c.l.b16 %v1089
      %v1127 = vunpack.c.l.b16 %v1090
      %v1128 = vunpack.c.l.b16 %v1091
      %v1129 = vunpack.c.l.b16 %v1092
      %v1130 = vunpack.c.l.b16 %v1093
      %v1131 = vunpack.c.l.b16 %v1094
      %v1132 = vunpack.c.l.b16 %v1095
      %v1133 = vunpack.c.l.b16 %v1096
      %v1134 = vunpack.c.l.b16 %v1097
      %v1135 = vunpack.c.l.b16 %v1098
      %v1136 = vunpack.c.l.b16 %v1099
      %v1137 = vunpack.c.l.b16 %v1100
      %v1138 = vunpack.c.l.b16 %v1101
      %v1139 = vunpack.c.l.b16 %v1102
      %v1140 = vunpack.c.l.b16 %v1103
      %v1141 = vunpack.c.l.b16 %v1104
      %v1142 = vpack.c.b16 %v1127, %v1126
      %v1143 = vpack.c.b16 %v1129, %v1128
      %v1144 = vpack.c.b16 %v1131, %v1130
      %v1145 = vpack.c.b16 %v1133, %v1132
      %v1146 = vpack.c.b16 %v1135, %v1134
      %v1147 = vpack.c.b16 %v1137, %v1136
      %v1148 = vpack.c.b16 %v1139, %v1138
      %v1149 = vpack.c.b16 %v1141, %v1140
      %1158 = vmatpush.bf16.msra.mxu0 %v1149
      %1159 = vmatpush.bf16.msra.mxu0 %v1148
      %1160 = vmatpush.bf16.msra.mxu0 %v1147
      %1161 = vmatpush.bf16.msra.mxu0 %v1146
      %1162 = vmatpush.bf16.msra.mxu0 %v1145
      %1163 = vmatpush.bf16.msra.mxu0 %v1144
      %1164 = vmatpush.bf16.msra.mxu0 %v1143
      %1165 = vmatpush.bf16.msra.mxu0 %v1142
      %1166 = vmatmul.bf16.gmra.mxu0 %v1108
      %v1167 = vpop.f32.mrf.mxu0
      %v1168 = vadd.f32 0.0, %v1167
      %v1169 = vpop.f32.mrf.mxu0
      %v1170 = vadd.f32 0.0, %v1169
      %1171 = vdwg.mxu0
      %v1172 = vadd.f32 %v1085, %v1168
      %v1173 = vadd.f32 %v1086, %v1170
      %v1174 = vld [vmem:[%s165 + $0x8] sm:$0xf]
      %s1175 = scalar_lea.vmem %s1, 704
      %v1176 = vld [vmem:[%s1175] sm:$0xf]
      %v1177 = vld [vmem:[%s1175 + $0x4] sm:$0xf]
      %v1178 = vld [vmem:[%s1175 + $0x8] sm:$0xf]
      %v1179 = vld [vmem:[%s1175 + $0xc] sm:$0xf]
      %v1180 = vld [vmem:[%s1175 + $0x10] sm:$0xf]
      %v1181 = vld [vmem:[%s1175 + $0x14] sm:$0xf]
      %v1182 = vld [vmem:[%s1175 + $0x18] sm:$0xf]
      %v1183 = vld [vmem:[%s1175 + $0x1c] sm:$0xf]
      %v1184 = vld [vmem:[%s1175 + $0x20] sm:$0xf]
      %v1185 = vld [vmem:[%s1175 + $0x24] sm:$0xf]
      %v1186 = vld [vmem:[%s1175 + $0x28] sm:$0xf]
      %v1187 = vld [vmem:[%s1175 + $0x2c] sm:$0xf]
      %v1188 = vld [vmem:[%s1175 + $0x30] sm:$0xf]
      %v1189 = vld [vmem:[%s1175 + $0x34] sm:$0xf]
      %v1190 = vld [vmem:[%s1175 + $0x38] sm:$0xf]
      %v1191 = vld [vmem:[%s1175 + $0x3c] sm:$0xf]
      %v1193 = vunpack.c.l.b16 %v1174
      %v1194 = vpack.c.b16 %v1193, %v1106
      %v1196 = vshrl.u32 %v1194, 16
      %v1198 = vrot.slane %v1196, 2
      %v1199 = vshll.u32 %v1194, 16
      %v1201 = vrot.slane %v1199, 3
      %v1202 = vor.u32 %v1198, %v1201
      %v1220 = vunpack.c.l.b16 %v1176
      %v1221 = vunpack.c.l.b16 %v1177
      %v1222 = vunpack.c.l.b16 %v1178
      %v1223 = vunpack.c.l.b16 %v1179
      %v1224 = vunpack.c.l.b16 %v1180
      %v1225 = vunpack.c.l.b16 %v1181
      %v1226 = vunpack.c.l.b16 %v1182
      %v1227 = vunpack.c.l.b16 %v1183
      %v1228 = vunpack.c.l.b16 %v1184
      %v1229 = vunpack.c.l.b16 %v1185
      %v1230 = vunpack.c.l.b16 %v1186
      %v1231 = vunpack.c.l.b16 %v1187
      %v1232 = vunpack.c.l.b16 %v1188
      %v1233 = vunpack.c.l.b16 %v1189
      %v1234 = vunpack.c.l.b16 %v1190
      %v1235 = vunpack.c.l.b16 %v1191
      %v1236 = vpack.c.b16 %v1221, %v1220
      %v1237 = vpack.c.b16 %v1223, %v1222
      %v1238 = vpack.c.b16 %v1225, %v1224
      %v1239 = vpack.c.b16 %v1227, %v1226
      %v1240 = vpack.c.b16 %v1229, %v1228
      %v1241 = vpack.c.b16 %v1231, %v1230
      %v1242 = vpack.c.b16 %v1233, %v1232
      %v1243 = vpack.c.b16 %v1235, %v1234
      %1252 = vmatpush.bf16.msra.mxu0 %v1243
      %1253 = vmatpush.bf16.msra.mxu0 %v1242
      %1254 = vmatpush.bf16.msra.mxu0 %v1241
      %1255 = vmatpush.bf16.msra.mxu0 %v1240
      %1256 = vmatpush.bf16.msra.mxu0 %v1239
      %1257 = vmatpush.bf16.msra.mxu0 %v1238
      %1258 = vmatpush.bf16.msra.mxu0 %v1237
      %1259 = vmatpush.bf16.msra.mxu0 %v1236
      %1260 = vmatmul.bf16.gmra.mxu0 %v1202
      %v1261 = vpop.f32.mrf.mxu0
      %v1262 = vadd.f32 0.0, %v1261
      %v1263 = vpop.f32.mrf.mxu0
      %v1264 = vadd.f32 0.0, %v1263
      %1265 = vdwg.mxu0
      %v1266 = vadd.f32 %v1172, %v1262
      %v1267 = vadd.f32 %v1173, %v1264
      %v1268 = vld [vmem:[%s165 + $0x4] sm:$0x8]
      %v1269 = vld [vmem:[%s165 + $0x8] sm:$0xf]
      %v1270 = vld [vmem:[%s165 + $0xc] sm:$0x1]
      %s1271 = scalar_lea.vmem %s1, 768
      %v1272 = vld [vmem:[%s1271] sm:$0xf]
      %v1273 = vld [vmem:[%s1271 + $0x4] sm:$0xf]
      %v1274 = vld [vmem:[%s1271 + $0x8] sm:$0xf]
      %v1275 = vld [vmem:[%s1271 + $0xc] sm:$0xf]
      %v1276 = vld [vmem:[%s1271 + $0x10] sm:$0xf]
      %v1277 = vld [vmem:[%s1271 + $0x14] sm:$0xf]
      %v1278 = vld [vmem:[%s1271 + $0x18] sm:$0xf]
      %v1279 = vld [vmem:[%s1271 + $0x1c] sm:$0xf]
      %v1280 = vld [vmem:[%s1271 + $0x20] sm:$0xf]
      %v1281 = vld [vmem:[%s1271 + $0x24] sm:$0xf]
      %v1282 = vld [vmem:[%s1271 + $0x28] sm:$0xf]
      %v1283 = vld [vmem:[%s1271 + $0x2c] sm:$0xf]
      %v1284 = vld [vmem:[%s1271 + $0x30] sm:$0xf]
      %v1285 = vld [vmem:[%s1271 + $0x34] sm:$0xf]
      %v1286 = vld [vmem:[%s1271 + $0x38] sm:$0xf]
      %v1287 = vld [vmem:[%s1271 + $0x3c] sm:$0xf]
      %v1291 = vunpack.c.l.b16 %v1268
      %v1292 = vunpack.c.l.b16 %v1269
      %v1293 = vunpack.c.l.b16 %v1270
      %v1294 = vpack.c.b16 %v1292, %v1291
      %v1295 = vpack.c.b16 %v1293, %v1293
      %v1297 = vshrl.u32 %v1294, 16
      %v1299 = vrot.slane %v1297, 3
      %v1300 = vshll.u32 %v1294, 16
      %v1302 = vrot.slane %v1300, 4
      %v1303 = vor.u32 %v1299, %v1302
      %v1305 = vshll.u32 %v1295, 16
      %v1307 = vrot.slane %v1305, 4
      %v1308 = vsel %vm741, %v1303, %v1307
      %v1326 = vunpack.c.l.b16 %v1272
      %v1327 = vunpack.c.l.b16 %v1273
      %v1328 = vunpack.c.l.b16 %v1274
      %v1329 = vunpack.c.l.b16 %v1275
      %v1330 = vunpack.c.l.b16 %v1276
      %v1331 = vunpack.c.l.b16 %v1277
      %v1332 = vunpack.c.l.b16 %v1278
      %v1333 = vunpack.c.l.b16 %v1279
      %v1334 = vunpack.c.l.b16 %v1280
      %v1335 = vunpack.c.l.b16 %v1281
      %v1336 = vunpack.c.l.b16 %v1282
      %v1337 = vunpack.c.l.b16 %v1283
      %v1338 = vunpack.c.l.b16 %v1284
      %v1339 = vunpack.c.l.b16 %v1285
      %v1340 = vunpack.c.l.b16 %v1286
      %v1341 = vunpack.c.l.b16 %v1287
      %v1342 = vpack.c.b16 %v1327, %v1326
      %v1343 = vpack.c.b16 %v1329, %v1328
      %v1344 = vpack.c.b16 %v1331, %v1330
      %v1345 = vpack.c.b16 %v1333, %v1332
      %v1346 = vpack.c.b16 %v1335, %v1334
      %v1347 = vpack.c.b16 %v1337, %v1336
      %v1348 = vpack.c.b16 %v1339, %v1338
      %v1349 = vpack.c.b16 %v1341, %v1340
      %1358 = vmatpush.bf16.msra.mxu0 %v1349
      %1359 = vmatpush.bf16.msra.mxu0 %v1348
      %1360 = vmatpush.bf16.msra.mxu0 %v1347
      %1361 = vmatpush.bf16.msra.mxu0 %v1346
      %1362 = vmatpush.bf16.msra.mxu0 %v1345
      %1363 = vmatpush.bf16.msra.mxu0 %v1344
      %1364 = vmatpush.bf16.msra.mxu0 %v1343
      %1365 = vmatpush.bf16.msra.mxu0 %v1342
      %1366 = vmatmul.bf16.gmra.mxu0 %v1308
      %v1367 = vpop.f32.mrf.mxu0
      %v1368 = vadd.f32 0.0, %v1367
      %v1369 = vpop.f32.mrf.mxu0
      %v1370 = vadd.f32 0.0, %v1369
      %1371 = vdwg.mxu0
      %v1372 = vadd.f32 %v1266, %v1368
      %v1373 = vadd.f32 %v1267, %v1370
      %s1374 = scalar_lea.vmem %s1, 832
      %v1375 = vld [vmem:[%s1374] sm:$0xf]
      %v1376 = vld [vmem:[%s1374 + $0x4] sm:$0xf]
      %v1377 = vld [vmem:[%s1374 + $0x8] sm:$0xf]
      %v1378 = vld [vmem:[%s1374 + $0xc] sm:$0xf]
      %v1379 = vld [vmem:[%s1374 + $0x10] sm:$0xf]
      %v1380 = vld [vmem:[%s1374 + $0x14] sm:$0xf]
      %v1381 = vld [vmem:[%s1374 + $0x18] sm:$0xf]
      %v1382 = vld [vmem:[%s1374 + $0x1c] sm:$0xf]
      %v1383 = vld [vmem:[%s1374 + $0x20] sm:$0xf]
      %v1384 = vld [vmem:[%s1374 + $0x24] sm:$0xf]
      %v1385 = vld [vmem:[%s1374 + $0x28] sm:$0xf]
      %v1386 = vld [vmem:[%s1374 + $0x2c] sm:$0xf]
      %v1387 = vld [vmem:[%s1374 + $0x30] sm:$0xf]
      %v1388 = vld [vmem:[%s1374 + $0x34] sm:$0xf]
      %v1389 = vld [vmem:[%s1374 + $0x38] sm:$0xf]
      %v1390 = vld [vmem:[%s1374 + $0x3c] sm:$0xf]
      %v1391 = vpack.c.b16 %v1293, %v1292
      %v1409 = vunpack.c.l.b16 %v1375
      %v1410 = vunpack.c.l.b16 %v1376
      %v1411 = vunpack.c.l.b16 %v1377
      %v1412 = vunpack.c.l.b16 %v1378
      %v1413 = vunpack.c.l.b16 %v1379
      %v1414 = vunpack.c.l.b16 %v1380
      %v1415 = vunpack.c.l.b16 %v1381
      %v1416 = vunpack.c.l.b16 %v1382
      %v1417 = vunpack.c.l.b16 %v1383
      %v1418 = vunpack.c.l.b16 %v1384
      %v1419 = vunpack.c.l.b16 %v1385
      %v1420 = vunpack.c.l.b16 %v1386
      %v1421 = vunpack.c.l.b16 %v1387
      %v1422 = vunpack.c.l.b16 %v1388
      %v1423 = vunpack.c.l.b16 %v1389
      %v1424 = vunpack.c.l.b16 %v1390
      %v1425 = vpack.c.b16 %v1410, %v1409
      %v1426 = vpack.c.b16 %v1412, %v1411
      %v1427 = vpack.c.b16 %v1414, %v1413
      %v1428 = vpack.c.b16 %v1416, %v1415
      %v1429 = vpack.c.b16 %v1418, %v1417
      %v1430 = vpack.c.b16 %v1420, %v1419
      %v1431 = vpack.c.b16 %v1422, %v1421
      %v1432 = vpack.c.b16 %v1424, %v1423
      %1441 = vmatpush.bf16.msra.mxu0 %v1432
      %1442 = vmatpush.bf16.msra.mxu0 %v1431
      %1443 = vmatpush.bf16.msra.mxu0 %v1430
      %1444 = vmatpush.bf16.msra.mxu0 %v1429
      %1445 = vmatpush.bf16.msra.mxu0 %v1428
      %1446 = vmatpush.bf16.msra.mxu0 %v1427
      %1447 = vmatpush.bf16.msra.mxu0 %v1426
      %1448 = vmatpush.bf16.msra.mxu0 %v1425
      %1449 = vmatmul.bf16.gmra.mxu0 %v1391
      %v1450 = vpop.f32.mrf.mxu0
      %v1451 = vadd.f32 0.0, %v1450
      %v1452 = vpop.f32.mrf.mxu0
      %v1453 = vadd.f32 0.0, %v1452
      %1454 = vdwg.mxu0
      %v1455 = vadd.f32 %v1372, %v1451
      %v1456 = vadd.f32 %v1373, %v1453
      %v1457 = vld [vmem:[%s165 + $0xc] sm:$0x3]
      %s1458 = scalar_lea.vmem %s1, 896
      %v1459 = vld [vmem:[%s1458] sm:$0xf]
      %v1460 = vld [vmem:[%s1458 + $0x4] sm:$0xf]
      %v1461 = vld [vmem:[%s1458 + $0x8] sm:$0xf]
      %v1462 = vld [vmem:[%s1458 + $0xc] sm:$0xf]
      %v1463 = vld [vmem:[%s1458 + $0x10] sm:$0xf]
      %v1464 = vld [vmem:[%s1458 + $0x14] sm:$0xf]
      %v1465 = vld [vmem:[%s1458 + $0x18] sm:$0xf]
      %v1466 = vld [vmem:[%s1458 + $0x1c] sm:$0xf]
      %v1467 = vld [vmem:[%s1458 + $0x20] sm:$0xf]
      %v1468 = vld [vmem:[%s1458 + $0x24] sm:$0xf]
      %v1469 = vld [vmem:[%s1458 + $0x28] sm:$0xf]
      %v1470 = vld [vmem:[%s1458 + $0x2c] sm:$0xf]
      %v1471 = vld [vmem:[%s1458 + $0x30] sm:$0xf]
      %v1472 = vld [vmem:[%s1458 + $0x34] sm:$0xf]
      %v1473 = vld [vmem:[%s1458 + $0x38] sm:$0xf]
      %v1474 = vld [vmem:[%s1458 + $0x3c] sm:$0xf]
      %v1476 = vunpack.c.l.b16 %v1457
      %v1477 = vpack.c.b16 %v1476, %v1292
      %v1479 = vshrl.u32 %v1477, 16
      %v1481 = vshll.u32 %v1477, 16
      %v1483 = vrot.slane %v1481, 1
      %v1484 = vor.u32 %v1479, %v1483
      %v1502 = vunpack.c.l.b16 %v1459
      %v1503 = vunpack.c.l.b16 %v1460
      %v1504 = vunpack.c.l.b16 %v1461
      %v1505 = vunpack.c.l.b16 %v1462
      %v1506 = vunpack.c.l.b16 %v1463
      %v1507 = vunpack.c.l.b16 %v1464
      %v1508 = vunpack.c.l.b16 %v1465
      %v1509 = vunpack.c.l.b16 %v1466
      %v1510 = vunpack.c.l.b16 %v1467
      %v1511 = vunpack.c.l.b16 %v1468
      %v1512 = vunpack.c.l.b16 %v1469
      %v1513 = vunpack.c.l.b16 %v1470
      %v1514 = vunpack.c.l.b16 %v1471
      %v1515 = vunpack.c.l.b16 %v1472
      %v1516 = vunpack.c.l.b16 %v1473
      %v1517 = vunpack.c.l.b16 %v1474
      %v1518 = vpack.c.b16 %v1503, %v1502
      %v1519 = vpack.c.b16 %v1505, %v1504
      %v1520 = vpack.c.b16 %v1507, %v1506
      %v1521 = vpack.c.b16 %v1509, %v1508
      %v1522 = vpack.c.b16 %v1511, %v1510
      %v1523 = vpack.c.b16 %v1513, %v1512
      %v1524 = vpack.c.b16 %v1515, %v1514
      %v1525 = vpack.c.b16 %v1517, %v1516
      %1534 = vmatpush.bf16.msra.mxu0 %v1525
      %1535 = vmatpush.bf16.msra.mxu0 %v1524
      %1536 = vmatpush.bf16.msra.mxu0 %v1523
      %1537 = vmatpush.bf16.msra.mxu0 %v1522
      %1538 = vmatpush.bf16.msra.mxu0 %v1521
      %1539 = vmatpush.bf16.msra.mxu0 %v1520
      %1540 = vmatpush.bf16.msra.mxu0 %v1519
      %1541 = vmatpush.bf16.msra.mxu0 %v1518
      %1542 = vmatmul.bf16.gmra.mxu0 %v1484
      %v1543 = vpop.f32.mrf.mxu0
      %v1544 = vadd.f32 0.0, %v1543
      %v1545 = vpop.f32.mrf.mxu0
      %v1546 = vadd.f32 0.0, %v1545
      %1547 = vdwg.mxu0
      %v1548 = vadd.f32 %v1455, %v1544
      %v1549 = vadd.f32 %v1456, %v1546
      %v1550 = vld [vmem:[%s165 + $0x8] sm:$0xe]
      %s1551 = scalar_lea.vmem %s1, 960
      %v1552 = vld [vmem:[%s1551] sm:$0xf]
      %v1553 = vld [vmem:[%s1551 + $0x4] sm:$0xf]
      %v1554 = vld [vmem:[%s1551 + $0x8] sm:$0xf]
      %v1555 = vld [vmem:[%s1551 + $0xc] sm:$0xf]
      %v1556 = vld [vmem:[%s1551 + $0x10] sm:$0xf]
      %v1557 = vld [vmem:[%s1551 + $0x14] sm:$0xf]
      %v1558 = vld [vmem:[%s1551 + $0x18] sm:$0xf]
      %v1559 = vld [vmem:[%s1551 + $0x1c] sm:$0xf]
      %v1560 = vld [vmem:[%s1551 + $0x20] sm:$0xf]
      %v1561 = vld [vmem:[%s1551 + $0x24] sm:$0xf]
      %v1562 = vld [vmem:[%s1551 + $0x28] sm:$0xf]
      %v1563 = vld [vmem:[%s1551 + $0x2c] sm:$0xf]
      %v1564 = vld [vmem:[%s1551 + $0x30] sm:$0xf]
      %v1565 = vld [vmem:[%s1551 + $0x34] sm:$0xf]
      %v1566 = vld [vmem:[%s1551 + $0x38] sm:$0xf]
      %v1567 = vld [vmem:[%s1551 + $0x3c] sm:$0xf]
      %v1569 = vunpack.c.l.b16 %v1550
      %v1570 = vpack.c.b16 %v1476, %v1569
      %v1571 = vrot.slane %v1570, 1
      %v1589 = vunpack.c.l.b16 %v1552
      %v1590 = vunpack.c.l.b16 %v1553
      %v1591 = vunpack.c.l.b16 %v1554
      %v1592 = vunpack.c.l.b16 %v1555
      %v1593 = vunpack.c.l.b16 %v1556
      %v1594 = vunpack.c.l.b16 %v1557
      %v1595 = vunpack.c.l.b16 %v1558
      %v1596 = vunpack.c.l.b16 %v1559
      %v1597 = vunpack.c.l.b16 %v1560
      %v1598 = vunpack.c.l.b16 %v1561
      %v1599 = vunpack.c.l.b16 %v1562
      %v1600 = vunpack.c.l.b16 %v1563
      %v1601 = vunpack.c.l.b16 %v1564
      %v1602 = vunpack.c.l.b16 %v1565
      %v1603 = vunpack.c.l.b16 %v1566
      %v1604 = vunpack.c.l.b16 %v1567
      %v1605 = vpack.c.b16 %v1590, %v1589
      %v1606 = vpack.c.b16 %v1592, %v1591
      %v1607 = vpack.c.b16 %v1594, %v1593
      %v1608 = vpack.c.b16 %v1596, %v1595
      %v1609 = vpack.c.b16 %v1598, %v1597
      %v1610 = vpack.c.b16 %v1600, %v1599
      %v1611 = vpack.c.b16 %v1602, %v1601
      %v1612 = vpack.c.b16 %v1604, %v1603
      %1621 = vmatpush.bf16.msra.mxu0 %v1612
      %1622 = vmatpush.bf16.msra.mxu0 %v1611
      %1623 = vmatpush.bf16.msra.mxu0 %v1610
      %1624 = vmatpush.bf16.msra.mxu0 %v1609
      %1625 = vmatpush.bf16.msra.mxu0 %v1608
      %1626 = vmatpush.bf16.msra.mxu0 %v1607
      %1627 = vmatpush.bf16.msra.mxu0 %v1606
      %1628 = vmatpush.bf16.msra.mxu0 %v1605
      %1629 = vmatmul.bf16.gmra.mxu0 %v1571
      %v1630 = vpop.f32.mrf.mxu0
      %v1631 = vadd.f32 0.0, %v1630
      %v1632 = vpop.f32.mrf.mxu0
      %v1633 = vadd.f32 0.0, %v1632
      %1634 = vdwg.mxu0
      %v1635 = vadd.f32 %v1548, %v1631
      %v1636 = vadd.f32 %v1549, %v1633
      %v1637 = vld [vmem:[%s2] sm:$0x1]
      %v1639 = vperm.slane %v1637, 0
      %v1641 = vadd.f32 %v1635, %v1639
      %v1642 = vadd.f32 %v1636, %v1639
      %1643 = vst [vmem:[%s170] sm:$0xff] %v1641
      %1644 = vst [vmem:[%s170 + $0x8] sm:$0x3] %v1642
      %p1645 = scmp.lt.s32.totalorder %s14, 1
      %s1646 = scalar_select %p1645, %s14, 1
      %s1647 = smul.addr %s1646, 2
      %s1648 = smul.addr %s1647, 8
      %s1649 = scalar_lea.vmem %s3, %s1648
      // Predicated region
      $region33: #{_lambda_.21} parent=31 // pred_check
        %p1650 = pneg %p100
      $region34: #{_lambda_.21} parent=31 // pred_check_branch
        %1652 = sbr.rel (%p1650) target = $region36
      $region35: #{_lambda_.21} parent=31 // pred_region
        _
      $region36: #{_lambda_.21} parent=31 // pred_fallthru
        _
    $region32: #{_lambda_.21} parent=5 // pred_fallthru
      _
    %p1653 = scmp.le.s32.totalorder 2, %s9
    // Predicated region
    $region37: #{_lambda_.21} parent=5 // pred_check
      %p1654 = pneg %p1653
    $region38: #{_lambda_.21} parent=5 // pred_check_branch
      %1656 = sbr.rel (%p1654) target = $region40
    $region39: #{_lambda_.21} parent=5 // pred_region
      %s1657 = ssub.s32 %s9, 2
      // Predicated region
      $region41: #{_lambda_.21} parent=39 // pred_check
        %p1658 = pneg %p106
      $region42: #{_lambda_.21} parent=39 // pred_check_branch
        %1660 = sbr.rel (%p1658) target = $region44
      $region43: #{_lambda_.21} parent=39 // pred_region
        %p1661 = scmp.lt.s32.totalorder %s15, 1
        %s1662 = scalar_select %p1661, %s15, 1
        %s1663 = smul.addr %s1662, 2
        %s1664 = smul.addr %s1663, 8
        %s1665 = scalar_lea.vmem %s3, %s1664
      $region44: #{_lambda_.21} parent=39 // pred_fallthru
        _
    $region40: #{_lambda_.21} parent=5 // pred_fallthru
      _
  $region6: #{_lambda_.21} parent=0 // loop_footer
    %s13 = sadd.s32 1, %s9
  $region7: #{_lambda_.21} parent=0 // loop_footer_branch
    %8 = sbr.rel target = $region3
  $region8: #{_lambda_.21} parent=0 // loop_exit
    _

</llo_original>
